<compile_context>
chip_gen: v7x
topology: tpu7x:2x2x1
jax: 0.10.0
libtpu: 0.0.40
codegen_flags: <defaults>
</compile_context>

<pallas_src>
import jax
import jax.numpy as jnp
from jax.experimental import pallas as pl
from jax.experimental.pallas import tpu as pltpu

# ----------------------------- configuration (small) ------------------------------
B = 2
NUM_LON, NUM_LAT = 8, 4
N_GRID = NUM_LON * NUM_LAT          # 32 grid nodes
N_MESH = 16                         # mesh nodes
IN_F = 4                            # input_features_dim (two prev timesteps concat)
OUT_F = 3                           # output_features_dim
LATENT = 32                         # hidden_dims[-1]
HID = 32                            # hidden_dims[0]
NUM_BLOCKS = 2                      # transformer blocks (16 in the real model)
NUM_HEADS = 4
HEAD_DIM = LATENT // NUM_HEADS
NOISE_FREQS = 32
NOISE_BASE_PERIOD = 16.0
NOISE_EMB = 16
GRID_STATIC = 3                     # static grid-node features
MESH_STATIC = 3                     # static mesh-node features
EDGE_ATTR = 4                       # raw edge-attribute dim
E_G2M = 64                          # g2m edges per batch element
E_M2G = 64                          # m2g edges per batch element
SCALE_FACTOR = 1.0
SIGMA_DATA = 1.0
W_DTYPE = jnp.bfloat16              # MXU operand dtype (accumulation stays f32)


# --------------------------- in-kernel math helpers (traced) ----------------------
def _mlp_body(x, w1, b1, w2, b2, g=None, be=None):
    """Linear -> SiLU -> Linear [-> LayerNorm].  Weights bf16, math/accumulation f32."""
    h = jnp.dot(x.astype(jnp.bfloat16), w1, preferred_element_type=jnp.float32) + b1
    h = h * jax.nn.sigmoid(h)                                    # SiLU (f32)
    y = jnp.dot(h.astype(jnp.bfloat16), w2, preferred_element_type=jnp.float32) + b2
    if g is not None:
        mu = jnp.mean(y, axis=-1, keepdims=True)
        var = jnp.mean(jnp.square(y - mu), axis=-1, keepdims=True)
        y = (y - mu) * jax.lax.rsqrt(var + 1e-5) * g + be
    return y


def _ln(v):
    mu = jnp.mean(v, axis=-1, keepdims=True)
    var = jnp.mean(jnp.square(v - mu), axis=-1, keepdims=True)
    return (v - mu) * jax.lax.rsqrt(var + 1e-5)


# ------------------------- merged multi-MLP pallas_call ---------------------------
def fused_mlps(groups):
    """Run several independent Linear->SiLU->Linear[->LayerNorm] MLPs in ONE pallas_call.

    groups: list of (x, params) with params = (w1, b1, w2, b2[, gain, bias]);
    LayerNorm is applied iff 6 params are given.  All inputs/weights are whole
    VMEM-resident blocks (no grid): one launch instead of one per MLP.
    """
    sizes = [len(p) for _, p in groups]
    flat = []
    for x, p in groups:
        flat.append(x)
        flat.extend(p)
    out_shape = tuple(jax.ShapeDtypeStruct((x.shape[0], p[2].shape[1]), jnp.float32)
                      for x, p in groups)
    n_in = len(flat)

    def kernel(*refs):
        outs = refs[n_in:]
        pos = 0
        for i, k in enumerate(sizes):
            grp = refs[pos:pos + 1 + k]
            pos += 1 + k
            x = grp[0][...]
            pv = [r[...] for r in grp[1:]]
            outs[i][...] = _mlp_body(x, *pv)

    res = pl.pallas_call(kernel, out_shape=out_shape)(*flat)
    return list(res)


# -------------------- fused GNN-node-update ("finalize") kernels ------------------
def _enc_finalize_kernel(mesh_ref, agg_ref, grid_ref,
                         nw1, nb1, nw2, nb2, ng, nbe,
                         gw1, gb1, gw2, gb2, gg, gbe,
                         mesh_out, grid_out):
    """node-MLP + residual for mesh nodes; grid-update MLP + residual for grid nodes."""
    mesh = mesh_ref[...]
    n_in = jnp.concatenate([mesh, agg_ref[...]], axis=-1)
    mp = _mlp_body(n_in, nw1[...], nb1[...], nw2[...], nb2[...], ng[...], nbe[...])
    mesh_out[...] = mesh + SCALE_FACTOR * mp
    grid = grid_ref[...]
    upd = _mlp_body(grid, gw1[...], gb1[...], gw2[...], gb2[...], gg[...], gbe[...])
    grid_out[...] = grid + upd


def encoder_finalize(mesh_emb, agg, grid_emb, node_params, grid_update_params):
    return pl.pallas_call(
        _enc_finalize_kernel,
        out_shape=(jax.ShapeDtypeStruct(mesh_emb.shape, jnp.float32),
                   jax.ShapeDtypeStruct(grid_emb.shape, jnp.float32)),
    )(mesh_emb, agg, grid_emb, *node_params, *grid_update_params)


def _dec_finalize_kernel(grid_ref, agg_ref,
                         nw1, nb1, nw2, nb2, ng, nbe,
                         ow1, ob1, ow2, ob2,
                         out_ref):
    """node-MLP + residual, then output MLP (Linear -> SiLU -> Linear, no LN)."""
    grid = grid_ref[...]
    n_in = jnp.concatenate([grid, agg_ref[...]], axis=-1)
    upd = grid + _mlp_body(n_in, nw1[...], nb1[...], nw2[...], nb2[...], ng[...], nbe[...])
    # TODO(synk): OUT_F=3 output is a masked (3/128-lane) store; padding to 128 lanes is
    # not worth it at toy size but should be revisited at real GenCast dims.
    out_ref[...] = _mlp_body(upd, ow1[...], ob1[...], ow2[...], ob2[...])


def decoder_finalize(latent_grid, agg, node_params, out_params):
    return pl.pallas_call(
        _dec_finalize_kernel,
        out_shape=jax.ShapeDtypeStruct((latent_grid.shape[0], OUT_F), jnp.float32),
    )(latent_grid, agg, *node_params, *out_params)


# ----------------------------- Processor (transformer) ----------------------------
def _proc_kernel(x_ref, ne_ref,
                 wln1_ref, bln1_ref, wqkv_ref, bqkv_ref, wo_ref, bo_ref,
                 wln2_ref, bln2_ref, w1_ref, b1_ref, w2_ref, b2_ref,
                 o_ref):
    """All NUM_BLOCKS transformer blocks for one batch element, block weights VMEM-resident."""
    x = x_ref[0]                                       # (N_MESH, LATENT) f32 residual stream
    ne_bf = ne_ref[0].astype(jnp.bfloat16)             # (1, NOISE_EMB), cast once
    scale = 1.0 / (HEAD_DIM ** 0.5)

    # Static block loop: weight stacks are indexed with static l (no per-block DMA).
    for l in range(NUM_BLOCKS):
        # ---- attention sub-block: cond-LN -> fused QKV -> MHSA -> single Wo -> residual ----
        gb1 = jnp.dot(ne_bf, wln1_ref[l], preferred_element_type=jnp.float32) + bln1_ref[l]
        y = _ln(x) * gb1[:, :LATENT] + gb1[:, LATENT:]
        qkv = jnp.dot(y.astype(jnp.bfloat16), wqkv_ref[l],
                      preferred_element_type=jnp.float32) + bqkv_ref[l]
        qkv_bf = qkv.astype(jnp.bfloat16)               # cast once; slice heads from bf16

        ctx_heads = []
        for h in range(NUM_HEADS):
            lo = h * HEAD_DIM
            qh = qkv_bf[:, lo:lo + HEAD_DIM]
            kh = qkv_bf[:, LATENT + lo:LATENT + lo + HEAD_DIM]
            vh = qkv_bf[:, 2 * LATENT + lo:2 * LATENT + lo + HEAD_DIM]
            s = jax.lax.dot_general(qh, kh, (((1,), (1,)), ((), ())),
                                    preferred_element_type=jnp.float32) * scale
            s = s - jnp.max(s, axis=-1, keepdims=True)
            p = jnp.exp(s)
            p = p * pl.reciprocal(jnp.sum(p, axis=-1, keepdims=True), approx=True)
            ctx_heads.append(jnp.dot(p.astype(jnp.bfloat16), vh,
                                     preferred_element_type=jnp.float32))
        # lane-concat heads -> one (N_MESH,LATENT)@(LATENT,LATENT) Wo matmul (no K=8 matmuls)
        ctx_bf = jnp.concatenate(ctx_heads, axis=-1).astype(jnp.bfloat16)
        x = x + jnp.dot(ctx_bf, wo_ref[l], preferred_element_type=jnp.float32) + bo_ref[l]

        # ---- MLP sub-block: cond-LN -> Linear -> SiLU -> Linear -> residual ----
        gb2 = jnp.dot(ne_bf, wln2_ref[l], preferred_element_type=jnp.float32) + bln2_ref[l]
        y2 = _ln(x) * gb2[:, :LATENT] + gb2[:, LATENT:]
        hdn = jnp.dot(y2.astype(jnp.bfloat16), w1_ref[l],
                      preferred_element_type=jnp.float32) + b1_ref[l]
        hdn = hdn * jax.nn.sigmoid(hdn)
        x = x + jnp.dot(hdn.astype(jnp.bfloat16), w2_ref[l],
                        preferred_element_type=jnp.float32) + b2_ref[l]

    o_ref[0] = x


def run_processor_blocks(latent_mesh_rows, noise_emb, blocks):
    x = latent_mesh_rows.reshape(B, N_MESH, LATENT)
    ne = noise_emb.reshape(B, 1, NOISE_EMB)

    # Weights: whole stacked arrays, constant index_map -> DMA'd once, retained across the
    # batch grid axis.  grid=(B,) "parallel" maps B=2 onto v7x's 2 TensorCores; on single-TC
    # v5e/v6e it is only 2 grid steps.  (Folding B into rows would remove those 2 steps at
    # the cost of v7x megacore sharding.)
    # TODO(synk): at real GenCast dims (LATENT~512, 16 blocks, ~40k mesh nodes) the resident
    # weight+stream set exceeds 64 MiB/TC on v7x: tile mesh rows on a grid axis, stream block
    # weights with pl.Buffered(2-3) and set vmem_limit_bytes explicitly.
    def wspec(arr):
        shp = arr.shape
        return pl.BlockSpec(shp, lambda b: (0,) * len(shp))

    weight_arrs = [blocks["wln1"], blocks["bln1"], blocks["wqkv"], blocks["bqkv"],
                   blocks["wo"], blocks["bo"], blocks["wln2"], blocks["bln2"],
                   blocks["w1"], blocks["b1"], blocks["w2"], blocks["b2"]]

    out = pl.pallas_call(
        _proc_kernel,
        out_shape=jax.ShapeDtypeStruct((B, N_MESH, LATENT), jnp.float32),
        grid=(B,),
        in_specs=[pl.BlockSpec((1, N_MESH, LATENT), lambda b: (b, 0, 0)),   # residual stream
                  pl.BlockSpec((1, 1, NOISE_EMB), lambda b: (b, 0, 0))]     # noise embedding
                 + [wspec(a) for a in weight_arrs],
        out_specs=pl.BlockSpec((1, N_MESH, LATENT), lambda b: (b, 0, 0)),
        compiler_params=pltpu.CompilerParams(dimension_semantics=("parallel",)),
    )(x, ne, *weight_arrs)
    return out.reshape(B * N_MESH, LATENT)


# -------------------------------- full forward pass --------------------------------
def denoiser_forward(corrupted_targets, prev_inputs, noise_levels, params, graph):
    # b lon lat f -> b (lon lat) f
    z = corrupted_targets.reshape(B, N_GRID, OUT_F)
    xprev = prev_inputs.reshape(B, N_GRID, IN_F)
    sigma = noise_levels                                        # (B, 1)

    # EDM preconditioner (sigma_data = 1.0) — tiny elementwise, plain JAX (XLA fuses).
    c_in = 1.0 / jnp.sqrt(sigma ** 2 + SIGMA_DATA ** 2)
    c_skip = SIGMA_DATA ** 2 / (sigma ** 2 + SIGMA_DATA ** 2)
    c_out = sigma * SIGMA_DATA / jnp.sqrt(sigma ** 2 + SIGMA_DATA ** 2)
    c_noise = 0.25 * jnp.log(sigma)

    scaled_targets = c_in[:, :, None] * z
    grid_rows = jnp.concatenate([scaled_targets, xprev], axis=-1).reshape(
        B * N_GRID, OUT_F + IN_F)

    # Batched static graph features & edge indices (plain JAX tiling / offsets).
    grid_static = jnp.tile(graph["grid_static"], (B, 1))
    mesh_static = jnp.tile(graph["mesh_static"], (B, 1))
    g2m_attr = jnp.tile(graph["g2m_attr"], (B, 1))
    m2g_attr = jnp.tile(graph["m2g_attr"], (B, 1))
    g2m_src = jnp.concatenate([graph["g2m_src"] + b * N_GRID for b in range(B)])
    g2m_dst = jnp.concatenate([graph["g2m_dst"] + b * N_MESH for b in range(B)])
    m2g_src = jnp.concatenate([graph["m2g_src"] + b * N_MESH for b in range(B)])
    m2g_dst = jnp.concatenate([graph["m2g_dst"] + b * N_GRID for b in range(B)])

    # Fourier noise features (num_frequencies=32, base_period=16) — tiny, plain JAX.
    freqs = jnp.arange(1, NOISE_FREQS + 1, dtype=jnp.float32)
    ang = 2.0 * jnp.pi * c_noise * freqs[None, :] / NOISE_BASE_PERIOD      # (B, 32)
    fourier = jnp.concatenate([jnp.sin(ang), jnp.cos(ang)], axis=-1)       # (B, 64)

    enc, proc, dec = params["encoder"], params["processor"], params["decoder"]

    # ---- 1 launch: all independent embedding MLPs (grid/mesh/edge/noise) ----
    grid_in = jnp.concatenate([grid_rows, grid_static], axis=-1)
    grid_emb, mesh_emb, g2m_edge_emb, m2g_edge_emb, noise_emb = fused_mlps([
        (grid_in, enc["grid_emb"]),
        (mesh_static, enc["mesh_emb"]),
        (g2m_attr, enc["g2m_edge_emb"]),
        (m2g_attr, dec["m2g_edge_emb"]),
        (fourier, proc["noise_mlp"]),
    ])

    # ---- encoder g2m interaction network ----
    # TODO(synk): data-dependent edge gather / scatter-add stays in plain JAX; a Pallas
    # version would need manual DMA gather with scalar-prefetched edge indices.
    e_in = jnp.concatenate([g2m_edge_emb, grid_emb[g2m_src], mesh_emb[g2m_dst]], axis=-1)
    (msg,) = fused_mlps([(e_in, enc["g2m_gnn"]["edge_mlp"])])
    agg = jax.ops.segment_sum(msg, g2m_dst, num_segments=B * N_MESH)
    latent_mesh, latent_grid = encoder_finalize(mesh_emb, agg, grid_emb,
                                                enc["g2m_gnn"]["node_mlp"],
                                                enc["grid_update"])

    # ---- processor ----
    # TODO(synk): k-hop sparse attention mask + mesh-edge features are not applied;
    # dense self-attention over mesh nodes is used (correct topology needs GraphBuilder).
    latent_mesh = run_processor_blocks(latent_mesh, noise_emb, proc["blocks"])

    # ---- decoder m2g interaction network + output MLP ----
    e_in2 = jnp.concatenate([m2g_edge_emb, latent_mesh[m2g_src], latent_grid[m2g_dst]],
                            axis=-1)
    (msg2,) = fused_mlps([(e_in2, dec["m2g_gnn"]["edge_mlp"])])
    agg2 = jax.ops.segment_sum(msg2, m2g_dst, num_segments=B * N_GRID)
    preds = decoder_finalize(latent_grid, agg2, dec["m2g_gnn"]["node_mlp"], dec["out_mlp"])
    preds = preds.reshape(B, N_GRID, OUT_F)

    out = c_skip[:, :, None] * z + c_out[:, :, None] * preds
    return out.reshape(B, NUM_LON, NUM_LAT, OUT_F)


# ------------------------------ parameters & graph --------------------------------
def _glorot(key, shape):
    fan_in, fan_out = shape
    return jax.random.normal(key, shape, jnp.float32) * jnp.sqrt(2.0 / (fan_in + fan_out))


def init_params(key):
    keys = iter(jax.random.split(key, 256))

    def nk():
        return next(keys)

    def mlp(din, dh, dout, ln=True):
        p = [_glorot(nk(), (din, dh)).astype(W_DTYPE),
             jnp.zeros((1, dh), jnp.float32),
             _glorot(nk(), (dh, dout)).astype(W_DTYPE),
             jnp.zeros((1, dout), jnp.float32)]
        if ln:
            p += [jnp.ones((1, dout), jnp.float32), jnp.zeros((1, dout), jnp.float32)]
        return tuple(p)

    enc = dict(
        grid_emb=mlp(OUT_F + IN_F + GRID_STATIC, HID, LATENT),
        mesh_emb=mlp(MESH_STATIC, HID, LATENT),
        g2m_edge_emb=mlp(EDGE_ATTR, HID, LATENT),
        g2m_gnn=dict(edge_mlp=mlp(3 * LATENT, HID, LATENT),
                     node_mlp=mlp(2 * LATENT, HID, LATENT)),
        grid_update=mlp(LATENT, HID, LATENT),
    )

    def stackw(shape):
        return jnp.stack([_glorot(nk(), shape) for _ in range(NUM_BLOCKS)]).astype(W_DTYPE)

    # fused cond-LN projection bias: gain half -> 1.0, shift half -> 0.0
    ln_bias = jnp.tile(
        jnp.concatenate([jnp.ones((1, 1, LATENT), jnp.float32),
                         jnp.zeros((1, 1, LATENT), jnp.float32)], axis=-1),
        (NUM_BLOCKS, 1, 1))

    blocks = dict(
        wln1=stackw((NOISE_EMB, 2 * LATENT)), bln1=ln_bias,
        wqkv=stackw((LATENT, 3 * LATENT)),
        bqkv=jnp.zeros((NUM_BLOCKS, 1, 3 * LATENT), jnp.float32),
        wo=stackw((LATENT, LATENT)),
        bo=jnp.zeros((NUM_BLOCKS, 1, LATENT), jnp.float32),
        wln2=stackw((NOISE_EMB, 2 * LATENT)), bln2=ln_bias,
        w1=stackw((LATENT, HID)),
        b1=jnp.zeros((NUM_BLOCKS, 1, HID), jnp.float32),
        w2=stackw((HID, LATENT)),
        b2=jnp.zeros((NUM_BLOCKS, 1, LATENT), jnp.float32),
    )
    proc = dict(noise_mlp=mlp(2 * NOISE_FREQS, HID, NOISE_EMB), blocks=blocks)
    dec = dict(
        m2g_edge_emb=mlp(EDGE_ATTR, HID, LATENT),
        m2g_gnn=dict(edge_mlp=mlp(3 * LATENT, HID, LATENT),
                     node_mlp=mlp(2 * LATENT, HID, LATENT)),
        out_mlp=mlp(LATENT, HID, OUT_F, ln=False),
    )
    return dict(encoder=enc, processor=proc, decoder=dec)


def make_graph(key):
    # TODO(synk): GraphBuilder's icosphere + k-hop graph construction has no Pallas
    # equivalent; replaced by a deterministic synthetic bipartite graph of the same form.
    lons = jnp.linspace(0.0, 2.0 * jnp.pi, NUM_LON, endpoint=False)
    lats = jnp.linspace(-1.2, 1.2, NUM_LAT)
    lon_g, lat_g = jnp.meshgrid(lons, lats, indexing="ij")
    grid_static = jnp.stack(
        [jnp.sin(lat_g), jnp.cos(lat_g) * jnp.sin(lon_g), jnp.cos(lat_g) * jnp.cos(lon_g)],
        axis=-1).reshape(N_GRID, GRID_STATIC).astype(jnp.float32)

    k1, k2, k3, k4, k5, k6, k7 = jax.random.split(key, 7)
    mesh_static = jax.random.normal(k1, (N_MESH, MESH_STATIC), jnp.float32)
    return dict(
        grid_static=grid_static,
        mesh_static=mesh_static,
        g2m_src=jax.random.randint(k2, (E_G2M,), 0, N_GRID),
        g2m_dst=jax.random.randint(k3, (E_G2M,), 0, N_MESH),
        g2m_attr=jax.random.normal(k4, (E_G2M, EDGE_ATTR), jnp.float32),
        m2g_src=jax.random.randint(k5, (E_M2G,), 0, N_MESH),
        m2g_dst=jax.random.randint(k6, (E_M2G,), 0, N_GRID),
        m2g_attr=jax.random.normal(k7, (E_M2G, EDGE_ATTR), jnp.float32),
    )


# -------------------------------------- main ---------------------------------------
if __name__ == "__main__":
    key = jax.random.PRNGKey(0)
    k_z, k_x, k_s, k_p, k_g = jax.random.split(key, 5)

    corrupted_targets = jax.random.normal(k_z, (B, NUM_LON, NUM_LAT, OUT_F), jnp.float32)
    prev_inputs = jax.random.normal(k_x, (B, NUM_LON, NUM_LAT, IN_F), jnp.float32)
    noise_levels = jax.random.uniform(k_s, (B, 1), jnp.float32, minval=0.5, maxval=2.0)

    # _check_shapes / positivity check from the reference forward
    # (reference uses `.any()`, but per its error message the intent is `.all()`).
    assert corrupted_targets.shape == (B, NUM_LON, NUM_LAT, OUT_F)
    assert prev_inputs.shape == (B, NUM_LON, NUM_LAT, IN_F)
    assert noise_levels.shape == (B, 1)
    assert bool((noise_levels > 0).all()), "All the noise levels must be strictly positive."

    params = init_params(k_p)
    graph = make_graph(k_g)

    fwd = jax.jit(denoiser_forward)
    out = fwd(corrupted_targets, prev_inputs, noise_levels, params, graph)
    out = jax.block_until_ready(out)

    assert out.shape == (B, NUM_LON, NUM_LAT, OUT_F)
    assert not bool(jnp.isnan(out).any())
    print("KERNEL_OK")
</pallas_src>

<mosaic_0001>
module attributes {stable_mosaic.version = 11 : i64} {
  func.func @kernel(%arg0: memref<64x10xf32, #tpu.memory_space<vmem>>, %arg1: memref<10x32xbf16, #tpu.memory_space<vmem>>, %arg2: memref<1x32xf32, #tpu.memory_space<vmem>>, %arg3: memref<32x32xbf16, #tpu.memory_space<vmem>>, %arg4: memref<1x32xf32, #tpu.memory_space<vmem>>, %arg5: memref<1x32xf32, #tpu.memory_space<vmem>>, %arg6: memref<1x32xf32, #tpu.memory_space<vmem>>, %arg7: memref<32x3xf32, #tpu.memory_space<vmem>>, %arg8: memref<3x32xbf16, #tpu.memory_space<vmem>>, %arg9: memref<1x32xf32, #tpu.memory_space<vmem>>, %arg10: memref<32x32xbf16, #tpu.memory_space<vmem>>, %arg11: memref<1x32xf32, #tpu.memory_space<vmem>>, %arg12: memref<1x32xf32, #tpu.memory_space<vmem>>, %arg13: memref<1x32xf32, #tpu.memory_space<vmem>>, %arg14: memref<128x4xf32, #tpu.memory_space<vmem>>, %arg15: memref<4x32xbf16, #tpu.memory_space<vmem>>, %arg16: memref<1x32xf32, #tpu.memory_space<vmem>>, %arg17: memref<32x32xbf16, #tpu.memory_space<vmem>>, %arg18: memref<1x32xf32, #tpu.memory_space<vmem>>, %arg19: memref<1x32xf32, #tpu.memory_space<vmem>>, %arg20: memref<1x32xf32, #tpu.memory_space<vmem>>, %arg21: memref<128x4xf32, #tpu.memory_space<vmem>>, %arg22: memref<4x32xbf16, #tpu.memory_space<vmem>>, %arg23: memref<1x32xf32, #tpu.memory_space<vmem>>, %arg24: memref<32x32xbf16, #tpu.memory_space<vmem>>, %arg25: memref<1x32xf32, #tpu.memory_space<vmem>>, %arg26: memref<1x32xf32, #tpu.memory_space<vmem>>, %arg27: memref<1x32xf32, #tpu.memory_space<vmem>>, %arg28: memref<2x64xf32, #tpu.memory_space<vmem>>, %arg29: memref<64x32xbf16, #tpu.memory_space<vmem>>, %arg30: memref<1x32xf32, #tpu.memory_space<vmem>>, %arg31: memref<32x16xbf16, #tpu.memory_space<vmem>>, %arg32: memref<1x16xf32, #tpu.memory_space<vmem>>, %arg33: memref<1x16xf32, #tpu.memory_space<vmem>>, %arg34: memref<1x16xf32, #tpu.memory_space<vmem>>, %arg35: memref<64x32xf32, #tpu.memory_space<vmem>>, %arg36: memref<32x32xf32, #tpu.memory_space<vmem>>, %arg37: memref<128x32xf32, #tpu.memory_space<vmem>>, %arg38: memref<128x32xf32, #tpu.memory_space<vmem>>, %arg39: memref<2x16xf32, #tpu.memory_space<vmem>>) attributes {dimension_semantics = [], scalar_prefetch = 0 : i64, scratch_operands = 0 : i64, tpu.core_type = #tpu.core_type<tc>} {
    %c0 = arith.constant 0 : index
    %c0_0 = arith.constant 0 : index
    %0 = vector.load %arg0[%c0, %c0_0] : memref<64x10xf32, #tpu.memory_space<vmem>>, vector<64x10xf32>
    %c0_1 = arith.constant 0 : index
    %c0_2 = arith.constant 0 : index
    %1 = vector.load %arg1[%c0_1, %c0_2] : memref<10x32xbf16, #tpu.memory_space<vmem>>, vector<10x32xbf16>
    %c0_3 = arith.constant 0 : index
    %c0_4 = arith.constant 0 : index
    %2 = vector.load %arg2[%c0_3, %c0_4] : memref<1x32xf32, #tpu.memory_space<vmem>>, vector<1x32xf32>
    %c0_5 = arith.constant 0 : index
    %c0_6 = arith.constant 0 : index
    %3 = vector.load %arg3[%c0_5, %c0_6] : memref<32x32xbf16, #tpu.memory_space<vmem>>, vector<32x32xbf16>
    %c0_7 = arith.constant 0 : index
    %c0_8 = arith.constant 0 : index
    %4 = vector.load %arg4[%c0_7, %c0_8] : memref<1x32xf32, #tpu.memory_space<vmem>>, vector<1x32xf32>
    %c0_9 = arith.constant 0 : index
    %c0_10 = arith.constant 0 : index
    %5 = vector.load %arg5[%c0_9, %c0_10] : memref<1x32xf32, #tpu.memory_space<vmem>>, vector<1x32xf32>
    %c0_11 = arith.constant 0 : index
    %c0_12 = arith.constant 0 : index
    %6 = vector.load %arg6[%c0_11, %c0_12] : memref<1x32xf32, #tpu.memory_space<vmem>>, vector<1x32xf32>
    %7 = arith.truncf %0 : vector<64x10xf32> to vector<64x10xbf16>
    %cst = arith.constant dense<0.000000e+00> : vector<64x32xf32>
    %8 = tpu.matmul %7, %1, %cst {dimension_numbers = #tpu.dot_dimension_numbers<[1], [0], [0], [1], [0, 0, 1, 1], [], []>} : vector<64x10xbf16>, vector<10x32xbf16>, vector<64x32xf32> -> vector<64x32xf32>
    %9 = vector.broadcast %2 : vector<1x32xf32> to vector<64x32xf32>
    %10 = arith.addf %8, %9 : vector<64x32xf32>
    %11 = arith.negf %10 : vector<64x32xf32>
    %12 = math.exp %11 : vector<64x32xf32>
    %cst_13 = arith.constant 1.000000e+00 : f32
    %13 = vector.broadcast %cst_13 : f32 to vector<64x32xf32>
    %14 = arith.addf %13, %12 : vector<64x32xf32>
    %15 = arith.divf %13, %14 : vector<64x32xf32>
    %16 = arith.mulf %10, %15 : vector<64x32xf32>
    %17 = arith.truncf %16 : vector<64x32xf32> to vector<64x32xbf16>
    %cst_14 = arith.constant dense<0.000000e+00> : vector<64x32xf32>
    %18 = tpu.matmul %17, %3, %cst_14 {dimension_numbers = #tpu.dot_dimension_numbers<[1], [0], [0], [1], [0, 0, 1, 1], [], []>} : vector<64x32xbf16>, vector<32x32xbf16>, vector<64x32xf32> -> vector<64x32xf32>
    %19 = vector.broadcast %4 : vector<1x32xf32> to vector<64x32xf32>
    %20 = arith.addf %18, %19 : vector<64x32xf32>
    %cst_15 = arith.constant dense<0.000000e+00> : vector<64xf32>
    %21 = vector.multi_reduction <add>, %20, %cst_15 [1] : vector<64x32xf32> to vector<64xf32>
    %22 = vector.shape_cast %21 : vector<64xf32> to vector<64x1xf32>
    %cst_16 = arith.constant 3.200000e+01 : f32
    %23 = vector.broadcast %cst_16 : f32 to vector<64x1xf32>
    %24 = arith.divf %22, %23 : vector<64x1xf32>
    %25 = vector.broadcast %24 : vector<64x1xf32> to vector<64x32xf32>
    %26 = arith.subf %20, %25 : vector<64x32xf32>
    %27 = arith.mulf %26, %26 : vector<64x32xf32>
    %cst_17 = arith.constant dense<0.000000e+00> : vector<64xf32>
    %28 = vector.multi_reduction <add>, %27, %cst_17 [1] : vector<64x32xf32> to vector<64xf32>
    %29 = vector.shape_cast %28 : vector<64xf32> to vector<64x1xf32>
    %cst_18 = arith.constant 3.200000e+01 : f32
    %30 = vector.broadcast %cst_18 : f32 to vector<64x1xf32>
    %31 = arith.divf %29, %30 : vector<64x1xf32>
    %32 = vector.broadcast %24 : vector<64x1xf32> to vector<64x32xf32>
    %33 = arith.subf %20, %32 : vector<64x32xf32>
    %cst_19 = arith.constant 9.99999974E-6 : f32
    %34 = vector.broadcast %cst_19 : f32 to vector<64x1xf32>
    %35 = arith.addf %31, %34 : vector<64x1xf32>
    %36 = math.rsqrt %35 : vector<64x1xf32>
    %37 = vector.broadcast %36 : vector<64x1xf32> to vector<64x32xf32>
    %38 = arith.mulf %33, %37 : vector<64x32xf32>
    %39 = vector.broadcast %5 : vector<1x32xf32> to vector<64x32xf32>
    %40 = arith.mulf %38, %39 : vector<64x32xf32>
    %41 = vector.broadcast %6 : vector<1x32xf32> to vector<64x32xf32>
    %42 = arith.addf %40, %41 : vector<64x32xf32>
    %c0_20 = arith.constant 0 : index
    %c0_21 = arith.constant 0 : index
    %43 = vector.load %arg35[%c0_20, %c0_21] : memref<64x32xf32, #tpu.memory_space<vmem>>, vector<64x32xf32>
    tpu.vector_store %arg35[%c0_20, %c0_21], %42 {strides = array<i32>} : memref<64x32xf32, #tpu.memory_space<vmem>>, vector<64x32xf32>,
    %c0_22 = arith.constant 0 : index
    %c0_23 = arith.constant 0 : index
    %44 = vector.load %arg7[%c0_22, %c0_23] : memref<32x3xf32, #tpu.memory_space<vmem>>, vector<32x3xf32>
    %c0_24 = arith.constant 0 : index
    %c0_25 = arith.constant 0 : index
    %45 = vector.load %arg8[%c0_24, %c0_25] : memref<3x32xbf16, #tpu.memory_space<vmem>>, vector<3x32xbf16>
    %c0_26 = arith.constant 0 : index
    %c0_27 = arith.constant 0 : index
    %46 = vector.load %arg9[%c0_26, %c0_27] : memref<1x32xf32, #tpu.memory_space<vmem>>, vector<1x32xf32>
    %c0_28 = arith.constant 0 : index
    %c0_29 = arith.constant 0 : index
    %47 = vector.load %arg10[%c0_28, %c0_29] : memref<32x32xbf16, #tpu.memory_space<vmem>>, vector<32x32xbf16>
    %c0_30 = arith.constant 0 : index
    %c0_31 = arith.constant 0 : index
    %48 = vector.load %arg11[%c0_30, %c0_31] : memref<1x32xf32, #tpu.memory_space<vmem>>, vector<1x32xf32>
    %c0_32 = arith.constant 0 : index
    %c0_33 = arith.constant 0 : index
    %49 = vector.load %arg12[%c0_32, %c0_33] : memref<1x32xf32, #tpu.memory_space<vmem>>, vector<1x32xf32>
    %c0_34 = arith.constant 0 : index
    %c0_35 = arith.constant 0 : index
    %50 = vector.load %arg13[%c0_34, %c0_35] : memref<1x32xf32, #tpu.memory_space<vmem>>, vector<1x32xf32>
    %51 = arith.truncf %44 : vector<32x3xf32> to vector<32x3xbf16>
    %cst_36 = arith.constant dense<0.000000e+00> : vector<32x32xf32>
    %52 = tpu.matmul %51, %45, %cst_36 {dimension_numbers = #tpu.dot_dimension_numbers<[1], [0], [0], [1], [0, 0, 1, 1], [], []>} : vector<32x3xbf16>, vector<3x32xbf16>, vector<32x32xf32> -> vector<32x32xf32>
    %53 = vector.broadcast %46 : vector<1x32xf32> to vector<32x32xf32>
    %54 = arith.addf %52, %53 : vector<32x32xf32>
    %55 = arith.negf %54 : vector<32x32xf32>
    %56 = math.exp %55 : vector<32x32xf32>
    %cst_37 = arith.constant 1.000000e+00 : f32
    %57 = vector.broadcast %cst_37 : f32 to vector<32x32xf32>
    %58 = arith.addf %57, %56 : vector<32x32xf32>
    %59 = arith.divf %57, %58 : vector<32x32xf32>
    %60 = arith.mulf %54, %59 : vector<32x32xf32>
    %61 = arith.truncf %60 : vector<32x32xf32> to vector<32x32xbf16>
    %cst_38 = arith.constant dense<0.000000e+00> : vector<32x32xf32>
    %62 = tpu.matmul %61, %47, %cst_38 {dimension_numbers = #tpu.dot_dimension_numbers<[1], [0], [0], [1], [0, 0, 1, 1], [], []>} : vector<32x32xbf16>, vector<32x32xbf16>, vector<32x32xf32> -> vector<32x32xf32>
    %63 = vector.broadcast %48 : vector<1x32xf32> to vector<32x32xf32>
    %64 = arith.addf %62, %63 : vector<32x32xf32>
    %cst_39 = arith.constant dense<0.000000e+00> : vector<32xf32>
    %65 = vector.multi_reduction <add>, %64, %cst_39 [1] : vector<32x32xf32> to vector<32xf32>
    %66 = vector.shape_cast %65 : vector<32xf32> to vector<32x1xf32>
    %cst_40 = arith.constant 3.200000e+01 : f32
    %67 = vector.broadcast %cst_40 : f32 to vector<32x1xf32>
    %68 = arith.divf %66, %67 : vector<32x1xf32>
    %69 = vector.broadcast %68 : vector<32x1xf32> to vector<32x32xf32>
    %70 = arith.subf %64, %69 : vector<32x32xf32>
    %71 = arith.mulf %70, %70 : vector<32x32xf32>
    %cst_41 = arith.constant dense<0.000000e+00> : vector<32xf32>
    %72 = vector.multi_reduction <add>, %71, %cst_41 [1] : vector<32x32xf32> to vector<32xf32>
    %73 = vector.shape_cast %72 : vector<32xf32> to vector<32x1xf32>
    %cst_42 = arith.constant 3.200000e+01 : f32
    %74 = vector.broadcast %cst_42 : f32 to vector<32x1xf32>
    %75 = arith.divf %73, %74 : vector<32x1xf32>
    %76 = vector.broadcast %68 : vector<32x1xf32> to vector<32x32xf32>
    %77 = arith.subf %64, %76 : vector<32x32xf32>
    %cst_43 = arith.constant 9.99999974E-6 : f32
    %78 = vector.broadcast %cst_43 : f32 to vector<32x1xf32>
    %79 = arith.addf %75, %78 : vector<32x1xf32>
    %80 = math.rsqrt %79 : vector<32x1xf32>
    %81 = vector.broadcast %80 : vector<32x1xf32> to vector<32x32xf32>
    %82 = arith.mulf %77, %81 : vector<32x32xf32>
    %83 = vector.broadcast %49 : vector<1x32xf32> to vector<32x32xf32>
    %84 = arith.mulf %82, %83 : vector<32x32xf32>
    %85 = vector.broadcast %50 : vector<1x32xf32> to vector<32x32xf32>
    %86 = arith.addf %84, %85 : vector<32x32xf32>
    %c0_44 = arith.constant 0 : index
    %c0_45 = arith.constant 0 : index
    %87 = vector.load %arg36[%c0_44, %c0_45] : memref<32x32xf32, #tpu.memory_space<vmem>>, vector<32x32xf32>
    tpu.vector_store %arg36[%c0_44, %c0_45], %86 {strides = array<i32>} : memref<32x32xf32, #tpu.memory_space<vmem>>, vector<32x32xf32>,
    %c0_46 = arith.constant 0 : index
    %c0_47 = arith.constant 0 : index
    %88 = vector.load %arg14[%c0_46, %c0_47] : memref<128x4xf32, #tpu.memory_space<vmem>>, vector<128x4xf32>
    %c0_48 = arith.constant 0 : index
    %c0_49 = arith.constant 0 : index
    %89 = vector.load %arg15[%c0_48, %c0_49] : memref<4x32xbf16, #tpu.memory_space<vmem>>, vector<4x32xbf16>
    %c0_50 = arith.constant 0 : index
    %c0_51 = arith.constant 0 : index
    %90 = vector.load %arg16[%c0_50, %c0_51] : memref<1x32xf32, #tpu.memory_space<vmem>>, vector<1x32xf32>
    %c0_52 = arith.constant 0 : index
    %c0_53 = arith.constant 0 : index
    %91 = vector.load %arg17[%c0_52, %c0_53] : memref<32x32xbf16, #tpu.memory_space<vmem>>, vector<32x32xbf16>
    %c0_54 = arith.constant 0 : index
    %c0_55 = arith.constant 0 : index
    %92 = vector.load %arg18[%c0_54, %c0_55] : memref<1x32xf32, #tpu.memory_space<vmem>>, vector<1x32xf32>
    %c0_56 = arith.constant 0 : index
    %c0_57 = arith.constant 0 : index
    %93 = vector.load %arg19[%c0_56, %c0_57] : memref<1x32xf32, #tpu.memory_space<vmem>>, vector<1x32xf32>
    %c0_58 = arith.constant 0 : index
    %c0_59 = arith.constant 0 : index
    %94 = vector.load %arg20[%c0_58, %c0_59] : memref<1x32xf32, #tpu.memory_space<vmem>>, vector<1x32xf32>
    %95 = arith.truncf %88 : vector<128x4xf32> to vector<128x4xbf16>
    %cst_60 = arith.constant dense<0.000000e+00> : vector<128x32xf32>
    %96 = tpu.matmul %95, %89, %cst_60 {dimension_numbers = #tpu.dot_dimension_numbers<[1], [0], [0], [1], [0, 0, 1, 1], [], []>} : vector<128x4xbf16>, vector<4x32xbf16>, vector<128x32xf32> -> vector<128x32xf32>
    %97 = vector.broadcast %90 : vector<1x32xf32> to vector<128x32xf32>
    %98 = arith.addf %96, %97 : vector<128x32xf32>
    %99 = arith.negf %98 : vector<128x32xf32>
    %100 = math.exp %99 : vector<128x32xf32>
    %cst_61 = arith.constant 1.000000e+00 : f32
    %101 = vector.broadcast %cst_61 : f32 to vector<128x32xf32>
    %102 = arith.addf %101, %100 : vector<128x32xf32>
    %103 = arith.divf %101, %102 : vector<128x32xf32>
    %104 = arith.mulf %98, %103 : vector<128x32xf32>
    %105 = arith.truncf %104 : vector<128x32xf32> to vector<128x32xbf16>
    %cst_62 = arith.constant dense<0.000000e+00> : vector<128x32xf32>
    %106 = tpu.matmul %105, %91, %cst_62 {dimension_numbers = #tpu.dot_dimension_numbers<[1], [0], [0], [1], [0, 0, 1, 1], [], []>} : vector<128x32xbf16>, vector<32x32xbf16>, vector<128x32xf32> -> vector<128x32xf32>
    %107 = vector.broadcast %92 : vector<1x32xf32> to vector<128x32xf32>
    %108 = arith.addf %106, %107 : vector<128x32xf32>
    %cst_63 = arith.constant dense<0.000000e+00> : vector<128xf32>
    %109 = vector.multi_reduction <add>, %108, %cst_63 [1] : vector<128x32xf32> to vector<128xf32>
    %110 = vector.shape_cast %109 : vector<128xf32> to vector<128x1xf32>
    %cst_64 = arith.constant 3.200000e+01 : f32
    %111 = vector.broadcast %cst_64 : f32 to vector<128x1xf32>
    %112 = arith.divf %110, %111 : vector<128x1xf32>
    %113 = vector.broadcast %112 : vector<128x1xf32> to vector<128x32xf32>
    %114 = arith.subf %108, %113 : vector<128x32xf32>
    %115 = arith.mulf %114, %114 : vector<128x32xf32>
    %cst_65 = arith.constant dense<0.000000e+00> : vector<128xf32>
    %116 = vector.multi_reduction <add>, %115, %cst_65 [1] : vector<128x32xf32> to vector<128xf32>
    %117 = vector.shape_cast %116 : vector<128xf32> to vector<128x1xf32>
    %cst_66 = arith.constant 3.200000e+01 : f32
    %118 = vector.broadcast %cst_66 : f32 to vector<128x1xf32>
    %119 = arith.divf %117, %118 : vector<128x1xf32>
    %120 = vector.broadcast %112 : vector<128x1xf32> to vector<128x32xf32>
    %121 = arith.subf %108, %120 : vector<128x32xf32>
    %cst_67 = arith.constant 9.99999974E-6 : f32
    %122 = vector.broadcast %cst_67 : f32 to vector<128x1xf32>
    %123 = arith.addf %119, %122 : vector<128x1xf32>
    %124 = math.rsqrt %123 : vector<128x1xf32>
    %125 = vector.broadcast %124 : vector<128x1xf32> to vector<128x32xf32>
    %126 = arith.mulf %121, %125 : vector<128x32xf32>
    %127 = vector.broadcast %93 : vector<1x32xf32> to vector<128x32xf32>
    %128 = arith.mulf %126, %127 : vector<128x32xf32>
    %129 = vector.broadcast %94 : vector<1x32xf32> to vector<128x32xf32>
    %130 = arith.addf %128, %129 : vector<128x32xf32>
    %c0_68 = arith.constant 0 : index
    %c0_69 = arith.constant 0 : index
    %131 = vector.load %arg37[%c0_68, %c0_69] : memref<128x32xf32, #tpu.memory_space<vmem>>, vector<128x32xf32>
    tpu.vector_store %arg37[%c0_68, %c0_69], %130 {strides = array<i32>} : memref<128x32xf32, #tpu.memory_space<vmem>>, vector<128x32xf32>,
    %c0_70 = arith.constant 0 : index
    %c0_71 = arith.constant 0 : index
    %132 = vector.load %arg21[%c0_70, %c0_71] : memref<128x4xf32, #tpu.memory_space<vmem>>, vector<128x4xf32>
    %c0_72 = arith.constant 0 : index
    %c0_73 = arith.constant 0 : index
    %133 = vector.load %arg22[%c0_72, %c0_73] : memref<4x32xbf16, #tpu.memory_space<vmem>>, vector<4x32xbf16>
    %c0_74 = arith.constant 0 : index
    %c0_75 = arith.constant 0 : index
    %134 = vector.load %arg23[%c0_74, %c0_75] : memref<1x32xf32, #tpu.memory_space<vmem>>, vector<1x32xf32>
    %c0_76 = arith.constant 0 : index
    %c0_77 = arith.constant 0 : index
    %135 = vector.load %arg24[%c0_76, %c0_77] : memref<32x32xbf16, #tpu.memory_space<vmem>>, vector<32x32xbf16>
    %c0_78 = arith.constant 0 : index
    %c0_79 = arith.constant 0 : index
    %136 = vector.load %arg25[%c0_78, %c0_79] : memref<1x32xf32, #tpu.memory_space<vmem>>, vector<1x32xf32>
    %c0_80 = arith.constant 0 : index
    %c0_81 = arith.constant 0 : index
    %137 = vector.load %arg26[%c0_80, %c0_81] : memref<1x32xf32, #tpu.memory_space<vmem>>, vector<1x32xf32>
    %c0_82 = arith.constant 0 : index
    %c0_83 = arith.constant 0 : index
    %138 = vector.load %arg27[%c0_82, %c0_83] : memref<1x32xf32, #tpu.memory_space<vmem>>, vector<1x32xf32>
    %139 = arith.truncf %132 : vector<128x4xf32> to vector<128x4xbf16>
    %cst_84 = arith.constant dense<0.000000e+00> : vector<128x32xf32>
    %140 = tpu.matmul %139, %133, %cst_84 {dimension_numbers = #tpu.dot_dimension_numbers<[1], [0], [0], [1], [0, 0, 1, 1], [], []>} : vector<128x4xbf16>, vector<4x32xbf16>, vector<128x32xf32> -> vector<128x32xf32>
    %141 = vector.broadcast %134 : vector<1x32xf32> to vector<128x32xf32>
    %142 = arith.addf %140, %141 : vector<128x32xf32>
    %143 = arith.negf %142 : vector<128x32xf32>
    %144 = math.exp %143 : vector<128x32xf32>
    %cst_85 = arith.constant 1.000000e+00 : f32
    %145 = vector.broadcast %cst_85 : f32 to vector<128x32xf32>
    %146 = arith.addf %145, %144 : vector<128x32xf32>
    %147 = arith.divf %145, %146 : vector<128x32xf32>
    %148 = arith.mulf %142, %147 : vector<128x32xf32>
    %149 = arith.truncf %148 : vector<128x32xf32> to vector<128x32xbf16>
    %cst_86 = arith.constant dense<0.000000e+00> : vector<128x32xf32>
    %150 = tpu.matmul %149, %135, %cst_86 {dimension_numbers = #tpu.dot_dimension_numbers<[1], [0], [0], [1], [0, 0, 1, 1], [], []>} : vector<128x32xbf16>, vector<32x32xbf16>, vector<128x32xf32> -> vector<128x32xf32>
    %151 = vector.broadcast %136 : vector<1x32xf32> to vector<128x32xf32>
    %152 = arith.addf %150, %151 : vector<128x32xf32>
    %cst_87 = arith.constant dense<0.000000e+00> : vector<128xf32>
    %153 = vector.multi_reduction <add>, %152, %cst_87 [1] : vector<128x32xf32> to vector<128xf32>
    %154 = vector.shape_cast %153 : vector<128xf32> to vector<128x1xf32>
    %cst_88 = arith.constant 3.200000e+01 : f32
    %155 = vector.broadcast %cst_88 : f32 to vector<128x1xf32>
    %156 = arith.divf %154, %155 : vector<128x1xf32>
    %157 = vector.broadcast %156 : vector<128x1xf32> to vector<128x32xf32>
    %158 = arith.subf %152, %157 : vector<128x32xf32>
    %159 = arith.mulf %158, %158 : vector<128x32xf32>
    %cst_89 = arith.constant dense<0.000000e+00> : vector<128xf32>
    %160 = vector.multi_reduction <add>, %159, %cst_89 [1] : vector<128x32xf32> to vector<128xf32>
    %161 = vector.shape_cast %160 : vector<128xf32> to vector<128x1xf32>
    %cst_90 = arith.constant 3.200000e+01 : f32
    %162 = vector.broadcast %cst_90 : f32 to vector<128x1xf32>
    %163 = arith.divf %161, %162 : vector<128x1xf32>
    %164 = vector.broadcast %156 : vector<128x1xf32> to vector<128x32xf32>
    %165 = arith.subf %152, %164 : vector<128x32xf32>
    %cst_91 = arith.constant 9.99999974E-6 : f32
    %166 = vector.broadcast %cst_91 : f32 to vector<128x1xf32>
    %167 = arith.addf %163, %166 : vector<128x1xf32>
    %168 = math.rsqrt %167 : vector<128x1xf32>
    %169 = vector.broadcast %168 : vector<128x1xf32> to vector<128x32xf32>
    %170 = arith.mulf %165, %169 : vector<128x32xf32>
    %171 = vector.broadcast %137 : vector<1x32xf32> to vector<128x32xf32>
    %172 = arith.mulf %170, %171 : vector<128x32xf32>
    %173 = vector.broadcast %138 : vector<1x32xf32> to vector<128x32xf32>
    %174 = arith.addf %172, %173 : vector<128x32xf32>
    %c0_92 = arith.constant 0 : index
    %c0_93 = arith.constant 0 : index
    %175 = vector.load %arg38[%c0_92, %c0_93] : memref<128x32xf32, #tpu.memory_space<vmem>>, vector<128x32xf32>
    tpu.vector_store %arg38[%c0_92, %c0_93], %174 {strides = array<i32>} : memref<128x32xf32, #tpu.memory_space<vmem>>, vector<128x32xf32>,
    %c0_94 = arith.constant 0 : index
    %c0_95 = arith.constant 0 : index
    %176 = vector.load %arg28[%c0_94, %c0_95] : memref<2x64xf32, #tpu.memory_space<vmem>>, vector<2x64xf32>
    %c0_96 = arith.constant 0 : index
    %c0_97 = arith.constant 0 : index
    %177 = vector.load %arg29[%c0_96, %c0_97] : memref<64x32xbf16, #tpu.memory_space<vmem>>, vector<64x32xbf16>
    %c0_98 = arith.constant 0 : index
    %c0_99 = arith.constant 0 : index
    %178 = vector.load %arg30[%c0_98, %c0_99] : memref<1x32xf32, #tpu.memory_space<vmem>>, vector<1x32xf32>
    %c0_100 = arith.constant 0 : index
    %c0_101 = arith.constant 0 : index
    %179 = vector.load %arg31[%c0_100, %c0_101] : memref<32x16xbf16, #tpu.memory_space<vmem>>, vector<32x16xbf16>
    %c0_102 = arith.constant 0 : index
    %c0_103 = arith.constant 0 : index
    %180 = vector.load %arg32[%c0_102, %c0_103] : memref<1x16xf32, #tpu.memory_space<vmem>>, vector<1x16xf32>
    %c0_104 = arith.constant 0 : index
    %c0_105 = arith.constant 0 : index
    %181 = vector.load %arg33[%c0_104, %c0_105] : memref<1x16xf32, #tpu.memory_space<vmem>>, vector<1x16xf32>
    %c0_106 = arith.constant 0 : index
    %c0_107 = arith.constant 0 : index
    %182 = vector.load %arg34[%c0_106, %c0_107] : memref<1x16xf32, #tpu.memory_space<vmem>>, vector<1x16xf32>
    %183 = arith.truncf %176 : vector<2x64xf32> to vector<2x64xbf16>
    %cst_108 = arith.constant dense<0.000000e+00> : vector<2x32xf32>
    %184 = tpu.matmul %183, %177, %cst_108 {dimension_numbers = #tpu.dot_dimension_numbers<[1], [0], [0], [1], [0, 0, 1, 1], [], []>} : vector<2x64xbf16>, vector<64x32xbf16>, vector<2x32xf32> -> vector<2x32xf32>
    %185 = vector.broadcast %178 : vector<1x32xf32> to vector<2x32xf32>
    %186 = arith.addf %184, %185 : vector<2x32xf32>
    %187 = arith.negf %186 : vector<2x32xf32>
    %188 = math.exp %187 : vector<2x32xf32>
    %cst_109 = arith.constant 1.000000e+00 : f32
    %189 = vector.broadcast %cst_109 : f32 to vector<2x32xf32>
    %190 = arith.addf %189, %188 : vector<2x32xf32>
    %191 = arith.divf %189, %190 : vector<2x32xf32>
    %192 = arith.mulf %186, %191 : vector<2x32xf32>
    %193 = arith.truncf %192 : vector<2x32xf32> to vector<2x32xbf16>
    %cst_110 = arith.constant dense<0.000000e+00> : vector<2x16xf32>
    %194 = tpu.matmul %193, %179, %cst_110 {dimension_numbers = #tpu.dot_dimension_numbers<[1], [0], [0], [1], [0, 0, 1, 1], [], []>} : vector<2x32xbf16>, vector<32x16xbf16>, vector<2x16xf32> -> vector<2x16xf32>
    %195 = vector.broadcast %180 : vector<1x16xf32> to vector<2x16xf32>
    %196 = arith.addf %194, %195 : vector<2x16xf32>
    %cst_111 = arith.constant dense<0.000000e+00> : vector<2xf32>
    %197 = vector.multi_reduction <add>, %196, %cst_111 [1] : vector<2x16xf32> to vector<2xf32>
    %198 = vector.shape_cast %197 : vector<2xf32> to vector<2x1xf32>
    %cst_112 = arith.constant 1.600000e+01 : f32
    %199 = vector.broadcast %cst_112 : f32 to vector<2x1xf32>
    %200 = arith.divf %198, %199 : vector<2x1xf32>
    %201 = vector.broadcast %200 : vector<2x1xf32> to vector<2x16xf32>
    %202 = arith.subf %196, %201 : vector<2x16xf32>
    %203 = arith.mulf %202, %202 : vector<2x16xf32>
    %cst_113 = arith.constant dense<0.000000e+00> : vector<2xf32>
    %204 = vector.multi_reduction <add>, %203, %cst_113 [1] : vector<2x16xf32> to vector<2xf32>
    %205 = vector.shape_cast %204 : vector<2xf32> to vector<2x1xf32>
    %cst_114 = arith.constant 1.600000e+01 : f32
    %206 = vector.broadcast %cst_114 : f32 to vector<2x1xf32>
    %207 = arith.divf %205, %206 : vector<2x1xf32>
    %208 = vector.broadcast %200 : vector<2x1xf32> to vector<2x16xf32>
    %209 = arith.subf %196, %208 : vector<2x16xf32>
    %cst_115 = arith.constant 9.99999974E-6 : f32
    %210 = vector.broadcast %cst_115 : f32 to vector<2x1xf32>
    %211 = arith.addf %207, %210 : vector<2x1xf32>
    %212 = math.rsqrt %211 : vector<2x1xf32>
    %213 = vector.broadcast %212 : vector<2x1xf32> to vector<2x16xf32>
    %214 = arith.mulf %209, %213 : vector<2x16xf32>
    %215 = vector.broadcast %181 : vector<1x16xf32> to vector<2x16xf32>
    %216 = arith.mulf %214, %215 : vector<2x16xf32>
    %217 = vector.broadcast %182 : vector<1x16xf32> to vector<2x16xf32>
    %218 = arith.addf %216, %217 : vector<2x16xf32>
    %c0_116 = arith.constant 0 : index
    %c0_117 = arith.constant 0 : index
    %219 = vector.load %arg39[%c0_116, %c0_117] : memref<2x16xf32, #tpu.memory_space<vmem>>, vector<2x16xf32>
    tpu.vector_store %arg39[%c0_116, %c0_117], %218 {strides = array<i32>} : memref<2x16xf32, #tpu.memory_space<vmem>>, vector<2x16xf32>,
    return
  }
}

module attributes {stable_mosaic.version = 11 : i64} {
  func.func @kernel(%arg0: memref<128x96xf32, #tpu.memory_space<vmem>>, %arg1: memref<96x32xbf16, #tpu.memory_space<vmem>>, %arg2: memref<1x32xf32, #tpu.memory_space<vmem>>, %arg3: memref<32x32xbf16, #tpu.memory_space<vmem>>, %arg4: memref<1x32xf32, #tpu.memory_space<vmem>>, %arg5: memref<1x32xf32, #tpu.memory_space<vmem>>, %arg6: memref<1x32xf32, #tpu.memory_space<vmem>>, %arg7: memref<128x32xf32, #tpu.memory_space<vmem>>) attributes {dimension_semantics = [], scalar_prefetch = 0 : i64, scratch_operands = 0 : i64, tpu.core_type = #tpu.core_type<tc>} {
    %c0 = arith.constant 0 : index
    %c0_0 = arith.constant 0 : index
    %0 = vector.load %arg0[%c0, %c0_0] : memref<128x96xf32, #tpu.memory_space<vmem>>, vector<128x96xf32>
    %c0_1 = arith.constant 0 : index
    %c0_2 = arith.constant 0 : index
    %1 = vector.load %arg1[%c0_1, %c0_2] : memref<96x32xbf16, #tpu.memory_space<vmem>>, vector<96x32xbf16>
    %c0_3 = arith.constant 0 : index
    %c0_4 = arith.constant 0 : index
    %2 = vector.load %arg2[%c0_3, %c0_4] : memref<1x32xf32, #tpu.memory_space<vmem>>, vector<1x32xf32>
    %c0_5 = arith.constant 0 : index
    %c0_6 = arith.constant 0 : index
    %3 = vector.load %arg3[%c0_5, %c0_6] : memref<32x32xbf16, #tpu.memory_space<vmem>>, vector<32x32xbf16>
    %c0_7 = arith.constant 0 : index
    %c0_8 = arith.constant 0 : index
    %4 = vector.load %arg4[%c0_7, %c0_8] : memref<1x32xf32, #tpu.memory_space<vmem>>, vector<1x32xf32>
    %c0_9 = arith.constant 0 : index
    %c0_10 = arith.constant 0 : index
    %5 = vector.load %arg5[%c0_9, %c0_10] : memref<1x32xf32, #tpu.memory_space<vmem>>, vector<1x32xf32>
    %c0_11 = arith.constant 0 : index
    %c0_12 = arith.constant 0 : index
    %6 = vector.load %arg6[%c0_11, %c0_12] : memref<1x32xf32, #tpu.memory_space<vmem>>, vector<1x32xf32>
    %7 = arith.truncf %0 : vector<128x96xf32> to vector<128x96xbf16>
    %cst = arith.constant dense<0.000000e+00> : vector<128x32xf32>
    %8 = tpu.matmul %7, %1, %cst {dimension_numbers = #tpu.dot_dimension_numbers<[1], [0], [0], [1], [0, 0, 1, 1], [], []>} : vector<128x96xbf16>, vector<96x32xbf16>, vector<128x32xf32> -> vector<128x32xf32>
    %9 = vector.broadcast %2 : vector<1x32xf32> to vector<128x32xf32>
    %10 = arith.addf %8, %9 : vector<128x32xf32>
    %11 = arith.negf %10 : vector<128x32xf32>
    %12 = math.exp %11 : vector<128x32xf32>
    %cst_13 = arith.constant 1.000000e+00 : f32
    %13 = vector.broadcast %cst_13 : f32 to vector<128x32xf32>
    %14 = arith.addf %13, %12 : vector<128x32xf32>
    %15 = arith.divf %13, %14 : vector<128x32xf32>
    %16 = arith.mulf %10, %15 : vector<128x32xf32>
    %17 = arith.truncf %16 : vector<128x32xf32> to vector<128x32xbf16>
    %cst_14 = arith.constant dense<0.000000e+00> : vector<128x32xf32>
    %18 = tpu.matmul %17, %3, %cst_14 {dimension_numbers = #tpu.dot_dimension_numbers<[1], [0], [0], [1], [0, 0, 1, 1], [], []>} : vector<128x32xbf16>, vector<32x32xbf16>, vector<128x32xf32> -> vector<128x32xf32>
    %19 = vector.broadcast %4 : vector<1x32xf32> to vector<128x32xf32>
    %20 = arith.addf %18, %19 : vector<128x32xf32>
    %cst_15 = arith.constant dense<0.000000e+00> : vector<128xf32>
    %21 = vector.multi_reduction <add>, %20, %cst_15 [1] : vector<128x32xf32> to vector<128xf32>
    %22 = vector.shape_cast %21 : vector<128xf32> to vector<128x1xf32>
    %cst_16 = arith.constant 3.200000e+01 : f32
    %23 = vector.broadcast %cst_16 : f32 to vector<128x1xf32>
    %24 = arith.divf %22, %23 : vector<128x1xf32>
    %25 = vector.broadcast %24 : vector<128x1xf32> to vector<128x32xf32>
    %26 = arith.subf %20, %25 : vector<128x32xf32>
    %27 = arith.mulf %26, %26 : vector<128x32xf32>
    %cst_17 = arith.constant dense<0.000000e+00> : vector<128xf32>
    %28 = vector.multi_reduction <add>, %27, %cst_17 [1] : vector<128x32xf32> to vector<128xf32>
    %29 = vector.shape_cast %28 : vector<128xf32> to vector<128x1xf32>
    %cst_18 = arith.constant 3.200000e+01 : f32
    %30 = vector.broadcast %cst_18 : f32 to vector<128x1xf32>
    %31 = arith.divf %29, %30 : vector<128x1xf32>
    %32 = vector.broadcast %24 : vector<128x1xf32> to vector<128x32xf32>
    %33 = arith.subf %20, %32 : vector<128x32xf32>
    %cst_19 = arith.constant 9.99999974E-6 : f32
    %34 = vector.broadcast %cst_19 : f32 to vector<128x1xf32>
    %35 = arith.addf %31, %34 : vector<128x1xf32>
    %36 = math.rsqrt %35 : vector<128x1xf32>
    %37 = vector.broadcast %36 : vector<128x1xf32> to vector<128x32xf32>
    %38 = arith.mulf %33, %37 : vector<128x32xf32>
    %39 = vector.broadcast %5 : vector<1x32xf32> to vector<128x32xf32>
    %40 = arith.mulf %38, %39 : vector<128x32xf32>
    %41 = vector.broadcast %6 : vector<1x32xf32> to vector<128x32xf32>
    %42 = arith.addf %40, %41 : vector<128x32xf32>
    %c0_20 = arith.constant 0 : index
    %c0_21 = arith.constant 0 : index
    %43 = vector.load %arg7[%c0_20, %c0_21] : memref<128x32xf32, #tpu.memory_space<vmem>>, vector<128x32xf32>
    tpu.vector_store %arg7[%c0_20, %c0_21], %42 {strides = array<i32>} : memref<128x32xf32, #tpu.memory_space<vmem>>, vector<128x32xf32>,
    return
  }
}

module attributes {stable_mosaic.version = 11 : i64} {
  func.func @_enc_finalize_kernel(%arg0: memref<32x32xf32, #tpu.memory_space<vmem>>, %arg1: memref<32x32xf32, #tpu.memory_space<vmem>>, %arg2: memref<64x32xf32, #tpu.memory_space<vmem>>, %arg3: memref<64x32xbf16, #tpu.memory_space<vmem>>, %arg4: memref<1x32xf32, #tpu.memory_space<vmem>>, %arg5: memref<32x32xbf16, #tpu.memory_space<vmem>>, %arg6: memref<1x32xf32, #tpu.memory_space<vmem>>, %arg7: memref<1x32xf32, #tpu.memory_space<vmem>>, %arg8: memref<1x32xf32, #tpu.memory_space<vmem>>, %arg9: memref<32x32xbf16, #tpu.memory_space<vmem>>, %arg10: memref<1x32xf32, #tpu.memory_space<vmem>>, %arg11: memref<32x32xbf16, #tpu.memory_space<vmem>>, %arg12: memref<1x32xf32, #tpu.memory_space<vmem>>, %arg13: memref<1x32xf32, #tpu.memory_space<vmem>>, %arg14: memref<1x32xf32, #tpu.memory_space<vmem>>, %arg15: memref<32x32xf32, #tpu.memory_space<vmem>>, %arg16: memref<64x32xf32, #tpu.memory_space<vmem>>) attributes {dimension_semantics = [], scalar_prefetch = 0 : i64, scratch_operands = 0 : i64, tpu.core_type = #tpu.core_type<tc>} {
    %c0 = arith.constant 0 : index
    %c0_0 = arith.constant 0 : index
    %0 = vector.load %arg0[%c0, %c0_0] : memref<32x32xf32, #tpu.memory_space<vmem>>, vector<32x32xf32>
    %c0_1 = arith.constant 0 : index
    %c0_2 = arith.constant 0 : index
    %1 = vector.load %arg1[%c0_1, %c0_2] : memref<32x32xf32, #tpu.memory_space<vmem>>, vector<32x32xf32>
    %2 = tpu.concatenate %0, %1 in 1 : vector<32x32xf32>, vector<32x32xf32> -> vector<32x64xf32>
    %c0_3 = arith.constant 0 : index
    %c0_4 = arith.constant 0 : index
    %3 = vector.load %arg3[%c0_3, %c0_4] : memref<64x32xbf16, #tpu.memory_space<vmem>>, vector<64x32xbf16>
    %c0_5 = arith.constant 0 : index
    %c0_6 = arith.constant 0 : index
    %4 = vector.load %arg4[%c0_5, %c0_6] : memref<1x32xf32, #tpu.memory_space<vmem>>, vector<1x32xf32>
    %c0_7 = arith.constant 0 : index
    %c0_8 = arith.constant 0 : index
    %5 = vector.load %arg5[%c0_7, %c0_8] : memref<32x32xbf16, #tpu.memory_space<vmem>>, vector<32x32xbf16>
    %c0_9 = arith.constant 0 : index
    %c0_10 = arith.constant 0 : index
    %6 = vector.load %arg6[%c0_9, %c0_10] : memref<1x32xf32, #tpu.memory_space<vmem>>, vector<1x32xf32>
    %c0_11 = arith.constant 0 : index
    %c0_12 = arith.constant 0 : index
    %7 = vector.load %arg7[%c0_11, %c0_12] : memref<1x32xf32, #tpu.memory_space<vmem>>, vector<1x32xf32>
    %c0_13 = arith.constant 0 : index
    %c0_14 = arith.constant 0 : index
    %8 = vector.load %arg8[%c0_13, %c0_14] : memref<1x32xf32, #tpu.memory_space<vmem>>, vector<1x32xf32>
    %9 = arith.truncf %2 : vector<32x64xf32> to vector<32x64xbf16>
    %cst = arith.constant dense<0.000000e+00> : vector<32x32xf32>
    %10 = tpu.matmul %9, %3, %cst {dimension_numbers = #tpu.dot_dimension_numbers<[1], [0], [0], [1], [0, 0, 1, 1], [], []>} : vector<32x64xbf16>, vector<64x32xbf16>, vector<32x32xf32> -> vector<32x32xf32>
    %11 = vector.broadcast %4 : vector<1x32xf32> to vector<32x32xf32>
    %12 = arith.addf %10, %11 : vector<32x32xf32>
    %13 = arith.negf %12 : vector<32x32xf32>
    %14 = math.exp %13 : vector<32x32xf32>
    %cst_15 = arith.constant 1.000000e+00 : f32
    %15 = vector.broadcast %cst_15 : f32 to vector<32x32xf32>
    %16 = arith.addf %15, %14 : vector<32x32xf32>
    %17 = arith.divf %15, %16 : vector<32x32xf32>
    %18 = arith.mulf %12, %17 : vector<32x32xf32>
    %19 = arith.truncf %18 : vector<32x32xf32> to vector<32x32xbf16>
    %cst_16 = arith.constant dense<0.000000e+00> : vector<32x32xf32>
    %20 = tpu.matmul %19, %5, %cst_16 {dimension_numbers = #tpu.dot_dimension_numbers<[1], [0], [0], [1], [0, 0, 1, 1], [], []>} : vector<32x32xbf16>, vector<32x32xbf16>, vector<32x32xf32> -> vector<32x32xf32>
    %21 = vector.broadcast %6 : vector<1x32xf32> to vector<32x32xf32>
    %22 = arith.addf %20, %21 : vector<32x32xf32>
    %cst_17 = arith.constant dense<0.000000e+00> : vector<32xf32>
    %23 = vector.multi_reduction <add>, %22, %cst_17 [1] : vector<32x32xf32> to vector<32xf32>
    %24 = vector.shape_cast %23 : vector<32xf32> to vector<32x1xf32>
    %cst_18 = arith.constant 3.200000e+01 : f32
    %25 = vector.broadcast %cst_18 : f32 to vector<32x1xf32>
    %26 = arith.divf %24, %25 : vector<32x1xf32>
    %27 = vector.broadcast %26 : vector<32x1xf32> to vector<32x32xf32>
    %28 = arith.subf %22, %27 : vector<32x32xf32>
    %29 = arith.mulf %28, %28 : vector<32x32xf32>
    %cst_19 = arith.constant dense<0.000000e+00> : vector<32xf32>
    %30 = vector.multi_reduction <add>, %29, %cst_19 [1] : vector<32x32xf32> to vector<32xf32>
    %31 = vector.shape_cast %30 : vector<32xf32> to vector<32x1xf32>
    %cst_20 = arith.constant 3.200000e+01 : f32
    %32 = vector.broadcast %cst_20 : f32 to vector<32x1xf32>
    %33 = arith.divf %31, %32 : vector<32x1xf32>
    %34 = vector.broadcast %26 : vector<32x1xf32> to vector<32x32xf32>
    %35 = arith.subf %22, %34 : vector<32x32xf32>
    %cst_21 = arith.constant 9.99999974E-6 : f32
    %36 = vector.broadcast %cst_21 : f32 to vector<32x1xf32>
    %37 = arith.addf %33, %36 : vector<32x1xf32>
    %38 = math.rsqrt %37 : vector<32x1xf32>
    %39 = vector.broadcast %38 : vector<32x1xf32> to vector<32x32xf32>
    %40 = arith.mulf %35, %39 : vector<32x32xf32>
    %41 = vector.broadcast %7 : vector<1x32xf32> to vector<32x32xf32>
    %42 = arith.mulf %40, %41 : vector<32x32xf32>
    %43 = vector.broadcast %8 : vector<1x32xf32> to vector<32x32xf32>
    %44 = arith.addf %42, %43 : vector<32x32xf32>
    %cst_22 = arith.constant 1.000000e+00 : f32
    %45 = vector.broadcast %cst_22 : f32 to vector<32x32xf32>
    %46 = arith.mulf %45, %44 : vector<32x32xf32>
    %47 = arith.addf %0, %46 : vector<32x32xf32>
    %c0_23 = arith.constant 0 : index
    %c0_24 = arith.constant 0 : index
    %48 = vector.load %arg15[%c0_23, %c0_24] : memref<32x32xf32, #tpu.memory_space<vmem>>, vector<32x32xf32>
    tpu.vector_store %arg15[%c0_23, %c0_24], %47 {strides = array<i32>} : memref<32x32xf32, #tpu.memory_space<vmem>>, vector<32x32xf32>,
    %c0_25 = arith.constant 0 : index
    %c0_26 = arith.constant 0 : index
    %49 = vector.load %arg2[%c0_25, %c0_26] : memref<64x32xf32, #tpu.memory_space<vmem>>, vector<64x32xf32>
    %c0_27 = arith.constant 0 : index
    %c0_28 = arith.constant 0 : index
    %50 = vector.load %arg9[%c0_27, %c0_28] : memref<32x32xbf16, #tpu.memory_space<vmem>>, vector<32x32xbf16>
    %c0_29 = arith.constant 0 : index
    %c0_30 = arith.constant 0 : index
    %51 = vector.load %arg10[%c0_29, %c0_30] : memref<1x32xf32, #tpu.memory_space<vmem>>, vector<1x32xf32>
    %c0_31 = arith.constant 0 : index
    %c0_32 = arith.constant 0 : index
    %52 = vector.load %arg11[%c0_31, %c0_32] : memref<32x32xbf16, #tpu.memory_space<vmem>>, vector<32x32xbf16>
    %c0_33 = arith.constant 0 : index
    %c0_34 = arith.constant 0 : index
    %53 = vector.load %arg12[%c0_33, %c0_34] : memref<1x32xf32, #tpu.memory_space<vmem>>, vector<1x32xf32>
    %c0_35 = arith.constant 0 : index
    %c0_36 = arith.constant 0 : index
    %54 = vector.load %arg13[%c0_35, %c0_36] : memref<1x32xf32, #tpu.memory_space<vmem>>, vector<1x32xf32>
    %c0_37 = arith.constant 0 : index
    %c0_38 = arith.constant 0 : index
    %55 = vector.load %arg14[%c0_37, %c0_38] : memref<1x32xf32, #tpu.memory_space<vmem>>, vector<1x32xf32>
    %56 = arith.truncf %49 : vector<64x32xf32> to vector<64x32xbf16>
    %cst_39 = arith.constant dense<0.000000e+00> : vector<64x32xf32>
    %57 = tpu.matmul %56, %50, %cst_39 {dimension_numbers = #tpu.dot_dimension_numbers<[1], [0], [0], [1], [0, 0, 1, 1], [], []>} : vector<64x32xbf16>, vector<32x32xbf16>, vector<64x32xf32> -> vector<64x32xf32>
    %58 = vector.broadcast %51 : vector<1x32xf32> to vector<64x32xf32>
    %59 = arith.addf %57, %58 : vector<64x32xf32>
    %60 = arith.negf %59 : vector<64x32xf32>
    %61 = math.exp %60 : vector<64x32xf32>
    %cst_40 = arith.constant 1.000000e+00 : f32
    %62 = vector.broadcast %cst_40 : f32 to vector<64x32xf32>
    %63 = arith.addf %62, %61 : vector<64x32xf32>
    %64 = arith.divf %62, %63 : vector<64x32xf32>
    %65 = arith.mulf %59, %64 : vector<64x32xf32>
    %66 = arith.truncf %65 : vector<64x32xf32> to vector<64x32xbf16>
    %cst_41 = arith.constant dense<0.000000e+00> : vector<64x32xf32>
    %67 = tpu.matmul %66, %52, %cst_41 {dimension_numbers = #tpu.dot_dimension_numbers<[1], [0], [0], [1], [0, 0, 1, 1], [], []>} : vector<64x32xbf16>, vector<32x32xbf16>, vector<64x32xf32> -> vector<64x32xf32>
    %68 = vector.broadcast %53 : vector<1x32xf32> to vector<64x32xf32>
    %69 = arith.addf %67, %68 : vector<64x32xf32>
    %cst_42 = arith.constant dense<0.000000e+00> : vector<64xf32>
    %70 = vector.multi_reduction <add>, %69, %cst_42 [1] : vector<64x32xf32> to vector<64xf32>
    %71 = vector.shape_cast %70 : vector<64xf32> to vector<64x1xf32>
    %cst_43 = arith.constant 3.200000e+01 : f32
    %72 = vector.broadcast %cst_43 : f32 to vector<64x1xf32>
    %73 = arith.divf %71, %72 : vector<64x1xf32>
    %74 = vector.broadcast %73 : vector<64x1xf32> to vector<64x32xf32>
    %75 = arith.subf %69, %74 : vector<64x32xf32>
    %76 = arith.mulf %75, %75 : vector<64x32xf32>
    %cst_44 = arith.constant dense<0.000000e+00> : vector<64xf32>
    %77 = vector.multi_reduction <add>, %76, %cst_44 [1] : vector<64x32xf32> to vector<64xf32>
    %78 = vector.shape_cast %77 : vector<64xf32> to vector<64x1xf32>
    %cst_45 = arith.constant 3.200000e+01 : f32
    %79 = vector.broadcast %cst_45 : f32 to vector<64x1xf32>
    %80 = arith.divf %78, %79 : vector<64x1xf32>
    %81 = vector.broadcast %73 : vector<64x1xf32> to vector<64x32xf32>
    %82 = arith.subf %69, %81 : vector<64x32xf32>
    %cst_46 = arith.constant 9.99999974E-6 : f32
    %83 = vector.broadcast %cst_46 : f32 to vector<64x1xf32>
    %84 = arith.addf %80, %83 : vector<64x1xf32>
    %85 = math.rsqrt %84 : vector<64x1xf32>
    %86 = vector.broadcast %85 : vector<64x1xf32> to vector<64x32xf32>
    %87 = arith.mulf %82, %86 : vector<64x32xf32>
    %88 = vector.broadcast %54 : vector<1x32xf32> to vector<64x32xf32>
    %89 = arith.mulf %87, %88 : vector<64x32xf32>
    %90 = vector.broadcast %55 : vector<1x32xf32> to vector<64x32xf32>
    %91 = arith.addf %89, %90 : vector<64x32xf32>
    %92 = arith.addf %49, %91 : vector<64x32xf32>
    %c0_47 = arith.constant 0 : index
    %c0_48 = arith.constant 0 : index
    %93 = vector.load %arg16[%c0_47, %c0_48] : memref<64x32xf32, #tpu.memory_space<vmem>>, vector<64x32xf32>
    tpu.vector_store %arg16[%c0_47, %c0_48], %92 {strides = array<i32>} : memref<64x32xf32, #tpu.memory_space<vmem>>, vector<64x32xf32>,
    return
  }
}

module attributes {stable_mosaic.version = 11 : i64} {
  func.func @_proc_kernel(%arg0: i32, %arg1: memref<1x16x32xf32, #tpu.memory_space<vmem>>, %arg2: memref<1x1x16xf32, #tpu.memory_space<vmem>>, %arg3: memref<2x16x64xbf16, #tpu.memory_space<vmem>>, %arg4: memref<2x1x64xf32, #tpu.memory_space<vmem>>, %arg5: memref<2x32x96xbf16, #tpu.memory_space<vmem>>, %arg6: memref<2x1x96xf32, #tpu.memory_space<vmem>>, %arg7: memref<2x32x32xbf16, #tpu.memory_space<vmem>>, %arg8: memref<2x1x32xf32, #tpu.memory_space<vmem>>, %arg9: memref<2x16x64xbf16, #tpu.memory_space<vmem>>, %arg10: memref<2x1x64xf32, #tpu.memory_space<vmem>>, %arg11: memref<2x32x32xbf16, #tpu.memory_space<vmem>>, %arg12: memref<2x1x32xf32, #tpu.memory_space<vmem>>, %arg13: memref<2x32x32xbf16, #tpu.memory_space<vmem>>, %arg14: memref<2x1x32xf32, #tpu.memory_space<vmem>>, %arg15: memref<1x16x32xf32, #tpu.memory_space<vmem>>) attributes {dimension_semantics = [#tpu.dimension_semantics<parallel>], iteration_bounds = array<i64: 2>, scalar_prefetch = 0 : i64, scratch_operands = 0 : i64, tpu.core_type = #tpu.core_type<tc>, window_params = [{transform_indices = @transform_0, window_bounds = array<i64: 1, 16, 32>}, {transform_indices = @transform_1, window_bounds = array<i64: 1, 1, 16>}, {pipeline_mode = #tpu.pipeline_mode<synchronous>, transform_indices = @transform_2, window_bounds = array<i64: 2, 16, 64>}, {pipeline_mode = #tpu.pipeline_mode<synchronous>, transform_indices = @transform_3, window_bounds = array<i64: 2, 1, 64>}, {pipeline_mode = #tpu.pipeline_mode<synchronous>, transform_indices = @transform_4, window_bounds = array<i64: 2, 32, 96>}, {pipeline_mode = #tpu.pipeline_mode<synchronous>, transform_indices = @transform_5, window_bounds = array<i64: 2, 1, 96>}, {pipeline_mode = #tpu.pipeline_mode<synchronous>, transform_indices = @transform_6, window_bounds = array<i64: 2, 32, 32>}, {pipeline_mode = #tpu.pipeline_mode<synchronous>, transform_indices = @transform_7, window_bounds = array<i64: 2, 1, 32>}, {pipeline_mode = #tpu.pipeline_mode<synchronous>, transform_indices = @transform_8, window_bounds = array<i64: 2, 16, 64>}, {pipeline_mode = #tpu.pipeline_mode<synchronous>, transform_indices = @transform_9, window_bounds = array<i64: 2, 1, 64>}, {pipeline_mode = #tpu.pipeline_mode<synchronous>, transform_indices = @transform_10, window_bounds = array<i64: 2, 32, 32>}, {pipeline_mode = #tpu.pipeline_mode<synchronous>, transform_indices = @transform_11, window_bounds = array<i64: 2, 1, 32>}, {pipeline_mode = #tpu.pipeline_mode<synchronous>, transform_indices = @transform_12, window_bounds = array<i64: 2, 32, 32>}, {pipeline_mode = #tpu.pipeline_mode<synchronous>, transform_indices = @transform_13, window_bounds = array<i64: 2, 1, 32>}, {transform_indices = @transform_14, window_bounds = array<i64: 1, 16, 32>}]} {
    %c0 = arith.constant 0 : index
    %c0_0 = arith.constant 0 : index
    %c0_1 = arith.constant 0 : index
    %0 = vector.load %arg1[%c0, %c0_0, %c0_1] : memref<1x16x32xf32, #tpu.memory_space<vmem>>, vector<1x16x32xf32>
    %1 = vector.shape_cast %0 : vector<1x16x32xf32> to vector<16x32xf32>
    %c0_2 = arith.constant 0 : index
    %c0_3 = arith.constant 0 : index
    %c0_4 = arith.constant 0 : index
    %2 = vector.load %arg2[%c0_2, %c0_3, %c0_4] : memref<1x1x16xf32, #tpu.memory_space<vmem>>, vector<1x1x16xf32>
    %3 = vector.shape_cast %2 : vector<1x1x16xf32> to vector<1x16xf32>
    %4 = arith.truncf %3 : vector<1x16xf32> to vector<1x16xbf16>
    %c0_5 = arith.constant 0 : index
    %c0_6 = arith.constant 0 : index
    %c0_7 = arith.constant 0 : index
    %5 = vector.load %arg3[%c0_5, %c0_6, %c0_7] : memref<2x16x64xbf16, #tpu.memory_space<vmem>>, vector<1x16x64xbf16>
    %6 = vector.shape_cast %5 : vector<1x16x64xbf16> to vector<16x64xbf16>
    %cst = arith.constant dense<0.000000e+00> : vector<1x64xf32>
    %7 = tpu.matmul %4, %6, %cst {dimension_numbers = #tpu.dot_dimension_numbers<[1], [0], [0], [1], [0, 0, 1, 1], [], []>} : vector<1x16xbf16>, vector<16x64xbf16>, vector<1x64xf32> -> vector<1x64xf32>
    %c0_8 = arith.constant 0 : index
    %c0_9 = arith.constant 0 : index
    %c0_10 = arith.constant 0 : index
    %8 = vector.load %arg4[%c0_8, %c0_9, %c0_10] : memref<2x1x64xf32, #tpu.memory_space<vmem>>, vector<1x1x64xf32>
    %9 = vector.shape_cast %8 : vector<1x1x64xf32> to vector<1x64xf32>
    %10 = arith.addf %7, %9 : vector<1x64xf32>
    %cst_11 = arith.constant dense<0.000000e+00> : vector<16xf32>
    %11 = vector.multi_reduction <add>, %1, %cst_11 [1] : vector<16x32xf32> to vector<16xf32>
    %12 = vector.shape_cast %11 : vector<16xf32> to vector<16x1xf32>
    %cst_12 = arith.constant 3.200000e+01 : f32
    %13 = vector.broadcast %cst_12 : f32 to vector<16x1xf32>
    %14 = arith.divf %12, %13 : vector<16x1xf32>
    %15 = vector.broadcast %14 : vector<16x1xf32> to vector<16x32xf32>
    %16 = arith.subf %1, %15 : vector<16x32xf32>
    %17 = arith.mulf %16, %16 : vector<16x32xf32>
    %cst_13 = arith.constant dense<0.000000e+00> : vector<16xf32>
    %18 = vector.multi_reduction <add>, %17, %cst_13 [1] : vector<16x32xf32> to vector<16xf32>
    %19 = vector.shape_cast %18 : vector<16xf32> to vector<16x1xf32>
    %cst_14 = arith.constant 3.200000e+01 : f32
    %20 = vector.broadcast %cst_14 : f32 to vector<16x1xf32>
    %21 = arith.divf %19, %20 : vector<16x1xf32>
    %22 = vector.broadcast %14 : vector<16x1xf32> to vector<16x32xf32>
    %23 = arith.subf %1, %22 : vector<16x32xf32>
    %cst_15 = arith.constant 9.99999974E-6 : f32
    %24 = vector.broadcast %cst_15 : f32 to vector<16x1xf32>
    %25 = arith.addf %21, %24 : vector<16x1xf32>
    %26 = math.rsqrt %25 : vector<16x1xf32>
    %27 = vector.broadcast %26 : vector<16x1xf32> to vector<16x32xf32>
    %28 = arith.mulf %23, %27 : vector<16x32xf32>
    %29 = vector.extract_strided_slice %10 {offsets = [0, 0], sizes = [1, 32], strides = [1, 1]} : vector<1x64xf32> to vector<1x32xf32>
    %30 = vector.broadcast %29 : vector<1x32xf32> to vector<16x32xf32>
    %31 = arith.mulf %28, %30 : vector<16x32xf32>
    %32 = vector.extract_strided_slice %10 {offsets = [0, 32], sizes = [1, 32], strides = [1, 1]} : vector<1x64xf32> to vector<1x32xf32>
    %33 = vector.broadcast %32 : vector<1x32xf32> to vector<16x32xf32>
    %34 = arith.addf %31, %33 : vector<16x32xf32>
    %35 = arith.truncf %34 : vector<16x32xf32> to vector<16x32xbf16>
    %c0_16 = arith.constant 0 : index
    %c0_17 = arith.constant 0 : index
    %c0_18 = arith.constant 0 : index
    %36 = vector.load %arg5[%c0_16, %c0_17, %c0_18] : memref<2x32x96xbf16, #tpu.memory_space<vmem>>, vector<1x32x96xbf16>
    %37 = vector.shape_cast %36 : vector<1x32x96xbf16> to vector<32x96xbf16>
    %cst_19 = arith.constant dense<0.000000e+00> : vector<16x96xf32>
    %38 = tpu.matmul %35, %37, %cst_19 {dimension_numbers = #tpu.dot_dimension_numbers<[1], [0], [0], [1], [0, 0, 1, 1], [], []>} : vector<16x32xbf16>, vector<32x96xbf16>, vector<16x96xf32> -> vector<16x96xf32>
    %c0_20 = arith.constant 0 : index
    %c0_21 = arith.constant 0 : index
    %c0_22 = arith.constant 0 : index
    %39 = vector.load %arg6[%c0_20, %c0_21, %c0_22] : memref<2x1x96xf32, #tpu.memory_space<vmem>>, vector<1x1x96xf32>
    %40 = vector.shape_cast %39 : vector<1x1x96xf32> to vector<1x96xf32>
    %41 = vector.broadcast %40 : vector<1x96xf32> to vector<16x96xf32>
    %42 = arith.addf %38, %41 : vector<16x96xf32>
    %43 = arith.truncf %42 : vector<16x96xf32> to vector<16x96xbf16>
    %44 = vector.extract_strided_slice %43 {offsets = [0, 0], sizes = [16, 8], strides = [1, 1]} : vector<16x96xbf16> to vector<16x8xbf16>
    %45 = vector.extract_strided_slice %43 {offsets = [0, 32], sizes = [16, 8], strides = [1, 1]} : vector<16x96xbf16> to vector<16x8xbf16>
    %46 = vector.extract_strided_slice %43 {offsets = [0, 64], sizes = [16, 8], strides = [1, 1]} : vector<16x96xbf16> to vector<16x8xbf16>
    %cst_23 = arith.constant dense<0.000000e+00> : vector<16x16xf32>
    %47 = tpu.matmul %44, %45, %cst_23 {dimension_numbers = #tpu.dot_dimension_numbers<[1], [1], [0], [0], [0, 0, 1, 0], [], []>} : vector<16x8xbf16>, vector<16x8xbf16>, vector<16x16xf32> -> vector<16x16xf32>
    %cst_24 = arith.constant 0.353553385 : f32
    %48 = vector.broadcast %cst_24 : f32 to vector<16x16xf32>
    %49 = arith.mulf %47, %48 : vector<16x16xf32>
    %cst_25 = arith.constant dense<0xFF800000> : vector<16xf32>
    %50 = vector.multi_reduction <maximumf>, %49, %cst_25 [1] : vector<16x16xf32> to vector<16xf32>
    %51 = vector.shape_cast %50 : vector<16xf32> to vector<16x1xf32>
    %52 = vector.broadcast %51 : vector<16x1xf32> to vector<16x16xf32>
    %53 = arith.subf %49, %52 : vector<16x16xf32>
    %54 = math.exp %53 : vector<16x16xf32>
    %cst_26 = arith.constant dense<0.000000e+00> : vector<16xf32>
    %55 = vector.multi_reduction <add>, %54, %cst_26 [1] : vector<16x16xf32> to vector<16xf32>
    %56 = vector.shape_cast %55 : vector<16xf32> to vector<16x1xf32>
    %57 = tpu.reciprocal %56 {approx = true} : vector<16x1xf32> -> vector<16x1xf32>
    %58 = vector.broadcast %57 : vector<16x1xf32> to vector<16x16xf32>
    %59 = arith.mulf %54, %58 : vector<16x16xf32>
    %60 = arith.truncf %59 : vector<16x16xf32> to vector<16x16xbf16>
    %cst_27 = arith.constant dense<0.000000e+00> : vector<16x8xf32>
    %61 = tpu.matmul %60, %46, %cst_27 {dimension_numbers = #tpu.dot_dimension_numbers<[1], [0], [0], [1], [0, 0, 1, 1], [], []>} : vector<16x16xbf16>, vector<16x8xbf16>, vector<16x8xf32> -> vector<16x8xf32>
    %62 = vector.extract_strided_slice %43 {offsets = [0, 8], sizes = [16, 8], strides = [1, 1]} : vector<16x96xbf16> to vector<16x8xbf16>
    %63 = vector.extract_strided_slice %43 {offsets = [0, 40], sizes = [16, 8], strides = [1, 1]} : vector<16x96xbf16> to vector<16x8xbf16>
    %64 = vector.extract_strided_slice %43 {offsets = [0, 72], sizes = [16, 8], strides = [1, 1]} : vector<16x96xbf16> to vector<16x8xbf16>
    %cst_28 = arith.constant dense<0.000000e+00> : vector<16x16xf32>
    %65 = tpu.matmul %62, %63, %cst_28 {dimension_numbers = #tpu.dot_dimension_numbers<[1], [1], [0], [0], [0, 0, 1, 0], [], []>} : vector<16x8xbf16>, vector<16x8xbf16>, vector<16x16xf32> -> vector<16x16xf32>
    %cst_29 = arith.constant 0.353553385 : f32
    %66 = vector.broadcast %cst_29 : f32 to vector<16x16xf32>
    %67 = arith.mulf %65, %66 : vector<16x16xf32>
    %cst_30 = arith.constant dense<0xFF800000> : vector<16xf32>
    %68 = vector.multi_reduction <maximumf>, %67, %cst_30 [1] : vector<16x16xf32> to vector<16xf32>
    %69 = vector.shape_cast %68 : vector<16xf32> to vector<16x1xf32>
    %70 = vector.broadcast %69 : vector<16x1xf32> to vector<16x16xf32>
    %71 = arith.subf %67, %70 : vector<16x16xf32>
    %72 = math.exp %71 : vector<16x16xf32>
    %cst_31 = arith.constant dense<0.000000e+00> : vector<16xf32>
    %73 = vector.multi_reduction <add>, %72, %cst_31 [1] : vector<16x16xf32> to vector<16xf32>
    %74 = vector.shape_cast %73 : vector<16xf32> to vector<16x1xf32>
    %75 = tpu.reciprocal %74 {approx = true} : vector<16x1xf32> -> vector<16x1xf32>
    %76 = vector.broadcast %75 : vector<16x1xf32> to vector<16x16xf32>
    %77 = arith.mulf %72, %76 : vector<16x16xf32>
    %78 = arith.truncf %77 : vector<16x16xf32> to vector<16x16xbf16>
    %cst_32 = arith.constant dense<0.000000e+00> : vector<16x8xf32>
    %79 = tpu.matmul %78, %64, %cst_32 {dimension_numbers = #tpu.dot_dimension_numbers<[1], [0], [0], [1], [0, 0, 1, 1], [], []>} : vector<16x16xbf16>, vector<16x8xbf16>, vector<16x8xf32> -> vector<16x8xf32>
    %80 = vector.extract_strided_slice %43 {offsets = [0, 16], sizes = [16, 8], strides = [1, 1]} : vector<16x96xbf16> to vector<16x8xbf16>
    %81 = vector.extract_strided_slice %43 {offsets = [0, 48], sizes = [16, 8], strides = [1, 1]} : vector<16x96xbf16> to vector<16x8xbf16>
    %82 = vector.extract_strided_slice %43 {offsets = [0, 80], sizes = [16, 8], strides = [1, 1]} : vector<16x96xbf16> to vector<16x8xbf16>
    %cst_33 = arith.constant dense<0.000000e+00> : vector<16x16xf32>
    %83 = tpu.matmul %80, %81, %cst_33 {dimension_numbers = #tpu.dot_dimension_numbers<[1], [1], [0], [0], [0, 0, 1, 0], [], []>} : vector<16x8xbf16>, vector<16x8xbf16>, vector<16x16xf32> -> vector<16x16xf32>
    %cst_34 = arith.constant 0.353553385 : f32
    %84 = vector.broadcast %cst_34 : f32 to vector<16x16xf32>
    %85 = arith.mulf %83, %84 : vector<16x16xf32>
    %cst_35 = arith.constant dense<0xFF800000> : vector<16xf32>
    %86 = vector.multi_reduction <maximumf>, %85, %cst_35 [1] : vector<16x16xf32> to vector<16xf32>
    %87 = vector.shape_cast %86 : vector<16xf32> to vector<16x1xf32>
    %88 = vector.broadcast %87 : vector<16x1xf32> to vector<16x16xf32>
    %89 = arith.subf %85, %88 : vector<16x16xf32>
    %90 = math.exp %89 : vector<16x16xf32>
    %cst_36 = arith.constant dense<0.000000e+00> : vector<16xf32>
    %91 = vector.multi_reduction <add>, %90, %cst_36 [1] : vector<16x16xf32> to vector<16xf32>
    %92 = vector.shape_cast %91 : vector<16xf32> to vector<16x1xf32>
    %93 = tpu.reciprocal %92 {approx = true} : vector<16x1xf32> -> vector<16x1xf32>
    %94 = vector.broadcast %93 : vector<16x1xf32> to vector<16x16xf32>
    %95 = arith.mulf %90, %94 : vector<16x16xf32>
    %96 = arith.truncf %95 : vector<16x16xf32> to vector<16x16xbf16>
    %cst_37 = arith.constant dense<0.000000e+00> : vector<16x8xf32>
    %97 = tpu.matmul %96, %82, %cst_37 {dimension_numbers = #tpu.dot_dimension_numbers<[1], [0], [0], [1], [0, 0, 1, 1], [], []>} : vector<16x16xbf16>, vector<16x8xbf16>, vector<16x8xf32> -> vector<16x8xf32>
    %98 = vector.extract_strided_slice %43 {offsets = [0, 24], sizes = [16, 8], strides = [1, 1]} : vector<16x96xbf16> to vector<16x8xbf16>
    %99 = vector.extract_strided_slice %43 {offsets = [0, 56], sizes = [16, 8], strides = [1, 1]} : vector<16x96xbf16> to vector<16x8xbf16>
    %100 = vector.extract_strided_slice %43 {offsets = [0, 88], sizes = [16, 8], strides = [1, 1]} : vector<16x96xbf16> to vector<16x8xbf16>
    %cst_38 = arith.constant dense<0.000000e+00> : vector<16x16xf32>
    %101 = tpu.matmul %98, %99, %cst_38 {dimension_numbers = #tpu.dot_dimension_numbers<[1], [1], [0], [0], [0, 0, 1, 0], [], []>} : vector<16x8xbf16>, vector<16x8xbf16>, vector<16x16xf32> -> vector<16x16xf32>
    %cst_39 = arith.constant 0.353553385 : f32
    %102 = vector.broadcast %cst_39 : f32 to vector<16x16xf32>
    %103 = arith.mulf %101, %102 : vector<16x16xf32>
    %cst_40 = arith.constant dense<0xFF800000> : vector<16xf32>
    %104 = vector.multi_reduction <maximumf>, %103, %cst_40 [1] : vector<16x16xf32> to vector<16xf32>
    %105 = vector.shape_cast %104 : vector<16xf32> to vector<16x1xf32>
    %106 = vector.broadcast %105 : vector<16x1xf32> to vector<16x16xf32>
    %107 = arith.subf %103, %106 : vector<16x16xf32>
    %108 = math.exp %107 : vector<16x16xf32>
    %cst_41 = arith.constant dense<0.000000e+00> : vector<16xf32>
    %109 = vector.multi_reduction <add>, %108, %cst_41 [1] : vector<16x16xf32> to vector<16xf32>
    %110 = vector.shape_cast %109 : vector<16xf32> to vector<16x1xf32>
    %111 = tpu.reciprocal %110 {approx = true} : vector<16x1xf32> -> vector<16x1xf32>
    %112 = vector.broadcast %111 : vector<16x1xf32> to vector<16x16xf32>
    %113 = arith.mulf %108, %112 : vector<16x16xf32>
    %114 = arith.truncf %113 : vector<16x16xf32> to vector<16x16xbf16>
    %cst_42 = arith.constant dense<0.000000e+00> : vector<16x8xf32>
    %115 = tpu.matmul %114, %100, %cst_42 {dimension_numbers = #tpu.dot_dimension_numbers<[1], [0], [0], [1], [0, 0, 1, 1], [], []>} : vector<16x16xbf16>, vector<16x8xbf16>, vector<16x8xf32> -> vector<16x8xf32>
    %116 = tpu.concatenate %61, %79, %97, %115 in 1 : vector<16x8xf32>, vector<16x8xf32>, vector<16x8xf32>, vector<16x8xf32> -> vector<16x32xf32>
    %117 = arith.truncf %116 : vector<16x32xf32> to vector<16x32xbf16>
    %c0_43 = arith.constant 0 : index
    %c0_44 = arith.constant 0 : index
    %c0_45 = arith.constant 0 : index
    %118 = vector.load %arg7[%c0_43, %c0_44, %c0_45] : memref<2x32x32xbf16, #tpu.memory_space<vmem>>, vector<1x32x32xbf16>
    %119 = vector.shape_cast %118 : vector<1x32x32xbf16> to vector<32x32xbf16>
    %cst_46 = arith.constant dense<0.000000e+00> : vector<16x32xf32>
    %120 = tpu.matmul %117, %119, %cst_46 {dimension_numbers = #tpu.dot_dimension_numbers<[1], [0], [0], [1], [0, 0, 1, 1], [], []>} : vector<16x32xbf16>, vector<32x32xbf16>, vector<16x32xf32> -> vector<16x32xf32>
    %121 = arith.addf %1, %120 : vector<16x32xf32>
    %c0_47 = arith.constant 0 : index
    %c0_48 = arith.constant 0 : index
    %c0_49 = arith.constant 0 : index
    %122 = vector.load %arg8[%c0_47, %c0_48, %c0_49] : memref<2x1x32xf32, #tpu.memory_space<vmem>>, vector<1x1x32xf32>
    %123 = vector.shape_cast %122 : vector<1x1x32xf32> to vector<1x32xf32>
    %124 = vector.broadcast %123 : vector<1x32xf32> to vector<16x32xf32>
    %125 = arith.addf %121, %124 : vector<16x32xf32>
    %c0_50 = arith.constant 0 : index
    %c0_51 = arith.constant 0 : index
    %c0_52 = arith.constant 0 : index
    %126 = vector.load %arg9[%c0_50, %c0_51, %c0_52] : memref<2x16x64xbf16, #tpu.memory_space<vmem>>, vector<1x16x64xbf16>
    %127 = vector.shape_cast %126 : vector<1x16x64xbf16> to vector<16x64xbf16>
    %cst_53 = arith.constant dense<0.000000e+00> : vector<1x64xf32>
    %128 = tpu.matmul %4, %127, %cst_53 {dimension_numbers = #tpu.dot_dimension_numbers<[1], [0], [0], [1], [0, 0, 1, 1], [], []>} : vector<1x16xbf16>, vector<16x64xbf16>, vector<1x64xf32> -> vector<1x64xf32>
    %c0_54 = arith.constant 0 : index
    %c0_55 = arith.constant 0 : index
    %c0_56 = arith.constant 0 : index
    %129 = vector.load %arg10[%c0_54, %c0_55, %c0_56] : memref<2x1x64xf32, #tpu.memory_space<vmem>>, vector<1x1x64xf32>
    %130 = vector.shape_cast %129 : vector<1x1x64xf32> to vector<1x64xf32>
    %131 = arith.addf %128, %130 : vector<1x64xf32>
    %cst_57 = arith.constant dense<0.000000e+00> : vector<16xf32>
    %132 = vector.multi_reduction <add>, %125, %cst_57 [1] : vector<16x32xf32> to vector<16xf32>
    %133 = vector.shape_cast %132 : vector<16xf32> to vector<16x1xf32>
    %cst_58 = arith.constant 3.200000e+01 : f32
    %134 = vector.broadcast %cst_58 : f32 to vector<16x1xf32>
    %135 = arith.divf %133, %134 : vector<16x1xf32>
    %136 = vector.broadcast %135 : vector<16x1xf32> to vector<16x32xf32>
    %137 = arith.subf %125, %136 : vector<16x32xf32>
    %138 = arith.mulf %137, %137 : vector<16x32xf32>
    %cst_59 = arith.constant dense<0.000000e+00> : vector<16xf32>
    %139 = vector.multi_reduction <add>, %138, %cst_59 [1] : vector<16x32xf32> to vector<16xf32>
    %140 = vector.shape_cast %139 : vector<16xf32> to vector<16x1xf32>
    %cst_60 = arith.constant 3.200000e+01 : f32
    %141 = vector.broadcast %cst_60 : f32 to vector<16x1xf32>
    %142 = arith.divf %140, %141 : vector<16x1xf32>
    %143 = vector.broadcast %135 : vector<16x1xf32> to vector<16x32xf32>
    %144 = arith.subf %125, %143 : vector<16x32xf32>
    %cst_61 = arith.constant 9.99999974E-6 : f32
    %145 = vector.broadcast %cst_61 : f32 to vector<16x1xf32>
    %146 = arith.addf %142, %145 : vector<16x1xf32>
    %147 = math.rsqrt %146 : vector<16x1xf32>
    %148 = vector.broadcast %147 : vector<16x1xf32> to vector<16x32xf32>
    %149 = arith.mulf %144, %148 : vector<16x32xf32>
    %150 = vector.extract_strided_slice %131 {offsets = [0, 0], sizes = [1, 32], strides = [1, 1]} : vector<1x64xf32> to vector<1x32xf32>
    %151 = vector.broadcast %150 : vector<1x32xf32> to vector<16x32xf32>
    %152 = arith.mulf %149, %151 : vector<16x32xf32>
    %153 = vector.extract_strided_slice %131 {offsets = [0, 32], sizes = [1, 32], strides = [1, 1]} : vector<1x64xf32> to vector<1x32xf32>
    %154 = vector.broadcast %153 : vector<1x32xf32> to vector<16x32xf32>
    %155 = arith.addf %152, %154 : vector<16x32xf32>
    %156 = arith.truncf %155 : vector<16x32xf32> to vector<16x32xbf16>
    %c0_62 = arith.constant 0 : index
    %c0_63 = arith.constant 0 : index
    %c0_64 = arith.constant 0 : index
    %157 = vector.load %arg11[%c0_62, %c0_63, %c0_64] : memref<2x32x32xbf16, #tpu.memory_space<vmem>>, vector<1x32x32xbf16>
    %158 = vector.shape_cast %157 : vector<1x32x32xbf16> to vector<32x32xbf16>
    %cst_65 = arith.constant dense<0.000000e+00> : vector<16x32xf32>
    %159 = tpu.matmul %156, %158, %cst_65 {dimension_numbers = #tpu.dot_dimension_numbers<[1], [0], [0], [1], [0, 0, 1, 1], [], []>} : vector<16x32xbf16>, vector<32x32xbf16>, vector<16x32xf32> -> vector<16x32xf32>
    %c0_66 = arith.constant 0 : index
    %c0_67 = arith.constant 0 : index
    %c0_68 = arith.constant 0 : index
    %160 = vector.load %arg12[%c0_66, %c0_67, %c0_68] : memref<2x1x32xf32, #tpu.memory_space<vmem>>, vector<1x1x32xf32>
    %161 = vector.shape_cast %160 : vector<1x1x32xf32> to vector<1x32xf32>
    %162 = vector.broadcast %161 : vector<1x32xf32> to vector<16x32xf32>
    %163 = arith.addf %159, %162 : vector<16x32xf32>
    %164 = arith.negf %163 : vector<16x32xf32>
    %165 = math.exp %164 : vector<16x32xf32>
    %cst_69 = arith.constant 1.000000e+00 : f32
    %166 = vector.broadcast %cst_69 : f32 to vector<16x32xf32>
    %167 = arith.addf %166, %165 : vector<16x32xf32>
    %168 = arith.divf %166, %167 : vector<16x32xf32>
    %169 = arith.mulf %163, %168 : vector<16x32xf32>
    %170 = arith.truncf %169 : vector<16x32xf32> to vector<16x32xbf16>
    %c0_70 = arith.constant 0 : index
    %c0_71 = arith.constant 0 : index
    %c0_72 = arith.constant 0 : index
    %171 = vector.load %arg13[%c0_70, %c0_71, %c0_72] : memref<2x32x32xbf16, #tpu.memory_space<vmem>>, vector<1x32x32xbf16>
    %172 = vector.shape_cast %171 : vector<1x32x32xbf16> to vector<32x32xbf16>
    %cst_73 = arith.constant dense<0.000000e+00> : vector<16x32xf32>
    %173 = tpu.matmul %170, %172, %cst_73 {dimension_numbers = #tpu.dot_dimension_numbers<[1], [0], [0], [1], [0, 0, 1, 1], [], []>} : vector<16x32xbf16>, vector<32x32xbf16>, vector<16x32xf32> -> vector<16x32xf32>
    %174 = arith.addf %125, %173 : vector<16x32xf32>
    %c0_74 = arith.constant 0 : index
    %c0_75 = arith.constant 0 : index
    %c0_76 = arith.constant 0 : index
    %175 = vector.load %arg14[%c0_74, %c0_75, %c0_76] : memref<2x1x32xf32, #tpu.memory_space<vmem>>, vector<1x1x32xf32>
    %176 = vector.shape_cast %175 : vector<1x1x32xf32> to vector<1x32xf32>
    %177 = vector.broadcast %176 : vector<1x32xf32> to vector<16x32xf32>
    %178 = arith.addf %174, %177 : vector<16x32xf32>
    %c1 = arith.constant 1 : index
    %c0_77 = arith.constant 0 : index
    %c0_78 = arith.constant 0 : index
    %179 = vector.load %arg3[%c1, %c0_77, %c0_78] : memref<2x16x64xbf16, #tpu.memory_space<vmem>>, vector<1x16x64xbf16>
    %180 = vector.shape_cast %179 : vector<1x16x64xbf16> to vector<16x64xbf16>
    %cst_79 = arith.constant dense<0.000000e+00> : vector<1x64xf32>
    %181 = tpu.matmul %4, %180, %cst_79 {dimension_numbers = #tpu.dot_dimension_numbers<[1], [0], [0], [1], [0, 0, 1, 1], [], []>} : vector<1x16xbf16>, vector<16x64xbf16>, vector<1x64xf32> -> vector<1x64xf32>
    %c1_80 = arith.constant 1 : index
    %c0_81 = arith.constant 0 : index
    %c0_82 = arith.constant 0 : index
    %182 = vector.load %arg4[%c1_80, %c0_81, %c0_82] : memref<2x1x64xf32, #tpu.memory_space<vmem>>, vector<1x1x64xf32>
    %183 = vector.shape_cast %182 : vector<1x1x64xf32> to vector<1x64xf32>
    %184 = arith.addf %181, %183 : vector<1x64xf32>
    %cst_83 = arith.constant dense<0.000000e+00> : vector<16xf32>
    %185 = vector.multi_reduction <add>, %178, %cst_83 [1] : vector<16x32xf32> to vector<16xf32>
    %186 = vector.shape_cast %185 : vector<16xf32> to vector<16x1xf32>
    %cst_84 = arith.constant 3.200000e+01 : f32
    %187 = vector.broadcast %cst_84 : f32 to vector<16x1xf32>
    %188 = arith.divf %186, %187 : vector<16x1xf32>
    %189 = vector.broadcast %188 : vector<16x1xf32> to vector<16x32xf32>
    %190 = arith.subf %178, %189 : vector<16x32xf32>
    %191 = arith.mulf %190, %190 : vector<16x32xf32>
    %cst_85 = arith.constant dense<0.000000e+00> : vector<16xf32>
    %192 = vector.multi_reduction <add>, %191, %cst_85 [1] : vector<16x32xf32> to vector<16xf32>
    %193 = vector.shape_cast %192 : vector<16xf32> to vector<16x1xf32>
    %cst_86 = arith.constant 3.200000e+01 : f32
    %194 = vector.broadcast %cst_86 : f32 to vector<16x1xf32>
    %195 = arith.divf %193, %194 : vector<16x1xf32>
    %196 = vector.broadcast %188 : vector<16x1xf32> to vector<16x32xf32>
    %197 = arith.subf %178, %196 : vector<16x32xf32>
    %cst_87 = arith.constant 9.99999974E-6 : f32
    %198 = vector.broadcast %cst_87 : f32 to vector<16x1xf32>
    %199 = arith.addf %195, %198 : vector<16x1xf32>
    %200 = math.rsqrt %199 : vector<16x1xf32>
    %201 = vector.broadcast %200 : vector<16x1xf32> to vector<16x32xf32>
    %202 = arith.mulf %197, %201 : vector<16x32xf32>
    %203 = vector.extract_strided_slice %184 {offsets = [0, 0], sizes = [1, 32], strides = [1, 1]} : vector<1x64xf32> to vector<1x32xf32>
    %204 = vector.broadcast %203 : vector<1x32xf32> to vector<16x32xf32>
    %205 = arith.mulf %202, %204 : vector<16x32xf32>
    %206 = vector.extract_strided_slice %184 {offsets = [0, 32], sizes = [1, 32], strides = [1, 1]} : vector<1x64xf32> to vector<1x32xf32>
    %207 = vector.broadcast %206 : vector<1x32xf32> to vector<16x32xf32>
    %208 = arith.addf %205, %207 : vector<16x32xf32>
    %209 = arith.truncf %208 : vector<16x32xf32> to vector<16x32xbf16>
    %c1_88 = arith.constant 1 : index
    %c0_89 = arith.constant 0 : index
    %c0_90 = arith.constant 0 : index
    %210 = vector.load %arg5[%c1_88, %c0_89, %c0_90] : memref<2x32x96xbf16, #tpu.memory_space<vmem>>, vector<1x32x96xbf16>
    %211 = vector.shape_cast %210 : vector<1x32x96xbf16> to vector<32x96xbf16>
    %cst_91 = arith.constant dense<0.000000e+00> : vector<16x96xf32>
    %212 = tpu.matmul %209, %211, %cst_91 {dimension_numbers = #tpu.dot_dimension_numbers<[1], [0], [0], [1], [0, 0, 1, 1], [], []>} : vector<16x32xbf16>, vector<32x96xbf16>, vector<16x96xf32> -> vector<16x96xf32>
    %c1_92 = arith.constant 1 : index
    %c0_93 = arith.constant 0 : index
    %c0_94 = arith.constant 0 : index
    %213 = vector.load %arg6[%c1_92, %c0_93, %c0_94] : memref<2x1x96xf32, #tpu.memory_space<vmem>>, vector<1x1x96xf32>
    %214 = vector.shape_cast %213 : vector<1x1x96xf32> to vector<1x96xf32>
    %215 = vector.broadcast %214 : vector<1x96xf32> to vector<16x96xf32>
    %216 = arith.addf %212, %215 : vector<16x96xf32>
    %217 = arith.truncf %216 : vector<16x96xf32> to vector<16x96xbf16>
    %218 = vector.extract_strided_slice %217 {offsets = [0, 0], sizes = [16, 8], strides = [1, 1]} : vector<16x96xbf16> to vector<16x8xbf16>
    %219 = vector.extract_strided_slice %217 {offsets = [0, 32], sizes = [16, 8], strides = [1, 1]} : vector<16x96xbf16> to vector<16x8xbf16>
    %220 = vector.extract_strided_slice %217 {offsets = [0, 64], sizes = [16, 8], strides = [1, 1]} : vector<16x96xbf16> to vector<16x8xbf16>
    %cst_95 = arith.constant dense<0.000000e+00> : vector<16x16xf32>
    %221 = tpu.matmul %218, %219, %cst_95 {dimension_numbers = #tpu.dot_dimension_numbers<[1], [1], [0], [0], [0, 0, 1, 0], [], []>} : vector<16x8xbf16>, vector<16x8xbf16>, vector<16x16xf32> -> vector<16x16xf32>
    %cst_96 = arith.constant 0.353553385 : f32
    %222 = vector.broadcast %cst_96 : f32 to vector<16x16xf32>
    %223 = arith.mulf %221, %222 : vector<16x16xf32>
    %cst_97 = arith.constant dense<0xFF800000> : vector<16xf32>
    %224 = vector.multi_reduction <maximumf>, %223, %cst_97 [1] : vector<16x16xf32> to vector<16xf32>
    %225 = vector.shape_cast %224 : vector<16xf32> to vector<16x1xf32>
    %226 = vector.broadcast %225 : vector<16x1xf32> to vector<16x16xf32>
    %227 = arith.subf %223, %226 : vector<16x16xf32>
    %228 = math.exp %227 : vector<16x16xf32>
    %cst_98 = arith.constant dense<0.000000e+00> : vector<16xf32>
    %229 = vector.multi_reduction <add>, %228, %cst_98 [1] : vector<16x16xf32> to vector<16xf32>
    %230 = vector.shape_cast %229 : vector<16xf32> to vector<16x1xf32>
    %231 = tpu.reciprocal %230 {approx = true} : vector<16x1xf32> -> vector<16x1xf32>
    %232 = vector.broadcast %231 : vector<16x1xf32> to vector<16x16xf32>
    %233 = arith.mulf %228, %232 : vector<16x16xf32>
    %234 = arith.truncf %233 : vector<16x16xf32> to vector<16x16xbf16>
    %cst_99 = arith.constant dense<0.000000e+00> : vector<16x8xf32>
    %235 = tpu.matmul %234, %220, %cst_99 {dimension_numbers = #tpu.dot_dimension_numbers<[1], [0], [0], [1], [0, 0, 1, 1], [], []>} : vector<16x16xbf16>, vector<16x8xbf16>, vector<16x8xf32> -> vector<16x8xf32>
    %236 = vector.extract_strided_slice %217 {offsets = [0, 8], sizes = [16, 8], strides = [1, 1]} : vector<16x96xbf16> to vector<16x8xbf16>
    %237 = vector.extract_strided_slice %217 {offsets = [0, 40], sizes = [16, 8], strides = [1, 1]} : vector<16x96xbf16> to vector<16x8xbf16>
    %238 = vector.extract_strided_slice %217 {offsets = [0, 72], sizes = [16, 8], strides = [1, 1]} : vector<16x96xbf16> to vector<16x8xbf16>
    %cst_100 = arith.constant dense<0.000000e+00> : vector<16x16xf32>
    %239 = tpu.matmul %236, %237, %cst_100 {dimension_numbers = #tpu.dot_dimension_numbers<[1], [1], [0], [0], [0, 0, 1, 0], [], []>} : vector<16x8xbf16>, vector<16x8xbf16>, vector<16x16xf32> -> vector<16x16xf32>
    %cst_101 = arith.constant 0.353553385 : f32
    %240 = vector.broadcast %cst_101 : f32 to vector<16x16xf32>
    %241 = arith.mulf %239, %240 : vector<16x16xf32>
    %cst_102 = arith.constant dense<0xFF800000> : vector<16xf32>
    %242 = vector.multi_reduction <maximumf>, %241, %cst_102 [1] : vector<16x16xf32> to vector<16xf32>
    %243 = vector.shape_cast %242 : vector<16xf32> to vector<16x1xf32>
    %244 = vector.broadcast %243 : vector<16x1xf32> to vector<16x16xf32>
    %245 = arith.subf %241, %244 : vector<16x16xf32>
    %246 = math.exp %245 : vector<16x16xf32>
    %cst_103 = arith.constant dense<0.000000e+00> : vector<16xf32>
    %247 = vector.multi_reduction <add>, %246, %cst_103 [1] : vector<16x16xf32> to vector<16xf32>
    %248 = vector.shape_cast %247 : vector<16xf32> to vector<16x1xf32>
    %249 = tpu.reciprocal %248 {approx = true} : vector<16x1xf32> -> vector<16x1xf32>
    %250 = vector.broadcast %249 : vector<16x1xf32> to vector<16x16xf32>
    %251 = arith.mulf %246, %250 : vector<16x16xf32>
    %252 = arith.truncf %251 : vector<16x16xf32> to vector<16x16xbf16>
    %cst_104 = arith.constant dense<0.000000e+00> : vector<16x8xf32>
    %253 = tpu.matmul %252, %238, %cst_104 {dimension_numbers = #tpu.dot_dimension_numbers<[1], [0], [0], [1], [0, 0, 1, 1], [], []>} : vector<16x16xbf16>, vector<16x8xbf16>, vector<16x8xf32> -> vector<16x8xf32>
    %254 = vector.extract_strided_slice %217 {offsets = [0, 16], sizes = [16, 8], strides = [1, 1]} : vector<16x96xbf16> to vector<16x8xbf16>
    %255 = vector.extract_strided_slice %217 {offsets = [0, 48], sizes = [16, 8], strides = [1, 1]} : vector<16x96xbf16> to vector<16x8xbf16>
    %256 = vector.extract_strided_slice %217 {offsets = [0, 80], sizes = [16, 8], strides = [1, 1]} : vector<16x96xbf16> to vector<16x8xbf16>
    %cst_105 = arith.constant dense<0.000000e+00> : vector<16x16xf32>
    %257 = tpu.matmul %254, %255, %cst_105 {dimension_numbers = #tpu.dot_dimension_numbers<[1], [1], [0], [0], [0, 0, 1, 0], [], []>} : vector<16x8xbf16>, vector<16x8xbf16>, vector<16x16xf32> -> vector<16x16xf32>
    %cst_106 = arith.constant 0.353553385 : f32
    %258 = vector.broadcast %cst_106 : f32 to vector<16x16xf32>
    %259 = arith.mulf %257, %258 : vector<16x16xf32>
    %cst_107 = arith.constant dense<0xFF800000> : vector<16xf32>
    %260 = vector.multi_reduction <maximumf>, %259, %cst_107 [1] : vector<16x16xf32> to vector<16xf32>
    %261 = vector.shape_cast %260 : vector<16xf32> to vector<16x1xf32>
    %262 = vector.broadcast %261 : vector<16x1xf32> to vector<16x16xf32>
    %263 = arith.subf %259, %262 : vector<16x16xf32>
    %264 = math.exp %263 : vector<16x16xf32>
    %cst_108 = arith.constant dense<0.000000e+00> : vector<16xf32>
    %265 = vector.multi_reduction <add>, %264, %cst_108 [1] : vector<16x16xf32> to vector<16xf32>
    %266 = vector.shape_cast %265 : vector<16xf32> to vector<16x1xf32>
    %267 = tpu.reciprocal %266 {approx = true} : vector<16x1xf32> -> vector<16x1xf32>
    %268 = vector.broadcast %267 : vector<16x1xf32> to vector<16x16xf32>
    %269 = arith.mulf %264, %268 : vector<16x16xf32>
    %270 = arith.truncf %269 : vector<16x16xf32> to vector<16x16xbf16>
    %cst_109 = arith.constant dense<0.000000e+00> : vector<16x8xf32>
    %271 = tpu.matmul %270, %256, %cst_109 {dimension_numbers = #tpu.dot_dimension_numbers<[1], [0], [0], [1], [0, 0, 1, 1], [], []>} : vector<16x16xbf16>, vector<16x8xbf16>, vector<16x8xf32> -> vector<16x8xf32>
    %272 = vector.extract_strided_slice %217 {offsets = [0, 24], sizes = [16, 8], strides = [1, 1]} : vector<16x96xbf16> to vector<16x8xbf16>
    %273 = vector.extract_strided_slice %217 {offsets = [0, 56], sizes = [16, 8], strides = [1, 1]} : vector<16x96xbf16> to vector<16x8xbf16>
    %274 = vector.extract_strided_slice %217 {offsets = [0, 88], sizes = [16, 8], strides = [1, 1]} : vector<16x96xbf16> to vector<16x8xbf16>
    %cst_110 = arith.constant dense<0.000000e+00> : vector<16x16xf32>
    %275 = tpu.matmul %272, %273, %cst_110 {dimension_numbers = #tpu.dot_dimension_numbers<[1], [1], [0], [0], [0, 0, 1, 0], [], []>} : vector<16x8xbf16>, vector<16x8xbf16>, vector<16x16xf32> -> vector<16x16xf32>
    %cst_111 = arith.constant 0.353553385 : f32
    %276 = vector.broadcast %cst_111 : f32 to vector<16x16xf32>
    %277 = arith.mulf %275, %276 : vector<16x16xf32>
    %cst_112 = arith.constant dense<0xFF800000> : vector<16xf32>
    %278 = vector.multi_reduction <maximumf>, %277, %cst_112 [1] : vector<16x16xf32> to vector<16xf32>
    %279 = vector.shape_cast %278 : vector<16xf32> to vector<16x1xf32>
    %280 = vector.broadcast %279 : vector<16x1xf32> to vector<16x16xf32>
    %281 = arith.subf %277, %280 : vector<16x16xf32>
    %282 = math.exp %281 : vector<16x16xf32>
    %cst_113 = arith.constant dense<0.000000e+00> : vector<16xf32>
    %283 = vector.multi_reduction <add>, %282, %cst_113 [1] : vector<16x16xf32> to vector<16xf32>
    %284 = vector.shape_cast %283 : vector<16xf32> to vector<16x1xf32>
    %285 = tpu.reciprocal %284 {approx = true} : vector<16x1xf32> -> vector<16x1xf32>
    %286 = vector.broadcast %285 : vector<16x1xf32> to vector<16x16xf32>
    %287 = arith.mulf %282, %286 : vector<16x16xf32>
    %288 = arith.truncf %287 : vector<16x16xf32> to vector<16x16xbf16>
    %cst_114 = arith.constant dense<0.000000e+00> : vector<16x8xf32>
    %289 = tpu.matmul %288, %274, %cst_114 {dimension_numbers = #tpu.dot_dimension_numbers<[1], [0], [0], [1], [0, 0, 1, 1], [], []>} : vector<16x16xbf16>, vector<16x8xbf16>, vector<16x8xf32> -> vector<16x8xf32>
    %290 = tpu.concatenate %235, %253, %271, %289 in 1 : vector<16x8xf32>, vector<16x8xf32>, vector<16x8xf32>, vector<16x8xf32> -> vector<16x32xf32>
    %291 = arith.truncf %290 : vector<16x32xf32> to vector<16x32xbf16>
    %c1_115 = arith.constant 1 : index
    %c0_116 = arith.constant 0 : index
    %c0_117 = arith.constant 0 : index
    %292 = vector.load %arg7[%c1_115, %c0_116, %c0_117] : memref<2x32x32xbf16, #tpu.memory_space<vmem>>, vector<1x32x32xbf16>
    %293 = vector.shape_cast %292 : vector<1x32x32xbf16> to vector<32x32xbf16>
    %cst_118 = arith.constant dense<0.000000e+00> : vector<16x32xf32>
    %294 = tpu.matmul %291, %293, %cst_118 {dimension_numbers = #tpu.dot_dimension_numbers<[1], [0], [0], [1], [0, 0, 1, 1], [], []>} : vector<16x32xbf16>, vector<32x32xbf16>, vector<16x32xf32> -> vector<16x32xf32>
    %295 = arith.addf %178, %294 : vector<16x32xf32>
    %c1_119 = arith.constant 1 : index
    %c0_120 = arith.constant 0 : index
    %c0_121 = arith.constant 0 : index
    %296 = vector.load %arg8[%c1_119, %c0_120, %c0_121] : memref<2x1x32xf32, #tpu.memory_space<vmem>>, vector<1x1x32xf32>
    %297 = vector.shape_cast %296 : vector<1x1x32xf32> to vector<1x32xf32>
    %298 = vector.broadcast %297 : vector<1x32xf32> to vector<16x32xf32>
    %299 = arith.addf %295, %298 : vector<16x32xf32>
    %c1_122 = arith.constant 1 : index
    %c0_123 = arith.constant 0 : index
    %c0_124 = arith.constant 0 : index
    %300 = vector.load %arg9[%c1_122, %c0_123, %c0_124] : memref<2x16x64xbf16, #tpu.memory_space<vmem>>, vector<1x16x64xbf16>
    %301 = vector.shape_cast %300 : vector<1x16x64xbf16> to vector<16x64xbf16>
    %cst_125 = arith.constant dense<0.000000e+00> : vector<1x64xf32>
    %302 = tpu.matmul %4, %301, %cst_125 {dimension_numbers = #tpu.dot_dimension_numbers<[1], [0], [0], [1], [0, 0, 1, 1], [], []>} : vector<1x16xbf16>, vector<16x64xbf16>, vector<1x64xf32> -> vector<1x64xf32>
    %c1_126 = arith.constant 1 : index
    %c0_127 = arith.constant 0 : index
    %c0_128 = arith.constant 0 : index
    %303 = vector.load %arg10[%c1_126, %c0_127, %c0_128] : memref<2x1x64xf32, #tpu.memory_space<vmem>>, vector<1x1x64xf32>
    %304 = vector.shape_cast %303 : vector<1x1x64xf32> to vector<1x64xf32>
    %305 = arith.addf %302, %304 : vector<1x64xf32>
    %cst_129 = arith.constant dense<0.000000e+00> : vector<16xf32>
    %306 = vector.multi_reduction <add>, %299, %cst_129 [1] : vector<16x32xf32> to vector<16xf32>
    %307 = vector.shape_cast %306 : vector<16xf32> to vector<16x1xf32>
    %cst_130 = arith.constant 3.200000e+01 : f32
    %308 = vector.broadcast %cst_130 : f32 to vector<16x1xf32>
    %309 = arith.divf %307, %308 : vector<16x1xf32>
    %310 = vector.broadcast %309 : vector<16x1xf32> to vector<16x32xf32>
    %311 = arith.subf %299, %310 : vector<16x32xf32>
    %312 = arith.mulf %311, %311 : vector<16x32xf32>
    %cst_131 = arith.constant dense<0.000000e+00> : vector<16xf32>
    %313 = vector.multi_reduction <add>, %312, %cst_131 [1] : vector<16x32xf32> to vector<16xf32>
    %314 = vector.shape_cast %313 : vector<16xf32> to vector<16x1xf32>
    %cst_132 = arith.constant 3.200000e+01 : f32
    %315 = vector.broadcast %cst_132 : f32 to vector<16x1xf32>
    %316 = arith.divf %314, %315 : vector<16x1xf32>
    %317 = vector.broadcast %309 : vector<16x1xf32> to vector<16x32xf32>
    %318 = arith.subf %299, %317 : vector<16x32xf32>
    %cst_133 = arith.constant 9.99999974E-6 : f32
    %319 = vector.broadcast %cst_133 : f32 to vector<16x1xf32>
    %320 = arith.addf %316, %319 : vector<16x1xf32>
    %321 = math.rsqrt %320 : vector<16x1xf32>
    %322 = vector.broadcast %321 : vector<16x1xf32> to vector<16x32xf32>
    %323 = arith.mulf %318, %322 : vector<16x32xf32>
    %324 = vector.extract_strided_slice %305 {offsets = [0, 0], sizes = [1, 32], strides = [1, 1]} : vector<1x64xf32> to vector<1x32xf32>
    %325 = vector.broadcast %324 : vector<1x32xf32> to vector<16x32xf32>
    %326 = arith.mulf %323, %325 : vector<16x32xf32>
    %327 = vector.extract_strided_slice %305 {offsets = [0, 32], sizes = [1, 32], strides = [1, 1]} : vector<1x64xf32> to vector<1x32xf32>
    %328 = vector.broadcast %327 : vector<1x32xf32> to vector<16x32xf32>
    %329 = arith.addf %326, %328 : vector<16x32xf32>
    %330 = arith.truncf %329 : vector<16x32xf32> to vector<16x32xbf16>
    %c1_134 = arith.constant 1 : index
    %c0_135 = arith.constant 0 : index
    %c0_136 = arith.constant 0 : index
    %331 = vector.load %arg11[%c1_134, %c0_135, %c0_136] : memref<2x32x32xbf16, #tpu.memory_space<vmem>>, vector<1x32x32xbf16>
    %332 = vector.shape_cast %331 : vector<1x32x32xbf16> to vector<32x32xbf16>
    %cst_137 = arith.constant dense<0.000000e+00> : vector<16x32xf32>
    %333 = tpu.matmul %330, %332, %cst_137 {dimension_numbers = #tpu.dot_dimension_numbers<[1], [0], [0], [1], [0, 0, 1, 1], [], []>} : vector<16x32xbf16>, vector<32x32xbf16>, vector<16x32xf32> -> vector<16x32xf32>
    %c1_138 = arith.constant 1 : index
    %c0_139 = arith.constant 0 : index
    %c0_140 = arith.constant 0 : index
    %334 = vector.load %arg12[%c1_138, %c0_139, %c0_140] : memref<2x1x32xf32, #tpu.memory_space<vmem>>, vector<1x1x32xf32>
    %335 = vector.shape_cast %334 : vector<1x1x32xf32> to vector<1x32xf32>
    %336 = vector.broadcast %335 : vector<1x32xf32> to vector<16x32xf32>
    %337 = arith.addf %333, %336 : vector<16x32xf32>
    %338 = arith.negf %337 : vector<16x32xf32>
    %339 = math.exp %338 : vector<16x32xf32>
    %cst_141 = arith.constant 1.000000e+00 : f32
    %340 = vector.broadcast %cst_141 : f32 to vector<16x32xf32>
    %341 = arith.addf %340, %339 : vector<16x32xf32>
    %342 = arith.divf %340, %341 : vector<16x32xf32>
    %343 = arith.mulf %337, %342 : vector<16x32xf32>
    %344 = arith.truncf %343 : vector<16x32xf32> to vector<16x32xbf16>
    %c1_142 = arith.constant 1 : index
    %c0_143 = arith.constant 0 : index
    %c0_144 = arith.constant 0 : index
    %345 = vector.load %arg13[%c1_142, %c0_143, %c0_144] : memref<2x32x32xbf16, #tpu.memory_space<vmem>>, vector<1x32x32xbf16>
    %346 = vector.shape_cast %345 : vector<1x32x32xbf16> to vector<32x32xbf16>
    %cst_145 = arith.constant dense<0.000000e+00> : vector<16x32xf32>
    %347 = tpu.matmul %344, %346, %cst_145 {dimension_numbers = #tpu.dot_dimension_numbers<[1], [0], [0], [1], [0, 0, 1, 1], [], []>} : vector<16x32xbf16>, vector<32x32xbf16>, vector<16x32xf32> -> vector<16x32xf32>
    %348 = arith.addf %299, %347 : vector<16x32xf32>
    %c1_146 = arith.constant 1 : index
    %c0_147 = arith.constant 0 : index
    %c0_148 = arith.constant 0 : index
    %349 = vector.load %arg14[%c1_146, %c0_147, %c0_148] : memref<2x1x32xf32, #tpu.memory_space<vmem>>, vector<1x1x32xf32>
    %350 = vector.shape_cast %349 : vector<1x1x32xf32> to vector<1x32xf32>
    %351 = vector.broadcast %350 : vector<1x32xf32> to vector<16x32xf32>
    %352 = arith.addf %348, %351 : vector<16x32xf32>
    %c0_149 = arith.constant 0 : index
    %c0_150 = arith.constant 0 : index
    %c0_151 = arith.constant 0 : index
    %353 = vector.load %arg15[%c0_149, %c0_150, %c0_151] : memref<1x16x32xf32, #tpu.memory_space<vmem>>, vector<1x16x32xf32>
    %354 = vector.shape_cast %353 : vector<1x16x32xf32> to vector<16x32xf32>
    %355 = vector.shape_cast %352 : vector<16x32xf32> to vector<1x16x32xf32>
    tpu.vector_store %arg15[%c0_149, %c0_150, %c0_151], %355 {strides = array<i32>} : memref<1x16x32xf32, #tpu.memory_space<vmem>>, vector<1x16x32xf32>,
    return
  }
  func.func @transform_0(%arg0: i32) -> (i32, i32, i32) {
    %c0_i32 = arith.constant 0 : i32
    %c0_i32_0 = arith.constant 0 : i32
    %c0_i32_1 = arith.constant 0 : i32
    return %arg0, %c0_i32, %c0_i32_0 : i32, i32, i32
  }
  func.func @transform_1(%arg0: i32) -> (i32, i32, i32) {
    %c0_i32 = arith.constant 0 : i32
    %c0_i32_0 = arith.constant 0 : i32
    %c0_i32_1 = arith.constant 0 : i32
    return %arg0, %c0_i32, %c0_i32_0 : i32, i32, i32
  }
  func.func @transform_2(%arg0: i32) -> (i32, i32, i32) {
    %c0_i32 = arith.constant 0 : i32
    %c0_i32_0 = arith.constant 0 : i32
    %c0_i32_1 = arith.constant 0 : i32
    %c0_i32_2 = arith.constant 0 : i32
    return %c0_i32, %c0_i32_0, %c0_i32_1 : i32, i32, i32
  }
  func.func @transform_3(%arg0: i32) -> (i32, i32, i32) {
    %c0_i32 = arith.constant 0 : i32
    %c0_i32_0 = arith.constant 0 : i32
    %c0_i32_1 = arith.constant 0 : i32
    %c0_i32_2 = arith.constant 0 : i32
    return %c0_i32, %c0_i32_0, %c0_i32_1 : i32, i32, i32
  }
  func.func @transform_4(%arg0: i32) -> (i32, i32, i32) {
    %c0_i32 = arith.constant 0 : i32
    %c0_i32_0 = arith.constant 0 : i32
    %c0_i32_1 = arith.constant 0 : i32
    %c0_i32_2 = arith.constant 0 : i32
    return %c0_i32, %c0_i32_0, %c0_i32_1 : i32, i32, i32
  }
  func.func @transform_5(%arg0: i32) -> (i32, i32, i32) {
    %c0_i32 = arith.constant 0 : i32
    %c0_i32_0 = arith.constant 0 : i32
    %c0_i32_1 = arith.constant 0 : i32
    %c0_i32_2 = arith.constant 0 : i32
    return %c0_i32, %c0_i32_0, %c0_i32_1 : i32, i32, i32
  }
  func.func @transform_6(%arg0: i32) -> (i32, i32, i32) {
    %c0_i32 = arith.constant 0 : i32
    %c0_i32_0 = arith.constant 0 : i32
    %c0_i32_1 = arith.constant 0 : i32
    %c0_i32_2 = arith.constant 0 : i32
    return %c0_i32, %c0_i32_0, %c0_i32_1 : i32, i32, i32
  }
  func.func @transform_7(%arg0: i32) -> (i32, i32, i32) {
    %c0_i32 = arith.constant 0 : i32
    %c0_i32_0 = arith.constant 0 : i32
    %c0_i32_1 = arith.constant 0 : i32
    %c0_i32_2 = arith.constant 0 : i32
    return %c0_i32, %c0_i32_0, %c0_i32_1 : i32, i32, i32
  }
  func.func @transform_8(%arg0: i32) -> (i32, i32, i32) {
    %c0_i32 = arith.constant 0 : i32
    %c0_i32_0 = arith.constant 0 : i32
    %c0_i32_1 = arith.constant 0 : i32
    %c0_i32_2 = arith.constant 0 : i32
    return %c0_i32, %c0_i32_0, %c0_i32_1 : i32, i32, i32
  }
  func.func @transform_9(%arg0: i32) -> (i32, i32, i32) {
    %c0_i32 = arith.constant 0 : i32
    %c0_i32_0 = arith.constant 0 : i32
    %c0_i32_1 = arith.constant 0 : i32
    %c0_i32_2 = arith.constant 0 : i32
    return %c0_i32, %c0_i32_0, %c0_i32_1 : i32, i32, i32
  }
  func.func @transform_10(%arg0: i32) -> (i32, i32, i32) {
    %c0_i32 = arith.constant 0 : i32
    %c0_i32_0 = arith.constant 0 : i32
    %c0_i32_1 = arith.constant 0 : i32
    %c0_i32_2 = arith.constant 0 : i32
    return %c0_i32, %c0_i32_0, %c0_i32_1 : i32, i32, i32
  }
  func.func @transform_11(%arg0: i32) -> (i32, i32, i32) {
    %c0_i32 = arith.constant 0 : i32
    %c0_i32_0 = arith.constant 0 : i32
    %c0_i32_1 = arith.constant 0 : i32
    %c0_i32_2 = arith.constant 0 : i32
    return %c0_i32, %c0_i32_0, %c0_i32_1 : i32, i32, i32
  }
  func.func @transform_12(%arg0: i32) -> (i32, i32, i32) {
    %c0_i32 = arith.constant 0 : i32
    %c0_i32_0 = arith.constant 0 : i32
    %c0_i32_1 = arith.constant 0 : i32
    %c0_i32_2 = arith.constant 0 : i32
    return %c0_i32, %c0_i32_0, %c0_i32_1 : i32, i32, i32
  }
  func.func @transform_13(%arg0: i32) -> (i32, i32, i32) {
    %c0_i32 = arith.constant 0 : i32
    %c0_i32_0 = arith.constant 0 : i32
    %c0_i32_1 = arith.constant 0 : i32
    %c0_i32_2 = arith.constant 0 : i32
    return %c0_i32, %c0_i32_0, %c0_i32_1 : i32, i32, i32
  }
  func.func @transform_14(%arg0: i32) -> (i32, i32, i32) {
    %c0_i32 = arith.constant 0 : i32
    %c0_i32_0 = arith.constant 0 : i32
    %c0_i32_1 = arith.constant 0 : i32
    return %arg0, %c0_i32, %c0_i32_0 : i32, i32, i32
  }
}

module attributes {stable_mosaic.version = 11 : i64} {
  func.func @_dec_finalize_kernel(%arg0: memref<64x32xf32, #tpu.memory_space<vmem>>, %arg1: memref<64x32xf32, #tpu.memory_space<vmem>>, %arg2: memref<64x32xbf16, #tpu.memory_space<vmem>>, %arg3: memref<1x32xf32, #tpu.memory_space<vmem>>, %arg4: memref<32x32xbf16, #tpu.memory_space<vmem>>, %arg5: memref<1x32xf32, #tpu.memory_space<vmem>>, %arg6: memref<1x32xf32, #tpu.memory_space<vmem>>, %arg7: memref<1x32xf32, #tpu.memory_space<vmem>>, %arg8: memref<32x32xbf16, #tpu.memory_space<vmem>>, %arg9: memref<1x32xf32, #tpu.memory_space<vmem>>, %arg10: memref<32x3xbf16, #tpu.memory_space<vmem>>, %arg11: memref<1x3xf32, #tpu.memory_space<vmem>>, %arg12: memref<64x3xf32, #tpu.memory_space<vmem>>) attributes {dimension_semantics = [], scalar_prefetch = 0 : i64, scratch_operands = 0 : i64, tpu.core_type = #tpu.core_type<tc>} {
    %c0 = arith.constant 0 : index
    %c0_0 = arith.constant 0 : index
    %0 = vector.load %arg0[%c0, %c0_0] : memref<64x32xf32, #tpu.memory_space<vmem>>, vector<64x32xf32>
    %c0_1 = arith.constant 0 : index
    %c0_2 = arith.constant 0 : index
    %1 = vector.load %arg1[%c0_1, %c0_2] : memref<64x32xf32, #tpu.memory_space<vmem>>, vector<64x32xf32>
    %2 = tpu.concatenate %0, %1 in 1 : vector<64x32xf32>, vector<64x32xf32> -> vector<64x64xf32>
    %c0_3 = arith.constant 0 : index
    %c0_4 = arith.constant 0 : index
    %3 = vector.load %arg2[%c0_3, %c0_4] : memref<64x32xbf16, #tpu.memory_space<vmem>>, vector<64x32xbf16>
    %c0_5 = arith.constant 0 : index
    %c0_6 = arith.constant 0 : index
    %4 = vector.load %arg3[%c0_5, %c0_6] : memref<1x32xf32, #tpu.memory_space<vmem>>, vector<1x32xf32>
    %c0_7 = arith.constant 0 : index
    %c0_8 = arith.constant 0 : index
    %5 = vector.load %arg4[%c0_7, %c0_8] : memref<32x32xbf16, #tpu.memory_space<vmem>>, vector<32x32xbf16>
    %c0_9 = arith.constant 0 : index
    %c0_10 = arith.constant 0 : index
    %6 = vector.load %arg5[%c0_9, %c0_10] : memref<1x32xf32, #tpu.memory_space<vmem>>, vector<1x32xf32>
    %c0_11 = arith.constant 0 : index
    %c0_12 = arith.constant 0 : index
    %7 = vector.load %arg6[%c0_11, %c0_12] : memref<1x32xf32, #tpu.memory_space<vmem>>, vector<1x32xf32>
    %c0_13 = arith.constant 0 : index
    %c0_14 = arith.constant 0 : index
    %8 = vector.load %arg7[%c0_13, %c0_14] : memref<1x32xf32, #tpu.memory_space<vmem>>, vector<1x32xf32>
    %9 = arith.truncf %2 : vector<64x64xf32> to vector<64x64xbf16>
    %cst = arith.constant dense<0.000000e+00> : vector<64x32xf32>
    %10 = tpu.matmul %9, %3, %cst {dimension_numbers = #tpu.dot_dimension_numbers<[1], [0], [0], [1], [0, 0, 1, 1], [], []>} : vector<64x64xbf16>, vector<64x32xbf16>, vector<64x32xf32> -> vector<64x32xf32>
    %11 = vector.broadcast %4 : vector<1x32xf32> to vector<64x32xf32>
    %12 = arith.addf %10, %11 : vector<64x32xf32>
    %13 = arith.negf %12 : vector<64x32xf32>
    %14 = math.exp %13 : vector<64x32xf32>
    %cst_15 = arith.constant 1.000000e+00 : f32
    %15 = vector.broadcast %cst_15 : f32 to vector<64x32xf32>
    %16 = arith.addf %15, %14 : vector<64x32xf32>
    %17 = arith.divf %15, %16 : vector<64x32xf32>
    %18 = arith.mulf %12, %17 : vector<64x32xf32>
    %19 = arith.truncf %18 : vector<64x32xf32> to vector<64x32xbf16>
    %cst_16 = arith.constant dense<0.000000e+00> : vector<64x32xf32>
    %20 = tpu.matmul %19, %5, %cst_16 {dimension_numbers = #tpu.dot_dimension_numbers<[1], [0], [0], [1], [0, 0, 1, 1], [], []>} : vector<64x32xbf16>, vector<32x32xbf16>, vector<64x32xf32> -> vector<64x32xf32>
    %21 = vector.broadcast %6 : vector<1x32xf32> to vector<64x32xf32>
    %22 = arith.addf %20, %21 : vector<64x32xf32>
    %cst_17 = arith.constant dense<0.000000e+00> : vector<64xf32>
    %23 = vector.multi_reduction <add>, %22, %cst_17 [1] : vector<64x32xf32> to vector<64xf32>
    %24 = vector.shape_cast %23 : vector<64xf32> to vector<64x1xf32>
    %cst_18 = arith.constant 3.200000e+01 : f32
    %25 = vector.broadcast %cst_18 : f32 to vector<64x1xf32>
    %26 = arith.divf %24, %25 : vector<64x1xf32>
    %27 = vector.broadcast %26 : vector<64x1xf32> to vector<64x32xf32>
    %28 = arith.subf %22, %27 : vector<64x32xf32>
    %29 = arith.mulf %28, %28 : vector<64x32xf32>
    %cst_19 = arith.constant dense<0.000000e+00> : vector<64xf32>
    %30 = vector.multi_reduction <add>, %29, %cst_19 [1] : vector<64x32xf32> to vector<64xf32>
    %31 = vector.shape_cast %30 : vector<64xf32> to vector<64x1xf32>
    %cst_20 = arith.constant 3.200000e+01 : f32
    %32 = vector.broadcast %cst_20 : f32 to vector<64x1xf32>
    %33 = arith.divf %31, %32 : vector<64x1xf32>
    %34 = vector.broadcast %26 : vector<64x1xf32> to vector<64x32xf32>
    %35 = arith.subf %22, %34 : vector<64x32xf32>
    %cst_21 = arith.constant 9.99999974E-6 : f32
    %36 = vector.broadcast %cst_21 : f32 to vector<64x1xf32>
    %37 = arith.addf %33, %36 : vector<64x1xf32>
    %38 = math.rsqrt %37 : vector<64x1xf32>
    %39 = vector.broadcast %38 : vector<64x1xf32> to vector<64x32xf32>
    %40 = arith.mulf %35, %39 : vector<64x32xf32>
    %41 = vector.broadcast %7 : vector<1x32xf32> to vector<64x32xf32>
    %42 = arith.mulf %40, %41 : vector<64x32xf32>
    %43 = vector.broadcast %8 : vector<1x32xf32> to vector<64x32xf32>
    %44 = arith.addf %42, %43 : vector<64x32xf32>
    %45 = arith.addf %0, %44 : vector<64x32xf32>
    %c0_22 = arith.constant 0 : index
    %c0_23 = arith.constant 0 : index
    %46 = vector.load %arg8[%c0_22, %c0_23] : memref<32x32xbf16, #tpu.memory_space<vmem>>, vector<32x32xbf16>
    %c0_24 = arith.constant 0 : index
    %c0_25 = arith.constant 0 : index
    %47 = vector.load %arg9[%c0_24, %c0_25] : memref<1x32xf32, #tpu.memory_space<vmem>>, vector<1x32xf32>
    %c0_26 = arith.constant 0 : index
    %c0_27 = arith.constant 0 : index
    %48 = vector.load %arg10[%c0_26, %c0_27] : memref<32x3xbf16, #tpu.memory_space<vmem>>, vector<32x3xbf16>
    %c0_28 = arith.constant 0 : index
    %c0_29 = arith.constant 0 : index
    %49 = vector.load %arg11[%c0_28, %c0_29] : memref<1x3xf32, #tpu.memory_space<vmem>>, vector<1x3xf32>
    %50 = arith.truncf %45 : vector<64x32xf32> to vector<64x32xbf16>
    %cst_30 = arith.constant dense<0.000000e+00> : vector<64x32xf32>
    %51 = tpu.matmul %50, %46, %cst_30 {dimension_numbers = #tpu.dot_dimension_numbers<[1], [0], [0], [1], [0, 0, 1, 1], [], []>} : vector<64x32xbf16>, vector<32x32xbf16>, vector<64x32xf32> -> vector<64x32xf32>
    %52 = vector.broadcast %47 : vector<1x32xf32> to vector<64x32xf32>
    %53 = arith.addf %51, %52 : vector<64x32xf32>
    %54 = arith.negf %53 : vector<64x32xf32>
    %55 = math.exp %54 : vector<64x32xf32>
    %cst_31 = arith.constant 1.000000e+00 : f32
    %56 = vector.broadcast %cst_31 : f32 to vector<64x32xf32>
    %57 = arith.addf %56, %55 : vector<64x32xf32>
    %58 = arith.divf %56, %57 : vector<64x32xf32>
    %59 = arith.mulf %53, %58 : vector<64x32xf32>
    %60 = arith.truncf %59 : vector<64x32xf32> to vector<64x32xbf16>
    %cst_32 = arith.constant dense<0.000000e+00> : vector<64x3xf32>
    %61 = tpu.matmul %60, %48, %cst_32 {dimension_numbers = #tpu.dot_dimension_numbers<[1], [0], [0], [1], [0, 0, 1, 1], [], []>} : vector<64x32xbf16>, vector<32x3xbf16>, vector<64x3xf32> -> vector<64x3xf32>
    %62 = vector.broadcast %49 : vector<1x3xf32> to vector<64x3xf32>
    %63 = arith.addf %61, %62 : vector<64x3xf32>
    %c0_33 = arith.constant 0 : index
    %c0_34 = arith.constant 0 : index
    %64 = vector.load %arg12[%c0_33, %c0_34] : memref<64x3xf32, #tpu.memory_space<vmem>>, vector<64x3xf32>
    tpu.vector_store %arg12[%c0_33, %c0_34], %63 {strides = array<i32>} : memref<64x3xf32, #tpu.memory_space<vmem>>, vector<64x3xf32>,
    return
  }
}

</mosaic_0001>

<llo_original>
// kernel: tile.24
$region0: #{tile.24}
  %s0 = inlined_call_operand.vmem [shape: f32[2,32,3], index: 0, kind: input, shape index: {}]
  %s1 = inlined_call_operand.vmem [shape: f32[64,3], index: 1, kind: output, shape index: {}]
  $region1: #{tile.24} parent=0
    #allocation0 [shape = 'u8[4096]{0}', space=vmem, size = 0x1000, scoped, tag = 'scoped mem for output reshape']
    #allocation1 [shape = 'u8[12288]{0}', space=vmem, size = 0x3000, scoped, tag = 'scoped mem for input reshape']
    %s3 = sshllo.u32 0, 2
    %s4 = smul.addr 2, 2
    %s5 = scalar_lea.vmem %s0, %s4
    %v6 = vld [vmem:[%s5] sm:%s3]
    %s7 = scalar_lea.vmem [#allocation1], 16
    %8 = vst [vmem:[%s7] sm:%s3] %v6
    %s9 = scalar_lea.vmem %s0, 2
    %v10 = vld [vmem:[%s9] sm:%s3]
    %s11 = scalar_lea.vmem [#allocation1], 8
    %12 = vst [vmem:[%s11] sm:%s3] %v10
    %v13 = vld [vmem:[%s0] sm:%s3]
    %14 = vst [vmem:[#allocation1] sm:%s3] %v13
    %v15 = vld [vmem:[#allocation1] ss:$8 sm:$0x7]
    %vm16 = vcmask 261120
    %17 = vst.msk [vmem:[#allocation0] sm:$0x7] %vm16, %v15
    %s18 = scalar_lea.vmem [#allocation1], 1
    %v19 = vld [vmem:[%s18] ss:$8 sm:$0x7]
    %20 = vrot.lane.b32.xlu0 %v19, 32
    %v21 = vpop.permute.xlu0 %20
    %vm22 = vcmask 523520
    %23 = vst.msk [vmem:[#allocation0] sm:$0x7] %vm22, %v21
    %s25 = sshllo.u32 0, 4
    %v27 = vld [vmem:[#allocation0] sm:%s25]
    %s28 = sshllo.u32 0, 4
    %29 = vst [vmem:[%s1] sm:%s28] %v27

// kernel: denoiser_forward.6
$region0: #{denoiser_forward.6}
  #allocation0 [shape = 'u32[]', space=smem, size = 0x4, offset = 0x4, fixed_abs, tag = 'smem constant byte address 0x4 - core index']
  #allocation1 [shape = 'u32[144,128]{1,0:T(1,128)}', space=vmem, size = 0x12000, scoped, tag = 'internal scratch']
  %s0 = inlined_call_operand.smem [shape: u32[40], index: -1, kind: input, shape index: {}]
  %s1 = sld [smem:[%s0]]
  %s2 = scalar_lea.smem %s0, 1
  %s3 = sld [smem:[%s2]]
  %s4 = scalar_lea.smem %s0, 2
  %s5 = sld [smem:[%s4]]
  %s6 = scalar_lea.smem %s0, 3
  %s7 = sld [smem:[%s6]]
  %s8 = scalar_lea.smem %s0, 4
  %s9 = sld [smem:[%s8]]
  %s10 = scalar_lea.smem %s0, 5
  %s11 = sld [smem:[%s10]]
  %s12 = scalar_lea.smem %s0, 6
  %s13 = sld [smem:[%s12]]
  %s14 = scalar_lea.smem %s0, 7
  %s15 = sld [smem:[%s14]]
  %s16 = scalar_lea.smem %s0, 8
  %s17 = sld [smem:[%s16]]
  %s18 = scalar_lea.smem %s0, 9
  %s19 = sld [smem:[%s18]]
  %s20 = scalar_lea.smem %s0, 10
  %s21 = sld [smem:[%s20]]
  %s22 = scalar_lea.smem %s0, 11
  %s23 = sld [smem:[%s22]]
  %s24 = scalar_lea.smem %s0, 12
  %s25 = sld [smem:[%s24]]
  %s26 = scalar_lea.smem %s0, 13
  %s27 = sld [smem:[%s26]]
  %s28 = scalar_lea.smem %s0, 14
  %s29 = sld [smem:[%s28]]
  %s30 = scalar_lea.smem %s0, 15
  %s31 = sld [smem:[%s30]]
  %s32 = scalar_lea.smem %s0, 16
  %s33 = sld [smem:[%s32]]
  %s34 = scalar_lea.smem %s0, 17
  %s35 = sld [smem:[%s34]]
  %s36 = scalar_lea.smem %s0, 18
  %s37 = sld [smem:[%s36]]
  %s38 = scalar_lea.smem %s0, 19
  %s39 = sld [smem:[%s38]]
  %s40 = scalar_lea.smem %s0, 20
  %s41 = sld [smem:[%s40]]
  %s42 = scalar_lea.smem %s0, 21
  %s43 = sld [smem:[%s42]]
  %s44 = scalar_lea.smem %s0, 22
  %s45 = sld [smem:[%s44]]
  %s46 = scalar_lea.smem %s0, 23
  %s47 = sld [smem:[%s46]]
  %s48 = scalar_lea.smem %s0, 24
  %s49 = sld [smem:[%s48]]
  %s50 = scalar_lea.smem %s0, 25
  %s51 = sld [smem:[%s50]]
  %s52 = scalar_lea.smem %s0, 26
  %s53 = sld [smem:[%s52]]
  %s54 = scalar_lea.smem %s0, 27
  %s55 = sld [smem:[%s54]]
  %s56 = scalar_lea.smem %s0, 28
  %s57 = sld [smem:[%s56]]
  %s58 = scalar_lea.smem %s0, 29
  %s59 = sld [smem:[%s58]]
  %s60 = scalar_lea.smem %s0, 30
  %s61 = sld [smem:[%s60]]
  %s62 = scalar_lea.smem %s0, 31
  %s63 = sld [smem:[%s62]]
  %s64 = scalar_lea.smem %s0, 32
  %s65 = sld [smem:[%s64]]
  %s66 = scalar_lea.smem %s0, 33
  %s67 = sld [smem:[%s66]]
  %s68 = scalar_lea.smem %s0, 34
  %s69 = sld [smem:[%s68]]
  %s70 = scalar_lea.smem %s0, 35
  %s71 = sld [smem:[%s70]]
  %s72 = scalar_lea.smem %s0, 36
  %s73 = sld [smem:[%s72]]
  %s74 = scalar_lea.smem %s0, 37
  %s75 = sld [smem:[%s74]]
  %s76 = scalar_lea.smem %s0, 38
  %s77 = sld [smem:[%s76]]
  %s78 = scalar_lea.smem %s0, 39
  %s79 = sld [smem:[%s78]]
  %80 = xla_tuple %s71, %s73, %s75, %s77, %s79
  %s81 = sld [smem:[#allocation0]]
  $region182: #{denoiser_forward.6} parent=0
    _
  %s83 = ssub.s32 1, %s81
  %s84 = scalar_select 0, %s83, %s81
  // Predicated region
  $region2: #{denoiser_forward.6} parent=0 // pred_check
    _
  $region3: #{denoiser_forward.6} parent=0 // pred_check_branch
    %86 = sbr.rel (0) target = $region5
  $region4: #{denoiser_forward.6} parent=0 // pred_region
    _
  $region5: #{denoiser_forward.6} parent=0 // pred_fallthru
    _
  // Predicated region
  $region6: #{denoiser_forward.6} parent=0 // pred_check
    _
  $region7: #{denoiser_forward.6} parent=0 // pred_check_branch
    %88 = sbr.rel (0) target = $region9
  $region8: #{denoiser_forward.6} parent=0 // pred_region
    _
  $region9: #{denoiser_forward.6} parent=0 // pred_fallthru
    _
  // Predicated region
  $region10: #{denoiser_forward.6} parent=0 // pred_check
    _
  $region11: #{denoiser_forward.6} parent=0 // pred_check_branch
    %90 = sbr.rel (0) target = $region13
  $region12: #{denoiser_forward.6} parent=0 // pred_region
    _
  $region13: #{denoiser_forward.6} parent=0 // pred_fallthru
    _
  // Predicated region
  $region14: #{denoiser_forward.6} parent=0 // pred_check
    _
  $region15: #{denoiser_forward.6} parent=0 // pred_check_branch
    %92 = sbr.rel (0) target = $region17
  $region16: #{denoiser_forward.6} parent=0 // pred_region
    _
  $region17: #{denoiser_forward.6} parent=0 // pred_fallthru
    _
  // Predicated region
  $region18: #{denoiser_forward.6} parent=0 // pred_check
    _
  $region19: #{denoiser_forward.6} parent=0 // pred_check_branch
    %94 = sbr.rel (0) target = $region21
  $region20: #{denoiser_forward.6} parent=0 // pred_region
    _
  $region21: #{denoiser_forward.6} parent=0 // pred_fallthru
    _
  // Predicated region
  $region22: #{denoiser_forward.6} parent=0 // pred_check
    _
  $region23: #{denoiser_forward.6} parent=0 // pred_check_branch
    %96 = sbr.rel (0) target = $region25
  $region24: #{denoiser_forward.6} parent=0 // pred_region
    _
  $region25: #{denoiser_forward.6} parent=0 // pred_fallthru
    _
  // Predicated region
  $region26: #{denoiser_forward.6} parent=0 // pred_check
    _
  $region27: #{denoiser_forward.6} parent=0 // pred_check_branch
    %98 = sbr.rel (0) target = $region29
  $region28: #{denoiser_forward.6} parent=0 // pred_region
    _
  $region29: #{denoiser_forward.6} parent=0 // pred_fallthru
    _
  // Predicated region
  $region30: #{denoiser_forward.6} parent=0 // pred_check
    _
  $region31: #{denoiser_forward.6} parent=0 // pred_check_branch
    %100 = sbr.rel (0) target = $region33
  $region32: #{denoiser_forward.6} parent=0 // pred_region
    _
  $region33: #{denoiser_forward.6} parent=0 // pred_fallthru
    _
  // Predicated region
  $region34: #{denoiser_forward.6} parent=0 // pred_check
    _
  $region35: #{denoiser_forward.6} parent=0 // pred_check_branch
    %102 = sbr.rel (0) target = $region37
  $region36: #{denoiser_forward.6} parent=0 // pred_region
    _
  $region37: #{denoiser_forward.6} parent=0 // pred_fallthru
    _
  // Predicated region
  $region38: #{denoiser_forward.6} parent=0 // pred_check
    _
  $region39: #{denoiser_forward.6} parent=0 // pred_check_branch
    %104 = sbr.rel (0) target = $region41
  $region40: #{denoiser_forward.6} parent=0 // pred_region
    _
  $region41: #{denoiser_forward.6} parent=0 // pred_fallthru
    _
  // Predicated region
  $region42: #{denoiser_forward.6} parent=0 // pred_check
    _
  $region43: #{denoiser_forward.6} parent=0 // pred_check_branch
    %106 = sbr.rel (0) target = $region45
  $region44: #{denoiser_forward.6} parent=0 // pred_region
    _
  $region45: #{denoiser_forward.6} parent=0 // pred_fallthru
    _
  // Predicated region
  $region46: #{denoiser_forward.6} parent=0 // pred_check
    _
  $region47: #{denoiser_forward.6} parent=0 // pred_check_branch
    %108 = sbr.rel (0) target = $region49
  $region48: #{denoiser_forward.6} parent=0 // pred_region
    _
  $region49: #{denoiser_forward.6} parent=0 // pred_fallthru
    _
  // Predicated region
  $region50: #{denoiser_forward.6} parent=0 // pred_check
    _
  $region51: #{denoiser_forward.6} parent=0 // pred_check_branch
    %110 = sbr.rel (0) target = $region53
  $region52: #{denoiser_forward.6} parent=0 // pred_region
    _
  $region53: #{denoiser_forward.6} parent=0 // pred_fallthru
    _
  // Predicated region
  $region54: #{denoiser_forward.6} parent=0 // pred_check
    _
  $region55: #{denoiser_forward.6} parent=0 // pred_check_branch
    %112 = sbr.rel (0) target = $region57
  $region56: #{denoiser_forward.6} parent=0 // pred_region
    _
  $region57: #{denoiser_forward.6} parent=0 // pred_fallthru
    _
  // Predicated region
  $region58: #{denoiser_forward.6} parent=0 // pred_check
    _
  $region59: #{denoiser_forward.6} parent=0 // pred_check_branch
    %114 = sbr.rel (0) target = $region61
  $region60: #{denoiser_forward.6} parent=0 // pred_region
    _
  $region61: #{denoiser_forward.6} parent=0 // pred_fallthru
    _
  // Predicated region
  $region62: #{denoiser_forward.6} parent=0 // pred_check
    _
  $region63: #{denoiser_forward.6} parent=0 // pred_check_branch
    %116 = sbr.rel (0) target = $region65
  $region64: #{denoiser_forward.6} parent=0 // pred_region
    _
  $region65: #{denoiser_forward.6} parent=0 // pred_fallthru
    _
  // Predicated region
  $region66: #{denoiser_forward.6} parent=0 // pred_check
    _
  $region67: #{denoiser_forward.6} parent=0 // pred_check_branch
    %118 = sbr.rel (0) target = $region69
  $region68: #{denoiser_forward.6} parent=0 // pred_region
    _
  $region69: #{denoiser_forward.6} parent=0 // pred_fallthru
    _
  // Predicated region
  $region70: #{denoiser_forward.6} parent=0 // pred_check
    _
  $region71: #{denoiser_forward.6} parent=0 // pred_check_branch
    %120 = sbr.rel (0) target = $region73
  $region72: #{denoiser_forward.6} parent=0 // pred_region
    _
  $region73: #{denoiser_forward.6} parent=0 // pred_fallthru
    _
  // Predicated region
  $region74: #{denoiser_forward.6} parent=0 // pred_check
    _
  $region75: #{denoiser_forward.6} parent=0 // pred_check_branch
    %122 = sbr.rel (0) target = $region77
  $region76: #{denoiser_forward.6} parent=0 // pred_region
    _
  $region77: #{denoiser_forward.6} parent=0 // pred_fallthru
    _
  // Predicated region
  $region78: #{denoiser_forward.6} parent=0 // pred_check
    _
  $region79: #{denoiser_forward.6} parent=0 // pred_check_branch
    %124 = sbr.rel (0) target = $region81
  $region80: #{denoiser_forward.6} parent=0 // pred_region
    _
  $region81: #{denoiser_forward.6} parent=0 // pred_fallthru
    _
  // Predicated region
  $region82: #{denoiser_forward.6} parent=0 // pred_check
    _
  $region83: #{denoiser_forward.6} parent=0 // pred_check_branch
    %126 = sbr.rel (0) target = $region85
  $region84: #{denoiser_forward.6} parent=0 // pred_region
    _
  $region85: #{denoiser_forward.6} parent=0 // pred_fallthru
    _
  // Predicated region
  $region86: #{denoiser_forward.6} parent=0 // pred_check
    _
  $region87: #{denoiser_forward.6} parent=0 // pred_check_branch
    %128 = sbr.rel (0) target = $region89
  $region88: #{denoiser_forward.6} parent=0 // pred_region
    _
  $region89: #{denoiser_forward.6} parent=0 // pred_fallthru
    _
  // Predicated region
  $region90: #{denoiser_forward.6} parent=0 // pred_check
    _
  $region91: #{denoiser_forward.6} parent=0 // pred_check_branch
    %130 = sbr.rel (0) target = $region93
  $region92: #{denoiser_forward.6} parent=0 // pred_region
    _
  $region93: #{denoiser_forward.6} parent=0 // pred_fallthru
    _
  // Predicated region
  $region94: #{denoiser_forward.6} parent=0 // pred_check
    _
  $region95: #{denoiser_forward.6} parent=0 // pred_check_branch
    %132 = sbr.rel (0) target = $region97
  $region96: #{denoiser_forward.6} parent=0 // pred_region
    _
  $region97: #{denoiser_forward.6} parent=0 // pred_fallthru
    _
  // Predicated region
  $region98: #{denoiser_forward.6} parent=0 // pred_check
    _
  $region99: #{denoiser_forward.6} parent=0 // pred_check_branch
    %134 = sbr.rel (0) target = $region101
  $region100: #{denoiser_forward.6} parent=0 // pred_region
    _
  $region101: #{denoiser_forward.6} parent=0 // pred_fallthru
    _
  // Predicated region
  $region102: #{denoiser_forward.6} parent=0 // pred_check
    _
  $region103: #{denoiser_forward.6} parent=0 // pred_check_branch
    %136 = sbr.rel (0) target = $region105
  $region104: #{denoiser_forward.6} parent=0 // pred_region
    _
  $region105: #{denoiser_forward.6} parent=0 // pred_fallthru
    _
  // Predicated region
  $region106: #{denoiser_forward.6} parent=0 // pred_check
    _
  $region107: #{denoiser_forward.6} parent=0 // pred_check_branch
    %138 = sbr.rel (0) target = $region109
  $region108: #{denoiser_forward.6} parent=0 // pred_region
    _
  $region109: #{denoiser_forward.6} parent=0 // pred_fallthru
    _
  // Predicated region
  $region110: #{denoiser_forward.6} parent=0 // pred_check
    _
  $region111: #{denoiser_forward.6} parent=0 // pred_check_branch
    %140 = sbr.rel (0) target = $region113
  $region112: #{denoiser_forward.6} parent=0 // pred_region
    _
  $region113: #{denoiser_forward.6} parent=0 // pred_fallthru
    _
  // Predicated region
  $region114: #{denoiser_forward.6} parent=0 // pred_check
    _
  $region115: #{denoiser_forward.6} parent=0 // pred_check_branch
    %142 = sbr.rel (0) target = $region117
  $region116: #{denoiser_forward.6} parent=0 // pred_region
    _
  $region117: #{denoiser_forward.6} parent=0 // pred_fallthru
    _
  // Predicated region
  $region118: #{denoiser_forward.6} parent=0 // pred_check
    _
  $region119: #{denoiser_forward.6} parent=0 // pred_check_branch
    %144 = sbr.rel (0) target = $region121
  $region120: #{denoiser_forward.6} parent=0 // pred_region
    _
  $region121: #{denoiser_forward.6} parent=0 // pred_fallthru
    _
  // Predicated region
  $region122: #{denoiser_forward.6} parent=0 // pred_check
    _
  $region123: #{denoiser_forward.6} parent=0 // pred_check_branch
    %146 = sbr.rel (0) target = $region125
  $region124: #{denoiser_forward.6} parent=0 // pred_region
    _
  $region125: #{denoiser_forward.6} parent=0 // pred_fallthru
    _
  // Predicated region
  $region126: #{denoiser_forward.6} parent=0 // pred_check
    _
  $region127: #{denoiser_forward.6} parent=0 // pred_check_branch
    %148 = sbr.rel (0) target = $region129
  $region128: #{denoiser_forward.6} parent=0 // pred_region
    _
  $region129: #{denoiser_forward.6} parent=0 // pred_fallthru
    _
  // Predicated region
  $region130: #{denoiser_forward.6} parent=0 // pred_check
    _
  $region131: #{denoiser_forward.6} parent=0 // pred_check_branch
    %150 = sbr.rel (0) target = $region133
  $region132: #{denoiser_forward.6} parent=0 // pred_region
    _
  $region133: #{denoiser_forward.6} parent=0 // pred_fallthru
    _
  // Predicated region
  $region134: #{denoiser_forward.6} parent=0 // pred_check
    _
  $region135: #{denoiser_forward.6} parent=0 // pred_check_branch
    %152 = sbr.rel (0) target = $region137
  $region136: #{denoiser_forward.6} parent=0 // pred_region
    _
  $region137: #{denoiser_forward.6} parent=0 // pred_fallthru
    _
  // Predicated region
  $region138: #{denoiser_forward.6} parent=0 // pred_check
    _
  $region139: #{denoiser_forward.6} parent=0 // pred_check_branch
    %154 = sbr.rel (0) target = $region141
  $region140: #{denoiser_forward.6} parent=0 // pred_region
    _
  $region141: #{denoiser_forward.6} parent=0 // pred_fallthru
    _
  %v156 = vld [vmem:[%s1] sm:$0xff]
  %v157 = vld [vmem:[%s1 + $0x8] sm:$0xff]
  %v158 = vld [vmem:[%s1 + $0x10] sm:$0xff]
  %v159 = vld [vmem:[%s1 + $0x18] sm:$0xff]
  %v160 = vld [vmem:[%s1 + $0x20] sm:$0xff]
  %v161 = vld [vmem:[%s1 + $0x28] sm:$0xff]
  %v162 = vld [vmem:[%s1 + $0x30] sm:$0xff]
  %v163 = vld [vmem:[%s1 + $0x38] sm:$0xff]
  %v164 = vld [vmem:[%s3] sm:$0xf]
  %v165 = vld [vmem:[%s3 + $0x4] sm:$0x1]
  %v166 = vld [vmem:[%s5] sm:$0x1]
  %v167 = vld [vmem:[%s7] sm:$0xf]
  %v168 = vld [vmem:[%s7 + $0x4] sm:$0xf]
  %v169 = vld [vmem:[%s7 + $0x8] sm:$0xf]
  %v170 = vld [vmem:[%s7 + $0xc] sm:$0xf]
  %v171 = vld [vmem:[%s9] sm:$0x1]
  %v172 = vld [vmem:[%s11] sm:$0x1]
  %v173 = vld [vmem:[%s13] sm:$0x1]
  %v174 = vpack.c.bf16 %v157, %v156
  %v175 = vpack.c.bf16 %v159, %v158
  %v176 = vpack.c.bf16 %v161, %v160
  %v177 = vpack.c.bf16 %v163, %v162
  %v179 = vlaneseq
  %v180 = vshrl.u32 %v179, 7
  %v181 = vsub.s32 0, %v180
  %v182 = vrot.slane %v166, %v181
  %v186 = vunpack.c.l.b16 %v164
  %v187 = vunpack.c.l.b16 %v165
  %v188 = vpack.c.b16 %v187, %v186
  %vm189 = vcmask 80896
  %v191 = vsel %vm189, %v174, 0
  %v194 = vsel %vm189, %v175, 0
  %v197 = vsel %vm189, %v176, 0
  %v200 = vsel %vm189, %v177, 0
  %vm202 = vcmask 1044480
  %v204 = vsel %vm202, %v188, 0
  %206 = vmatprep.subr.bf16.mxu0 0
  %207 = vmatpush1.bf16.msra.mxu0 %v204
  %208 = vmatprep.subr.bf16.mxu0 0
  %209 = vmatpush1.bf16.msra.mxu0 0
  %210 = vmatprep.subr.bf16.mxu0 0
  %211 = vmatpush1.bf16.msra.mxu0 0
  %212 = vmatprep.subr.bf16.mxu0 0
  %213 = vmatpush1.bf16.msra.mxu0 0
  %214 = vmatprep.subr.bf16.mxu0 0
  %215 = vmatpush1.bf16.msra.mxu0 0
  %216 = vmatprep.subr.bf16.mxu0 0
  %217 = vmatpush1.bf16.msra.mxu0 0
  %218 = vmatprep.subr.bf16.mxu0 0
  %219 = vmatpush1.bf16.msra.mxu0 0
  %220 = vmatprep.subr.bf16.mxu0 0
  %221 = vmatpush1.bf16.msra.mxu0 0
  %222 = vmatprep.subr.bf16.mxu0 0
  %223 = vmatpush1.bf16.msra.mxu0 0
  %224 = vmatprep.subr.bf16.mxu0 0
  %225 = vmatpush1.bf16.msra.mxu0 0
  %226 = vmatprep.subr.bf16.mxu0 0
  %227 = vmatpush1.bf16.msra.mxu0 0
  %228 = vmatprep.subr.bf16.mxu0 0
  %229 = vmatpush1.bf16.msra.mxu0 0
  %230 = vmatprep.subr.bf16.mxu0 0
  %231 = vmatpush1.bf16.msra.mxu0 0
  %232 = vmatprep.subr.bf16.mxu0 0
  %233 = vmatpush1.bf16.msra.mxu0 0
  %234 = vmatprep.subr.bf16.mxu0 0
  %235 = vmatpush1.bf16.msra.mxu0 0
  %236 = vmatprep.subr.bf16.mxu0 0
  %237 = vmatpush1.bf16.msra.mxu0 0
  %238 = vmatprep.mubr.bf16.mxu0 0
  %239 = vmatmul.mubr.bf16.gmra.mrb[0].mxu0 %v191
  %v240 = vpop.f32.mrb[0].mxu0
  %v241 = vadd.f32 %v182, %v240
  %v242 = vpop.f32.mrb[0].mxu0
  %v243 = vpop.f32.mrb[0].mxu0
  %v244 = vadd.f32 %v182, %v243
  %v245 = vpop.f32.mrb[0].mxu0
  %246 = vmatprep.mubr.bf16.mxu0 0
  %247 = vmatmul.mubr.bf16.gmra.mrb[0].mxu0 %v194
  %v248 = vpop.f32.mrb[0].mxu0
  %v249 = vadd.f32 %v182, %v248
  %v250 = vpop.f32.mrb[0].mxu0
  %v251 = vpop.f32.mrb[0].mxu0
  %v252 = vadd.f32 %v182, %v251
  %v253 = vpop.f32.mrb[0].mxu0
  %254 = vmatprep.mubr.bf16.mxu0 0
  %255 = vmatmul.mubr.bf16.gmra.mrb[0].mxu0 %v197
  %v256 = vpop.f32.mrb[0].mxu0
  %v257 = vadd.f32 %v182, %v256
  %v258 = vpop.f32.mrb[0].mxu0
  %v259 = vpop.f32.mrb[0].mxu0
  %v260 = vadd.f32 %v182, %v259
  %v261 = vpop.f32.mrb[0].mxu0
  %262 = vmatprep.mubr.bf16.mxu0 0
  %263 = vmatmul.mubr.bf16.gmra.mrb[0].mxu0 %v200
  %v264 = vpop.f32.mrb[0].mxu0
  %v265 = vadd.f32 %v182, %v264
  %v266 = vpop.f32.mrb[0].mxu0
  %v267 = vpop.f32.mrb[0].mxu0
  %v268 = vadd.f32 %v182, %v267
  %v269 = vpop.f32.mrb[0].mxu0
  %270 = vdwg.mxu0
  %v271 = vxor.u32 %v241, 2147483648
  %v272 = vxor.u32 %v244, 2147483648
  %v273 = vxor.u32 %v249, 2147483648
  %v274 = vxor.u32 %v252, 2147483648
  %v275 = vxor.u32 %v257, 2147483648
  %v276 = vxor.u32 %v260, 2147483648
  %v277 = vxor.u32 %v265, 2147483648
  %v278 = vxor.u32 %v268, 2147483648
  %v279 = vmul.f32 %v271, 1.442695
  %v280 = vpow.pop %v279
  %v281 = vmul.f32 %v272, 1.442695
  %v282 = vpow.pop %v281
  %v283 = vmul.f32 %v273, 1.442695
  %v284 = vpow.pop %v283
  %v285 = vmul.f32 %v274, 1.442695
  %v286 = vpow.pop %v285
  %v287 = vmul.f32 %v275, 1.442695
  %v288 = vpow.pop %v287
  %v289 = vmul.f32 %v276, 1.442695
  %v290 = vpow.pop %v289
  %v291 = vmul.f32 %v277, 1.442695
  %v292 = vpow.pop %v291
  %v293 = vmul.f32 %v278, 1.442695
  %v294 = vpow.pop %v293
  %v295 = vadd.f32 %v280, 1.0
  %v296 = vadd.f32 %v282, 1.0
  %v297 = vadd.f32 %v284, 1.0
  %v298 = vadd.f32 %v286, 1.0
  %v299 = vadd.f32 %v288, 1.0
  %v300 = vadd.f32 %v290, 1.0
  %v301 = vadd.f32 %v292, 1.0
  %v302 = vadd.f32 %v294, 1.0
  %v303 = vrcp.pop %v295
  %v304 = vmul.f32 1.0, %v303
  %v305 = vrcp.pop %v296
  %v306 = vmul.f32 1.0, %v305
  %v307 = vrcp.pop %v297
  %v308 = vmul.f32 1.0, %v307
  %v309 = vrcp.pop %v298
  %v310 = vmul.f32 1.0, %v309
  %v311 = vrcp.pop %v299
  %v312 = vmul.f32 1.0, %v311
  %v313 = vrcp.pop %v300
  %v314 = vmul.f32 1.0, %v313
  %v315 = vrcp.pop %v301
  %v316 = vmul.f32 1.0, %v315
  %v317 = vrcp.pop %v302
  %v318 = vmul.f32 1.0, %v317
  %v319 = vmul.f32 %v241, %v304
  %v320 = vmul.f32 %v244, %v306
  %v321 = vmul.f32 %v249, %v308
  %v322 = vmul.f32 %v252, %v310
  %v323 = vmul.f32 %v257, %v312
  %v324 = vmul.f32 %v260, %v314
  %v325 = vmul.f32 %v265, %v316
  %v326 = vmul.f32 %v268, %v318
  %v327 = vpack.c.bf16 %v320, %v319
  %v328 = vpack.c.bf16 %v322, %v321
  %v329 = vpack.c.bf16 %v324, %v323
  %v330 = vpack.c.bf16 %v326, %v325
  %v332 = vlaneseq
  %v333 = vshrl.u32 %v332, 7
  %v334 = vsub.s32 0, %v333
  %v335 = vrot.slane %v171, %v334
  %v341 = vunpack.c.l.b16 %v167
  %v342 = vunpack.c.l.b16 %v168
  %v343 = vunpack.c.l.b16 %v169
  %v344 = vunpack.c.l.b16 %v170
  %v345 = vpack.c.b16 %v342, %v341
  %v346 = vpack.c.b16 %v344, %v343
  %vm349 = vcmask 261120
  %v351 = vsel %vm349, %v327, 0
  %v354 = vsel %vm349, %v328, 0
  %v357 = vsel %vm349, %v329, 0
  %v360 = vsel %vm349, %v330, 0
  %362 = vmatprep.subr.bf16.mxu0 0
  %363 = vmatpush1.bf16.msra.mxu0 %v345
  %364 = vmatprep.subr.bf16.mxu0 0
  %365 = vmatpush1.bf16.msra.mxu0 %v346
  %366 = vmatprep.subr.bf16.mxu0 0
  %367 = vmatpush1.bf16.msra.mxu0 0
  %368 = vmatprep.subr.bf16.mxu0 0
  %369 = vmatpush1.bf16.msra.mxu0 0
  %370 = vmatprep.subr.bf16.mxu0 0
  %371 = vmatpush1.bf16.msra.mxu0 0
  %372 = vmatprep.subr.bf16.mxu0 0
  %373 = vmatpush1.bf16.msra.mxu0 0
  %374 = vmatprep.subr.bf16.mxu0 0
  %375 = vmatpush1.bf16.msra.mxu0 0
  %376 = vmatprep.subr.bf16.mxu0 0
  %377 = vmatpush1.bf16.msra.mxu0 0
  %378 = vmatprep.subr.bf16.mxu0 0
  %379 = vmatpush1.bf16.msra.mxu0 0
  %380 = vmatprep.subr.bf16.mxu0 0
  %381 = vmatpush1.bf16.msra.mxu0 0
  %382 = vmatprep.subr.bf16.mxu0 0
  %383 = vmatpush1.bf16.msra.mxu0 0
  %384 = vmatprep.subr.bf16.mxu0 0
  %385 = vmatpush1.bf16.msra.mxu0 0
  %386 = vmatprep.subr.bf16.mxu0 0
  %387 = vmatpush1.bf16.msra.mxu0 0
  %388 = vmatprep.subr.bf16.mxu0 0
  %389 = vmatpush1.bf16.msra.mxu0 0
  %390 = vmatprep.subr.bf16.mxu0 0
  %391 = vmatpush1.bf16.msra.mxu0 0
  %392 = vmatprep.subr.bf16.mxu0 0
  %393 = vmatpush1.bf16.msra.mxu0 0
  %394 = vmatprep.mubr.bf16.mxu0 0
  %395 = vmatmul.mubr.bf16.gmra.mrb[0].mxu0 %v351
  %v396 = vpop.f32.mrb[0].mxu0
  %v397 = vadd.f32 %v335, %v396
  %v398 = vpop.f32.mrb[0].mxu0
  %v399 = vpop.f32.mrb[0].mxu0
  %v400 = vadd.f32 %v335, %v399
  %v401 = vpop.f32.mrb[0].mxu0
  %402 = vmatprep.mubr.bf16.mxu0 0
  %403 = vmatmul.mubr.bf16.gmra.mrb[0].mxu0 %v354
  %v404 = vpop.f32.mrb[0].mxu0
  %v405 = vadd.f32 %v335, %v404
  %v406 = vpop.f32.mrb[0].mxu0
  %v407 = vpop.f32.mrb[0].mxu0
  %v408 = vadd.f32 %v335, %v407
  %v409 = vpop.f32.mrb[0].mxu0
  %410 = vmatprep.mubr.bf16.mxu0 0
  %411 = vmatmul.mubr.bf16.gmra.mrb[0].mxu0 %v357
  %v412 = vpop.f32.mrb[0].mxu0
  %v413 = vadd.f32 %v335, %v412
  %v414 = vpop.f32.mrb[0].mxu0
  %v415 = vpop.f32.mrb[0].mxu0
  %v416 = vadd.f32 %v335, %v415
  %v417 = vpop.f32.mrb[0].mxu0
  %418 = vmatprep.mubr.bf16.mxu0 0
  %419 = vmatmul.mubr.bf16.gmra.mrb[0].mxu0 %v360
  %v420 = vpop.f32.mrb[0].mxu0
  %v421 = vadd.f32 %v335, %v420
  %v422 = vpop.f32.mrb[0].mxu0
  %v423 = vpop.f32.mrb[0].mxu0
  %v424 = vadd.f32 %v335, %v423
  %v425 = vpop.f32.mrb[0].mxu0
  %426 = vdwg.mxu0
  %v427 = vsel %vm349, %v397, 0.0
  %428 = vadd.xlane.f32.xlu0 %v427
  %v429 = vpop.xlane.xlu0 %428
  %v430 = vsel %vm349, %v400, 0.0
  %431 = vadd.xlane.f32.xlu0 %v430
  %v432 = vpop.xlane.xlu0 %431
  %v433 = vsel %vm349, %v405, 0.0
  %434 = vadd.xlane.f32.xlu0 %v433
  %v435 = vpop.xlane.xlu0 %434
  %v436 = vsel %vm349, %v408, 0.0
  %437 = vadd.xlane.f32.xlu0 %v436
  %v438 = vpop.xlane.xlu0 %437
  %v439 = vsel %vm349, %v413, 0.0
  %440 = vadd.xlane.f32.xlu0 %v439
  %v441 = vpop.xlane.xlu0 %440
  %v442 = vsel %vm349, %v416, 0.0
  %443 = vadd.xlane.f32.xlu0 %v442
  %v444 = vpop.xlane.xlu0 %443
  %v445 = vsel %vm349, %v421, 0.0
  %446 = vadd.xlane.f32.xlu0 %v445
  %v447 = vpop.xlane.xlu0 %446
  %v448 = vsel %vm349, %v424, 0.0
  %449 = vadd.xlane.f32.xlu0 %v448
  %v450 = vpop.xlane.xlu0 %449
  %v451 = vrcp.pop 32.0
  %v452 = vmul.f32 %v429, %v451
  %v453 = vmul.f32 %v432, %v451
  %v454 = vmul.f32 %v435, %v451
  %v455 = vmul.f32 %v438, %v451
  %v456 = vmul.f32 %v441, %v451
  %v457 = vmul.f32 %v444, %v451
  %v458 = vmul.f32 %v447, %v451
  %v459 = vmul.f32 %v450, %v451
  %v460 = vsub.f32 %v397, %v452
  %v461 = vsub.f32 %v400, %v453
  %v462 = vsub.f32 %v405, %v454
  %v463 = vsub.f32 %v408, %v455
  %v464 = vsub.f32 %v413, %v456
  %v465 = vsub.f32 %v416, %v457
  %v466 = vsub.f32 %v421, %v458
  %v467 = vsub.f32 %v424, %v459
  %v468 = vmul.f32 %v460, %v460
  %v469 = vmul.f32 %v461, %v461
  %v470 = vmul.f32 %v462, %v462
  %v471 = vmul.f32 %v463, %v463
  %v472 = vmul.f32 %v464, %v464
  %v473 = vmul.f32 %v465, %v465
  %v474 = vmul.f32 %v466, %v466
  %v475 = vmul.f32 %v467, %v467
  %v476 = vsel %vm349, %v468, 0.0
  %477 = vadd.xlane.f32.xlu0 %v476
  %v478 = vpop.xlane.xlu0 %477
  %v479 = vsel %vm349, %v469, 0.0
  %480 = vadd.xlane.f32.xlu0 %v479
  %v481 = vpop.xlane.xlu0 %480
  %v482 = vsel %vm349, %v470, 0.0
  %483 = vadd.xlane.f32.xlu0 %v482
  %v484 = vpop.xlane.xlu0 %483
  %v485 = vsel %vm349, %v471, 0.0
  %486 = vadd.xlane.f32.xlu0 %v485
  %v487 = vpop.xlane.xlu0 %486
  %v488 = vsel %vm349, %v472, 0.0
  %489 = vadd.xlane.f32.xlu0 %v488
  %v490 = vpop.xlane.xlu0 %489
  %v491 = vsel %vm349, %v473, 0.0
  %492 = vadd.xlane.f32.xlu0 %v491
  %v493 = vpop.xlane.xlu0 %492
  %v494 = vsel %vm349, %v474, 0.0
  %495 = vadd.xlane.f32.xlu0 %v494
  %v496 = vpop.xlane.xlu0 %495
  %v497 = vsel %vm349, %v475, 0.0
  %498 = vadd.xlane.f32.xlu0 %v497
  %v499 = vpop.xlane.xlu0 %498
  %v500 = vmul.f32 %v478, %v451
  %v501 = vmul.f32 %v481, %v451
  %v502 = vmul.f32 %v484, %v451
  %v503 = vmul.f32 %v487, %v451
  %v504 = vmul.f32 %v490, %v451
  %v505 = vmul.f32 %v493, %v451
  %v506 = vmul.f32 %v496, %v451
  %v507 = vmul.f32 %v499, %v451
  %v508 = vadd.f32 %v500, 1e-05
  %v509 = vadd.f32 %v501, 1e-05
  %v510 = vadd.f32 %v502, 1e-05
  %v511 = vadd.f32 %v503, 1e-05
  %v512 = vadd.f32 %v504, 1e-05
  %v513 = vadd.f32 %v505, 1e-05
  %v514 = vadd.f32 %v506, 1e-05
  %v515 = vadd.f32 %v507, 1e-05
  %v516 = vrsqrt.pop %v508
  %v517 = vrsqrt.pop %v509
  %v518 = vrsqrt.pop %v510
  %v519 = vrsqrt.pop %v511
  %v520 = vrsqrt.pop %v512
  %v521 = vrsqrt.pop %v513
  %v522 = vrsqrt.pop %v514
  %v523 = vrsqrt.pop %v515
  %v524 = vmul.f32 %v460, %v516
  %v525 = vmul.f32 %v461, %v517
  %v526 = vmul.f32 %v462, %v518
  %v527 = vmul.f32 %v463, %v519
  %v528 = vmul.f32 %v464, %v520
  %v529 = vmul.f32 %v465, %v521
  %v530 = vmul.f32 %v466, %v522
  %v531 = vmul.f32 %v467, %v523
  %v533 = vlaneseq
  %v534 = vshrl.u32 %v533, 7
  %v535 = vsub.s32 0, %v534
  %v536 = vrot.slane %v172, %v535
  %v538 = vmul.f32 %v524, %v536
  %v539 = vmul.f32 %v525, %v536
  %v540 = vmul.f32 %v526, %v536
  %v541 = vmul.f32 %v527, %v536
  %v542 = vmul.f32 %v528, %v536
  %v543 = vmul.f32 %v529, %v536
  %v544 = vmul.f32 %v530, %v536
  %v545 = vmul.f32 %v531, %v536
  %v547 = vlaneseq
  %v548 = vshrl.u32 %v547, 7
  %v549 = vsub.s32 0, %v548
  %v550 = vrot.slane %v173, %v549
  %v552 = vadd.f32 %v538, %v550
  %v553 = vadd.f32 %v539, %v550
  %v554 = vadd.f32 %v540, %v550
  %v555 = vadd.f32 %v541, %v550
  %v556 = vadd.f32 %v542, %v550
  %v557 = vadd.f32 %v543, %v550
  %v558 = vadd.f32 %v544, %v550
  %v559 = vadd.f32 %v545, %v550
  %560 = vst.msk [vmem:[%s71] sm:$0xff] %vm349, %v552
  %561 = vst.msk [vmem:[%s71 + $0x8] sm:$0xff] %vm349, %v553
  %562 = vst.msk [vmem:[%s71 + $0x10] sm:$0xff] %vm349, %v554
  %563 = vst.msk [vmem:[%s71 + $0x18] sm:$0xff] %vm349, %v555
  %564 = vst.msk [vmem:[%s71 + $0x20] sm:$0xff] %vm349, %v556
  %565 = vst.msk [vmem:[%s71 + $0x28] sm:$0xff] %vm349, %v557
  %566 = vst.msk [vmem:[%s71 + $0x30] sm:$0xff] %vm349, %v558
  %567 = vst.msk [vmem:[%s71 + $0x38] sm:$0xff] %vm349, %v559
  %v568 = vld [vmem:[%s15] sm:$0xff]
  %v569 = vld [vmem:[%s15 + $0x8] sm:$0xff]
  %v570 = vld [vmem:[%s15 + $0x10] sm:$0xff]
  %v571 = vld [vmem:[%s15 + $0x18] sm:$0xff]
  %v572 = vld [vmem:[%s17] sm:$0x3]
  %v573 = vld [vmem:[%s19] sm:$0x1]
  %v574 = vld [vmem:[%s21] sm:$0xf]
  %v575 = vld [vmem:[%s21 + $0x4] sm:$0xf]
  %v576 = vld [vmem:[%s21 + $0x8] sm:$0xf]
  %v577 = vld [vmem:[%s21 + $0xc] sm:$0xf]
  %v578 = vld [vmem:[%s23] sm:$0x1]
  %v579 = vld [vmem:[%s25] sm:$0x1]
  %v580 = vld [vmem:[%s27] sm:$0x1]
  %v581 = vpack.c.bf16 %v569, %v568
  %v582 = vpack.c.bf16 %v571, %v570
  %v584 = vlaneseq
  %v585 = vshrl.u32 %v584, 7
  %v586 = vsub.s32 0, %v585
  %v587 = vrot.slane %v573, %v586
  %vm589 = vcmask 23552
  %v591 = vsel %vm589, %v581, 0
  %v594 = vsel %vm589, %v582, 0
  %vm596 = vcmask 1040384
  %vm597 = vcmask 1041408
  %v598 = vsel %vm596, 4294967295, 65535
  %v599 = vsel %vm597, %v598, 0
  %v601 = vand.u32 %v572, %v599
  %603 = vmatprep.subr.bf16.mxu0 0
  %604 = vmatpush1.bf16.msra.mxu0 %v601
  %605 = vmatprep.subr.bf16.mxu0 0
  %606 = vmatpush1.bf16.msra.mxu0 0
  %607 = vmatprep.subr.bf16.mxu0 0
  %608 = vmatpush1.bf16.msra.mxu0 0
  %609 = vmatprep.subr.bf16.mxu0 0
  %610 = vmatpush1.bf16.msra.mxu0 0
  %611 = vmatprep.subr.bf16.mxu0 0
  %612 = vmatpush1.bf16.msra.mxu0 0
  %613 = vmatprep.subr.bf16.mxu0 0
  %614 = vmatpush1.bf16.msra.mxu0 0
  %615 = vmatprep.subr.bf16.mxu0 0
  %616 = vmatpush1.bf16.msra.mxu0 0
  %617 = vmatprep.subr.bf16.mxu0 0
  %618 = vmatpush1.bf16.msra.mxu0 0
  %619 = vmatprep.subr.bf16.mxu0 0
  %620 = vmatpush1.bf16.msra.mxu0 0
  %621 = vmatprep.subr.bf16.mxu0 0
  %622 = vmatpush1.bf16.msra.mxu0 0
  %623 = vmatprep.subr.bf16.mxu0 0
  %624 = vmatpush1.bf16.msra.mxu0 0
  %625 = vmatprep.subr.bf16.mxu0 0
  %626 = vmatpush1.bf16.msra.mxu0 0
  %627 = vmatprep.subr.bf16.mxu0 0
  %628 = vmatpush1.bf16.msra.mxu0 0
  %629 = vmatprep.subr.bf16.mxu0 0
  %630 = vmatpush1.bf16.msra.mxu0 0
  %631 = vmatprep.subr.bf16.mxu0 0
  %632 = vmatpush1.bf16.msra.mxu0 0
  %633 = vmatprep.subr.bf16.mxu0 0
  %634 = vmatpush1.bf16.msra.mxu0 0
  %635 = vmatprep.mubr.bf16.mxu0 0
  %636 = vmatmul.mubr.bf16.gmra.mrb[0].mxu0 %v591
  %v637 = vpop.f32.mrb[0].mxu0
  %v638 = vadd.f32 %v587, %v637
  %v639 = vpop.f32.mrb[0].mxu0
  %v640 = vpop.f32.mrb[0].mxu0
  %v641 = vadd.f32 %v587, %v640
  %v642 = vpop.f32.mrb[0].mxu0
  %643 = vmatprep.mubr.bf16.mxu0 0
  %644 = vmatmul.mubr.bf16.gmra.mrb[0].mxu0 %v594
  %v645 = vpop.f32.mrb[0].mxu0
  %v646 = vadd.f32 %v587, %v645
  %v647 = vpop.f32.mrb[0].mxu0
  %v648 = vpop.f32.mrb[0].mxu0
  %v649 = vadd.f32 %v587, %v648
  %v650 = vpop.f32.mrb[0].mxu0
  %651 = vdwg.mxu0
  %v652 = vxor.u32 %v638, 2147483648
  %v653 = vxor.u32 %v641, 2147483648
  %v654 = vxor.u32 %v646, 2147483648
  %v655 = vxor.u32 %v649, 2147483648
  %v656 = vmul.f32 %v652, 1.442695
  %v657 = vpow.pop %v656
  %v658 = vmul.f32 %v653, 1.442695
  %v659 = vpow.pop %v658
  %v660 = vmul.f32 %v654, 1.442695
  %v661 = vpow.pop %v660
  %v662 = vmul.f32 %v655, 1.442695
  %v663 = vpow.pop %v662
  %v664 = vadd.f32 %v657, 1.0
  %v665 = vadd.f32 %v659, 1.0
  %v666 = vadd.f32 %v661, 1.0
  %v667 = vadd.f32 %v663, 1.0
  %v668 = vrcp.pop %v664
  %v669 = vmul.f32 1.0, %v668
  %v670 = vrcp.pop %v665
  %v671 = vmul.f32 1.0, %v670
  %v672 = vrcp.pop %v666
  %v673 = vmul.f32 1.0, %v672
  %v674 = vrcp.pop %v667
  %v675 = vmul.f32 1.0, %v674
  %v676 = vmul.f32 %v638, %v669
  %v677 = vmul.f32 %v641, %v671
  %v678 = vmul.f32 %v646, %v673
  %v679 = vmul.f32 %v649, %v675
  %v680 = vpack.c.bf16 %v677, %v676
  %v681 = vpack.c.bf16 %v679, %v678
  %v683 = vlaneseq
  %v684 = vshrl.u32 %v683, 7
  %v685 = vsub.s32 0, %v684
  %v686 = vrot.slane %v578, %v685
  %v692 = vunpack.c.l.b16 %v574
  %v693 = vunpack.c.l.b16 %v575
  %v694 = vunpack.c.l.b16 %v576
  %v695 = vunpack.c.l.b16 %v577
  %v696 = vpack.c.b16 %v693, %v692
  %v697 = vpack.c.b16 %v695, %v694
  %v701 = vsel %vm349, %v680, 0
  %v704 = vsel %vm349, %v681, 0
  %706 = vmatprep.subr.bf16.mxu0 0
  %707 = vmatpush1.bf16.msra.mxu0 %v696
  %708 = vmatprep.subr.bf16.mxu0 0
  %709 = vmatpush1.bf16.msra.mxu0 %v697
  %710 = vmatprep.subr.bf16.mxu0 0
  %711 = vmatpush1.bf16.msra.mxu0 0
  %712 = vmatprep.subr.bf16.mxu0 0
  %713 = vmatpush1.bf16.msra.mxu0 0
  %714 = vmatprep.subr.bf16.mxu0 0
  %715 = vmatpush1.bf16.msra.mxu0 0
  %716 = vmatprep.subr.bf16.mxu0 0
  %717 = vmatpush1.bf16.msra.mxu0 0
  %718 = vmatprep.subr.bf16.mxu0 0
  %719 = vmatpush1.bf16.msra.mxu0 0
  %720 = vmatprep.subr.bf16.mxu0 0
  %721 = vmatpush1.bf16.msra.mxu0 0
  %722 = vmatprep.subr.bf16.mxu0 0
  %723 = vmatpush1.bf16.msra.mxu0 0
  %724 = vmatprep.subr.bf16.mxu0 0
  %725 = vmatpush1.bf16.msra.mxu0 0
  %726 = vmatprep.subr.bf16.mxu0 0
  %727 = vmatpush1.bf16.msra.mxu0 0
  %728 = vmatprep.subr.bf16.mxu0 0
  %729 = vmatpush1.bf16.msra.mxu0 0
  %730 = vmatprep.subr.bf16.mxu0 0
  %731 = vmatpush1.bf16.msra.mxu0 0
  %732 = vmatprep.subr.bf16.mxu0 0
  %733 = vmatpush1.bf16.msra.mxu0 0
  %734 = vmatprep.subr.bf16.mxu0 0
  %735 = vmatpush1.bf16.msra.mxu0 0
  %736 = vmatprep.subr.bf16.mxu0 0
  %737 = vmatpush1.bf16.msra.mxu0 0
  %738 = vmatprep.mubr.bf16.mxu0 0
  %739 = vmatmul.mubr.bf16.gmra.mrb[0].mxu0 %v701
  %v740 = vpop.f32.mrb[0].mxu0
  %v741 = vadd.f32 %v686, %v740
  %v742 = vpop.f32.mrb[0].mxu0
  %v743 = vpop.f32.mrb[0].mxu0
  %v744 = vadd.f32 %v686, %v743
  %v745 = vpop.f32.mrb[0].mxu0
  %746 = vmatprep.mubr.bf16.mxu0 0
  %747 = vmatmul.mubr.bf16.gmra.mrb[0].mxu0 %v704
  %v748 = vpop.f32.mrb[0].mxu0
  %v749 = vadd.f32 %v686, %v748
  %v750 = vpop.f32.mrb[0].mxu0
  %v751 = vpop.f32.mrb[0].mxu0
  %v752 = vadd.f32 %v686, %v751
  %v753 = vpop.f32.mrb[0].mxu0
  %754 = vdwg.mxu0
  %v755 = vsel %vm349, %v741, 0.0
  %756 = vadd.xlane.f32.xlu0 %v755
  %v757 = vpop.xlane.xlu0 %756
  %v758 = vsel %vm349, %v744, 0.0
  %759 = vadd.xlane.f32.xlu0 %v758
  %v760 = vpop.xlane.xlu0 %759
  %v761 = vsel %vm349, %v749, 0.0
  %762 = vadd.xlane.f32.xlu0 %v761
  %v763 = vpop.xlane.xlu0 %762
  %v764 = vsel %vm349, %v752, 0.0
  %765 = vadd.xlane.f32.xlu0 %v764
  %v766 = vpop.xlane.xlu0 %765
  %v767 = vmul.f32 %v757, %v451
  %v768 = vmul.f32 %v760, %v451
  %v769 = vmul.f32 %v763, %v451
  %v770 = vmul.f32 %v766, %v451
  %v771 = vsub.f32 %v741, %v767
  %v772 = vsub.f32 %v744, %v768
  %v773 = vsub.f32 %v749, %v769
  %v774 = vsub.f32 %v752, %v770
  %v775 = vmul.f32 %v771, %v771
  %v776 = vmul.f32 %v772, %v772
  %v777 = vmul.f32 %v773, %v773
  %v778 = vmul.f32 %v774, %v774
  %v779 = vsel %vm349, %v775, 0.0
  %780 = vadd.xlane.f32.xlu0 %v779
  %v781 = vpop.xlane.xlu0 %780
  %v782 = vsel %vm349, %v776, 0.0
  %783 = vadd.xlane.f32.xlu0 %v782
  %v784 = vpop.xlane.xlu0 %783
  %v785 = vsel %vm349, %v777, 0.0
  %786 = vadd.xlane.f32.xlu0 %v785
  %v787 = vpop.xlane.xlu0 %786
  %v788 = vsel %vm349, %v778, 0.0
  %789 = vadd.xlane.f32.xlu0 %v788
  %v790 = vpop.xlane.xlu0 %789
  %v791 = vmul.f32 %v781, %v451
  %v792 = vmul.f32 %v784, %v451
  %v793 = vmul.f32 %v787, %v451
  %v794 = vmul.f32 %v790, %v451
  %v795 = vadd.f32 %v791, 1e-05
  %v796 = vadd.f32 %v792, 1e-05
  %v797 = vadd.f32 %v793, 1e-05
  %v798 = vadd.f32 %v794, 1e-05
  %v799 = vrsqrt.pop %v795
  %v800 = vrsqrt.pop %v796
  %v801 = vrsqrt.pop %v797
  %v802 = vrsqrt.pop %v798
  %v803 = vmul.f32 %v771, %v799
  %v804 = vmul.f32 %v772, %v800
  %v805 = vmul.f32 %v773, %v801
  %v806 = vmul.f32 %v774, %v802
  %v808 = vlaneseq
  %v809 = vshrl.u32 %v808, 7
  %v810 = vsub.s32 0, %v809
  %v811 = vrot.slane %v579, %v810
  %v813 = vmul.f32 %v803, %v811
  %v814 = vmul.f32 %v804, %v811
  %v815 = vmul.f32 %v805, %v811
  %v816 = vmul.f32 %v806, %v811
  %v818 = vlaneseq
  %v819 = vshrl.u32 %v818, 7
  %v820 = vsub.s32 0, %v819
  %v821 = vrot.slane %v580, %v820
  %v823 = vadd.f32 %v813, %v821
  %v824 = vadd.f32 %v814, %v821
  %v825 = vadd.f32 %v815, %v821
  %v826 = vadd.f32 %v816, %v821
  %827 = vst.msk [vmem:[%s73] sm:$0xff] %vm349, %v823
  %828 = vst.msk [vmem:[%s73 + $0x8] sm:$0xff] %vm349, %v824
  %829 = vst.msk [vmem:[%s73 + $0x10] sm:$0xff] %vm349, %v825
  %830 = vst.msk [vmem:[%s73 + $0x18] sm:$0xff] %vm349, %v826
  %v831 = vld [vmem:[%s29] sm:$0xff]
  %v832 = vld [vmem:[%s29 + $0x8] sm:$0xff]
  %v833 = vld [vmem:[%s29 + $0x10] sm:$0xff]
  %v834 = vld [vmem:[%s29 + $0x18] sm:$0xff]
  %v835 = vld [vmem:[%s29 + $0x20] sm:$0xff]
  %v836 = vld [vmem:[%s29 + $0x28] sm:$0xff]
  %v837 = vld [vmem:[%s29 + $0x30] sm:$0xff]
  %v838 = vld [vmem:[%s29 + $0x38] sm:$0xff]
  %v839 = vld [vmem:[%s29 + $0x40] sm:$0xff]
  %v840 = vld [vmem:[%s29 + $0x48] sm:$0xff]
  %v841 = vld [vmem:[%s29 + $0x50] sm:$0xff]
  %v842 = vld [vmem:[%s29 + $0x58] sm:$0xff]
  %v843 = vld [vmem:[%s29 + $0x60] sm:$0xff]
  %v844 = vld [vmem:[%s29 + $0x68] sm:$0xff]
  %v845 = vld [vmem:[%s29 + $0x70] sm:$0xff]
  %v846 = vld [vmem:[%s29 + $0x78] sm:$0xff]
  %v847 = vld [vmem:[%s31] sm:$0x3]
  %v848 = vld [vmem:[%s33] sm:$0x1]
  %v849 = vld [vmem:[%s35] sm:$0xf]
  %v850 = vld [vmem:[%s35 + $0x4] sm:$0xf]
  %v851 = vld [vmem:[%s35 + $0x8] sm:$0xf]
  %v852 = vld [vmem:[%s35 + $0xc] sm:$0xf]
  %v853 = vld [vmem:[%s37] sm:$0x1]
  %v854 = vld [vmem:[%s39] sm:$0x1]
  %v855 = vld [vmem:[%s41] sm:$0x1]
  %v856 = vpack.c.bf16 %v832, %v831
  %v857 = vpack.c.bf16 %v834, %v833
  %v858 = vpack.c.bf16 %v836, %v835
  %v859 = vpack.c.bf16 %v838, %v837
  %v860 = vpack.c.bf16 %v840, %v839
  %v861 = vpack.c.bf16 %v842, %v841
  %v862 = vpack.c.bf16 %v844, %v843
  %v863 = vpack.c.bf16 %v846, %v845
  %v865 = vlaneseq
  %v866 = vshrl.u32 %v865, 7
  %v867 = vsub.s32 0, %v866
  %v868 = vrot.slane %v848, %v867
  %vm870 = vcmask 31744
  %v872 = vsel %vm870, %v856, 0
  %v875 = vsel %vm870, %v857, 0
  %v878 = vsel %vm870, %v858, 0
  %v881 = vsel %vm870, %v859, 0
  %v884 = vsel %vm870, %v860, 0
  %v887 = vsel %vm870, %v861, 0
  %v890 = vsel %vm870, %v862, 0
  %v893 = vsel %vm870, %v863, 0
  %v896 = vsel %vm597, %v847, 0
  %898 = vmatprep.subr.bf16.mxu0 0
  %899 = vmatpush1.bf16.msra.mxu0 %v896
  %900 = vmatprep.subr.bf16.mxu0 0
  %901 = vmatpush1.bf16.msra.mxu0 0
  %902 = vmatprep.subr.bf16.mxu0 0
  %903 = vmatpush1.bf16.msra.mxu0 0
  %904 = vmatprep.subr.bf16.mxu0 0
  %905 = vmatpush1.bf16.msra.mxu0 0
  %906 = vmatprep.subr.bf16.mxu0 0
  %907 = vmatpush1.bf16.msra.mxu0 0
  %908 = vmatprep.subr.bf16.mxu0 0
  %909 = vmatpush1.bf16.msra.mxu0 0
  %910 = vmatprep.subr.bf16.mxu0 0
  %911 = vmatpush1.bf16.msra.mxu0 0
  %912 = vmatprep.subr.bf16.mxu0 0
  %913 = vmatpush1.bf16.msra.mxu0 0
  %914 = vmatprep.subr.bf16.mxu0 0
  %915 = vmatpush1.bf16.msra.mxu0 0
  %916 = vmatprep.subr.bf16.mxu0 0
  %917 = vmatpush1.bf16.msra.mxu0 0
  %918 = vmatprep.subr.bf16.mxu0 0
  %919 = vmatpush1.bf16.msra.mxu0 0
  %920 = vmatprep.subr.bf16.mxu0 0
  %921 = vmatpush1.bf16.msra.mxu0 0
  %922 = vmatprep.subr.bf16.mxu0 0
  %923 = vmatpush1.bf16.msra.mxu0 0
  %924 = vmatprep.subr.bf16.mxu0 0
  %925 = vmatpush1.bf16.msra.mxu0 0
  %926 = vmatprep.subr.bf16.mxu0 0
  %927 = vmatpush1.bf16.msra.mxu0 0
  %928 = vmatprep.subr.bf16.mxu0 0
  %929 = vmatpush1.bf16.msra.mxu0 0
  %930 = vmatprep.mubr.bf16.mxu0 0
  %931 = vmatmul.mubr.bf16.gmra.mrb[0].mxu0 %v872
  %v932 = vpop.f32.mrb[0].mxu0
  %v933 = vadd.f32 %v868, %v932
  %v934 = vpop.f32.mrb[0].mxu0
  %v935 = vpop.f32.mrb[0].mxu0
  %v936 = vadd.f32 %v868, %v935
  %v937 = vpop.f32.mrb[0].mxu0
  %938 = vmatprep.mubr.bf16.mxu0 0
  %939 = vmatmul.mubr.bf16.gmra.mrb[0].mxu0 %v875
  %v940 = vpop.f32.mrb[0].mxu0
  %v941 = vadd.f32 %v868, %v940
  %v942 = vpop.f32.mrb[0].mxu0
  %v943 = vpop.f32.mrb[0].mxu0
  %v944 = vadd.f32 %v868, %v943
  %v945 = vpop.f32.mrb[0].mxu0
  %946 = vmatprep.mubr.bf16.mxu0 0
  %947 = vmatmul.mubr.bf16.gmra.mrb[0].mxu0 %v878
  %v948 = vpop.f32.mrb[0].mxu0
  %v949 = vadd.f32 %v868, %v948
  %v950 = vpop.f32.mrb[0].mxu0
  %v951 = vpop.f32.mrb[0].mxu0
  %v952 = vadd.f32 %v868, %v951
  %v953 = vpop.f32.mrb[0].mxu0
  %954 = vmatprep.mubr.bf16.mxu0 0
  %955 = vmatmul.mubr.bf16.gmra.mrb[0].mxu0 %v881
  %v956 = vpop.f32.mrb[0].mxu0
  %v957 = vadd.f32 %v868, %v956
  %v958 = vpop.f32.mrb[0].mxu0
  %v959 = vpop.f32.mrb[0].mxu0
  %v960 = vadd.f32 %v868, %v959
  %v961 = vpop.f32.mrb[0].mxu0
  %962 = vmatprep.mubr.bf16.mxu0 0
  %963 = vmatmul.mubr.bf16.gmra.mrb[0].mxu0 %v884
  %v964 = vpop.f32.mrb[0].mxu0
  %v965 = vadd.f32 %v868, %v964
  %v966 = vpop.f32.mrb[0].mxu0
  %v967 = vpop.f32.mrb[0].mxu0
  %v968 = vadd.f32 %v868, %v967
  %v969 = vpop.f32.mrb[0].mxu0
  %970 = vmatprep.mubr.bf16.mxu0 0
  %971 = vmatmul.mubr.bf16.gmra.mrb[0].mxu0 %v887
  %v972 = vpop.f32.mrb[0].mxu0
  %v973 = vadd.f32 %v868, %v972
  %v974 = vpop.f32.mrb[0].mxu0
  %v975 = vpop.f32.mrb[0].mxu0
  %v976 = vadd.f32 %v868, %v975
  %v977 = vpop.f32.mrb[0].mxu0
  %978 = vmatprep.mubr.bf16.mxu0 0
  %979 = vmatmul.mubr.bf16.gmra.mrb[0].mxu0 %v890
  %v980 = vpop.f32.mrb[0].mxu0
  %v981 = vadd.f32 %v868, %v980
  %v982 = vpop.f32.mrb[0].mxu0
  %v983 = vpop.f32.mrb[0].mxu0
  %v984 = vadd.f32 %v868, %v983
  %v985 = vpop.f32.mrb[0].mxu0
  %986 = vmatprep.mubr.bf16.mxu0 0
  %987 = vmatmul.mubr.bf16.gmra.mrb[0].mxu0 %v893
  %v988 = vpop.f32.mrb[0].mxu0
  %v989 = vadd.f32 %v868, %v988
  %v990 = vpop.f32.mrb[0].mxu0
  %v991 = vpop.f32.mrb[0].mxu0
  %v992 = vadd.f32 %v868, %v991
  %v993 = vpop.f32.mrb[0].mxu0
  %994 = vdwg.mxu0
  %v995 = vxor.u32 %v933, 2147483648
  %v996 = vxor.u32 %v936, 2147483648
  %v997 = vxor.u32 %v941, 2147483648
  %v998 = vxor.u32 %v944, 2147483648
  %v999 = vxor.u32 %v949, 2147483648
  %v1000 = vxor.u32 %v952, 2147483648
  %v1001 = vxor.u32 %v957, 2147483648
  %v1002 = vxor.u32 %v960, 2147483648
  %v1003 = vxor.u32 %v965, 2147483648
  %v1004 = vxor.u32 %v968, 2147483648
  %v1005 = vxor.u32 %v973, 2147483648
  %v1006 = vxor.u32 %v976, 2147483648
  %v1007 = vxor.u32 %v981, 2147483648
  %v1008 = vxor.u32 %v984, 2147483648
  %v1009 = vxor.u32 %v989, 2147483648
  %v1010 = vxor.u32 %v992, 2147483648
  %v1011 = vmul.f32 %v995, 1.442695
  %v1012 = vpow.pop %v1011
  %v1013 = vmul.f32 %v996, 1.442695
  %v1014 = vpow.pop %v1013
  %v1015 = vmul.f32 %v997, 1.442695
  %v1016 = vpow.pop %v1015
  %v1017 = vmul.f32 %v998, 1.442695
  %v1018 = vpow.pop %v1017
  %v1019 = vmul.f32 %v999, 1.442695
  %v1020 = vpow.pop %v1019
  %v1021 = vmul.f32 %v1000, 1.442695
  %v1022 = vpow.pop %v1021
  %v1023 = vmul.f32 %v1001, 1.442695
  %v1024 = vpow.pop %v1023
  %v1025 = vmul.f32 %v1002, 1.442695
  %v1026 = vpow.pop %v1025
  %v1027 = vmul.f32 %v1003, 1.442695
  %v1028 = vpow.pop %v1027
  %v1029 = vmul.f32 %v1004, 1.442695
  %v1030 = vpow.pop %v1029
  %v1031 = vmul.f32 %v1005, 1.442695
  %v1032 = vpow.pop %v1031
  %v1033 = vmul.f32 %v1006, 1.442695
  %v1034 = vpow.pop %v1033
  %v1035 = vmul.f32 %v1007, 1.442695
  %v1036 = vpow.pop %v1035
  %v1037 = vmul.f32 %v1008, 1.442695
  %v1038 = vpow.pop %v1037
  %v1039 = vmul.f32 %v1009, 1.442695
  %v1040 = vpow.pop %v1039
  %v1041 = vmul.f32 %v1010, 1.442695
  %v1042 = vpow.pop %v1041
  %v1043 = vadd.f32 %v1012, 1.0
  %v1044 = vadd.f32 %v1014, 1.0
  %v1045 = vadd.f32 %v1016, 1.0
  %v1046 = vadd.f32 %v1018, 1.0
  %v1047 = vadd.f32 %v1020, 1.0
  %v1048 = vadd.f32 %v1022, 1.0
  %v1049 = vadd.f32 %v1024, 1.0
  %v1050 = vadd.f32 %v1026, 1.0
  %v1051 = vadd.f32 %v1028, 1.0
  %v1052 = vadd.f32 %v1030, 1.0
  %v1053 = vadd.f32 %v1032, 1.0
  %v1054 = vadd.f32 %v1034, 1.0
  %v1055 = vadd.f32 %v1036, 1.0
  %v1056 = vadd.f32 %v1038, 1.0
  %v1057 = vadd.f32 %v1040, 1.0
  %v1058 = vadd.f32 %v1042, 1.0
  %v1059 = vrcp.pop %v1043
  %v1060 = vmul.f32 1.0, %v1059
  %v1061 = vrcp.pop %v1044
  %v1062 = vmul.f32 1.0, %v1061
  %v1063 = vrcp.pop %v1045
  %v1064 = vmul.f32 1.0, %v1063
  %v1065 = vrcp.pop %v1046
  %v1066 = vmul.f32 1.0, %v1065
  %v1067 = vrcp.pop %v1047
  %v1068 = vmul.f32 1.0, %v1067
  %v1069 = vrcp.pop %v1048
  %v1070 = vmul.f32 1.0, %v1069
  %v1071 = vrcp.pop %v1049
  %v1072 = vmul.f32 1.0, %v1071
  %v1073 = vrcp.pop %v1050
  %v1074 = vmul.f32 1.0, %v1073
  %v1075 = vrcp.pop %v1051
  %v1076 = vmul.f32 1.0, %v1075
  %v1077 = vrcp.pop %v1052
  %v1078 = vmul.f32 1.0, %v1077
  %v1079 = vrcp.pop %v1053
  %v1080 = vmul.f32 1.0, %v1079
  %v1081 = vrcp.pop %v1054
  %v1082 = vmul.f32 1.0, %v1081
  %v1083 = vrcp.pop %v1055
  %v1084 = vmul.f32 1.0, %v1083
  %v1085 = vrcp.pop %v1056
  %v1086 = vmul.f32 1.0, %v1085
  %v1087 = vrcp.pop %v1057
  %v1088 = vmul.f32 1.0, %v1087
  %v1089 = vrcp.pop %v1058
  %v1090 = vmul.f32 1.0, %v1089
  %v1091 = vmul.f32 %v933, %v1060
  %v1092 = vmul.f32 %v936, %v1062
  %v1093 = vmul.f32 %v941, %v1064
  %v1094 = vmul.f32 %v944, %v1066
  %v1095 = vmul.f32 %v949, %v1068
  %v1096 = vmul.f32 %v952, %v1070
  %v1097 = vmul.f32 %v957, %v1072
  %v1098 = vmul.f32 %v960, %v1074
  %v1099 = vmul.f32 %v965, %v1076
  %v1100 = vmul.f32 %v968, %v1078
  %v1101 = vmul.f32 %v973, %v1080
  %v1102 = vmul.f32 %v976, %v1082
  %v1103 = vmul.f32 %v981, %v1084
  %v1104 = vmul.f32 %v984, %v1086
  %v1105 = vmul.f32 %v989, %v1088
  %v1106 = vmul.f32 %v992, %v1090
  %v1107 = vpack.c.bf16 %v1092, %v1091
  %v1108 = vpack.c.bf16 %v1094, %v1093
  %v1109 = vpack.c.bf16 %v1096, %v1095
  %v1110 = vpack.c.bf16 %v1098, %v1097
  %v1111 = vpack.c.bf16 %v1100, %v1099
  %v1112 = vpack.c.bf16 %v1102, %v1101
  %v1113 = vpack.c.bf16 %v1104, %v1103
  %v1114 = vpack.c.bf16 %v1106, %v1105
  %v1116 = vlaneseq
  %v1117 = vshrl.u32 %v1116, 7
  %v1118 = vsub.s32 0, %v1117
  %v1119 = vrot.slane %v853, %v1118
  %v1125 = vunpack.c.l.b16 %v849
  %v1126 = vunpack.c.l.b16 %v850
  %v1127 = vunpack.c.l.b16 %v851
  %v1128 = vunpack.c.l.b16 %v852
  %v1129 = vpack.c.b16 %v1126, %v1125
  %v1130 = vpack.c.b16 %v1128, %v1127
  %v1134 = vsel %vm349, %v1107, 0
  %v1137 = vsel %vm349, %v1108, 0
  %v1140 = vsel %vm349, %v1109, 0
  %v1143 = vsel %vm349, %v1110, 0
  %v1146 = vsel %vm349, %v1111, 0
  %v1149 = vsel %vm349, %v1112, 0
  %v1152 = vsel %vm349, %v1113, 0
  %v1155 = vsel %vm349, %v1114, 0
  %1157 = vmatprep.subr.bf16.mxu0 0
  %1158 = vmatpush1.bf16.msra.mxu0 %v1129
  %1159 = vmatprep.subr.bf16.mxu0 0
  %1160 = vmatpush1.bf16.msra.mxu0 %v1130
  %1161 = vmatprep.subr.bf16.mxu0 0
  %1162 = vmatpush1.bf16.msra.mxu0 0
  %1163 = vmatprep.subr.bf16.mxu0 0
  %1164 = vmatpush1.bf16.msra.mxu0 0
  %1165 = vmatprep.subr.bf16.mxu0 0
  %1166 = vmatpush1.bf16.msra.mxu0 0
  %1167 = vmatprep.subr.bf16.mxu0 0
  %1168 = vmatpush1.bf16.msra.mxu0 0
  %1169 = vmatprep.subr.bf16.mxu0 0
  %1170 = vmatpush1.bf16.msra.mxu0 0
  %1171 = vmatprep.subr.bf16.mxu0 0
  %1172 = vmatpush1.bf16.msra.mxu0 0
  %1173 = vmatprep.subr.bf16.mxu0 0
  %1174 = vmatpush1.bf16.msra.mxu0 0
  %1175 = vmatprep.subr.bf16.mxu0 0
  %1176 = vmatpush1.bf16.msra.mxu0 0
  %1177 = vmatprep.subr.bf16.mxu0 0
  %1178 = vmatpush1.bf16.msra.mxu0 0
  %1179 = vmatprep.subr.bf16.mxu0 0
  %1180 = vmatpush1.bf16.msra.mxu0 0
  %1181 = vmatprep.subr.bf16.mxu0 0
  %1182 = vmatpush1.bf16.msra.mxu0 0
  %1183 = vmatprep.subr.bf16.mxu0 0
  %1184 = vmatpush1.bf16.msra.mxu0 0
  %1185 = vmatprep.subr.bf16.mxu0 0
  %1186 = vmatpush1.bf16.msra.mxu0 0
  %1187 = vmatprep.subr.bf16.mxu0 0
  %1188 = vmatpush1.bf16.msra.mxu0 0
  %1189 = vmatprep.mubr.bf16.mxu0 0
  %1190 = vmatmul.mubr.bf16.gmra.mrb[0].mxu0 %v1134
  %v1191 = vpop.f32.mrb[0].mxu0
  %v1192 = vadd.f32 %v1119, %v1191
  %v1193 = vpop.f32.mrb[0].mxu0
  %v1194 = vpop.f32.mrb[0].mxu0
  %v1195 = vadd.f32 %v1119, %v1194
  %v1196 = vpop.f32.mrb[0].mxu0
  %1197 = vmatprep.mubr.bf16.mxu0 0
  %1198 = vmatmul.mubr.bf16.gmra.mrb[0].mxu0 %v1137
  %v1199 = vpop.f32.mrb[0].mxu0
  %v1200 = vadd.f32 %v1119, %v1199
  %v1201 = vpop.f32.mrb[0].mxu0
  %v1202 = vpop.f32.mrb[0].mxu0
  %v1203 = vadd.f32 %v1119, %v1202
  %v1204 = vpop.f32.mrb[0].mxu0
  %1205 = vmatprep.mubr.bf16.mxu0 0
  %1206 = vmatmul.mubr.bf16.gmra.mrb[0].mxu0 %v1140
  %v1207 = vpop.f32.mrb[0].mxu0
  %v1208 = vadd.f32 %v1119, %v1207
  %v1209 = vpop.f32.mrb[0].mxu0
  %v1210 = vpop.f32.mrb[0].mxu0
  %v1211 = vadd.f32 %v1119, %v1210
  %v1212 = vpop.f32.mrb[0].mxu0
  %1213 = vmatprep.mubr.bf16.mxu0 0
  %1214 = vmatmul.mubr.bf16.gmra.mrb[0].mxu0 %v1143
  %v1215 = vpop.f32.mrb[0].mxu0
  %v1216 = vadd.f32 %v1119, %v1215
  %v1217 = vpop.f32.mrb[0].mxu0
  %v1218 = vpop.f32.mrb[0].mxu0
  %v1219 = vadd.f32 %v1119, %v1218
  %v1220 = vpop.f32.mrb[0].mxu0
  %1221 = vmatprep.mubr.bf16.mxu0 0
  %1222 = vmatmul.mubr.bf16.gmra.mrb[0].mxu0 %v1146
  %v1223 = vpop.f32.mrb[0].mxu0
  %v1224 = vadd.f32 %v1119, %v1223
  %v1225 = vpop.f32.mrb[0].mxu0
  %v1226 = vpop.f32.mrb[0].mxu0
  %v1227 = vadd.f32 %v1119, %v1226
  %v1228 = vpop.f32.mrb[0].mxu0
  %1229 = vmatprep.mubr.bf16.mxu0 0
  %1230 = vmatmul.mubr.bf16.gmra.mrb[0].mxu0 %v1149
  %v1231 = vpop.f32.mrb[0].mxu0
  %v1232 = vadd.f32 %v1119, %v1231
  %v1233 = vpop.f32.mrb[0].mxu0
  %v1234 = vpop.f32.mrb[0].mxu0
  %v1235 = vadd.f32 %v1119, %v1234
  %v1236 = vpop.f32.mrb[0].mxu0
  %1237 = vmatprep.mubr.bf16.mxu0 0
  %1238 = vmatmul.mubr.bf16.gmra.mrb[0].mxu0 %v1152
  %v1239 = vpop.f32.mrb[0].mxu0
  %v1240 = vadd.f32 %v1119, %v1239
  %v1241 = vpop.f32.mrb[0].mxu0
  %v1242 = vpop.f32.mrb[0].mxu0
  %v1243 = vadd.f32 %v1119, %v1242
  %v1244 = vpop.f32.mrb[0].mxu0
  %1245 = vmatprep.mubr.bf16.mxu0 0
  %1246 = vmatmul.mubr.bf16.gmra.mrb[0].mxu0 %v1155
  %v1247 = vpop.f32.mrb[0].mxu0
  %v1248 = vadd.f32 %v1119, %v1247
  %v1249 = vpop.f32.mrb[0].mxu0
  %v1250 = vpop.f32.mrb[0].mxu0
  %v1251 = vadd.f32 %v1119, %v1250
  %v1252 = vpop.f32.mrb[0].mxu0
  %1253 = vdwg.mxu0
  %v1254 = vsel %vm349, %v1192, 0.0
  %1255 = vadd.xlane.f32.xlu0 %v1254
  %v1256 = vpop.xlane.xlu0 %1255
  %v1257 = vsel %vm349, %v1195, 0.0
  %1258 = vadd.xlane.f32.xlu0 %v1257
  %v1259 = vpop.xlane.xlu0 %1258
  %v1260 = vsel %vm349, %v1200, 0.0
  %1261 = vadd.xlane.f32.xlu0 %v1260
  %v1262 = vpop.xlane.xlu0 %1261
  %v1263 = vsel %vm349, %v1203, 0.0
  %1264 = vadd.xlane.f32.xlu0 %v1263
  %v1265 = vpop.xlane.xlu0 %1264
  %v1266 = vsel %vm349, %v1208, 0.0
  %1267 = vadd.xlane.f32.xlu0 %v1266
  %v1268 = vpop.xlane.xlu0 %1267
  %v1269 = vsel %vm349, %v1211, 0.0
  %1270 = vadd.xlane.f32.xlu0 %v1269
  %v1271 = vpop.xlane.xlu0 %1270
  %v1272 = vsel %vm349, %v1216, 0.0
  %1273 = vadd.xlane.f32.xlu0 %v1272
  %v1274 = vpop.xlane.xlu0 %1273
  %v1275 = vsel %vm349, %v1219, 0.0
  %1276 = vadd.xlane.f32.xlu0 %v1275
  %v1277 = vpop.xlane.xlu0 %1276
  %v1278 = vsel %vm349, %v1224, 0.0
  %1279 = vadd.xlane.f32.xlu0 %v1278
  %v1280 = vpop.xlane.xlu0 %1279
  %v1281 = vsel %vm349, %v1227, 0.0
  %1282 = vadd.xlane.f32.xlu0 %v1281
  %v1283 = vpop.xlane.xlu0 %1282
  %v1284 = vsel %vm349, %v1232, 0.0
  %1285 = vadd.xlane.f32.xlu0 %v1284
  %v1286 = vpop.xlane.xlu0 %1285
  %v1287 = vsel %vm349, %v1235, 0.0
  %1288 = vadd.xlane.f32.xlu0 %v1287
  %v1289 = vpop.xlane.xlu0 %1288
  %v1290 = vsel %vm349, %v1240, 0.0
  %1291 = vadd.xlane.f32.xlu0 %v1290
  %v1292 = vpop.xlane.xlu0 %1291
  %v1293 = vsel %vm349, %v1243, 0.0
  %1294 = vadd.xlane.f32.xlu0 %v1293
  %v1295 = vpop.xlane.xlu0 %1294
  %v1296 = vsel %vm349, %v1248, 0.0
  %1297 = vadd.xlane.f32.xlu0 %v1296
  %v1298 = vpop.xlane.xlu0 %1297
  %v1299 = vsel %vm349, %v1251, 0.0
  %1300 = vadd.xlane.f32.xlu0 %v1299
  %v1301 = vpop.xlane.xlu0 %1300
  %v1302 = vmul.f32 %v1256, %v451
  %v1303 = vmul.f32 %v1259, %v451
  %v1304 = vmul.f32 %v1262, %v451
  %v1305 = vmul.f32 %v1265, %v451
  %v1306 = vmul.f32 %v1268, %v451
  %v1307 = vmul.f32 %v1271, %v451
  %v1308 = vmul.f32 %v1274, %v451
  %v1309 = vmul.f32 %v1277, %v451
  %v1310 = vmul.f32 %v1280, %v451
  %v1311 = vmul.f32 %v1283, %v451
  %v1312 = vmul.f32 %v1286, %v451
  %v1313 = vmul.f32 %v1289, %v451
  %v1314 = vmul.f32 %v1292, %v451
  %v1315 = vmul.f32 %v1295, %v451
  %v1316 = vmul.f32 %v1298, %v451
  %v1317 = vmul.f32 %v1301, %v451
  %v1318 = vsub.f32 %v1192, %v1302
  %v1319 = vsub.f32 %v1195, %v1303
  %v1320 = vsub.f32 %v1200, %v1304
  %v1321 = vsub.f32 %v1203, %v1305
  %v1322 = vsub.f32 %v1208, %v1306
  %v1323 = vsub.f32 %v1211, %v1307
  %v1324 = vsub.f32 %v1216, %v1308
  %v1325 = vsub.f32 %v1219, %v1309
  %v1326 = vsub.f32 %v1224, %v1310
  %v1327 = vsub.f32 %v1227, %v1311
  %v1328 = vsub.f32 %v1232, %v1312
  %v1329 = vsub.f32 %v1235, %v1313
  %v1330 = vsub.f32 %v1240, %v1314
  %v1331 = vsub.f32 %v1243, %v1315
  %v1332 = vsub.f32 %v1248, %v1316
  %v1333 = vsub.f32 %v1251, %v1317
  %v1334 = vmul.f32 %v1318, %v1318
  %v1335 = vmul.f32 %v1319, %v1319
  %v1336 = vmul.f32 %v1320, %v1320
  %v1337 = vmul.f32 %v1321, %v1321
  %v1338 = vmul.f32 %v1322, %v1322
  %v1339 = vmul.f32 %v1323, %v1323
  %v1340 = vmul.f32 %v1324, %v1324
  %v1341 = vmul.f32 %v1325, %v1325
  %v1342 = vmul.f32 %v1326, %v1326
  %v1343 = vmul.f32 %v1327, %v1327
  %v1344 = vmul.f32 %v1328, %v1328
  %v1345 = vmul.f32 %v1329, %v1329
  %v1346 = vmul.f32 %v1330, %v1330
  %v1347 = vmul.f32 %v1331, %v1331
  %v1348 = vmul.f32 %v1332, %v1332
  %v1349 = vmul.f32 %v1333, %v1333
  %v1350 = vsel %vm349, %v1334, 0.0
  %1351 = vadd.xlane.f32.xlu0 %v1350
  %v1352 = vpop.xlane.xlu0 %1351
  %v1353 = vsel %vm349, %v1335, 0.0
  %1354 = vadd.xlane.f32.xlu0 %v1353
  %v1355 = vpop.xlane.xlu0 %1354
  %v1356 = vsel %vm349, %v1336, 0.0
  %1357 = vadd.xlane.f32.xlu0 %v1356
  %v1358 = vpop.xlane.xlu0 %1357
  %v1359 = vsel %vm349, %v1337, 0.0
  %1360 = vadd.xlane.f32.xlu0 %v1359
  %v1361 = vpop.xlane.xlu0 %1360
  %v1362 = vsel %vm349, %v1338, 0.0
  %1363 = vadd.xlane.f32.xlu0 %v1362
  %v1364 = vpop.xlane.xlu0 %1363
  %v1365 = vsel %vm349, %v1339, 0.0
  %1366 = vadd.xlane.f32.xlu0 %v1365
  %v1367 = vpop.xlane.xlu0 %1366
  %v1368 = vsel %vm349, %v1340, 0.0
  %1369 = vadd.xlane.f32.xlu0 %v1368
  %v1370 = vpop.xlane.xlu0 %1369
  %v1371 = vsel %vm349, %v1341, 0.0
  %1372 = vadd.xlane.f32.xlu0 %v1371
  %v1373 = vpop.xlane.xlu0 %1372
  %v1374 = vsel %vm349, %v1342, 0.0
  %1375 = vadd.xlane.f32.xlu0 %v1374
  %v1376 = vpop.xlane.xlu0 %1375
  %v1377 = vsel %vm349, %v1343, 0.0
  %1378 = vadd.xlane.f32.xlu0 %v1377
  %v1379 = vpop.xlane.xlu0 %1378
  %v1380 = vsel %vm349, %v1344, 0.0
  %1381 = vadd.xlane.f32.xlu0 %v1380
  %v1382 = vpop.xlane.xlu0 %1381
  %v1383 = vsel %vm349, %v1345, 0.0
  %1384 = vadd.xlane.f32.xlu0 %v1383
  %v1385 = vpop.xlane.xlu0 %1384
  %v1386 = vsel %vm349, %v1346, 0.0
  %1387 = vadd.xlane.f32.xlu0 %v1386
  %v1388 = vpop.xlane.xlu0 %1387
  %v1389 = vsel %vm349, %v1347, 0.0
  %1390 = vadd.xlane.f32.xlu0 %v1389
  %v1391 = vpop.xlane.xlu0 %1390
  %v1392 = vsel %vm349, %v1348, 0.0
  %1393 = vadd.xlane.f32.xlu0 %v1392
  %v1394 = vpop.xlane.xlu0 %1393
  %v1395 = vsel %vm349, %v1349, 0.0
  %1396 = vadd.xlane.f32.xlu0 %v1395
  %v1397 = vpop.xlane.xlu0 %1396
  %v1398 = vmul.f32 %v1352, %v451
  %v1399 = vmul.f32 %v1355, %v451
  %v1400 = vmul.f32 %v1358, %v451
  %v1401 = vmul.f32 %v1361, %v451
  %v1402 = vmul.f32 %v1364, %v451
  %v1403 = vmul.f32 %v1367, %v451
  %v1404 = vmul.f32 %v1370, %v451
  %v1405 = vmul.f32 %v1373, %v451
  %v1406 = vmul.f32 %v1376, %v451
  %v1407 = vmul.f32 %v1379, %v451
  %v1408 = vmul.f32 %v1382, %v451
  %v1409 = vmul.f32 %v1385, %v451
  %v1410 = vmul.f32 %v1388, %v451
  %v1411 = vmul.f32 %v1391, %v451
  %v1412 = vmul.f32 %v1394, %v451
  %v1413 = vmul.f32 %v1397, %v451
  %v1414 = vadd.f32 %v1398, 1e-05
  %v1415 = vadd.f32 %v1399, 1e-05
  %v1416 = vadd.f32 %v1400, 1e-05
  %v1417 = vadd.f32 %v1401, 1e-05
  %v1418 = vadd.f32 %v1402, 1e-05
  %v1419 = vadd.f32 %v1403, 1e-05
  %v1420 = vadd.f32 %v1404, 1e-05
  %v1421 = vadd.f32 %v1405, 1e-05
  %v1422 = vadd.f32 %v1406, 1e-05
  %v1423 = vadd.f32 %v1407, 1e-05
  %v1424 = vadd.f32 %v1408, 1e-05
  %v1425 = vadd.f32 %v1409, 1e-05
  %v1426 = vadd.f32 %v1410, 1e-05
  %v1427 = vadd.f32 %v1411, 1e-05
  %v1428 = vadd.f32 %v1412, 1e-05
  %v1429 = vadd.f32 %v1413, 1e-05
  %v1430 = vrsqrt.pop %v1414
  %v1431 = vrsqrt.pop %v1415
  %v1432 = vrsqrt.pop %v1416
  %v1433 = vrsqrt.pop %v1417
  %v1434 = vrsqrt.pop %v1418
  %v1435 = vrsqrt.pop %v1419
  %v1436 = vrsqrt.pop %v1420
  %v1437 = vrsqrt.pop %v1421
  %v1438 = vrsqrt.pop %v1422
  %v1439 = vrsqrt.pop %v1423
  %v1440 = vrsqrt.pop %v1424
  %v1441 = vrsqrt.pop %v1425
  %v1442 = vrsqrt.pop %v1426
  %v1443 = vrsqrt.pop %v1427
  %v1444 = vrsqrt.pop %v1428
  %v1445 = vrsqrt.pop %v1429
  %v1446 = vmul.f32 %v1318, %v1430
  %v1447 = vmul.f32 %v1319, %v1431
  %v1448 = vmul.f32 %v1320, %v1432
  %v1449 = vmul.f32 %v1321, %v1433
  %v1450 = vmul.f32 %v1322, %v1434
  %v1451 = vmul.f32 %v1323, %v1435
  %v1452 = vmul.f32 %v1324, %v1436
  %v1453 = vmul.f32 %v1325, %v1437
  %v1454 = vmul.f32 %v1326, %v1438
  %v1455 = vmul.f32 %v1327, %v1439
  %v1456 = vmul.f32 %v1328, %v1440
  %v1457 = vmul.f32 %v1329, %v1441
  %v1458 = vmul.f32 %v1330, %v1442
  %v1459 = vmul.f32 %v1331, %v1443
  %v1460 = vmul.f32 %v1332, %v1444
  %v1461 = vmul.f32 %v1333, %v1445
  %v1463 = vlaneseq
  %v1464 = vshrl.u32 %v1463, 7
  %v1465 = vsub.s32 0, %v1464
  %v1466 = vrot.slane %v854, %v1465
  %v1468 = vmul.f32 %v1446, %v1466
  %v1469 = vmul.f32 %v1447, %v1466
  %v1470 = vmul.f32 %v1448, %v1466
  %v1471 = vmul.f32 %v1449, %v1466
  %v1472 = vmul.f32 %v1450, %v1466
  %v1473 = vmul.f32 %v1451, %v1466
  %v1474 = vmul.f32 %v1452, %v1466
  %v1475 = vmul.f32 %v1453, %v1466
  %v1476 = vmul.f32 %v1454, %v1466
  %v1477 = vmul.f32 %v1455, %v1466
  %v1478 = vmul.f32 %v1456, %v1466
  %v1479 = vmul.f32 %v1457, %v1466
  %v1480 = vmul.f32 %v1458, %v1466
  %v1481 = vmul.f32 %v1459, %v1466
  %v1482 = vmul.f32 %v1460, %v1466
  %v1483 = vmul.f32 %v1461, %v1466
  %v1485 = vlaneseq
  %v1486 = vshrl.u32 %v1485, 7
  %v1487 = vsub.s32 0, %v1486
  %v1488 = vrot.slane %v855, %v1487
  %v1490 = vadd.f32 %v1468, %v1488
  %v1491 = vadd.f32 %v1469, %v1488
  %v1492 = vadd.f32 %v1470, %v1488
  %v1493 = vadd.f32 %v1471, %v1488
  %v1494 = vadd.f32 %v1472, %v1488
  %v1495 = vadd.f32 %v1473, %v1488
  %v1496 = vadd.f32 %v1474, %v1488
  %v1497 = vadd.f32 %v1475, %v1488
  %v1498 = vadd.f32 %v1476, %v1488
  %v1499 = vadd.f32 %v1477, %v1488
  %v1500 = vadd.f32 %v1478, %v1488
  %v1501 = vadd.f32 %v1479, %v1488
  %v1502 = vadd.f32 %v1480, %v1488
  %v1503 = vadd.f32 %v1481, %v1488
  %v1504 = vadd.f32 %v1482, %v1488
  %v1505 = vadd.f32 %v1483, %v1488
  %1506 = vst.msk [vmem:[%s75] sm:$0xff] %vm349, %v1490
  %1507 = vst.msk [vmem:[%s75 + $0x8] sm:$0xff] %vm349, %v1491
  %1508 = vst.msk [vmem:[%s75 + $0x10] sm:$0xff] %vm349, %v1492
  %1509 = vst.msk [vmem:[%s75 + $0x18] sm:$0xff] %vm349, %v1493
  %1510 = vst.msk [vmem:[%s75 + $0x20] sm:$0xff] %vm349, %v1494
  %1511 = vst.msk [vmem:[%s75 + $0x28] sm:$0xff] %vm349, %v1495
  %1512 = vst.msk [vmem:[%s75 + $0x30] sm:$0xff] %vm349, %v1496
  %1513 = vst.msk [vmem:[%s75 + $0x38] sm:$0xff] %vm349, %v1497
  %1514 = vst.msk [vmem:[%s75 + $0x40] sm:$0xff] %vm349, %v1498
  %1515 = vst.msk [vmem:[%s75 + $0x48] sm:$0xff] %vm349, %v1499
  %1516 = vst.msk [vmem:[%s75 + $0x50] sm:$0xff] %vm349, %v1500
  %1517 = vst.msk [vmem:[%s75 + $0x58] sm:$0xff] %vm349, %v1501
  %1518 = vst.msk [vmem:[%s75 + $0x60] sm:$0xff] %vm349, %v1502
  %1519 = vst.msk [vmem:[%s75 + $0x68] sm:$0xff] %vm349, %v1503
  %1520 = vst.msk [vmem:[%s75 + $0x70] sm:$0xff] %vm349, %v1504
  %1521 = vst.msk [vmem:[%s75 + $0x78] sm:$0xff] %vm349, %v1505
  %v1522 = vld [vmem:[%s43] sm:$0xff]
  %v1523 = vld [vmem:[%s43 + $0x8] sm:$0xff]
  %v1524 = vld [vmem:[%s43 + $0x10] sm:$0xff]
  %v1525 = vld [vmem:[%s43 + $0x18] sm:$0xff]
  %v1526 = vld [vmem:[%s43 + $0x20] sm:$0xff]
  %v1527 = vld [vmem:[%s43 + $0x28] sm:$0xff]
  %v1528 = vld [vmem:[%s43 + $0x30] sm:$0xff]
  %v1529 = vld [vmem:[%s43 + $0x38] sm:$0xff]
  %v1530 = vld [vmem:[%s43 + $0x40] sm:$0xff]
  %v1531 = vld [vmem:[%s43 + $0x48] sm:$0xff]
  %v1532 = vld [vmem:[%s43 + $0x50] sm:$0xff]
  %v1533 = vld [vmem:[%s43 + $0x58] sm:$0xff]
  %v1534 = vld [vmem:[%s43 + $0x60] sm:$0xff]
  %v1535 = vld [vmem:[%s43 + $0x68] sm:$0xff]
  %v1536 = vld [vmem:[%s43 + $0x70] sm:$0xff]
  %v1537 = vld [vmem:[%s43 + $0x78] sm:$0xff]
  %v1538 = vld [vmem:[%s45] sm:$0x3]
  %v1539 = vld [vmem:[%s47] sm:$0x1]
  %v1540 = vld [vmem:[%s49] sm:$0xf]
  %v1541 = vld [vmem:[%s49 + $0x4] sm:$0xf]
  %v1542 = vld [vmem:[%s49 + $0x8] sm:$0xf]
  %v1543 = vld [vmem:[%s49 + $0xc] sm:$0xf]
  %v1544 = vld [vmem:[%s51] sm:$0x1]
  %v1545 = vld [vmem:[%s53] sm:$0x1]
  %v1546 = vld [vmem:[%s55] sm:$0x1]
  %v1547 = vpack.c.bf16 %v1523, %v1522
  %v1548 = vpack.c.bf16 %v1525, %v1524
  %v1549 = vpack.c.bf16 %v1527, %v1526
  %v1550 = vpack.c.bf16 %v1529, %v1528
  %v1551 = vpack.c.bf16 %v1531, %v1530
  %v1552 = vpack.c.bf16 %v1533, %v1532
  %v1553 = vpack.c.bf16 %v1535, %v1534
  %v1554 = vpack.c.bf16 %v1537, %v1536
  %v1556 = vlaneseq
  %v1557 = vshrl.u32 %v1556, 7
  %v1558 = vsub.s32 0, %v1557
  %v1559 = vrot.slane %v1539, %v1558
  %v1562 = vsel %vm870, %v1547, 0
  %v1565 = vsel %vm870, %v1548, 0
  %v1568 = vsel %vm870, %v1549, 0
  %v1571 = vsel %vm870, %v1550, 0
  %v1574 = vsel %vm870, %v1551, 0
  %v1577 = vsel %vm870, %v1552, 0
  %v1580 = vsel %vm870, %v1553, 0
  %v1583 = vsel %vm870, %v1554, 0
  %v1586 = vsel %vm597, %v1538, 0
  %1588 = vmatprep.subr.bf16.mxu0 0
  %1589 = vmatpush1.bf16.msra.mxu0 %v1586
  %1590 = vmatprep.subr.bf16.mxu0 0
  %1591 = vmatpush1.bf16.msra.mxu0 0
  %1592 = vmatprep.subr.bf16.mxu0 0
  %1593 = vmatpush1.bf16.msra.mxu0 0
  %1594 = vmatprep.subr.bf16.mxu0 0
  %1595 = vmatpush1.bf16.msra.mxu0 0
  %1596 = vmatprep.subr.bf16.mxu0 0
  %1597 = vmatpush1.bf16.msra.mxu0 0
  %1598 = vmatprep.subr.bf16.mxu0 0
  %1599 = vmatpush1.bf16.msra.mxu0 0
  %1600 = vmatprep.subr.bf16.mxu0 0
  %1601 = vmatpush1.bf16.msra.mxu0 0
  %1602 = vmatprep.subr.bf16.mxu0 0
  %1603 = vmatpush1.bf16.msra.mxu0 0
  %1604 = vmatprep.subr.bf16.mxu0 0
  %1605 = vmatpush1.bf16.msra.mxu0 0
  %1606 = vmatprep.subr.bf16.mxu0 0
  %1607 = vmatpush1.bf16.msra.mxu0 0
  %1608 = vmatprep.subr.bf16.mxu0 0
  %1609 = vmatpush1.bf16.msra.mxu0 0
  %1610 = vmatprep.subr.bf16.mxu0 0
  %1611 = vmatpush1.bf16.msra.mxu0 0
  %1612 = vmatprep.subr.bf16.mxu0 0
  %1613 = vmatpush1.bf16.msra.mxu0 0
  %1614 = vmatprep.subr.bf16.mxu0 0
  %1615 = vmatpush1.bf16.msra.mxu0 0
  %1616 = vmatprep.subr.bf16.mxu0 0
  %1617 = vmatpush1.bf16.msra.mxu0 0
  %1618 = vmatprep.subr.bf16.mxu0 0
  %1619 = vmatpush1.bf16.msra.mxu0 0
  %1620 = vmatprep.mubr.bf16.mxu0 0
  %1621 = vmatmul.mubr.bf16.gmra.mrb[0].mxu0 %v1562
  %v1622 = vpop.f32.mrb[0].mxu0
  %v1623 = vadd.f32 %v1559, %v1622
  %v1624 = vpop.f32.mrb[0].mxu0
  %v1625 = vpop.f32.mrb[0].mxu0
  %v1626 = vadd.f32 %v1559, %v1625
  %v1627 = vpop.f32.mrb[0].mxu0
  %1628 = vmatprep.mubr.bf16.mxu0 0
  %1629 = vmatmul.mubr.bf16.gmra.mrb[0].mxu0 %v1565
  %v1630 = vpop.f32.mrb[0].mxu0
  %v1631 = vadd.f32 %v1559, %v1630
  %v1632 = vpop.f32.mrb[0].mxu0
  %v1633 = vpop.f32.mrb[0].mxu0
  %v1634 = vadd.f32 %v1559, %v1633
  %v1635 = vpop.f32.mrb[0].mxu0
  %1636 = vmatprep.mubr.bf16.mxu0 0
  %1637 = vmatmul.mubr.bf16.gmra.mrb[0].mxu0 %v1568
  %v1638 = vpop.f32.mrb[0].mxu0
  %v1639 = vadd.f32 %v1559, %v1638
  %v1640 = vpop.f32.mrb[0].mxu0
  %v1641 = vpop.f32.mrb[0].mxu0
  %v1642 = vadd.f32 %v1559, %v1641
  %v1643 = vpop.f32.mrb[0].mxu0
  %1644 = vmatprep.mubr.bf16.mxu0 0
  %1645 = vmatmul.mubr.bf16.gmra.mrb[0].mxu0 %v1571
  %v1646 = vpop.f32.mrb[0].mxu0
  %v1647 = vadd.f32 %v1559, %v1646
  %v1648 = vpop.f32.mrb[0].mxu0
  %v1649 = vpop.f32.mrb[0].mxu0
  %v1650 = vadd.f32 %v1559, %v1649
  %v1651 = vpop.f32.mrb[0].mxu0
  %1652 = vmatprep.mubr.bf16.mxu0 0
  %1653 = vmatmul.mubr.bf16.gmra.mrb[0].mxu0 %v1574
  %v1654 = vpop.f32.mrb[0].mxu0
  %v1655 = vadd.f32 %v1559, %v1654
  %v1656 = vpop.f32.mrb[0].mxu0
  %v1657 = vpop.f32.mrb[0].mxu0
  %v1658 = vadd.f32 %v1559, %v1657
  %v1659 = vpop.f32.mrb[0].mxu0
  %1660 = vmatprep.mubr.bf16.mxu0 0
  %1661 = vmatmul.mubr.bf16.gmra.mrb[0].mxu0 %v1577
  %v1662 = vpop.f32.mrb[0].mxu0
  %v1663 = vadd.f32 %v1559, %v1662
  %v1664 = vpop.f32.mrb[0].mxu0
  %v1665 = vpop.f32.mrb[0].mxu0
  %v1666 = vadd.f32 %v1559, %v1665
  %v1667 = vpop.f32.mrb[0].mxu0
  %1668 = vmatprep.mubr.bf16.mxu0 0
  %1669 = vmatmul.mubr.bf16.gmra.mrb[0].mxu0 %v1580
  %v1670 = vpop.f32.mrb[0].mxu0
  %v1671 = vadd.f32 %v1559, %v1670
  %v1672 = vpop.f32.mrb[0].mxu0
  %v1673 = vpop.f32.mrb[0].mxu0
  %v1674 = vadd.f32 %v1559, %v1673
  %v1675 = vpop.f32.mrb[0].mxu0
  %1676 = vmatprep.mubr.bf16.mxu0 0
  %1677 = vmatmul.mubr.bf16.gmra.mrb[0].mxu0 %v1583
  %v1678 = vpop.f32.mrb[0].mxu0
  %v1679 = vadd.f32 %v1559, %v1678
  %v1680 = vpop.f32.mrb[0].mxu0
  %v1681 = vpop.f32.mrb[0].mxu0
  %v1682 = vadd.f32 %v1559, %v1681
  %v1683 = vpop.f32.mrb[0].mxu0
  %1684 = vdwg.mxu0
  %v1685 = vxor.u32 %v1623, 2147483648
  %v1686 = vxor.u32 %v1626, 2147483648
  %v1687 = vxor.u32 %v1631, 2147483648
  %v1688 = vxor.u32 %v1634, 2147483648
  %v1689 = vxor.u32 %v1639, 2147483648
  %v1690 = vxor.u32 %v1642, 2147483648
  %v1691 = vxor.u32 %v1647, 2147483648
  %v1692 = vxor.u32 %v1650, 2147483648
  %v1693 = vxor.u32 %v1655, 2147483648
  %v1694 = vxor.u32 %v1658, 2147483648
  %v1695 = vxor.u32 %v1663, 2147483648
  %v1696 = vxor.u32 %v1666, 2147483648
  %v1697 = vxor.u32 %v1671, 2147483648
  %v1698 = vxor.u32 %v1674, 2147483648
  %v1699 = vxor.u32 %v1679, 2147483648
  %v1700 = vxor.u32 %v1682, 2147483648
  %v1701 = vmul.f32 %v1685, 1.442695
  %v1702 = vpow.pop %v1701
  %v1703 = vmul.f32 %v1686, 1.442695
  %v1704 = vpow.pop %v1703
  %v1705 = vmul.f32 %v1687, 1.442695
  %v1706 = vpow.pop %v1705
  %v1707 = vmul.f32 %v1688, 1.442695
  %v1708 = vpow.pop %v1707
  %v1709 = vmul.f32 %v1689, 1.442695
  %v1710 = vpow.pop %v1709
  %v1711 = vmul.f32 %v1690, 1.442695
  %v1712 = vpow.pop %v1711
  %v1713 = vmul.f32 %v1691, 1.442695
  %v1714 = vpow.pop %v1713
  %v1715 = vmul.f32 %v1692, 1.442695
  %v1716 = vpow.pop %v1715
  %v1717 = vmul.f32 %v1693, 1.442695
  %v1718 = vpow.pop %v1717
  %v1719 = vmul.f32 %v1694, 1.442695
  %v1720 = vpow.pop %v1719
  %v1721 = vmul.f32 %v1695, 1.442695
  %v1722 = vpow.pop %v1721
  %v1723 = vmul.f32 %v1696, 1.442695
  %v1724 = vpow.pop %v1723
  %v1725 = vmul.f32 %v1697, 1.442695
  %v1726 = vpow.pop %v1725
  %v1727 = vmul.f32 %v1698, 1.442695
  %v1728 = vpow.pop %v1727
  %v1729 = vmul.f32 %v1699, 1.442695
  %v1730 = vpow.pop %v1729
  %v1731 = vmul.f32 %v1700, 1.442695
  %v1732 = vpow.pop %v1731
  %v1733 = vadd.f32 %v1702, 1.0
  %v1734 = vadd.f32 %v1704, 1.0
  %v1735 = vadd.f32 %v1706, 1.0
  %v1736 = vadd.f32 %v1708, 1.0
  %v1737 = vadd.f32 %v1710, 1.0
  %v1738 = vadd.f32 %v1712, 1.0
  %v1739 = vadd.f32 %v1714, 1.0
  %v1740 = vadd.f32 %v1716, 1.0
  %v1741 = vadd.f32 %v1718, 1.0
  %v1742 = vadd.f32 %v1720, 1.0
  %v1743 = vadd.f32 %v1722, 1.0
  %v1744 = vadd.f32 %v1724, 1.0
  %v1745 = vadd.f32 %v1726, 1.0
  %v1746 = vadd.f32 %v1728, 1.0
  %v1747 = vadd.f32 %v1730, 1.0
  %v1748 = vadd.f32 %v1732, 1.0
  %v1749 = vrcp.pop %v1733
  %v1750 = vmul.f32 1.0, %v1749
  %v1751 = vrcp.pop %v1734
  %v1752 = vmul.f32 1.0, %v1751
  %v1753 = vrcp.pop %v1735
  %v1754 = vmul.f32 1.0, %v1753
  %v1755 = vrcp.pop %v1736
  %v1756 = vmul.f32 1.0, %v1755
  %v1757 = vrcp.pop %v1737
  %v1758 = vmul.f32 1.0, %v1757
  %v1759 = vrcp.pop %v1738
  %v1760 = vmul.f32 1.0, %v1759
  %v1761 = vrcp.pop %v1739
  %v1762 = vmul.f32 1.0, %v1761
  %v1763 = vrcp.pop %v1740
  %v1764 = vmul.f32 1.0, %v1763
  %v1765 = vrcp.pop %v1741
  %v1766 = vmul.f32 1.0, %v1765
  %v1767 = vrcp.pop %v1742
  %v1768 = vmul.f32 1.0, %v1767
  %v1769 = vrcp.pop %v1743
  %v1770 = vmul.f32 1.0, %v1769
  %v1771 = vrcp.pop %v1744
  %v1772 = vmul.f32 1.0, %v1771
  %v1773 = vrcp.pop %v1745
  %v1774 = vmul.f32 1.0, %v1773
  %v1775 = vrcp.pop %v1746
  %v1776 = vmul.f32 1.0, %v1775
  %v1777 = vrcp.pop %v1747
  %v1778 = vmul.f32 1.0, %v1777
  %v1779 = vrcp.pop %v1748
  %v1780 = vmul.f32 1.0, %v1779
  %v1781 = vmul.f32 %v1623, %v1750
  %v1782 = vmul.f32 %v1626, %v1752
  %v1783 = vmul.f32 %v1631, %v1754
  %v1784 = vmul.f32 %v1634, %v1756
  %v1785 = vmul.f32 %v1639, %v1758
  %v1786 = vmul.f32 %v1642, %v1760
  %v1787 = vmul.f32 %v1647, %v1762
  %v1788 = vmul.f32 %v1650, %v1764
  %v1789 = vmul.f32 %v1655, %v1766
  %v1790 = vmul.f32 %v1658, %v1768
  %v1791 = vmul.f32 %v1663, %v1770
  %v1792 = vmul.f32 %v1666, %v1772
  %v1793 = vmul.f32 %v1671, %v1774
  %v1794 = vmul.f32 %v1674, %v1776
  %v1795 = vmul.f32 %v1679, %v1778
  %v1796 = vmul.f32 %v1682, %v1780
  %v1797 = vpack.c.bf16 %v1782, %v1781
  %v1798 = vpack.c.bf16 %v1784, %v1783
  %v1799 = vpack.c.bf16 %v1786, %v1785
  %v1800 = vpack.c.bf16 %v1788, %v1787
  %v1801 = vpack.c.bf16 %v1790, %v1789
  %v1802 = vpack.c.bf16 %v1792, %v1791
  %v1803 = vpack.c.bf16 %v1794, %v1793
  %v1804 = vpack.c.bf16 %v1796, %v1795
  %v1806 = vlaneseq
  %v1807 = vshrl.u32 %v1806, 7
  %v1808 = vsub.s32 0, %v1807
  %v1809 = vrot.slane %v1544, %v1808
  %v1815 = vunpack.c.l.b16 %v1540
  %v1816 = vunpack.c.l.b16 %v1541
  %v1817 = vunpack.c.l.b16 %v1542
  %v1818 = vunpack.c.l.b16 %v1543
  %v1819 = vpack.c.b16 %v1816, %v1815
  %v1820 = vpack.c.b16 %v1818, %v1817
  %v1824 = vsel %vm349, %v1797, 0
  %v1827 = vsel %vm349, %v1798, 0
  %v1830 = vsel %vm349, %v1799, 0
  %v1833 = vsel %vm349, %v1800, 0
  %v1836 = vsel %vm349, %v1801, 0
  %v1839 = vsel %vm349, %v1802, 0
  %v1842 = vsel %vm349, %v1803, 0
  %v1845 = vsel %vm349, %v1804, 0
  %1847 = vmatprep.subr.bf16.mxu0 0
  %1848 = vmatpush1.bf16.msra.mxu0 %v1819
  %1849 = vmatprep.subr.bf16.mxu0 0
  %1850 = vmatpush1.bf16.msra.mxu0 %v1820
  %1851 = vmatprep.subr.bf16.mxu0 0
  %1852 = vmatpush1.bf16.msra.mxu0 0
  %1853 = vmatprep.subr.bf16.mxu0 0
  %1854 = vmatpush1.bf16.msra.mxu0 0
  %1855 = vmatprep.subr.bf16.mxu0 0
  %1856 = vmatpush1.bf16.msra.mxu0 0
  %1857 = vmatprep.subr.bf16.mxu0 0
  %1858 = vmatpush1.bf16.msra.mxu0 0
  %1859 = vmatprep.subr.bf16.mxu0 0
  %1860 = vmatpush1.bf16.msra.mxu0 0
  %1861 = vmatprep.subr.bf16.mxu0 0
  %1862 = vmatpush1.bf16.msra.mxu0 0
  %1863 = vmatprep.subr.bf16.mxu0 0
  %1864 = vmatpush1.bf16.msra.mxu0 0
  %1865 = vmatprep.subr.bf16.mxu0 0
  %1866 = vmatpush1.bf16.msra.mxu0 0
  %1867 = vmatprep.subr.bf16.mxu0 0
  %1868 = vmatpush1.bf16.msra.mxu0 0
  %1869 = vmatprep.subr.bf16.mxu0 0
  %1870 = vmatpush1.bf16.msra.mxu0 0
  %1871 = vmatprep.subr.bf16.mxu0 0
  %1872 = vmatpush1.bf16.msra.mxu0 0
  %1873 = vmatprep.subr.bf16.mxu0 0
  %1874 = vmatpush1.bf16.msra.mxu0 0
  %1875 = vmatprep.subr.bf16.mxu0 0
  %1876 = vmatpush1.bf16.msra.mxu0 0
  %1877 = vmatprep.subr.bf16.mxu0 0
  %1878 = vmatpush1.bf16.msra.mxu0 0
  %1879 = vmatprep.mubr.bf16.mxu0 0
  %1880 = vmatmul.mubr.bf16.gmra.mrb[0].mxu0 %v1824
  %v1881 = vpop.f32.mrb[0].mxu0
  %v1882 = vadd.f32 %v1809, %v1881
  %v1883 = vpop.f32.mrb[0].mxu0
  %v1884 = vpop.f32.mrb[0].mxu0
  %v1885 = vadd.f32 %v1809, %v1884
  %v1886 = vpop.f32.mrb[0].mxu0
  %1887 = vmatprep.mubr.bf16.mxu0 0
  %1888 = vmatmul.mubr.bf16.gmra.mrb[0].mxu0 %v1827
  %v1889 = vpop.f32.mrb[0].mxu0
  %v1890 = vadd.f32 %v1809, %v1889
  %v1891 = vpop.f32.mrb[0].mxu0
  %v1892 = vpop.f32.mrb[0].mxu0
  %v1893 = vadd.f32 %v1809, %v1892
  %v1894 = vpop.f32.mrb[0].mxu0
  %1895 = vmatprep.mubr.bf16.mxu0 0
  %1896 = vmatmul.mubr.bf16.gmra.mrb[0].mxu0 %v1830
  %v1897 = vpop.f32.mrb[0].mxu0
  %v1898 = vadd.f32 %v1809, %v1897
  %v1899 = vpop.f32.mrb[0].mxu0
  %v1900 = vpop.f32.mrb[0].mxu0
  %v1901 = vadd.f32 %v1809, %v1900
  %v1902 = vpop.f32.mrb[0].mxu0
  %1903 = vmatprep.mubr.bf16.mxu0 0
  %1904 = vmatmul.mubr.bf16.gmra.mrb[0].mxu0 %v1833
  %v1905 = vpop.f32.mrb[0].mxu0
  %v1906 = vadd.f32 %v1809, %v1905
  %v1907 = vpop.f32.mrb[0].mxu0
  %v1908 = vpop.f32.mrb[0].mxu0
  %v1909 = vadd.f32 %v1809, %v1908
  %v1910 = vpop.f32.mrb[0].mxu0
  %1911 = vmatprep.mubr.bf16.mxu0 0
  %1912 = vmatmul.mubr.bf16.gmra.mrb[0].mxu0 %v1836
  %v1913 = vpop.f32.mrb[0].mxu0
  %v1914 = vadd.f32 %v1809, %v1913
  %v1915 = vpop.f32.mrb[0].mxu0
  %v1916 = vpop.f32.mrb[0].mxu0
  %v1917 = vadd.f32 %v1809, %v1916
  %v1918 = vpop.f32.mrb[0].mxu0
  %1919 = vmatprep.mubr.bf16.mxu0 0
  %1920 = vmatmul.mubr.bf16.gmra.mrb[0].mxu0 %v1839
  %v1921 = vpop.f32.mrb[0].mxu0
  %v1922 = vadd.f32 %v1809, %v1921
  %v1923 = vpop.f32.mrb[0].mxu0
  %v1924 = vpop.f32.mrb[0].mxu0
  %v1925 = vadd.f32 %v1809, %v1924
  %v1926 = vpop.f32.mrb[0].mxu0
  %1927 = vmatprep.mubr.bf16.mxu0 0
  %1928 = vmatmul.mubr.bf16.gmra.mrb[0].mxu0 %v1842
  %v1929 = vpop.f32.mrb[0].mxu0
  %v1930 = vadd.f32 %v1809, %v1929
  %v1931 = vpop.f32.mrb[0].mxu0
  %v1932 = vpop.f32.mrb[0].mxu0
  %v1933 = vadd.f32 %v1809, %v1932
  %v1934 = vpop.f32.mrb[0].mxu0
  %1935 = vmatprep.mubr.bf16.mxu0 0
  %1936 = vmatmul.mubr.bf16.gmra.mrb[0].mxu0 %v1845
  %v1937 = vpop.f32.mrb[0].mxu0
  %v1938 = vadd.f32 %v1809, %v1937
  %v1939 = vpop.f32.mrb[0].mxu0
  %v1940 = vpop.f32.mrb[0].mxu0
  %v1941 = vadd.f32 %v1809, %v1940
  %v1942 = vpop.f32.mrb[0].mxu0
  %1943 = vdwg.mxu0
  %v1944 = vsel %vm349, %v1882, 0.0
  %1945 = vadd.xlane.f32.xlu0 %v1944
  %v1946 = vpop.xlane.xlu0 %1945
  %v1947 = vsel %vm349, %v1885, 0.0
  %1948 = vadd.xlane.f32.xlu0 %v1947
  %v1949 = vpop.xlane.xlu0 %1948
  %v1950 = vsel %vm349, %v1890, 0.0
  %1951 = vadd.xlane.f32.xlu0 %v1950
  %v1952 = vpop.xlane.xlu0 %1951
  %v1953 = vsel %vm349, %v1893, 0.0
  %1954 = vadd.xlane.f32.xlu0 %v1953
  %v1955 = vpop.xlane.xlu0 %1954
  %v1956 = vsel %vm349, %v1898, 0.0
  %1957 = vadd.xlane.f32.xlu0 %v1956
  %v1958 = vpop.xlane.xlu0 %1957
  %v1959 = vsel %vm349, %v1901, 0.0
  %1960 = vadd.xlane.f32.xlu0 %v1959
  %v1961 = vpop.xlane.xlu0 %1960
  %v1962 = vsel %vm349, %v1906, 0.0
  %1963 = vadd.xlane.f32.xlu0 %v1962
  %v1964 = vpop.xlane.xlu0 %1963
  %v1965 = vsel %vm349, %v1909, 0.0
  %1966 = vadd.xlane.f32.xlu0 %v1965
  %v1967 = vpop.xlane.xlu0 %1966
  %v1968 = vsel %vm349, %v1914, 0.0
  %1969 = vadd.xlane.f32.xlu0 %v1968
  %v1970 = vpop.xlane.xlu0 %1969
  %v1971 = vsel %vm349, %v1917, 0.0
  %1972 = vadd.xlane.f32.xlu0 %v1971
  %v1973 = vpop.xlane.xlu0 %1972
  %v1974 = vsel %vm349, %v1922, 0.0
  %1975 = vadd.xlane.f32.xlu0 %v1974
  %v1976 = vpop.xlane.xlu0 %1975
  %v1977 = vsel %vm349, %v1925, 0.0
  %1978 = vadd.xlane.f32.xlu0 %v1977
  %v1979 = vpop.xlane.xlu0 %1978
  %v1980 = vsel %vm349, %v1930, 0.0
  %1981 = vadd.xlane.f32.xlu0 %v1980
  %v1982 = vpop.xlane.xlu0 %1981
  %v1983 = vsel %vm349, %v1933, 0.0
  %1984 = vadd.xlane.f32.xlu0 %v1983
  %v1985 = vpop.xlane.xlu0 %1984
  %v1986 = vsel %vm349, %v1938, 0.0
  %1987 = vadd.xlane.f32.xlu0 %v1986
  %v1988 = vpop.xlane.xlu0 %1987
  %v1989 = vsel %vm349, %v1941, 0.0
  %1990 = vadd.xlane.f32.xlu0 %v1989
  %v1991 = vpop.xlane.xlu0 %1990
  %v1992 = vmul.f32 %v1946, %v451
  %v1993 = vmul.f32 %v1949, %v451
  %v1994 = vmul.f32 %v1952, %v451
  %v1995 = vmul.f32 %v1955, %v451
  %v1996 = vmul.f32 %v1958, %v451
  %v1997 = vmul.f32 %v1961, %v451
  %v1998 = vmul.f32 %v1964, %v451
  %v1999 = vmul.f32 %v1967, %v451
  %v2000 = vmul.f32 %v1970, %v451
  %v2001 = vmul.f32 %v1973, %v451
  %v2002 = vmul.f32 %v1976, %v451
  %v2003 = vmul.f32 %v1979, %v451
  %v2004 = vmul.f32 %v1982, %v451
  %v2005 = vmul.f32 %v1985, %v451
  %v2006 = vmul.f32 %v1988, %v451
  %v2007 = vmul.f32 %v1991, %v451
  %v2008 = vsub.f32 %v1882, %v1992
  %v2009 = vsub.f32 %v1885, %v1993
  %v2010 = vsub.f32 %v1890, %v1994
  %v2011 = vsub.f32 %v1893, %v1995
  %v2012 = vsub.f32 %v1898, %v1996
  %v2013 = vsub.f32 %v1901, %v1997
  %v2014 = vsub.f32 %v1906, %v1998
  %v2015 = vsub.f32 %v1909, %v1999
  %v2016 = vsub.f32 %v1914, %v2000
  %v2017 = vsub.f32 %v1917, %v2001
  %v2018 = vsub.f32 %v1922, %v2002
  %v2019 = vsub.f32 %v1925, %v2003
  %v2020 = vsub.f32 %v1930, %v2004
  %v2021 = vsub.f32 %v1933, %v2005
  %v2022 = vsub.f32 %v1938, %v2006
  %v2023 = vsub.f32 %v1941, %v2007
  %v2024 = vmul.f32 %v2008, %v2008
  %v2025 = vmul.f32 %v2009, %v2009
  %v2026 = vmul.f32 %v2010, %v2010
  %v2027 = vmul.f32 %v2011, %v2011
  %v2028 = vmul.f32 %v2012, %v2012
  %v2029 = vmul.f32 %v2013, %v2013
  %v2030 = vmul.f32 %v2014, %v2014
  %v2031 = vmul.f32 %v2015, %v2015
  %v2032 = vmul.f32 %v2016, %v2016
  %v2033 = vmul.f32 %v2017, %v2017
  %v2034 = vmul.f32 %v2018, %v2018
  %v2035 = vmul.f32 %v2019, %v2019
  %v2036 = vmul.f32 %v2020, %v2020
  %v2037 = vmul.f32 %v2021, %v2021
  %v2038 = vmul.f32 %v2022, %v2022
  %v2039 = vmul.f32 %v2023, %v2023
  %v2040 = vsel %vm349, %v2024, 0.0
  %2041 = vadd.xlane.f32.xlu0 %v2040
  %v2042 = vpop.xlane.xlu0 %2041
  %v2043 = vsel %vm349, %v2025, 0.0
  %2044 = vadd.xlane.f32.xlu0 %v2043
  %v2045 = vpop.xlane.xlu0 %2044
  %v2046 = vsel %vm349, %v2026, 0.0
  %2047 = vadd.xlane.f32.xlu0 %v2046
  %v2048 = vpop.xlane.xlu0 %2047
  %v2049 = vsel %vm349, %v2027, 0.0
  %2050 = vadd.xlane.f32.xlu0 %v2049
  %v2051 = vpop.xlane.xlu0 %2050
  %v2052 = vsel %vm349, %v2028, 0.0
  %2053 = vadd.xlane.f32.xlu0 %v2052
  %v2054 = vpop.xlane.xlu0 %2053
  %v2055 = vsel %vm349, %v2029, 0.0
  %2056 = vadd.xlane.f32.xlu0 %v2055
  %v2057 = vpop.xlane.xlu0 %2056
  %v2058 = vsel %vm349, %v2030, 0.0
  %2059 = vadd.xlane.f32.xlu0 %v2058
  %v2060 = vpop.xlane.xlu0 %2059
  %v2061 = vsel %vm349, %v2031, 0.0
  %2062 = vadd.xlane.f32.xlu0 %v2061
  %v2063 = vpop.xlane.xlu0 %2062
  %v2064 = vsel %vm349, %v2032, 0.0
  %2065 = vadd.xlane.f32.xlu0 %v2064
  %v2066 = vpop.xlane.xlu0 %2065
  %v2067 = vsel %vm349, %v2033, 0.0
  %2068 = vadd.xlane.f32.xlu0 %v2067
  %v2069 = vpop.xlane.xlu0 %2068
  %v2070 = vsel %vm349, %v2034, 0.0
  %2071 = vadd.xlane.f32.xlu0 %v2070
  %v2072 = vpop.xlane.xlu0 %2071
  %v2073 = vsel %vm349, %v2035, 0.0
  %2074 = vadd.xlane.f32.xlu0 %v2073
  %v2075 = vpop.xlane.xlu0 %2074
  %v2076 = vsel %vm349, %v2036, 0.0
  %2077 = vadd.xlane.f32.xlu0 %v2076
  %v2078 = vpop.xlane.xlu0 %2077
  %v2079 = vsel %vm349, %v2037, 0.0
  %2080 = vadd.xlane.f32.xlu0 %v2079
  %v2081 = vpop.xlane.xlu0 %2080
  %v2082 = vsel %vm349, %v2038, 0.0
  %2083 = vadd.xlane.f32.xlu0 %v2082
  %v2084 = vpop.xlane.xlu0 %2083
  %v2085 = vsel %vm349, %v2039, 0.0
  %2086 = vadd.xlane.f32.xlu0 %v2085
  %v2087 = vpop.xlane.xlu0 %2086
  %v2088 = vmul.f32 %v2042, %v451
  %v2089 = vmul.f32 %v2045, %v451
  %v2090 = vmul.f32 %v2048, %v451
  %v2091 = vmul.f32 %v2051, %v451
  %v2092 = vmul.f32 %v2054, %v451
  %v2093 = vmul.f32 %v2057, %v451
  %v2094 = vmul.f32 %v2060, %v451
  %v2095 = vmul.f32 %v2063, %v451
  %v2096 = vmul.f32 %v2066, %v451
  %v2097 = vmul.f32 %v2069, %v451
  %v2098 = vmul.f32 %v2072, %v451
  %v2099 = vmul.f32 %v2075, %v451
  %v2100 = vmul.f32 %v2078, %v451
  %v2101 = vmul.f32 %v2081, %v451
  %v2102 = vmul.f32 %v2084, %v451
  %v2103 = vmul.f32 %v2087, %v451
  %v2104 = vadd.f32 %v2088, 1e-05
  %v2105 = vadd.f32 %v2089, 1e-05
  %v2106 = vadd.f32 %v2090, 1e-05
  %v2107 = vadd.f32 %v2091, 1e-05
  %v2108 = vadd.f32 %v2092, 1e-05
  %v2109 = vadd.f32 %v2093, 1e-05
  %v2110 = vadd.f32 %v2094, 1e-05
  %v2111 = vadd.f32 %v2095, 1e-05
  %v2112 = vadd.f32 %v2096, 1e-05
  %v2113 = vadd.f32 %v2097, 1e-05
  %v2114 = vadd.f32 %v2098, 1e-05
  %v2115 = vadd.f32 %v2099, 1e-05
  %v2116 = vadd.f32 %v2100, 1e-05
  %v2117 = vadd.f32 %v2101, 1e-05
  %v2118 = vadd.f32 %v2102, 1e-05
  %v2119 = vadd.f32 %v2103, 1e-05
  %v2120 = vrsqrt.pop %v2104
  %v2121 = vrsqrt.pop %v2105
  %v2122 = vrsqrt.pop %v2106
  %v2123 = vrsqrt.pop %v2107
  %v2124 = vrsqrt.pop %v2108
  %v2125 = vrsqrt.pop %v2109
  %v2126 = vrsqrt.pop %v2110
  %v2127 = vrsqrt.pop %v2111
  %v2128 = vrsqrt.pop %v2112
  %v2129 = vrsqrt.pop %v2113
  %v2130 = vrsqrt.pop %v2114
  %v2131 = vrsqrt.pop %v2115
  %v2132 = vrsqrt.pop %v2116
  %v2133 = vrsqrt.pop %v2117
  %v2134 = vrsqrt.pop %v2118
  %v2135 = vrsqrt.pop %v2119
  %v2136 = vmul.f32 %v2008, %v2120
  %v2137 = vmul.f32 %v2009, %v2121
  %v2138 = vmul.f32 %v2010, %v2122
  %v2139 = vmul.f32 %v2011, %v2123
  %v2140 = vmul.f32 %v2012, %v2124
  %v2141 = vmul.f32 %v2013, %v2125
  %v2142 = vmul.f32 %v2014, %v2126
  %v2143 = vmul.f32 %v2015, %v2127
  %v2144 = vmul.f32 %v2016, %v2128
  %v2145 = vmul.f32 %v2017, %v2129
  %v2146 = vmul.f32 %v2018, %v2130
  %v2147 = vmul.f32 %v2019, %v2131
  %v2148 = vmul.f32 %v2020, %v2132
  %v2149 = vmul.f32 %v2021, %v2133
  %v2150 = vmul.f32 %v2022, %v2134
  %v2151 = vmul.f32 %v2023, %v2135
  %v2153 = vlaneseq
  %v2154 = vshrl.u32 %v2153, 7
  %v2155 = vsub.s32 0, %v2154
  %v2156 = vrot.slane %v1545, %v2155
  %v2158 = vmul.f32 %v2136, %v2156
  %v2159 = vmul.f32 %v2137, %v2156
  %v2160 = vmul.f32 %v2138, %v2156
  %v2161 = vmul.f32 %v2139, %v2156
  %v2162 = vmul.f32 %v2140, %v2156
  %v2163 = vmul.f32 %v2141, %v2156
  %v2164 = vmul.f32 %v2142, %v2156
  %v2165 = vmul.f32 %v2143, %v2156
  %v2166 = vmul.f32 %v2144, %v2156
  %v2167 = vmul.f32 %v2145, %v2156
  %v2168 = vmul.f32 %v2146, %v2156
  %v2169 = vmul.f32 %v2147, %v2156
  %v2170 = vmul.f32 %v2148, %v2156
  %v2171 = vmul.f32 %v2149, %v2156
  %v2172 = vmul.f32 %v2150, %v2156
  %v2173 = vmul.f32 %v2151, %v2156
  %v2175 = vlaneseq
  %v2176 = vshrl.u32 %v2175, 7
  %v2177 = vsub.s32 0, %v2176
  %v2178 = vrot.slane %v1546, %v2177
  %v2180 = vadd.f32 %v2158, %v2178
  %v2181 = vadd.f32 %v2159, %v2178
  %v2182 = vadd.f32 %v2160, %v2178
  %v2183 = vadd.f32 %v2161, %v2178
  %v2184 = vadd.f32 %v2162, %v2178
  %v2185 = vadd.f32 %v2163, %v2178
  %v2186 = vadd.f32 %v2164, %v2178
  %v2187 = vadd.f32 %v2165, %v2178
  %v2188 = vadd.f32 %v2166, %v2178
  %v2189 = vadd.f32 %v2167, %v2178
  %v2190 = vadd.f32 %v2168, %v2178
  %v2191 = vadd.f32 %v2169, %v2178
  %v2192 = vadd.f32 %v2170, %v2178
  %v2193 = vadd.f32 %v2171, %v2178
  %v2194 = vadd.f32 %v2172, %v2178
  %v2195 = vadd.f32 %v2173, %v2178
  %2196 = vst.msk [vmem:[%s77] sm:$0xff] %vm349, %v2180
  %2197 = vst.msk [vmem:[%s77 + $0x8] sm:$0xff] %vm349, %v2181
  %2198 = vst.msk [vmem:[%s77 + $0x10] sm:$0xff] %vm349, %v2182
  %2199 = vst.msk [vmem:[%s77 + $0x18] sm:$0xff] %vm349, %v2183
  %2200 = vst.msk [vmem:[%s77 + $0x20] sm:$0xff] %vm349, %v2184
  %2201 = vst.msk [vmem:[%s77 + $0x28] sm:$0xff] %vm349, %v2185
  %2202 = vst.msk [vmem:[%s77 + $0x30] sm:$0xff] %vm349, %v2186
  %2203 = vst.msk [vmem:[%s77 + $0x38] sm:$0xff] %vm349, %v2187
  %2204 = vst.msk [vmem:[%s77 + $0x40] sm:$0xff] %vm349, %v2188
  %2205 = vst.msk [vmem:[%s77 + $0x48] sm:$0xff] %vm349, %v2189
  %2206 = vst.msk [vmem:[%s77 + $0x50] sm:$0xff] %vm349, %v2190
  %2207 = vst.msk [vmem:[%s77 + $0x58] sm:$0xff] %vm349, %v2191
  %2208 = vst.msk [vmem:[%s77 + $0x60] sm:$0xff] %vm349, %v2192
  %2209 = vst.msk [vmem:[%s77 + $0x68] sm:$0xff] %vm349, %v2193
  %2210 = vst.msk [vmem:[%s77 + $0x70] sm:$0xff] %vm349, %v2194
  %2211 = vst.msk [vmem:[%s77 + $0x78] sm:$0xff] %vm349, %v2195
  %v2212 = vld [vmem:[%s57] sm:$0x3]
  %v2213 = vld [vmem:[%s59] sm:$0xf]
  %v2214 = vld [vmem:[%s59 + $0x4] sm:$0xf]
  %v2215 = vld [vmem:[%s59 + $0x8] sm:$0xf]
  %v2216 = vld [vmem:[%s59 + $0xc] sm:$0xf]
  %v2217 = vld [vmem:[%s59 + $0x10] sm:$0xf]
  %v2218 = vld [vmem:[%s59 + $0x14] sm:$0xf]
  %v2219 = vld [vmem:[%s59 + $0x18] sm:$0xf]
  %v2220 = vld [vmem:[%s59 + $0x1c] sm:$0xf]
  %v2221 = vld [vmem:[%s61] sm:$0x1]
  %v2222 = vld [vmem:[%s63] sm:$0xf]
  %v2223 = vld [vmem:[%s63 + $0x4] sm:$0xf]
  %v2224 = vld [vmem:[%s63 + $0x8] sm:$0xf]
  %v2225 = vld [vmem:[%s63 + $0xc] sm:$0xf]
  %v2226 = vld [vmem:[%s65] sm:$0x1]
  %v2227 = vld [vmem:[%s67] sm:$0x1]
  %v2228 = vld [vmem:[%s69] sm:$0x1]
  %v2229 = vpack.c.bf16 %v2212, %v2212
  %v2231 = vlaneseq
  %v2232 = vshrl.u32 %v2231, 7
  %v2233 = vsub.s32 0, %v2232
  %v2234 = vrot.slane %v2221, %v2233
  %v2244 = vunpack.c.l.b16 %v2213
  %v2245 = vunpack.c.l.b16 %v2214
  %v2246 = vunpack.c.l.b16 %v2215
  %v2247 = vunpack.c.l.b16 %v2216
  %v2248 = vunpack.c.l.b16 %v2217
  %v2249 = vunpack.c.l.b16 %v2218
  %v2250 = vunpack.c.l.b16 %v2219
  %v2251 = vunpack.c.l.b16 %v2220
  %v2252 = vpack.c.b16 %v2245, %v2244
  %v2253 = vpack.c.b16 %v2247, %v2246
  %v2254 = vpack.c.b16 %v2249, %v2248
  %v2255 = vpack.c.b16 %v2251, %v2250
  %vm2260 = vcmask 523264
  %v2262 = vsel %vm2260, %v2229, 0
  %2264 = vmatprep.subr.bf16.mxu0 0
  %2265 = vmatpush1.bf16.msra.mxu0 %v2252
  %2266 = vmatprep.subr.bf16.mxu0 0
  %2267 = vmatpush1.bf16.msra.mxu0 %v2253
  %2268 = vmatprep.subr.bf16.mxu0 0
  %2269 = vmatpush1.bf16.msra.mxu0 %v2254
  %2270 = vmatprep.subr.bf16.mxu0 0
  %2271 = vmatpush1.bf16.msra.mxu0 %v2255
  %2272 = vmatprep.subr.bf16.mxu0 0
  %2273 = vmatpush1.bf16.msra.mxu0 0
  %2274 = vmatprep.subr.bf16.mxu0 0
  %2275 = vmatpush1.bf16.msra.mxu0 0
  %2276 = vmatprep.subr.bf16.mxu0 0
  %2277 = vmatpush1.bf16.msra.mxu0 0
  %2278 = vmatprep.subr.bf16.mxu0 0
  %2279 = vmatpush1.bf16.msra.mxu0 0
  %2280 = vmatprep.subr.bf16.mxu0 0
  %2281 = vmatpush1.bf16.msra.mxu0 0
  %2282 = vmatprep.subr.bf16.mxu0 0
  %2283 = vmatpush1.bf16.msra.mxu0 0
  %2284 = vmatprep.subr.bf16.mxu0 0
  %2285 = vmatpush1.bf16.msra.mxu0 0
  %2286 = vmatprep.subr.bf16.mxu0 0
  %2287 = vmatpush1.bf16.msra.mxu0 0
  %2288 = vmatprep.subr.bf16.mxu0 0
  %2289 = vmatpush1.bf16.msra.mxu0 0
  %2290 = vmatprep.subr.bf16.mxu0 0
  %2291 = vmatpush1.bf16.msra.mxu0 0
  %2292 = vmatprep.subr.bf16.mxu0 0
  %2293 = vmatpush1.bf16.msra.mxu0 0
  %2294 = vmatprep.subr.bf16.mxu0 0
  %2295 = vmatpush1.bf16.msra.mxu0 0
  %2296 = vmatprep.mubr.bf16.mxu0 0
  %2297 = vmatmul.mubr.bf16.gmra.mrb[0].mxu0 %v2262
  %v2298 = vpop.f32.mrb[0].mxu0
  %v2299 = vadd.f32 %v2234, %v2298
  %v2300 = vpop.f32.mrb[0].mxu0
  %v2301 = vpop.f32.mrb[0].mxu0
  %v2302 = vpop.f32.mrb[0].mxu0
  %2303 = vdwg.mxu0
  %v2304 = vxor.u32 %v2299, 2147483648
  %v2305 = vmul.f32 %v2304, 1.442695
  %v2306 = vpow.pop %v2305
  %v2307 = vadd.f32 %v2306, 1.0
  %v2308 = vrcp.pop %v2307
  %v2309 = vmul.f32 1.0, %v2308
  %v2310 = vmul.f32 %v2299, %v2309
  %v2311 = vpack.c.bf16 %v2310, %v2310
  %v2313 = vlaneseq
  %v2314 = vshrl.u32 %v2313, 7
  %v2315 = vsub.s32 0, %v2314
  %v2316 = vrot.slane %v2226, %v2315
  %v2322 = vunpack.c.l.b16 %v2222
  %v2323 = vunpack.c.l.b16 %v2223
  %v2324 = vunpack.c.l.b16 %v2224
  %v2325 = vunpack.c.l.b16 %v2225
  %v2326 = vpack.c.b16 %v2323, %v2322
  %v2327 = vpack.c.b16 %v2325, %v2324
  %v2331 = vsel %vm349, %v2311, 0
  %2333 = vmatprep.subr.bf16.mxu0 0
  %2334 = vmatpush1.bf16.msra.mxu0 %v2326
  %2335 = vmatprep.subr.bf16.mxu0 0
  %2336 = vmatpush1.bf16.msra.mxu0 %v2327
  %2337 = vmatprep.subr.bf16.mxu0 0
  %2338 = vmatpush1.bf16.msra.mxu0 0
  %2339 = vmatprep.subr.bf16.mxu0 0
  %2340 = vmatpush1.bf16.msra.mxu0 0
  %2341 = vmatprep.subr.bf16.mxu0 0
  %2342 = vmatpush1.bf16.msra.mxu0 0
  %2343 = vmatprep.subr.bf16.mxu0 0
  %2344 = vmatpush1.bf16.msra.mxu0 0
  %2345 = vmatprep.subr.bf16.mxu0 0
  %2346 = vmatpush1.bf16.msra.mxu0 0
  %2347 = vmatprep.subr.bf16.mxu0 0
  %2348 = vmatpush1.bf16.msra.mxu0 0
  %2349 = vmatprep.subr.bf16.mxu0 0
  %2350 = vmatpush1.bf16.msra.mxu0 0
  %2351 = vmatprep.subr.bf16.mxu0 0
  %2352 = vmatpush1.bf16.msra.mxu0 0
  %2353 = vmatprep.subr.bf16.mxu0 0
  %2354 = vmatpush1.bf16.msra.mxu0 0
  %2355 = vmatprep.subr.bf16.mxu0 0
  %2356 = vmatpush1.bf16.msra.mxu0 0
  %2357 = vmatprep.subr.bf16.mxu0 0
  %2358 = vmatpush1.bf16.msra.mxu0 0
  %2359 = vmatprep.subr.bf16.mxu0 0
  %2360 = vmatpush1.bf16.msra.mxu0 0
  %2361 = vmatprep.subr.bf16.mxu0 0
  %2362 = vmatpush1.bf16.msra.mxu0 0
  %2363 = vmatprep.subr.bf16.mxu0 0
  %2364 = vmatpush1.bf16.msra.mxu0 0
  %2365 = vmatprep.mubr.bf16.mxu0 0
  %2366 = vmatmul.mubr.bf16.gmra.mrb[0].mxu0 %v2331
  %v2367 = vpop.f32.mrb[0].mxu0
  %v2368 = vadd.f32 %v2316, %v2367
  %v2369 = vpop.f32.mrb[0].mxu0
  %v2370 = vpop.f32.mrb[0].mxu0
  %v2371 = vpop.f32.mrb[0].mxu0
  %2372 = vdwg.mxu0
  %vm2373 = vcmask 123904
  %v2374 = vsel %vm2373, %v2368, 0.0
  %2375 = vadd.xlane.f32.xlu0 %v2374
  %v2376 = vpop.xlane.xlu0 %2375
  %v2377 = vrcp.pop 16.0
  %v2378 = vmul.f32 %v2376, %v2377
  %v2379 = vsub.f32 %v2368, %v2378
  %v2380 = vmul.f32 %v2379, %v2379
  %v2381 = vsel %vm2373, %v2380, 0.0
  %2382 = vadd.xlane.f32.xlu0 %v2381
  %v2383 = vpop.xlane.xlu0 %2382
  %v2384 = vmul.f32 %v2383, %v2377
  %v2385 = vadd.f32 %v2384, 1e-05
  %v2386 = vrsqrt.pop %v2385
  %v2387 = vmul.f32 %v2379, %v2386
  %v2389 = vlaneseq
  %v2390 = vshrl.u32 %v2389, 7
  %v2391 = vsub.s32 0, %v2390
  %v2392 = vrot.slane %v2227, %v2391
  %v2394 = vmul.f32 %v2387, %v2392
  %v2396 = vlaneseq
  %v2397 = vshrl.u32 %v2396, 7
  %v2398 = vsub.s32 0, %v2397
  %v2399 = vrot.slane %v2228, %v2398
  %v2401 = vadd.f32 %v2394, %v2399
  %2402 = vst.msk [vmem:[%s79] sm:$0x3] %vm2373, %v2401
  // Predicated region
  $region142: #{denoiser_forward.6} parent=0 // pred_check
    _
  $region143: #{denoiser_forward.6} parent=0 // pred_check_branch
    %2404 = sbr.rel (0) target = $region145
  $region144: #{denoiser_forward.6} parent=0 // pred_region
    _
  $region145: #{denoiser_forward.6} parent=0 // pred_fallthru
    _
  // Predicated region
  $region146: #{denoiser_forward.6} parent=0 // pred_check
    _
  $region147: #{denoiser_forward.6} parent=0 // pred_check_branch
    %2406 = sbr.rel (0) target = $region149
  $region148: #{denoiser_forward.6} parent=0 // pred_region
    _
  $region149: #{denoiser_forward.6} parent=0 // pred_fallthru
    _
  // Predicated region
  $region150: #{denoiser_forward.6} parent=0 // pred_check
    _
  $region151: #{denoiser_forward.6} parent=0 // pred_check_branch
    %2408 = sbr.rel (0) target = $region153
  $region152: #{denoiser_forward.6} parent=0 // pred_region
    _
  $region153: #{denoiser_forward.6} parent=0 // pred_fallthru
    _
  // Predicated region
  $region154: #{denoiser_forward.6} parent=0 // pred_check
    _
  $region155: #{denoiser_forward.6} parent=0 // pred_check_branch
    %2410 = sbr.rel (0) target = $region157
  $region156: #{denoiser_forward.6} parent=0 // pred_region
    _
  $region157: #{denoiser_forward.6} parent=0 // pred_fallthru
    _
  // Predicated region
  $region158: #{denoiser_forward.6} parent=0 // pred_check
    _
  $region159: #{denoiser_forward.6} parent=0 // pred_check_branch
    %2412 = sbr.rel (0) target = $region161
  $region160: #{denoiser_forward.6} parent=0 // pred_region
    _
  $region161: #{denoiser_forward.6} parent=0 // pred_fallthru
    _
  // Predicated region
  $region162: #{denoiser_forward.6} parent=0 // pred_check
    _
  $region163: #{denoiser_forward.6} parent=0 // pred_check_branch
    %2414 = sbr.rel (0) target = $region165
  $region164: #{denoiser_forward.6} parent=0 // pred_region
    _
  $region165: #{denoiser_forward.6} parent=0 // pred_fallthru
    _
  // Predicated region
  $region166: #{denoiser_forward.6} parent=0 // pred_check
    _
  $region167: #{denoiser_forward.6} parent=0 // pred_check_branch
    %2416 = sbr.rel (0) target = $region169
  $region168: #{denoiser_forward.6} parent=0 // pred_region
    _
  $region169: #{denoiser_forward.6} parent=0 // pred_fallthru
    _
  // Predicated region
  $region170: #{denoiser_forward.6} parent=0 // pred_check
    _
  $region171: #{denoiser_forward.6} parent=0 // pred_check_branch
    %2418 = sbr.rel (0) target = $region173
  $region172: #{denoiser_forward.6} parent=0 // pred_region
    _
  $region173: #{denoiser_forward.6} parent=0 // pred_fallthru
    _
  // Predicated region
  $region174: #{denoiser_forward.6} parent=0 // pred_check
    _
  $region175: #{denoiser_forward.6} parent=0 // pred_check_branch
    %2420 = sbr.rel (0) target = $region177
  $region176: #{denoiser_forward.6} parent=0 // pred_region
    _
  $region177: #{denoiser_forward.6} parent=0 // pred_fallthru
    _
  // Predicated region
  $region178: #{denoiser_forward.6} parent=0 // pred_check
    _
  $region179: #{denoiser_forward.6} parent=0 // pred_check_branch
    %2422 = sbr.rel (0) target = $region181
  $region180: #{denoiser_forward.6} parent=0 // pred_region
    _
  $region181: #{denoiser_forward.6} parent=0 // pred_fallthru
    _

// kernel: denoiser_forward.7
$region0: #{denoiser_forward.7}
  #allocation0 [shape = 'u32[]', space=smem, size = 0x4, offset = 0x4, fixed_abs, tag = 'smem constant byte address 0x4 - core index']
  #allocation1 [shape = 'u32[144,128]{1,0:T(1,128)}', space=vmem, size = 0x12000, scoped, tag = 'internal scratch']
  %s0 = inlined_call_operand.vmem [shape: f32[128,96], index: 0, kind: input, shape index: {}]
  %s1 = inlined_call_operand.vmem [shape: bf16[96,32], index: 1, kind: input, shape index: {}]
  %s2 = inlined_call_operand.vmem [shape: f32[1,32], index: 2, kind: input, shape index: {}]
  %s3 = inlined_call_operand.vmem [shape: bf16[32,32], index: 3, kind: input, shape index: {}]
  %s4 = inlined_call_operand.vmem [shape: f32[1,32], index: 4, kind: input, shape index: {}]
  %s5 = inlined_call_operand.vmem [shape: f32[1,32], index: 5, kind: input, shape index: {}]
  %s6 = inlined_call_operand.vmem [shape: f32[1,32], index: 6, kind: input, shape index: {}]
  %s7 = inlined_call_operand.vmem [shape: f32[128,32], index: 7, kind: output, shape index: {}]
  %s8 = sld [smem:[#allocation0]]
  $region38: #{denoiser_forward.7} parent=0
    _
  %s10 = ssub.s32 1, %s8
  %s11 = scalar_select 0, %s10, %s8
  // Predicated region
  $region2: #{denoiser_forward.7} parent=0 // pred_check
    _
  $region3: #{denoiser_forward.7} parent=0 // pred_check_branch
    %13 = sbr.rel (0) target = $region5
  $region4: #{denoiser_forward.7} parent=0 // pred_region
    _
  $region5: #{denoiser_forward.7} parent=0 // pred_fallthru
    _
  // Predicated region
  $region6: #{denoiser_forward.7} parent=0 // pred_check
    _
  $region7: #{denoiser_forward.7} parent=0 // pred_check_branch
    %15 = sbr.rel (0) target = $region9
  $region8: #{denoiser_forward.7} parent=0 // pred_region
    _
  $region9: #{denoiser_forward.7} parent=0 // pred_fallthru
    _
  // Predicated region
  $region10: #{denoiser_forward.7} parent=0 // pred_check
    _
  $region11: #{denoiser_forward.7} parent=0 // pred_check_branch
    %17 = sbr.rel (0) target = $region13
  $region12: #{denoiser_forward.7} parent=0 // pred_region
    _
  $region13: #{denoiser_forward.7} parent=0 // pred_fallthru
    _
  // Predicated region
  $region14: #{denoiser_forward.7} parent=0 // pred_check
    _
  $region15: #{denoiser_forward.7} parent=0 // pred_check_branch
    %19 = sbr.rel (0) target = $region17
  $region16: #{denoiser_forward.7} parent=0 // pred_region
    _
  $region17: #{denoiser_forward.7} parent=0 // pred_fallthru
    _
  // Predicated region
  $region18: #{denoiser_forward.7} parent=0 // pred_check
    _
  $region19: #{denoiser_forward.7} parent=0 // pred_check_branch
    %21 = sbr.rel (0) target = $region21
  $region20: #{denoiser_forward.7} parent=0 // pred_region
    _
  $region21: #{denoiser_forward.7} parent=0 // pred_fallthru
    _
  // Predicated region
  $region22: #{denoiser_forward.7} parent=0 // pred_check
    _
  $region23: #{denoiser_forward.7} parent=0 // pred_check_branch
    %23 = sbr.rel (0) target = $region25
  $region24: #{denoiser_forward.7} parent=0 // pred_region
    _
  $region25: #{denoiser_forward.7} parent=0 // pred_fallthru
    _
  // Predicated region
  $region26: #{denoiser_forward.7} parent=0 // pred_check
    _
  $region27: #{denoiser_forward.7} parent=0 // pred_check_branch
    %25 = sbr.rel (0) target = $region29
  $region28: #{denoiser_forward.7} parent=0 // pred_region
    _
  $region29: #{denoiser_forward.7} parent=0 // pred_fallthru
    _
  %v27 = vld [vmem:[%s0] sm:$0xff]
  %v28 = vld [vmem:[%s0 + $0x8] sm:$0xff]
  %v29 = vld [vmem:[%s0 + $0x10] sm:$0xff]
  %v30 = vld [vmem:[%s0 + $0x18] sm:$0xff]
  %v31 = vld [vmem:[%s0 + $0x20] sm:$0xff]
  %v32 = vld [vmem:[%s0 + $0x28] sm:$0xff]
  %v33 = vld [vmem:[%s0 + $0x30] sm:$0xff]
  %v34 = vld [vmem:[%s0 + $0x38] sm:$0xff]
  %v35 = vld [vmem:[%s0 + $0x40] sm:$0xff]
  %v36 = vld [vmem:[%s0 + $0x48] sm:$0xff]
  %v37 = vld [vmem:[%s0 + $0x50] sm:$0xff]
  %v38 = vld [vmem:[%s0 + $0x58] sm:$0xff]
  %v39 = vld [vmem:[%s0 + $0x60] sm:$0xff]
  %v40 = vld [vmem:[%s0 + $0x68] sm:$0xff]
  %v41 = vld [vmem:[%s0 + $0x70] sm:$0xff]
  %v42 = vld [vmem:[%s0 + $0x78] sm:$0xff]
  %v43 = vld [vmem:[%s1] sm:$0xf]
  %v44 = vld [vmem:[%s1 + $0x4] sm:$0xf]
  %v45 = vld [vmem:[%s1 + $0x8] sm:$0xf]
  %v46 = vld [vmem:[%s1 + $0xc] sm:$0xf]
  %v47 = vld [vmem:[%s1 + $0x10] sm:$0xf]
  %v48 = vld [vmem:[%s1 + $0x14] sm:$0xf]
  %v49 = vld [vmem:[%s1 + $0x18] sm:$0xf]
  %v50 = vld [vmem:[%s1 + $0x1c] sm:$0xf]
  %v51 = vld [vmem:[%s1 + $0x20] sm:$0xf]
  %v52 = vld [vmem:[%s1 + $0x24] sm:$0xf]
  %v53 = vld [vmem:[%s1 + $0x28] sm:$0xf]
  %v54 = vld [vmem:[%s1 + $0x2c] sm:$0xf]
  %v55 = vld [vmem:[%s2] sm:$0x1]
  %v56 = vld [vmem:[%s3] sm:$0xf]
  %v57 = vld [vmem:[%s3 + $0x4] sm:$0xf]
  %v58 = vld [vmem:[%s3 + $0x8] sm:$0xf]
  %v59 = vld [vmem:[%s3 + $0xc] sm:$0xf]
  %v60 = vld [vmem:[%s4] sm:$0x1]
  %v61 = vld [vmem:[%s5] sm:$0x1]
  %v62 = vld [vmem:[%s6] sm:$0x1]
  %v63 = vpack.c.bf16 %v28, %v27
  %v64 = vpack.c.bf16 %v30, %v29
  %v65 = vpack.c.bf16 %v32, %v31
  %v66 = vpack.c.bf16 %v34, %v33
  %v67 = vpack.c.bf16 %v36, %v35
  %v68 = vpack.c.bf16 %v38, %v37
  %v69 = vpack.c.bf16 %v40, %v39
  %v70 = vpack.c.bf16 %v42, %v41
  %v72 = vlaneseq
  %v73 = vshrl.u32 %v72, 7
  %v74 = vsub.s32 0, %v73
  %v75 = vrot.slane %v55, %v74
  %v89 = vunpack.c.l.b16 %v43
  %v90 = vunpack.c.l.b16 %v44
  %v91 = vunpack.c.l.b16 %v45
  %v92 = vunpack.c.l.b16 %v46
  %v93 = vunpack.c.l.b16 %v47
  %v94 = vunpack.c.l.b16 %v48
  %v95 = vunpack.c.l.b16 %v49
  %v96 = vunpack.c.l.b16 %v50
  %v97 = vunpack.c.l.b16 %v51
  %v98 = vunpack.c.l.b16 %v52
  %v99 = vunpack.c.l.b16 %v53
  %v100 = vunpack.c.l.b16 %v54
  %v101 = vpack.c.b16 %v90, %v89
  %v102 = vpack.c.b16 %v92, %v91
  %v103 = vpack.c.b16 %v94, %v93
  %v104 = vpack.c.b16 %v96, %v95
  %v105 = vpack.c.b16 %v98, %v97
  %v106 = vpack.c.b16 %v100, %v99
  %vm113 = vcmask 785408
  %v115 = vsel %vm113, %v63, 0
  %v118 = vsel %vm113, %v64, 0
  %v121 = vsel %vm113, %v65, 0
  %v124 = vsel %vm113, %v66, 0
  %v127 = vsel %vm113, %v67, 0
  %v130 = vsel %vm113, %v68, 0
  %v133 = vsel %vm113, %v69, 0
  %v136 = vsel %vm113, %v70, 0
  %138 = vmatprep.subr.bf16.mxu0 0
  %139 = vmatpush1.bf16.msra.mxu0 %v101
  %140 = vmatprep.subr.bf16.mxu0 0
  %141 = vmatpush1.bf16.msra.mxu0 %v102
  %142 = vmatprep.subr.bf16.mxu0 0
  %143 = vmatpush1.bf16.msra.mxu0 %v103
  %144 = vmatprep.subr.bf16.mxu0 0
  %145 = vmatpush1.bf16.msra.mxu0 %v104
  %146 = vmatprep.subr.bf16.mxu0 0
  %147 = vmatpush1.bf16.msra.mxu0 %v105
  %148 = vmatprep.subr.bf16.mxu0 0
  %149 = vmatpush1.bf16.msra.mxu0 %v106
  %150 = vmatprep.subr.bf16.mxu0 0
  %151 = vmatpush1.bf16.msra.mxu0 0
  %152 = vmatprep.subr.bf16.mxu0 0
  %153 = vmatpush1.bf16.msra.mxu0 0
  %154 = vmatprep.subr.bf16.mxu0 0
  %155 = vmatpush1.bf16.msra.mxu0 0
  %156 = vmatprep.subr.bf16.mxu0 0
  %157 = vmatpush1.bf16.msra.mxu0 0
  %158 = vmatprep.subr.bf16.mxu0 0
  %159 = vmatpush1.bf16.msra.mxu0 0
  %160 = vmatprep.subr.bf16.mxu0 0
  %161 = vmatpush1.bf16.msra.mxu0 0
  %162 = vmatprep.subr.bf16.mxu0 0
  %163 = vmatpush1.bf16.msra.mxu0 0
  %164 = vmatprep.subr.bf16.mxu0 0
  %165 = vmatpush1.bf16.msra.mxu0 0
  %166 = vmatprep.subr.bf16.mxu0 0
  %167 = vmatpush1.bf16.msra.mxu0 0
  %168 = vmatprep.subr.bf16.mxu0 0
  %169 = vmatpush1.bf16.msra.mxu0 0
  %170 = vmatprep.mubr.bf16.mxu0 0
  %171 = vmatmul.mubr.bf16.gmra.mrb[0].mxu0 %v115
  %v172 = vpop.f32.mrb[0].mxu0
  %v173 = vadd.f32 %v75, %v172
  %v174 = vpop.f32.mrb[0].mxu0
  %v175 = vpop.f32.mrb[0].mxu0
  %v176 = vadd.f32 %v75, %v175
  %v177 = vpop.f32.mrb[0].mxu0
  %178 = vmatprep.mubr.bf16.mxu0 0
  %179 = vmatmul.mubr.bf16.gmra.mrb[0].mxu0 %v118
  %v180 = vpop.f32.mrb[0].mxu0
  %v181 = vadd.f32 %v75, %v180
  %v182 = vpop.f32.mrb[0].mxu0
  %v183 = vpop.f32.mrb[0].mxu0
  %v184 = vadd.f32 %v75, %v183
  %v185 = vpop.f32.mrb[0].mxu0
  %186 = vmatprep.mubr.bf16.mxu0 0
  %187 = vmatmul.mubr.bf16.gmra.mrb[0].mxu0 %v121
  %v188 = vpop.f32.mrb[0].mxu0
  %v189 = vadd.f32 %v75, %v188
  %v190 = vpop.f32.mrb[0].mxu0
  %v191 = vpop.f32.mrb[0].mxu0
  %v192 = vadd.f32 %v75, %v191
  %v193 = vpop.f32.mrb[0].mxu0
  %194 = vmatprep.mubr.bf16.mxu0 0
  %195 = vmatmul.mubr.bf16.gmra.mrb[0].mxu0 %v124
  %v196 = vpop.f32.mrb[0].mxu0
  %v197 = vadd.f32 %v75, %v196
  %v198 = vpop.f32.mrb[0].mxu0
  %v199 = vpop.f32.mrb[0].mxu0
  %v200 = vadd.f32 %v75, %v199
  %v201 = vpop.f32.mrb[0].mxu0
  %202 = vmatprep.mubr.bf16.mxu0 0
  %203 = vmatmul.mubr.bf16.gmra.mrb[0].mxu0 %v127
  %v204 = vpop.f32.mrb[0].mxu0
  %v205 = vadd.f32 %v75, %v204
  %v206 = vpop.f32.mrb[0].mxu0
  %v207 = vpop.f32.mrb[0].mxu0
  %v208 = vadd.f32 %v75, %v207
  %v209 = vpop.f32.mrb[0].mxu0
  %210 = vmatprep.mubr.bf16.mxu0 0
  %211 = vmatmul.mubr.bf16.gmra.mrb[0].mxu0 %v130
  %v212 = vpop.f32.mrb[0].mxu0
  %v213 = vadd.f32 %v75, %v212
  %v214 = vpop.f32.mrb[0].mxu0
  %v215 = vpop.f32.mrb[0].mxu0
  %v216 = vadd.f32 %v75, %v215
  %v217 = vpop.f32.mrb[0].mxu0
  %218 = vmatprep.mubr.bf16.mxu0 0
  %219 = vmatmul.mubr.bf16.gmra.mrb[0].mxu0 %v133
  %v220 = vpop.f32.mrb[0].mxu0
  %v221 = vadd.f32 %v75, %v220
  %v222 = vpop.f32.mrb[0].mxu0
  %v223 = vpop.f32.mrb[0].mxu0
  %v224 = vadd.f32 %v75, %v223
  %v225 = vpop.f32.mrb[0].mxu0
  %226 = vmatprep.mubr.bf16.mxu0 0
  %227 = vmatmul.mubr.bf16.gmra.mrb[0].mxu0 %v136
  %v228 = vpop.f32.mrb[0].mxu0
  %v229 = vadd.f32 %v75, %v228
  %v230 = vpop.f32.mrb[0].mxu0
  %v231 = vpop.f32.mrb[0].mxu0
  %v232 = vadd.f32 %v75, %v231
  %v233 = vpop.f32.mrb[0].mxu0
  %234 = vdwg.mxu0
  %v235 = vxor.u32 %v173, 2147483648
  %v236 = vxor.u32 %v176, 2147483648
  %v237 = vxor.u32 %v181, 2147483648
  %v238 = vxor.u32 %v184, 2147483648
  %v239 = vxor.u32 %v189, 2147483648
  %v240 = vxor.u32 %v192, 2147483648
  %v241 = vxor.u32 %v197, 2147483648
  %v242 = vxor.u32 %v200, 2147483648
  %v243 = vxor.u32 %v205, 2147483648
  %v244 = vxor.u32 %v208, 2147483648
  %v245 = vxor.u32 %v213, 2147483648
  %v246 = vxor.u32 %v216, 2147483648
  %v247 = vxor.u32 %v221, 2147483648
  %v248 = vxor.u32 %v224, 2147483648
  %v249 = vxor.u32 %v229, 2147483648
  %v250 = vxor.u32 %v232, 2147483648
  %v251 = vmul.f32 %v235, 1.442695
  %v252 = vpow.pop %v251
  %v253 = vmul.f32 %v236, 1.442695
  %v254 = vpow.pop %v253
  %v255 = vmul.f32 %v237, 1.442695
  %v256 = vpow.pop %v255
  %v257 = vmul.f32 %v238, 1.442695
  %v258 = vpow.pop %v257
  %v259 = vmul.f32 %v239, 1.442695
  %v260 = vpow.pop %v259
  %v261 = vmul.f32 %v240, 1.442695
  %v262 = vpow.pop %v261
  %v263 = vmul.f32 %v241, 1.442695
  %v264 = vpow.pop %v263
  %v265 = vmul.f32 %v242, 1.442695
  %v266 = vpow.pop %v265
  %v267 = vmul.f32 %v243, 1.442695
  %v268 = vpow.pop %v267
  %v269 = vmul.f32 %v244, 1.442695
  %v270 = vpow.pop %v269
  %v271 = vmul.f32 %v245, 1.442695
  %v272 = vpow.pop %v271
  %v273 = vmul.f32 %v246, 1.442695
  %v274 = vpow.pop %v273
  %v275 = vmul.f32 %v247, 1.442695
  %v276 = vpow.pop %v275
  %v277 = vmul.f32 %v248, 1.442695
  %v278 = vpow.pop %v277
  %v279 = vmul.f32 %v249, 1.442695
  %v280 = vpow.pop %v279
  %v281 = vmul.f32 %v250, 1.442695
  %v282 = vpow.pop %v281
  %v283 = vadd.f32 %v252, 1.0
  %v284 = vadd.f32 %v254, 1.0
  %v285 = vadd.f32 %v256, 1.0
  %v286 = vadd.f32 %v258, 1.0
  %v287 = vadd.f32 %v260, 1.0
  %v288 = vadd.f32 %v262, 1.0
  %v289 = vadd.f32 %v264, 1.0
  %v290 = vadd.f32 %v266, 1.0
  %v291 = vadd.f32 %v268, 1.0
  %v292 = vadd.f32 %v270, 1.0
  %v293 = vadd.f32 %v272, 1.0
  %v294 = vadd.f32 %v274, 1.0
  %v295 = vadd.f32 %v276, 1.0
  %v296 = vadd.f32 %v278, 1.0
  %v297 = vadd.f32 %v280, 1.0
  %v298 = vadd.f32 %v282, 1.0
  %v299 = vrcp.pop %v283
  %v300 = vmul.f32 1.0, %v299
  %v301 = vrcp.pop %v284
  %v302 = vmul.f32 1.0, %v301
  %v303 = vrcp.pop %v285
  %v304 = vmul.f32 1.0, %v303
  %v305 = vrcp.pop %v286
  %v306 = vmul.f32 1.0, %v305
  %v307 = vrcp.pop %v287
  %v308 = vmul.f32 1.0, %v307
  %v309 = vrcp.pop %v288
  %v310 = vmul.f32 1.0, %v309
  %v311 = vrcp.pop %v289
  %v312 = vmul.f32 1.0, %v311
  %v313 = vrcp.pop %v290
  %v314 = vmul.f32 1.0, %v313
  %v315 = vrcp.pop %v291
  %v316 = vmul.f32 1.0, %v315
  %v317 = vrcp.pop %v292
  %v318 = vmul.f32 1.0, %v317
  %v319 = vrcp.pop %v293
  %v320 = vmul.f32 1.0, %v319
  %v321 = vrcp.pop %v294
  %v322 = vmul.f32 1.0, %v321
  %v323 = vrcp.pop %v295
  %v324 = vmul.f32 1.0, %v323
  %v325 = vrcp.pop %v296
  %v326 = vmul.f32 1.0, %v325
  %v327 = vrcp.pop %v297
  %v328 = vmul.f32 1.0, %v327
  %v329 = vrcp.pop %v298
  %v330 = vmul.f32 1.0, %v329
  %v331 = vmul.f32 %v173, %v300
  %v332 = vmul.f32 %v176, %v302
  %v333 = vmul.f32 %v181, %v304
  %v334 = vmul.f32 %v184, %v306
  %v335 = vmul.f32 %v189, %v308
  %v336 = vmul.f32 %v192, %v310
  %v337 = vmul.f32 %v197, %v312
  %v338 = vmul.f32 %v200, %v314
  %v339 = vmul.f32 %v205, %v316
  %v340 = vmul.f32 %v208, %v318
  %v341 = vmul.f32 %v213, %v320
  %v342 = vmul.f32 %v216, %v322
  %v343 = vmul.f32 %v221, %v324
  %v344 = vmul.f32 %v224, %v326
  %v345 = vmul.f32 %v229, %v328
  %v346 = vmul.f32 %v232, %v330
  %v347 = vpack.c.bf16 %v332, %v331
  %v348 = vpack.c.bf16 %v334, %v333
  %v349 = vpack.c.bf16 %v336, %v335
  %v350 = vpack.c.bf16 %v338, %v337
  %v351 = vpack.c.bf16 %v340, %v339
  %v352 = vpack.c.bf16 %v342, %v341
  %v353 = vpack.c.bf16 %v344, %v343
  %v354 = vpack.c.bf16 %v346, %v345
  %v356 = vlaneseq
  %v357 = vshrl.u32 %v356, 7
  %v358 = vsub.s32 0, %v357
  %v359 = vrot.slane %v60, %v358
  %v365 = vunpack.c.l.b16 %v56
  %v366 = vunpack.c.l.b16 %v57
  %v367 = vunpack.c.l.b16 %v58
  %v368 = vunpack.c.l.b16 %v59
  %v369 = vpack.c.b16 %v366, %v365
  %v370 = vpack.c.b16 %v368, %v367
  %vm373 = vcmask 261120
  %v375 = vsel %vm373, %v347, 0
  %v378 = vsel %vm373, %v348, 0
  %v381 = vsel %vm373, %v349, 0
  %v384 = vsel %vm373, %v350, 0
  %v387 = vsel %vm373, %v351, 0
  %v390 = vsel %vm373, %v352, 0
  %v393 = vsel %vm373, %v353, 0
  %v396 = vsel %vm373, %v354, 0
  %398 = vmatprep.subr.bf16.mxu0 0
  %399 = vmatpush1.bf16.msra.mxu0 %v369
  %400 = vmatprep.subr.bf16.mxu0 0
  %401 = vmatpush1.bf16.msra.mxu0 %v370
  %402 = vmatprep.subr.bf16.mxu0 0
  %403 = vmatpush1.bf16.msra.mxu0 0
  %404 = vmatprep.subr.bf16.mxu0 0
  %405 = vmatpush1.bf16.msra.mxu0 0
  %406 = vmatprep.subr.bf16.mxu0 0
  %407 = vmatpush1.bf16.msra.mxu0 0
  %408 = vmatprep.subr.bf16.mxu0 0
  %409 = vmatpush1.bf16.msra.mxu0 0
  %410 = vmatprep.subr.bf16.mxu0 0
  %411 = vmatpush1.bf16.msra.mxu0 0
  %412 = vmatprep.subr.bf16.mxu0 0
  %413 = vmatpush1.bf16.msra.mxu0 0
  %414 = vmatprep.subr.bf16.mxu0 0
  %415 = vmatpush1.bf16.msra.mxu0 0
  %416 = vmatprep.subr.bf16.mxu0 0
  %417 = vmatpush1.bf16.msra.mxu0 0
  %418 = vmatprep.subr.bf16.mxu0 0
  %419 = vmatpush1.bf16.msra.mxu0 0
  %420 = vmatprep.subr.bf16.mxu0 0
  %421 = vmatpush1.bf16.msra.mxu0 0
  %422 = vmatprep.subr.bf16.mxu0 0
  %423 = vmatpush1.bf16.msra.mxu0 0
  %424 = vmatprep.subr.bf16.mxu0 0
  %425 = vmatpush1.bf16.msra.mxu0 0
  %426 = vmatprep.subr.bf16.mxu0 0
  %427 = vmatpush1.bf16.msra.mxu0 0
  %428 = vmatprep.subr.bf16.mxu0 0
  %429 = vmatpush1.bf16.msra.mxu0 0
  %430 = vmatprep.mubr.bf16.mxu0 0
  %431 = vmatmul.mubr.bf16.gmra.mrb[0].mxu0 %v375
  %v432 = vpop.f32.mrb[0].mxu0
  %v433 = vadd.f32 %v359, %v432
  %v434 = vpop.f32.mrb[0].mxu0
  %v435 = vpop.f32.mrb[0].mxu0
  %v436 = vadd.f32 %v359, %v435
  %v437 = vpop.f32.mrb[0].mxu0
  %438 = vmatprep.mubr.bf16.mxu0 0
  %439 = vmatmul.mubr.bf16.gmra.mrb[0].mxu0 %v378
  %v440 = vpop.f32.mrb[0].mxu0
  %v441 = vadd.f32 %v359, %v440
  %v442 = vpop.f32.mrb[0].mxu0
  %v443 = vpop.f32.mrb[0].mxu0
  %v444 = vadd.f32 %v359, %v443
  %v445 = vpop.f32.mrb[0].mxu0
  %446 = vmatprep.mubr.bf16.mxu0 0
  %447 = vmatmul.mubr.bf16.gmra.mrb[0].mxu0 %v381
  %v448 = vpop.f32.mrb[0].mxu0
  %v449 = vadd.f32 %v359, %v448
  %v450 = vpop.f32.mrb[0].mxu0
  %v451 = vpop.f32.mrb[0].mxu0
  %v452 = vadd.f32 %v359, %v451
  %v453 = vpop.f32.mrb[0].mxu0
  %454 = vmatprep.mubr.bf16.mxu0 0
  %455 = vmatmul.mubr.bf16.gmra.mrb[0].mxu0 %v384
  %v456 = vpop.f32.mrb[0].mxu0
  %v457 = vadd.f32 %v359, %v456
  %v458 = vpop.f32.mrb[0].mxu0
  %v459 = vpop.f32.mrb[0].mxu0
  %v460 = vadd.f32 %v359, %v459
  %v461 = vpop.f32.mrb[0].mxu0
  %462 = vmatprep.mubr.bf16.mxu0 0
  %463 = vmatmul.mubr.bf16.gmra.mrb[0].mxu0 %v387
  %v464 = vpop.f32.mrb[0].mxu0
  %v465 = vadd.f32 %v359, %v464
  %v466 = vpop.f32.mrb[0].mxu0
  %v467 = vpop.f32.mrb[0].mxu0
  %v468 = vadd.f32 %v359, %v467
  %v469 = vpop.f32.mrb[0].mxu0
  %470 = vmatprep.mubr.bf16.mxu0 0
  %471 = vmatmul.mubr.bf16.gmra.mrb[0].mxu0 %v390
  %v472 = vpop.f32.mrb[0].mxu0
  %v473 = vadd.f32 %v359, %v472
  %v474 = vpop.f32.mrb[0].mxu0
  %v475 = vpop.f32.mrb[0].mxu0
  %v476 = vadd.f32 %v359, %v475
  %v477 = vpop.f32.mrb[0].mxu0
  %478 = vmatprep.mubr.bf16.mxu0 0
  %479 = vmatmul.mubr.bf16.gmra.mrb[0].mxu0 %v393
  %v480 = vpop.f32.mrb[0].mxu0
  %v481 = vadd.f32 %v359, %v480
  %v482 = vpop.f32.mrb[0].mxu0
  %v483 = vpop.f32.mrb[0].mxu0
  %v484 = vadd.f32 %v359, %v483
  %v485 = vpop.f32.mrb[0].mxu0
  %486 = vmatprep.mubr.bf16.mxu0 0
  %487 = vmatmul.mubr.bf16.gmra.mrb[0].mxu0 %v396
  %v488 = vpop.f32.mrb[0].mxu0
  %v489 = vadd.f32 %v359, %v488
  %v490 = vpop.f32.mrb[0].mxu0
  %v491 = vpop.f32.mrb[0].mxu0
  %v492 = vadd.f32 %v359, %v491
  %v493 = vpop.f32.mrb[0].mxu0
  %494 = vdwg.mxu0
  %v495 = vsel %vm373, %v433, 0.0
  %496 = vadd.xlane.f32.xlu0 %v495
  %v497 = vpop.xlane.xlu0 %496
  %v498 = vsel %vm373, %v436, 0.0
  %499 = vadd.xlane.f32.xlu0 %v498
  %v500 = vpop.xlane.xlu0 %499
  %v501 = vsel %vm373, %v441, 0.0
  %502 = vadd.xlane.f32.xlu0 %v501
  %v503 = vpop.xlane.xlu0 %502
  %v504 = vsel %vm373, %v444, 0.0
  %505 = vadd.xlane.f32.xlu0 %v504
  %v506 = vpop.xlane.xlu0 %505
  %v507 = vsel %vm373, %v449, 0.0
  %508 = vadd.xlane.f32.xlu0 %v507
  %v509 = vpop.xlane.xlu0 %508
  %v510 = vsel %vm373, %v452, 0.0
  %511 = vadd.xlane.f32.xlu0 %v510
  %v512 = vpop.xlane.xlu0 %511
  %v513 = vsel %vm373, %v457, 0.0
  %514 = vadd.xlane.f32.xlu0 %v513
  %v515 = vpop.xlane.xlu0 %514
  %v516 = vsel %vm373, %v460, 0.0
  %517 = vadd.xlane.f32.xlu0 %v516
  %v518 = vpop.xlane.xlu0 %517
  %v519 = vsel %vm373, %v465, 0.0
  %520 = vadd.xlane.f32.xlu0 %v519
  %v521 = vpop.xlane.xlu0 %520
  %v522 = vsel %vm373, %v468, 0.0
  %523 = vadd.xlane.f32.xlu0 %v522
  %v524 = vpop.xlane.xlu0 %523
  %v525 = vsel %vm373, %v473, 0.0
  %526 = vadd.xlane.f32.xlu0 %v525
  %v527 = vpop.xlane.xlu0 %526
  %v528 = vsel %vm373, %v476, 0.0
  %529 = vadd.xlane.f32.xlu0 %v528
  %v530 = vpop.xlane.xlu0 %529
  %v531 = vsel %vm373, %v481, 0.0
  %532 = vadd.xlane.f32.xlu0 %v531
  %v533 = vpop.xlane.xlu0 %532
  %v534 = vsel %vm373, %v484, 0.0
  %535 = vadd.xlane.f32.xlu0 %v534
  %v536 = vpop.xlane.xlu0 %535
  %v537 = vsel %vm373, %v489, 0.0
  %538 = vadd.xlane.f32.xlu0 %v537
  %v539 = vpop.xlane.xlu0 %538
  %v540 = vsel %vm373, %v492, 0.0
  %541 = vadd.xlane.f32.xlu0 %v540
  %v542 = vpop.xlane.xlu0 %541
  %v543 = vrcp.pop 32.0
  %v544 = vmul.f32 %v497, %v543
  %v545 = vmul.f32 %v500, %v543
  %v546 = vmul.f32 %v503, %v543
  %v547 = vmul.f32 %v506, %v543
  %v548 = vmul.f32 %v509, %v543
  %v549 = vmul.f32 %v512, %v543
  %v550 = vmul.f32 %v515, %v543
  %v551 = vmul.f32 %v518, %v543
  %v552 = vmul.f32 %v521, %v543
  %v553 = vmul.f32 %v524, %v543
  %v554 = vmul.f32 %v527, %v543
  %v555 = vmul.f32 %v530, %v543
  %v556 = vmul.f32 %v533, %v543
  %v557 = vmul.f32 %v536, %v543
  %v558 = vmul.f32 %v539, %v543
  %v559 = vmul.f32 %v542, %v543
  %v560 = vsub.f32 %v433, %v544
  %v561 = vsub.f32 %v436, %v545
  %v562 = vsub.f32 %v441, %v546
  %v563 = vsub.f32 %v444, %v547
  %v564 = vsub.f32 %v449, %v548
  %v565 = vsub.f32 %v452, %v549
  %v566 = vsub.f32 %v457, %v550
  %v567 = vsub.f32 %v460, %v551
  %v568 = vsub.f32 %v465, %v552
  %v569 = vsub.f32 %v468, %v553
  %v570 = vsub.f32 %v473, %v554
  %v571 = vsub.f32 %v476, %v555
  %v572 = vsub.f32 %v481, %v556
  %v573 = vsub.f32 %v484, %v557
  %v574 = vsub.f32 %v489, %v558
  %v575 = vsub.f32 %v492, %v559
  %v576 = vmul.f32 %v560, %v560
  %v577 = vmul.f32 %v561, %v561
  %v578 = vmul.f32 %v562, %v562
  %v579 = vmul.f32 %v563, %v563
  %v580 = vmul.f32 %v564, %v564
  %v581 = vmul.f32 %v565, %v565
  %v582 = vmul.f32 %v566, %v566
  %v583 = vmul.f32 %v567, %v567
  %v584 = vmul.f32 %v568, %v568
  %v585 = vmul.f32 %v569, %v569
  %v586 = vmul.f32 %v570, %v570
  %v587 = vmul.f32 %v571, %v571
  %v588 = vmul.f32 %v572, %v572
  %v589 = vmul.f32 %v573, %v573
  %v590 = vmul.f32 %v574, %v574
  %v591 = vmul.f32 %v575, %v575
  %v592 = vsel %vm373, %v576, 0.0
  %593 = vadd.xlane.f32.xlu0 %v592
  %v594 = vpop.xlane.xlu0 %593
  %v595 = vsel %vm373, %v577, 0.0
  %596 = vadd.xlane.f32.xlu0 %v595
  %v597 = vpop.xlane.xlu0 %596
  %v598 = vsel %vm373, %v578, 0.0
  %599 = vadd.xlane.f32.xlu0 %v598
  %v600 = vpop.xlane.xlu0 %599
  %v601 = vsel %vm373, %v579, 0.0
  %602 = vadd.xlane.f32.xlu0 %v601
  %v603 = vpop.xlane.xlu0 %602
  %v604 = vsel %vm373, %v580, 0.0
  %605 = vadd.xlane.f32.xlu0 %v604
  %v606 = vpop.xlane.xlu0 %605
  %v607 = vsel %vm373, %v581, 0.0
  %608 = vadd.xlane.f32.xlu0 %v607
  %v609 = vpop.xlane.xlu0 %608
  %v610 = vsel %vm373, %v582, 0.0
  %611 = vadd.xlane.f32.xlu0 %v610
  %v612 = vpop.xlane.xlu0 %611
  %v613 = vsel %vm373, %v583, 0.0
  %614 = vadd.xlane.f32.xlu0 %v613
  %v615 = vpop.xlane.xlu0 %614
  %v616 = vsel %vm373, %v584, 0.0
  %617 = vadd.xlane.f32.xlu0 %v616
  %v618 = vpop.xlane.xlu0 %617
  %v619 = vsel %vm373, %v585, 0.0
  %620 = vadd.xlane.f32.xlu0 %v619
  %v621 = vpop.xlane.xlu0 %620
  %v622 = vsel %vm373, %v586, 0.0
  %623 = vadd.xlane.f32.xlu0 %v622
  %v624 = vpop.xlane.xlu0 %623
  %v625 = vsel %vm373, %v587, 0.0
  %626 = vadd.xlane.f32.xlu0 %v625
  %v627 = vpop.xlane.xlu0 %626
  %v628 = vsel %vm373, %v588, 0.0
  %629 = vadd.xlane.f32.xlu0 %v628
  %v630 = vpop.xlane.xlu0 %629
  %v631 = vsel %vm373, %v589, 0.0
  %632 = vadd.xlane.f32.xlu0 %v631
  %v633 = vpop.xlane.xlu0 %632
  %v634 = vsel %vm373, %v590, 0.0
  %635 = vadd.xlane.f32.xlu0 %v634
  %v636 = vpop.xlane.xlu0 %635
  %v637 = vsel %vm373, %v591, 0.0
  %638 = vadd.xlane.f32.xlu0 %v637
  %v639 = vpop.xlane.xlu0 %638
  %v640 = vmul.f32 %v594, %v543
  %v641 = vmul.f32 %v597, %v543
  %v642 = vmul.f32 %v600, %v543
  %v643 = vmul.f32 %v603, %v543
  %v644 = vmul.f32 %v606, %v543
  %v645 = vmul.f32 %v609, %v543
  %v646 = vmul.f32 %v612, %v543
  %v647 = vmul.f32 %v615, %v543
  %v648 = vmul.f32 %v618, %v543
  %v649 = vmul.f32 %v621, %v543
  %v650 = vmul.f32 %v624, %v543
  %v651 = vmul.f32 %v627, %v543
  %v652 = vmul.f32 %v630, %v543
  %v653 = vmul.f32 %v633, %v543
  %v654 = vmul.f32 %v636, %v543
  %v655 = vmul.f32 %v639, %v543
  %v656 = vadd.f32 %v640, 1e-05
  %v657 = vadd.f32 %v641, 1e-05
  %v658 = vadd.f32 %v642, 1e-05
  %v659 = vadd.f32 %v643, 1e-05
  %v660 = vadd.f32 %v644, 1e-05
  %v661 = vadd.f32 %v645, 1e-05
  %v662 = vadd.f32 %v646, 1e-05
  %v663 = vadd.f32 %v647, 1e-05
  %v664 = vadd.f32 %v648, 1e-05
  %v665 = vadd.f32 %v649, 1e-05
  %v666 = vadd.f32 %v650, 1e-05
  %v667 = vadd.f32 %v651, 1e-05
  %v668 = vadd.f32 %v652, 1e-05
  %v669 = vadd.f32 %v653, 1e-05
  %v670 = vadd.f32 %v654, 1e-05
  %v671 = vadd.f32 %v655, 1e-05
  %v672 = vrsqrt.pop %v656
  %v673 = vrsqrt.pop %v657
  %v674 = vrsqrt.pop %v658
  %v675 = vrsqrt.pop %v659
  %v676 = vrsqrt.pop %v660
  %v677 = vrsqrt.pop %v661
  %v678 = vrsqrt.pop %v662
  %v679 = vrsqrt.pop %v663
  %v680 = vrsqrt.pop %v664
  %v681 = vrsqrt.pop %v665
  %v682 = vrsqrt.pop %v666
  %v683 = vrsqrt.pop %v667
  %v684 = vrsqrt.pop %v668
  %v685 = vrsqrt.pop %v669
  %v686 = vrsqrt.pop %v670
  %v687 = vrsqrt.pop %v671
  %v688 = vmul.f32 %v560, %v672
  %v689 = vmul.f32 %v561, %v673
  %v690 = vmul.f32 %v562, %v674
  %v691 = vmul.f32 %v563, %v675
  %v692 = vmul.f32 %v564, %v676
  %v693 = vmul.f32 %v565, %v677
  %v694 = vmul.f32 %v566, %v678
  %v695 = vmul.f32 %v567, %v679
  %v696 = vmul.f32 %v568, %v680
  %v697 = vmul.f32 %v569, %v681
  %v698 = vmul.f32 %v570, %v682
  %v699 = vmul.f32 %v571, %v683
  %v700 = vmul.f32 %v572, %v684
  %v701 = vmul.f32 %v573, %v685
  %v702 = vmul.f32 %v574, %v686
  %v703 = vmul.f32 %v575, %v687
  %v705 = vlaneseq
  %v706 = vshrl.u32 %v705, 7
  %v707 = vsub.s32 0, %v706
  %v708 = vrot.slane %v61, %v707
  %v710 = vmul.f32 %v688, %v708
  %v711 = vmul.f32 %v689, %v708
  %v712 = vmul.f32 %v690, %v708
  %v713 = vmul.f32 %v691, %v708
  %v714 = vmul.f32 %v692, %v708
  %v715 = vmul.f32 %v693, %v708
  %v716 = vmul.f32 %v694, %v708
  %v717 = vmul.f32 %v695, %v708
  %v718 = vmul.f32 %v696, %v708
  %v719 = vmul.f32 %v697, %v708
  %v720 = vmul.f32 %v698, %v708
  %v721 = vmul.f32 %v699, %v708
  %v722 = vmul.f32 %v700, %v708
  %v723 = vmul.f32 %v701, %v708
  %v724 = vmul.f32 %v702, %v708
  %v725 = vmul.f32 %v703, %v708
  %v727 = vlaneseq
  %v728 = vshrl.u32 %v727, 7
  %v729 = vsub.s32 0, %v728
  %v730 = vrot.slane %v62, %v729
  %v732 = vadd.f32 %v710, %v730
  %v733 = vadd.f32 %v711, %v730
  %v734 = vadd.f32 %v712, %v730
  %v735 = vadd.f32 %v713, %v730
  %v736 = vadd.f32 %v714, %v730
  %v737 = vadd.f32 %v715, %v730
  %v738 = vadd.f32 %v716, %v730
  %v739 = vadd.f32 %v717, %v730
  %v740 = vadd.f32 %v718, %v730
  %v741 = vadd.f32 %v719, %v730
  %v742 = vadd.f32 %v720, %v730
  %v743 = vadd.f32 %v721, %v730
  %v744 = vadd.f32 %v722, %v730
  %v745 = vadd.f32 %v723, %v730
  %v746 = vadd.f32 %v724, %v730
  %v747 = vadd.f32 %v725, %v730
  %748 = vst.msk [vmem:[%s7] sm:$0xff] %vm373, %v732
  %749 = vst.msk [vmem:[%s7 + $0x8] sm:$0xff] %vm373, %v733
  %750 = vst.msk [vmem:[%s7 + $0x10] sm:$0xff] %vm373, %v734
  %751 = vst.msk [vmem:[%s7 + $0x18] sm:$0xff] %vm373, %v735
  %752 = vst.msk [vmem:[%s7 + $0x20] sm:$0xff] %vm373, %v736
  %753 = vst.msk [vmem:[%s7 + $0x28] sm:$0xff] %vm373, %v737
  %754 = vst.msk [vmem:[%s7 + $0x30] sm:$0xff] %vm373, %v738
  %755 = vst.msk [vmem:[%s7 + $0x38] sm:$0xff] %vm373, %v739
  %756 = vst.msk [vmem:[%s7 + $0x40] sm:$0xff] %vm373, %v740
  %757 = vst.msk [vmem:[%s7 + $0x48] sm:$0xff] %vm373, %v741
  %758 = vst.msk [vmem:[%s7 + $0x50] sm:$0xff] %vm373, %v742
  %759 = vst.msk [vmem:[%s7 + $0x58] sm:$0xff] %vm373, %v743
  %760 = vst.msk [vmem:[%s7 + $0x60] sm:$0xff] %vm373, %v744
  %761 = vst.msk [vmem:[%s7 + $0x68] sm:$0xff] %vm373, %v745
  %762 = vst.msk [vmem:[%s7 + $0x70] sm:$0xff] %vm373, %v746
  %763 = vst.msk [vmem:[%s7 + $0x78] sm:$0xff] %vm373, %v747
  // Predicated region
  $region30: #{denoiser_forward.7} parent=0 // pred_check
    _
  $region31: #{denoiser_forward.7} parent=0 // pred_check_branch
    %765 = sbr.rel (0) target = $region33
  $region32: #{denoiser_forward.7} parent=0 // pred_region
    _
  $region33: #{denoiser_forward.7} parent=0 // pred_fallthru
    _
  // Predicated region
  $region34: #{denoiser_forward.7} parent=0 // pred_check
    _
  $region35: #{denoiser_forward.7} parent=0 // pred_check_branch
    %767 = sbr.rel (0) target = $region37
  $region36: #{denoiser_forward.7} parent=0 // pred_region
    _
  $region37: #{denoiser_forward.7} parent=0 // pred_fallthru
    _

// kernel: denoiser_forward.8
$region0: #{denoiser_forward.8}
  #allocation0 [shape = 'u32[]', space=smem, size = 0x4, offset = 0x4, fixed_abs, tag = 'smem constant byte address 0x4 - core index']
  #allocation1 [shape = 'u32[144,128]{1,0:T(1,128)}', space=vmem, size = 0x12000, scoped, tag = 'internal scratch']
  %s0 = inlined_call_operand.vmem [shape: f32[32,32], index: 0, kind: input, shape index: {}]
  %s1 = inlined_call_operand.vmem [shape: f32[32,32], index: 1, kind: input, shape index: {}]
  %s2 = inlined_call_operand.vmem [shape: f32[64,32], index: 2, kind: input, shape index: {}]
  %s3 = inlined_call_operand.vmem [shape: bf16[64,32], index: 3, kind: input, shape index: {}]
  %s4 = inlined_call_operand.vmem [shape: f32[1,32], index: 4, kind: input, shape index: {}]
  %s5 = inlined_call_operand.vmem [shape: bf16[32,32], index: 5, kind: input, shape index: {}]
  %s6 = inlined_call_operand.vmem [shape: f32[1,32], index: 6, kind: input, shape index: {}]
  %s7 = inlined_call_operand.vmem [shape: f32[1,32], index: 7, kind: input, shape index: {}]
  %s8 = inlined_call_operand.vmem [shape: f32[1,32], index: 8, kind: input, shape index: {}]
  %s9 = inlined_call_operand.vmem [shape: bf16[32,32], index: 9, kind: input, shape index: {}]
  %s10 = inlined_call_operand.vmem [shape: f32[1,32], index: 10, kind: input, shape index: {}]
  %s11 = inlined_call_operand.vmem [shape: bf16[32,32], index: 11, kind: input, shape index: {}]
  %s12 = inlined_call_operand.vmem [shape: f32[1,32], index: 12, kind: input, shape index: {}]
  %s13 = inlined_call_operand.vmem [shape: f32[1,32], index: 13, kind: input, shape index: {}]
  %s14 = inlined_call_operand.vmem [shape: f32[1,32], index: 14, kind: input, shape index: {}]
  %s15 = inlined_call_operand.vmem [shape: f32[32,32], index: 15, kind: output, shape index: {0}]
  %s16 = inlined_call_operand.vmem [shape: f32[64,32], index: 16, kind: output, shape index: {1}]
  %17 = xla_tuple %s15, %s16
  %s18 = sld [smem:[#allocation0]]
  $region78: #{denoiser_forward.8} parent=0
    _
  %s20 = ssub.s32 1, %s18
  %s21 = scalar_select 0, %s20, %s18
  // Predicated region
  $region2: #{denoiser_forward.8} parent=0 // pred_check
    _
  $region3: #{denoiser_forward.8} parent=0 // pred_check_branch
    %23 = sbr.rel (0) target = $region5
  $region4: #{denoiser_forward.8} parent=0 // pred_region
    _
  $region5: #{denoiser_forward.8} parent=0 // pred_fallthru
    _
  // Predicated region
  $region6: #{denoiser_forward.8} parent=0 // pred_check
    _
  $region7: #{denoiser_forward.8} parent=0 // pred_check_branch
    %25 = sbr.rel (0) target = $region9
  $region8: #{denoiser_forward.8} parent=0 // pred_region
    _
  $region9: #{denoiser_forward.8} parent=0 // pred_fallthru
    _
  // Predicated region
  $region10: #{denoiser_forward.8} parent=0 // pred_check
    _
  $region11: #{denoiser_forward.8} parent=0 // pred_check_branch
    %27 = sbr.rel (0) target = $region13
  $region12: #{denoiser_forward.8} parent=0 // pred_region
    _
  $region13: #{denoiser_forward.8} parent=0 // pred_fallthru
    _
  // Predicated region
  $region14: #{denoiser_forward.8} parent=0 // pred_check
    _
  $region15: #{denoiser_forward.8} parent=0 // pred_check_branch
    %29 = sbr.rel (0) target = $region17
  $region16: #{denoiser_forward.8} parent=0 // pred_region
    _
  $region17: #{denoiser_forward.8} parent=0 // pred_fallthru
    _
  // Predicated region
  $region18: #{denoiser_forward.8} parent=0 // pred_check
    _
  $region19: #{denoiser_forward.8} parent=0 // pred_check_branch
    %31 = sbr.rel (0) target = $region21
  $region20: #{denoiser_forward.8} parent=0 // pred_region
    _
  $region21: #{denoiser_forward.8} parent=0 // pred_fallthru
    _
  // Predicated region
  $region22: #{denoiser_forward.8} parent=0 // pred_check
    _
  $region23: #{denoiser_forward.8} parent=0 // pred_check_branch
    %33 = sbr.rel (0) target = $region25
  $region24: #{denoiser_forward.8} parent=0 // pred_region
    _
  $region25: #{denoiser_forward.8} parent=0 // pred_fallthru
    _
  // Predicated region
  $region26: #{denoiser_forward.8} parent=0 // pred_check
    _
  $region27: #{denoiser_forward.8} parent=0 // pred_check_branch
    %35 = sbr.rel (0) target = $region29
  $region28: #{denoiser_forward.8} parent=0 // pred_region
    _
  $region29: #{denoiser_forward.8} parent=0 // pred_fallthru
    _
  // Predicated region
  $region30: #{denoiser_forward.8} parent=0 // pred_check
    _
  $region31: #{denoiser_forward.8} parent=0 // pred_check_branch
    %37 = sbr.rel (0) target = $region33
  $region32: #{denoiser_forward.8} parent=0 // pred_region
    _
  $region33: #{denoiser_forward.8} parent=0 // pred_fallthru
    _
  // Predicated region
  $region34: #{denoiser_forward.8} parent=0 // pred_check
    _
  $region35: #{denoiser_forward.8} parent=0 // pred_check_branch
    %39 = sbr.rel (0) target = $region37
  $region36: #{denoiser_forward.8} parent=0 // pred_region
    _
  $region37: #{denoiser_forward.8} parent=0 // pred_fallthru
    _
  // Predicated region
  $region38: #{denoiser_forward.8} parent=0 // pred_check
    _
  $region39: #{denoiser_forward.8} parent=0 // pred_check_branch
    %41 = sbr.rel (0) target = $region41
  $region40: #{denoiser_forward.8} parent=0 // pred_region
    _
  $region41: #{denoiser_forward.8} parent=0 // pred_fallthru
    _
  // Predicated region
  $region42: #{denoiser_forward.8} parent=0 // pred_check
    _
  $region43: #{denoiser_forward.8} parent=0 // pred_check_branch
    %43 = sbr.rel (0) target = $region45
  $region44: #{denoiser_forward.8} parent=0 // pred_region
    _
  $region45: #{denoiser_forward.8} parent=0 // pred_fallthru
    _
  // Predicated region
  $region46: #{denoiser_forward.8} parent=0 // pred_check
    _
  $region47: #{denoiser_forward.8} parent=0 // pred_check_branch
    %45 = sbr.rel (0) target = $region49
  $region48: #{denoiser_forward.8} parent=0 // pred_region
    _
  $region49: #{denoiser_forward.8} parent=0 // pred_fallthru
    _
  // Predicated region
  $region50: #{denoiser_forward.8} parent=0 // pred_check
    _
  $region51: #{denoiser_forward.8} parent=0 // pred_check_branch
    %47 = sbr.rel (0) target = $region53
  $region52: #{denoiser_forward.8} parent=0 // pred_region
    _
  $region53: #{denoiser_forward.8} parent=0 // pred_fallthru
    _
  // Predicated region
  $region54: #{denoiser_forward.8} parent=0 // pred_check
    _
  $region55: #{denoiser_forward.8} parent=0 // pred_check_branch
    %49 = sbr.rel (0) target = $region57
  $region56: #{denoiser_forward.8} parent=0 // pred_region
    _
  $region57: #{denoiser_forward.8} parent=0 // pred_fallthru
    _
  // Predicated region
  $region58: #{denoiser_forward.8} parent=0 // pred_check
    _
  $region59: #{denoiser_forward.8} parent=0 // pred_check_branch
    %51 = sbr.rel (0) target = $region61
  $region60: #{denoiser_forward.8} parent=0 // pred_region
    _
  $region61: #{denoiser_forward.8} parent=0 // pred_fallthru
    _
  %v53 = vld [vmem:[%s0] sm:$0xff]
  %v54 = vld [vmem:[%s0 + $0x8] sm:$0xff]
  %v55 = vld [vmem:[%s0 + $0x10] sm:$0xff]
  %v56 = vld [vmem:[%s0 + $0x18] sm:$0xff]
  %v57 = vld [vmem:[%s1] sm:$0xff]
  %v58 = vld [vmem:[%s1 + $0x8] sm:$0xff]
  %v59 = vld [vmem:[%s1 + $0x10] sm:$0xff]
  %v60 = vld [vmem:[%s1 + $0x18] sm:$0xff]
  %65 = vrot.lane.b32.xlu0 %v57, 32
  %v66 = vpop.permute.xlu0 %65
  %67 = vrot.lane.b32.xlu0 %v58, 32
  %v68 = vpop.permute.xlu0 %67
  %69 = vrot.lane.b32.xlu0 %v59, 32
  %v70 = vpop.permute.xlu0 %69
  %71 = vrot.lane.b32.xlu0 %v60, 32
  %v72 = vpop.permute.xlu0 %71
  %vm77 = vcmask 261120
  %v78 = vsel %vm77, %v53, %v66
  %v79 = vsel %vm77, %v54, %v68
  %v80 = vsel %vm77, %v55, %v70
  %v81 = vsel %vm77, %v56, %v72
  %v82 = vld [vmem:[%s3] sm:$0xf]
  %v83 = vld [vmem:[%s3 + $0x4] sm:$0xf]
  %v84 = vld [vmem:[%s3 + $0x8] sm:$0xf]
  %v85 = vld [vmem:[%s3 + $0xc] sm:$0xf]
  %v86 = vld [vmem:[%s3 + $0x10] sm:$0xf]
  %v87 = vld [vmem:[%s3 + $0x14] sm:$0xf]
  %v88 = vld [vmem:[%s3 + $0x18] sm:$0xf]
  %v89 = vld [vmem:[%s3 + $0x1c] sm:$0xf]
  %v90 = vld [vmem:[%s4] sm:$0x1]
  %v91 = vld [vmem:[%s5] sm:$0xf]
  %v92 = vld [vmem:[%s5 + $0x4] sm:$0xf]
  %v93 = vld [vmem:[%s5 + $0x8] sm:$0xf]
  %v94 = vld [vmem:[%s5 + $0xc] sm:$0xf]
  %v95 = vld [vmem:[%s6] sm:$0x1]
  %v96 = vld [vmem:[%s7] sm:$0x1]
  %v97 = vld [vmem:[%s8] sm:$0x1]
  %v98 = vpack.c.bf16 %v79, %v78
  %v99 = vpack.c.bf16 %v81, %v80
  %v101 = vlaneseq
  %v102 = vshrl.u32 %v101, 7
  %v103 = vsub.s32 0, %v102
  %v104 = vrot.slane %v90, %v103
  %v114 = vunpack.c.l.b16 %v82
  %v115 = vunpack.c.l.b16 %v83
  %v116 = vunpack.c.l.b16 %v84
  %v117 = vunpack.c.l.b16 %v85
  %v118 = vunpack.c.l.b16 %v86
  %v119 = vunpack.c.l.b16 %v87
  %v120 = vunpack.c.l.b16 %v88
  %v121 = vunpack.c.l.b16 %v89
  %v122 = vpack.c.b16 %v115, %v114
  %v123 = vpack.c.b16 %v117, %v116
  %v124 = vpack.c.b16 %v119, %v118
  %v125 = vpack.c.b16 %v121, %v120
  %vm130 = vcmask 523264
  %v132 = vsel %vm130, %v98, 0
  %v135 = vsel %vm130, %v99, 0
  %137 = vmatprep.subr.bf16.mxu0 0
  %138 = vmatpush1.bf16.msra.mxu0 %v122
  %139 = vmatprep.subr.bf16.mxu0 0
  %140 = vmatpush1.bf16.msra.mxu0 %v123
  %141 = vmatprep.subr.bf16.mxu0 0
  %142 = vmatpush1.bf16.msra.mxu0 %v124
  %143 = vmatprep.subr.bf16.mxu0 0
  %144 = vmatpush1.bf16.msra.mxu0 %v125
  %145 = vmatprep.subr.bf16.mxu0 0
  %146 = vmatpush1.bf16.msra.mxu0 0
  %147 = vmatprep.subr.bf16.mxu0 0
  %148 = vmatpush1.bf16.msra.mxu0 0
  %149 = vmatprep.subr.bf16.mxu0 0
  %150 = vmatpush1.bf16.msra.mxu0 0
  %151 = vmatprep.subr.bf16.mxu0 0
  %152 = vmatpush1.bf16.msra.mxu0 0
  %153 = vmatprep.subr.bf16.mxu0 0
  %154 = vmatpush1.bf16.msra.mxu0 0
  %155 = vmatprep.subr.bf16.mxu0 0
  %156 = vmatpush1.bf16.msra.mxu0 0
  %157 = vmatprep.subr.bf16.mxu0 0
  %158 = vmatpush1.bf16.msra.mxu0 0
  %159 = vmatprep.subr.bf16.mxu0 0
  %160 = vmatpush1.bf16.msra.mxu0 0
  %161 = vmatprep.subr.bf16.mxu0 0
  %162 = vmatpush1.bf16.msra.mxu0 0
  %163 = vmatprep.subr.bf16.mxu0 0
  %164 = vmatpush1.bf16.msra.mxu0 0
  %165 = vmatprep.subr.bf16.mxu0 0
  %166 = vmatpush1.bf16.msra.mxu0 0
  %167 = vmatprep.subr.bf16.mxu0 0
  %168 = vmatpush1.bf16.msra.mxu0 0
  %169 = vmatprep.mubr.bf16.mxu0 0
  %170 = vmatmul.mubr.bf16.gmra.mrb[0].mxu0 %v132
  %v171 = vpop.f32.mrb[0].mxu0
  %v172 = vadd.f32 %v104, %v171
  %v173 = vpop.f32.mrb[0].mxu0
  %v174 = vpop.f32.mrb[0].mxu0
  %v175 = vadd.f32 %v104, %v174
  %v176 = vpop.f32.mrb[0].mxu0
  %177 = vmatprep.mubr.bf16.mxu0 0
  %178 = vmatmul.mubr.bf16.gmra.mrb[0].mxu0 %v135
  %v179 = vpop.f32.mrb[0].mxu0
  %v180 = vadd.f32 %v104, %v179
  %v181 = vpop.f32.mrb[0].mxu0
  %v182 = vpop.f32.mrb[0].mxu0
  %v183 = vadd.f32 %v104, %v182
  %v184 = vpop.f32.mrb[0].mxu0
  %185 = vdwg.mxu0
  %v186 = vxor.u32 %v172, 2147483648
  %v187 = vxor.u32 %v175, 2147483648
  %v188 = vxor.u32 %v180, 2147483648
  %v189 = vxor.u32 %v183, 2147483648
  %v190 = vmul.f32 %v186, 1.442695
  %v191 = vpow.pop %v190
  %v192 = vmul.f32 %v187, 1.442695
  %v193 = vpow.pop %v192
  %v194 = vmul.f32 %v188, 1.442695
  %v195 = vpow.pop %v194
  %v196 = vmul.f32 %v189, 1.442695
  %v197 = vpow.pop %v196
  %v198 = vadd.f32 %v191, 1.0
  %v199 = vadd.f32 %v193, 1.0
  %v200 = vadd.f32 %v195, 1.0
  %v201 = vadd.f32 %v197, 1.0
  %v202 = vrcp.pop %v198
  %v203 = vmul.f32 1.0, %v202
  %v204 = vrcp.pop %v199
  %v205 = vmul.f32 1.0, %v204
  %v206 = vrcp.pop %v200
  %v207 = vmul.f32 1.0, %v206
  %v208 = vrcp.pop %v201
  %v209 = vmul.f32 1.0, %v208
  %v210 = vmul.f32 %v172, %v203
  %v211 = vmul.f32 %v175, %v205
  %v212 = vmul.f32 %v180, %v207
  %v213 = vmul.f32 %v183, %v209
  %v214 = vpack.c.bf16 %v211, %v210
  %v215 = vpack.c.bf16 %v213, %v212
  %v217 = vlaneseq
  %v218 = vshrl.u32 %v217, 7
  %v219 = vsub.s32 0, %v218
  %v220 = vrot.slane %v95, %v219
  %v226 = vunpack.c.l.b16 %v91
  %v227 = vunpack.c.l.b16 %v92
  %v228 = vunpack.c.l.b16 %v93
  %v229 = vunpack.c.l.b16 %v94
  %v230 = vpack.c.b16 %v227, %v226
  %v231 = vpack.c.b16 %v229, %v228
  %v235 = vsel %vm77, %v214, 0
  %v238 = vsel %vm77, %v215, 0
  %240 = vmatprep.subr.bf16.mxu0 0
  %241 = vmatpush1.bf16.msra.mxu0 %v230
  %242 = vmatprep.subr.bf16.mxu0 0
  %243 = vmatpush1.bf16.msra.mxu0 %v231
  %244 = vmatprep.subr.bf16.mxu0 0
  %245 = vmatpush1.bf16.msra.mxu0 0
  %246 = vmatprep.subr.bf16.mxu0 0
  %247 = vmatpush1.bf16.msra.mxu0 0
  %248 = vmatprep.subr.bf16.mxu0 0
  %249 = vmatpush1.bf16.msra.mxu0 0
  %250 = vmatprep.subr.bf16.mxu0 0
  %251 = vmatpush1.bf16.msra.mxu0 0
  %252 = vmatprep.subr.bf16.mxu0 0
  %253 = vmatpush1.bf16.msra.mxu0 0
  %254 = vmatprep.subr.bf16.mxu0 0
  %255 = vmatpush1.bf16.msra.mxu0 0
  %256 = vmatprep.subr.bf16.mxu0 0
  %257 = vmatpush1.bf16.msra.mxu0 0
  %258 = vmatprep.subr.bf16.mxu0 0
  %259 = vmatpush1.bf16.msra.mxu0 0
  %260 = vmatprep.subr.bf16.mxu0 0
  %261 = vmatpush1.bf16.msra.mxu0 0
  %262 = vmatprep.subr.bf16.mxu0 0
  %263 = vmatpush1.bf16.msra.mxu0 0
  %264 = vmatprep.subr.bf16.mxu0 0
  %265 = vmatpush1.bf16.msra.mxu0 0
  %266 = vmatprep.subr.bf16.mxu0 0
  %267 = vmatpush1.bf16.msra.mxu0 0
  %268 = vmatprep.subr.bf16.mxu0 0
  %269 = vmatpush1.bf16.msra.mxu0 0
  %270 = vmatprep.subr.bf16.mxu0 0
  %271 = vmatpush1.bf16.msra.mxu0 0
  %272 = vmatprep.mubr.bf16.mxu0 0
  %273 = vmatmul.mubr.bf16.gmra.mrb[0].mxu0 %v235
  %v274 = vpop.f32.mrb[0].mxu0
  %v275 = vadd.f32 %v220, %v274
  %v276 = vpop.f32.mrb[0].mxu0
  %v277 = vpop.f32.mrb[0].mxu0
  %v278 = vadd.f32 %v220, %v277
  %v279 = vpop.f32.mrb[0].mxu0
  %280 = vmatprep.mubr.bf16.mxu0 0
  %281 = vmatmul.mubr.bf16.gmra.mrb[0].mxu0 %v238
  %v282 = vpop.f32.mrb[0].mxu0
  %v283 = vadd.f32 %v220, %v282
  %v284 = vpop.f32.mrb[0].mxu0
  %v285 = vpop.f32.mrb[0].mxu0
  %v286 = vadd.f32 %v220, %v285
  %v287 = vpop.f32.mrb[0].mxu0
  %288 = vdwg.mxu0
  %v289 = vsel %vm77, %v275, 0.0
  %290 = vadd.xlane.f32.xlu0 %v289
  %v291 = vpop.xlane.xlu0 %290
  %v292 = vsel %vm77, %v278, 0.0
  %293 = vadd.xlane.f32.xlu0 %v292
  %v294 = vpop.xlane.xlu0 %293
  %v295 = vsel %vm77, %v283, 0.0
  %296 = vadd.xlane.f32.xlu0 %v295
  %v297 = vpop.xlane.xlu0 %296
  %v298 = vsel %vm77, %v286, 0.0
  %299 = vadd.xlane.f32.xlu0 %v298
  %v300 = vpop.xlane.xlu0 %299
  %v301 = vrcp.pop 32.0
  %v302 = vmul.f32 %v291, %v301
  %v303 = vmul.f32 %v294, %v301
  %v304 = vmul.f32 %v297, %v301
  %v305 = vmul.f32 %v300, %v301
  %v306 = vsub.f32 %v275, %v302
  %v307 = vsub.f32 %v278, %v303
  %v308 = vsub.f32 %v283, %v304
  %v309 = vsub.f32 %v286, %v305
  %v310 = vmul.f32 %v306, %v306
  %v311 = vmul.f32 %v307, %v307
  %v312 = vmul.f32 %v308, %v308
  %v313 = vmul.f32 %v309, %v309
  %v314 = vsel %vm77, %v310, 0.0
  %315 = vadd.xlane.f32.xlu0 %v314
  %v316 = vpop.xlane.xlu0 %315
  %v317 = vsel %vm77, %v311, 0.0
  %318 = vadd.xlane.f32.xlu0 %v317
  %v319 = vpop.xlane.xlu0 %318
  %v320 = vsel %vm77, %v312, 0.0
  %321 = vadd.xlane.f32.xlu0 %v320
  %v322 = vpop.xlane.xlu0 %321
  %v323 = vsel %vm77, %v313, 0.0
  %324 = vadd.xlane.f32.xlu0 %v323
  %v325 = vpop.xlane.xlu0 %324
  %v326 = vmul.f32 %v316, %v301
  %v327 = vmul.f32 %v319, %v301
  %v328 = vmul.f32 %v322, %v301
  %v329 = vmul.f32 %v325, %v301
  %v330 = vadd.f32 %v326, 1e-05
  %v331 = vadd.f32 %v327, 1e-05
  %v332 = vadd.f32 %v328, 1e-05
  %v333 = vadd.f32 %v329, 1e-05
  %v334 = vrsqrt.pop %v330
  %v335 = vrsqrt.pop %v331
  %v336 = vrsqrt.pop %v332
  %v337 = vrsqrt.pop %v333
  %v338 = vmul.f32 %v306, %v334
  %v339 = vmul.f32 %v307, %v335
  %v340 = vmul.f32 %v308, %v336
  %v341 = vmul.f32 %v309, %v337
  %v343 = vlaneseq
  %v344 = vshrl.u32 %v343, 7
  %v345 = vsub.s32 0, %v344
  %v346 = vrot.slane %v96, %v345
  %v348 = vmul.f32 %v338, %v346
  %v349 = vmul.f32 %v339, %v346
  %v350 = vmul.f32 %v340, %v346
  %v351 = vmul.f32 %v341, %v346
  %v353 = vlaneseq
  %v354 = vshrl.u32 %v353, 7
  %v355 = vsub.s32 0, %v354
  %v356 = vrot.slane %v97, %v355
  %v358 = vadd.f32 %v348, %v356
  %v359 = vadd.f32 %v349, %v356
  %v360 = vadd.f32 %v350, %v356
  %v361 = vadd.f32 %v351, %v356
  %v362 = vadd.f32 %v53, %v358
  %v363 = vadd.f32 %v54, %v359
  %v364 = vadd.f32 %v55, %v360
  %v365 = vadd.f32 %v56, %v361
  %366 = vst.msk [vmem:[%s15] sm:$0xff] %vm77, %v362
  %367 = vst.msk [vmem:[%s15 + $0x8] sm:$0xff] %vm77, %v363
  %368 = vst.msk [vmem:[%s15 + $0x10] sm:$0xff] %vm77, %v364
  %369 = vst.msk [vmem:[%s15 + $0x18] sm:$0xff] %vm77, %v365
  %v370 = vld [vmem:[%s2] sm:$0xff]
  %v371 = vld [vmem:[%s2 + $0x8] sm:$0xff]
  %v372 = vld [vmem:[%s2 + $0x10] sm:$0xff]
  %v373 = vld [vmem:[%s2 + $0x18] sm:$0xff]
  %v374 = vld [vmem:[%s2 + $0x20] sm:$0xff]
  %v375 = vld [vmem:[%s2 + $0x28] sm:$0xff]
  %v376 = vld [vmem:[%s2 + $0x30] sm:$0xff]
  %v377 = vld [vmem:[%s2 + $0x38] sm:$0xff]
  %v378 = vld [vmem:[%s9] sm:$0xf]
  %v379 = vld [vmem:[%s9 + $0x4] sm:$0xf]
  %v380 = vld [vmem:[%s9 + $0x8] sm:$0xf]
  %v381 = vld [vmem:[%s9 + $0xc] sm:$0xf]
  %v382 = vld [vmem:[%s10] sm:$0x1]
  %v383 = vld [vmem:[%s11] sm:$0xf]
  %v384 = vld [vmem:[%s11 + $0x4] sm:$0xf]
  %v385 = vld [vmem:[%s11 + $0x8] sm:$0xf]
  %v386 = vld [vmem:[%s11 + $0xc] sm:$0xf]
  %v387 = vld [vmem:[%s12] sm:$0x1]
  %v388 = vld [vmem:[%s13] sm:$0x1]
  %v389 = vld [vmem:[%s14] sm:$0x1]
  %v390 = vpack.c.bf16 %v371, %v370
  %v391 = vpack.c.bf16 %v373, %v372
  %v392 = vpack.c.bf16 %v375, %v374
  %v393 = vpack.c.bf16 %v377, %v376
  %v395 = vlaneseq
  %v396 = vshrl.u32 %v395, 7
  %v397 = vsub.s32 0, %v396
  %v398 = vrot.slane %v382, %v397
  %v404 = vunpack.c.l.b16 %v378
  %v405 = vunpack.c.l.b16 %v379
  %v406 = vunpack.c.l.b16 %v380
  %v407 = vunpack.c.l.b16 %v381
  %v408 = vpack.c.b16 %v405, %v404
  %v409 = vpack.c.b16 %v407, %v406
  %v413 = vsel %vm77, %v390, 0
  %v416 = vsel %vm77, %v391, 0
  %v419 = vsel %vm77, %v392, 0
  %v422 = vsel %vm77, %v393, 0
  %424 = vmatprep.subr.bf16.mxu0 0
  %425 = vmatpush1.bf16.msra.mxu0 %v408
  %426 = vmatprep.subr.bf16.mxu0 0
  %427 = vmatpush1.bf16.msra.mxu0 %v409
  %428 = vmatprep.subr.bf16.mxu0 0
  %429 = vmatpush1.bf16.msra.mxu0 0
  %430 = vmatprep.subr.bf16.mxu0 0
  %431 = vmatpush1.bf16.msra.mxu0 0
  %432 = vmatprep.subr.bf16.mxu0 0
  %433 = vmatpush1.bf16.msra.mxu0 0
  %434 = vmatprep.subr.bf16.mxu0 0
  %435 = vmatpush1.bf16.msra.mxu0 0
  %436 = vmatprep.subr.bf16.mxu0 0
  %437 = vmatpush1.bf16.msra.mxu0 0
  %438 = vmatprep.subr.bf16.mxu0 0
  %439 = vmatpush1.bf16.msra.mxu0 0
  %440 = vmatprep.subr.bf16.mxu0 0
  %441 = vmatpush1.bf16.msra.mxu0 0
  %442 = vmatprep.subr.bf16.mxu0 0
  %443 = vmatpush1.bf16.msra.mxu0 0
  %444 = vmatprep.subr.bf16.mxu0 0
  %445 = vmatpush1.bf16.msra.mxu0 0
  %446 = vmatprep.subr.bf16.mxu0 0
  %447 = vmatpush1.bf16.msra.mxu0 0
  %448 = vmatprep.subr.bf16.mxu0 0
  %449 = vmatpush1.bf16.msra.mxu0 0
  %450 = vmatprep.subr.bf16.mxu0 0
  %451 = vmatpush1.bf16.msra.mxu0 0
  %452 = vmatprep.subr.bf16.mxu0 0
  %453 = vmatpush1.bf16.msra.mxu0 0
  %454 = vmatprep.subr.bf16.mxu0 0
  %455 = vmatpush1.bf16.msra.mxu0 0
  %456 = vmatprep.mubr.bf16.mxu0 0
  %457 = vmatmul.mubr.bf16.gmra.mrb[0].mxu0 %v413
  %v458 = vpop.f32.mrb[0].mxu0
  %v459 = vadd.f32 %v398, %v458
  %v460 = vpop.f32.mrb[0].mxu0
  %v461 = vpop.f32.mrb[0].mxu0
  %v462 = vadd.f32 %v398, %v461
  %v463 = vpop.f32.mrb[0].mxu0
  %464 = vmatprep.mubr.bf16.mxu0 0
  %465 = vmatmul.mubr.bf16.gmra.mrb[0].mxu0 %v416
  %v466 = vpop.f32.mrb[0].mxu0
  %v467 = vadd.f32 %v398, %v466
  %v468 = vpop.f32.mrb[0].mxu0
  %v469 = vpop.f32.mrb[0].mxu0
  %v470 = vadd.f32 %v398, %v469
  %v471 = vpop.f32.mrb[0].mxu0
  %472 = vmatprep.mubr.bf16.mxu0 0
  %473 = vmatmul.mubr.bf16.gmra.mrb[0].mxu0 %v419
  %v474 = vpop.f32.mrb[0].mxu0
  %v475 = vadd.f32 %v398, %v474
  %v476 = vpop.f32.mrb[0].mxu0
  %v477 = vpop.f32.mrb[0].mxu0
  %v478 = vadd.f32 %v398, %v477
  %v479 = vpop.f32.mrb[0].mxu0
  %480 = vmatprep.mubr.bf16.mxu0 0
  %481 = vmatmul.mubr.bf16.gmra.mrb[0].mxu0 %v422
  %v482 = vpop.f32.mrb[0].mxu0
  %v483 = vadd.f32 %v398, %v482
  %v484 = vpop.f32.mrb[0].mxu0
  %v485 = vpop.f32.mrb[0].mxu0
  %v486 = vadd.f32 %v398, %v485
  %v487 = vpop.f32.mrb[0].mxu0
  %488 = vdwg.mxu0
  %v489 = vxor.u32 %v459, 2147483648
  %v490 = vxor.u32 %v462, 2147483648
  %v491 = vxor.u32 %v467, 2147483648
  %v492 = vxor.u32 %v470, 2147483648
  %v493 = vxor.u32 %v475, 2147483648
  %v494 = vxor.u32 %v478, 2147483648
  %v495 = vxor.u32 %v483, 2147483648
  %v496 = vxor.u32 %v486, 2147483648
  %v497 = vmul.f32 %v489, 1.442695
  %v498 = vpow.pop %v497
  %v499 = vmul.f32 %v490, 1.442695
  %v500 = vpow.pop %v499
  %v501 = vmul.f32 %v491, 1.442695
  %v502 = vpow.pop %v501
  %v503 = vmul.f32 %v492, 1.442695
  %v504 = vpow.pop %v503
  %v505 = vmul.f32 %v493, 1.442695
  %v506 = vpow.pop %v505
  %v507 = vmul.f32 %v494, 1.442695
  %v508 = vpow.pop %v507
  %v509 = vmul.f32 %v495, 1.442695
  %v510 = vpow.pop %v509
  %v511 = vmul.f32 %v496, 1.442695
  %v512 = vpow.pop %v511
  %v513 = vadd.f32 %v498, 1.0
  %v514 = vadd.f32 %v500, 1.0
  %v515 = vadd.f32 %v502, 1.0
  %v516 = vadd.f32 %v504, 1.0
  %v517 = vadd.f32 %v506, 1.0
  %v518 = vadd.f32 %v508, 1.0
  %v519 = vadd.f32 %v510, 1.0
  %v520 = vadd.f32 %v512, 1.0
  %v521 = vrcp.pop %v513
  %v522 = vmul.f32 1.0, %v521
  %v523 = vrcp.pop %v514
  %v524 = vmul.f32 1.0, %v523
  %v525 = vrcp.pop %v515
  %v526 = vmul.f32 1.0, %v525
  %v527 = vrcp.pop %v516
  %v528 = vmul.f32 1.0, %v527
  %v529 = vrcp.pop %v517
  %v530 = vmul.f32 1.0, %v529
  %v531 = vrcp.pop %v518
  %v532 = vmul.f32 1.0, %v531
  %v533 = vrcp.pop %v519
  %v534 = vmul.f32 1.0, %v533
  %v535 = vrcp.pop %v520
  %v536 = vmul.f32 1.0, %v535
  %v537 = vmul.f32 %v459, %v522
  %v538 = vmul.f32 %v462, %v524
  %v539 = vmul.f32 %v467, %v526
  %v540 = vmul.f32 %v470, %v528
  %v541 = vmul.f32 %v475, %v530
  %v542 = vmul.f32 %v478, %v532
  %v543 = vmul.f32 %v483, %v534
  %v544 = vmul.f32 %v486, %v536
  %v545 = vpack.c.bf16 %v538, %v537
  %v546 = vpack.c.bf16 %v540, %v539
  %v547 = vpack.c.bf16 %v542, %v541
  %v548 = vpack.c.bf16 %v544, %v543
  %v550 = vlaneseq
  %v551 = vshrl.u32 %v550, 7
  %v552 = vsub.s32 0, %v551
  %v553 = vrot.slane %v387, %v552
  %v559 = vunpack.c.l.b16 %v383
  %v560 = vunpack.c.l.b16 %v384
  %v561 = vunpack.c.l.b16 %v385
  %v562 = vunpack.c.l.b16 %v386
  %v563 = vpack.c.b16 %v560, %v559
  %v564 = vpack.c.b16 %v562, %v561
  %v568 = vsel %vm77, %v545, 0
  %v571 = vsel %vm77, %v546, 0
  %v574 = vsel %vm77, %v547, 0
  %v577 = vsel %vm77, %v548, 0
  %579 = vmatprep.subr.bf16.mxu0 0
  %580 = vmatpush1.bf16.msra.mxu0 %v563
  %581 = vmatprep.subr.bf16.mxu0 0
  %582 = vmatpush1.bf16.msra.mxu0 %v564
  %583 = vmatprep.subr.bf16.mxu0 0
  %584 = vmatpush1.bf16.msra.mxu0 0
  %585 = vmatprep.subr.bf16.mxu0 0
  %586 = vmatpush1.bf16.msra.mxu0 0
  %587 = vmatprep.subr.bf16.mxu0 0
  %588 = vmatpush1.bf16.msra.mxu0 0
  %589 = vmatprep.subr.bf16.mxu0 0
  %590 = vmatpush1.bf16.msra.mxu0 0
  %591 = vmatprep.subr.bf16.mxu0 0
  %592 = vmatpush1.bf16.msra.mxu0 0
  %593 = vmatprep.subr.bf16.mxu0 0
  %594 = vmatpush1.bf16.msra.mxu0 0
  %595 = vmatprep.subr.bf16.mxu0 0
  %596 = vmatpush1.bf16.msra.mxu0 0
  %597 = vmatprep.subr.bf16.mxu0 0
  %598 = vmatpush1.bf16.msra.mxu0 0
  %599 = vmatprep.subr.bf16.mxu0 0
  %600 = vmatpush1.bf16.msra.mxu0 0
  %601 = vmatprep.subr.bf16.mxu0 0
  %602 = vmatpush1.bf16.msra.mxu0 0
  %603 = vmatprep.subr.bf16.mxu0 0
  %604 = vmatpush1.bf16.msra.mxu0 0
  %605 = vmatprep.subr.bf16.mxu0 0
  %606 = vmatpush1.bf16.msra.mxu0 0
  %607 = vmatprep.subr.bf16.mxu0 0
  %608 = vmatpush1.bf16.msra.mxu0 0
  %609 = vmatprep.subr.bf16.mxu0 0
  %610 = vmatpush1.bf16.msra.mxu0 0
  %611 = vmatprep.mubr.bf16.mxu0 0
  %612 = vmatmul.mubr.bf16.gmra.mrb[0].mxu0 %v568
  %v613 = vpop.f32.mrb[0].mxu0
  %v614 = vadd.f32 %v553, %v613
  %v615 = vpop.f32.mrb[0].mxu0
  %v616 = vpop.f32.mrb[0].mxu0
  %v617 = vadd.f32 %v553, %v616
  %v618 = vpop.f32.mrb[0].mxu0
  %619 = vmatprep.mubr.bf16.mxu0 0
  %620 = vmatmul.mubr.bf16.gmra.mrb[0].mxu0 %v571
  %v621 = vpop.f32.mrb[0].mxu0
  %v622 = vadd.f32 %v553, %v621
  %v623 = vpop.f32.mrb[0].mxu0
  %v624 = vpop.f32.mrb[0].mxu0
  %v625 = vadd.f32 %v553, %v624
  %v626 = vpop.f32.mrb[0].mxu0
  %627 = vmatprep.mubr.bf16.mxu0 0
  %628 = vmatmul.mubr.bf16.gmra.mrb[0].mxu0 %v574
  %v629 = vpop.f32.mrb[0].mxu0
  %v630 = vadd.f32 %v553, %v629
  %v631 = vpop.f32.mrb[0].mxu0
  %v632 = vpop.f32.mrb[0].mxu0
  %v633 = vadd.f32 %v553, %v632
  %v634 = vpop.f32.mrb[0].mxu0
  %635 = vmatprep.mubr.bf16.mxu0 0
  %636 = vmatmul.mubr.bf16.gmra.mrb[0].mxu0 %v577
  %v637 = vpop.f32.mrb[0].mxu0
  %v638 = vadd.f32 %v553, %v637
  %v639 = vpop.f32.mrb[0].mxu0
  %v640 = vpop.f32.mrb[0].mxu0
  %v641 = vadd.f32 %v553, %v640
  %v642 = vpop.f32.mrb[0].mxu0
  %643 = vdwg.mxu0
  %v644 = vsel %vm77, %v614, 0.0
  %645 = vadd.xlane.f32.xlu0 %v644
  %v646 = vpop.xlane.xlu0 %645
  %v647 = vsel %vm77, %v617, 0.0
  %648 = vadd.xlane.f32.xlu0 %v647
  %v649 = vpop.xlane.xlu0 %648
  %v650 = vsel %vm77, %v622, 0.0
  %651 = vadd.xlane.f32.xlu0 %v650
  %v652 = vpop.xlane.xlu0 %651
  %v653 = vsel %vm77, %v625, 0.0
  %654 = vadd.xlane.f32.xlu0 %v653
  %v655 = vpop.xlane.xlu0 %654
  %v656 = vsel %vm77, %v630, 0.0
  %657 = vadd.xlane.f32.xlu0 %v656
  %v658 = vpop.xlane.xlu0 %657
  %v659 = vsel %vm77, %v633, 0.0
  %660 = vadd.xlane.f32.xlu0 %v659
  %v661 = vpop.xlane.xlu0 %660
  %v662 = vsel %vm77, %v638, 0.0
  %663 = vadd.xlane.f32.xlu0 %v662
  %v664 = vpop.xlane.xlu0 %663
  %v665 = vsel %vm77, %v641, 0.0
  %666 = vadd.xlane.f32.xlu0 %v665
  %v667 = vpop.xlane.xlu0 %666
  %v668 = vmul.f32 %v646, %v301
  %v669 = vmul.f32 %v649, %v301
  %v670 = vmul.f32 %v652, %v301
  %v671 = vmul.f32 %v655, %v301
  %v672 = vmul.f32 %v658, %v301
  %v673 = vmul.f32 %v661, %v301
  %v674 = vmul.f32 %v664, %v301
  %v675 = vmul.f32 %v667, %v301
  %v676 = vsub.f32 %v614, %v668
  %v677 = vsub.f32 %v617, %v669
  %v678 = vsub.f32 %v622, %v670
  %v679 = vsub.f32 %v625, %v671
  %v680 = vsub.f32 %v630, %v672
  %v681 = vsub.f32 %v633, %v673
  %v682 = vsub.f32 %v638, %v674
  %v683 = vsub.f32 %v641, %v675
  %v684 = vmul.f32 %v676, %v676
  %v685 = vmul.f32 %v677, %v677
  %v686 = vmul.f32 %v678, %v678
  %v687 = vmul.f32 %v679, %v679
  %v688 = vmul.f32 %v680, %v680
  %v689 = vmul.f32 %v681, %v681
  %v690 = vmul.f32 %v682, %v682
  %v691 = vmul.f32 %v683, %v683
  %v692 = vsel %vm77, %v684, 0.0
  %693 = vadd.xlane.f32.xlu0 %v692
  %v694 = vpop.xlane.xlu0 %693
  %v695 = vsel %vm77, %v685, 0.0
  %696 = vadd.xlane.f32.xlu0 %v695
  %v697 = vpop.xlane.xlu0 %696
  %v698 = vsel %vm77, %v686, 0.0
  %699 = vadd.xlane.f32.xlu0 %v698
  %v700 = vpop.xlane.xlu0 %699
  %v701 = vsel %vm77, %v687, 0.0
  %702 = vadd.xlane.f32.xlu0 %v701
  %v703 = vpop.xlane.xlu0 %702
  %v704 = vsel %vm77, %v688, 0.0
  %705 = vadd.xlane.f32.xlu0 %v704
  %v706 = vpop.xlane.xlu0 %705
  %v707 = vsel %vm77, %v689, 0.0
  %708 = vadd.xlane.f32.xlu0 %v707
  %v709 = vpop.xlane.xlu0 %708
  %v710 = vsel %vm77, %v690, 0.0
  %711 = vadd.xlane.f32.xlu0 %v710
  %v712 = vpop.xlane.xlu0 %711
  %v713 = vsel %vm77, %v691, 0.0
  %714 = vadd.xlane.f32.xlu0 %v713
  %v715 = vpop.xlane.xlu0 %714
  %v716 = vmul.f32 %v694, %v301
  %v717 = vmul.f32 %v697, %v301
  %v718 = vmul.f32 %v700, %v301
  %v719 = vmul.f32 %v703, %v301
  %v720 = vmul.f32 %v706, %v301
  %v721 = vmul.f32 %v709, %v301
  %v722 = vmul.f32 %v712, %v301
  %v723 = vmul.f32 %v715, %v301
  %v724 = vadd.f32 %v716, 1e-05
  %v725 = vadd.f32 %v717, 1e-05
  %v726 = vadd.f32 %v718, 1e-05
  %v727 = vadd.f32 %v719, 1e-05
  %v728 = vadd.f32 %v720, 1e-05
  %v729 = vadd.f32 %v721, 1e-05
  %v730 = vadd.f32 %v722, 1e-05
  %v731 = vadd.f32 %v723, 1e-05
  %v732 = vrsqrt.pop %v724
  %v733 = vrsqrt.pop %v725
  %v734 = vrsqrt.pop %v726
  %v735 = vrsqrt.pop %v727
  %v736 = vrsqrt.pop %v728
  %v737 = vrsqrt.pop %v729
  %v738 = vrsqrt.pop %v730
  %v739 = vrsqrt.pop %v731
  %v740 = vmul.f32 %v676, %v732
  %v741 = vmul.f32 %v677, %v733
  %v742 = vmul.f32 %v678, %v734
  %v743 = vmul.f32 %v679, %v735
  %v744 = vmul.f32 %v680, %v736
  %v745 = vmul.f32 %v681, %v737
  %v746 = vmul.f32 %v682, %v738
  %v747 = vmul.f32 %v683, %v739
  %v749 = vlaneseq
  %v750 = vshrl.u32 %v749, 7
  %v751 = vsub.s32 0, %v750
  %v752 = vrot.slane %v388, %v751
  %v754 = vmul.f32 %v740, %v752
  %v755 = vmul.f32 %v741, %v752
  %v756 = vmul.f32 %v742, %v752
  %v757 = vmul.f32 %v743, %v752
  %v758 = vmul.f32 %v744, %v752
  %v759 = vmul.f32 %v745, %v752
  %v760 = vmul.f32 %v746, %v752
  %v761 = vmul.f32 %v747, %v752
  %v763 = vlaneseq
  %v764 = vshrl.u32 %v763, 7
  %v765 = vsub.s32 0, %v764
  %v766 = vrot.slane %v389, %v765
  %v768 = vadd.f32 %v754, %v766
  %v769 = vadd.f32 %v755, %v766
  %v770 = vadd.f32 %v756, %v766
  %v771 = vadd.f32 %v757, %v766
  %v772 = vadd.f32 %v758, %v766
  %v773 = vadd.f32 %v759, %v766
  %v774 = vadd.f32 %v760, %v766
  %v775 = vadd.f32 %v761, %v766
  %v776 = vadd.f32 %v370, %v768
  %v777 = vadd.f32 %v371, %v769
  %v778 = vadd.f32 %v372, %v770
  %v779 = vadd.f32 %v373, %v771
  %v780 = vadd.f32 %v374, %v772
  %v781 = vadd.f32 %v375, %v773
  %v782 = vadd.f32 %v376, %v774
  %v783 = vadd.f32 %v377, %v775
  %784 = vst.msk [vmem:[%s16] sm:$0xff] %vm77, %v776
  %785 = vst.msk [vmem:[%s16 + $0x8] sm:$0xff] %vm77, %v777
  %786 = vst.msk [vmem:[%s16 + $0x10] sm:$0xff] %vm77, %v778
  %787 = vst.msk [vmem:[%s16 + $0x18] sm:$0xff] %vm77, %v779
  %788 = vst.msk [vmem:[%s16 + $0x20] sm:$0xff] %vm77, %v780
  %789 = vst.msk [vmem:[%s16 + $0x28] sm:$0xff] %vm77, %v781
  %790 = vst.msk [vmem:[%s16 + $0x30] sm:$0xff] %vm77, %v782
  %791 = vst.msk [vmem:[%s16 + $0x38] sm:$0xff] %vm77, %v783
  // Predicated region
  $region62: #{denoiser_forward.8} parent=0 // pred_check
    _
  $region63: #{denoiser_forward.8} parent=0 // pred_check_branch
    %793 = sbr.rel (0) target = $region65
  $region64: #{denoiser_forward.8} parent=0 // pred_region
    _
  $region65: #{denoiser_forward.8} parent=0 // pred_fallthru
    _
  // Predicated region
  $region66: #{denoiser_forward.8} parent=0 // pred_check
    _
  $region67: #{denoiser_forward.8} parent=0 // pred_check_branch
    %795 = sbr.rel (0) target = $region69
  $region68: #{denoiser_forward.8} parent=0 // pred_region
    _
  $region69: #{denoiser_forward.8} parent=0 // pred_fallthru
    _
  // Predicated region
  $region70: #{denoiser_forward.8} parent=0 // pred_check
    _
  $region71: #{denoiser_forward.8} parent=0 // pred_check_branch
    %797 = sbr.rel (0) target = $region73
  $region72: #{denoiser_forward.8} parent=0 // pred_region
    _
  $region73: #{denoiser_forward.8} parent=0 // pred_fallthru
    _
  // Predicated region
  $region74: #{denoiser_forward.8} parent=0 // pred_check
    _
  $region75: #{denoiser_forward.8} parent=0 // pred_check_branch
    %799 = sbr.rel (0) target = $region77
  $region76: #{denoiser_forward.8} parent=0 // pred_region
    _
  $region77: #{denoiser_forward.8} parent=0 // pred_fallthru
    _

// kernel: denoiser_forward.11
$region0: #{denoiser_forward.11}
  #allocation0 [shape = 'u32[]', space=smem, size = 0x4, offset = 0x4, fixed_abs, tag = 'smem constant byte address 0x4 - core index']
  #allocation1 [shape = 'u32[144,128]{1,0:T(1,128)}', space=vmem, size = 0x12000, scoped, tag = 'internal scratch']
  %s0 = inlined_call_operand.vmem [shape: f32[64,32], index: 0, kind: input, shape index: {}]
  %s1 = inlined_call_operand.vmem [shape: f32[64,32], index: 1, kind: input, shape index: {}]
  %s2 = inlined_call_operand.vmem [shape: bf16[64,32], index: 2, kind: input, shape index: {}]
  %s3 = inlined_call_operand.vmem [shape: f32[1,32], index: 3, kind: input, shape index: {}]
  %s4 = inlined_call_operand.vmem [shape: bf16[32,32], index: 4, kind: input, shape index: {}]
  %s5 = inlined_call_operand.vmem [shape: f32[1,32], index: 5, kind: input, shape index: {}]
  %s6 = inlined_call_operand.vmem [shape: f32[1,32], index: 6, kind: input, shape index: {}]
  %s7 = inlined_call_operand.vmem [shape: f32[1,32], index: 7, kind: input, shape index: {}]
  %s8 = inlined_call_operand.vmem [shape: bf16[32,32], index: 8, kind: input, shape index: {}]
  %s9 = inlined_call_operand.vmem [shape: f32[1,32], index: 9, kind: input, shape index: {}]
  %s10 = inlined_call_operand.vmem [shape: bf16[32,3], index: 10, kind: input, shape index: {}]
  %s11 = inlined_call_operand.vmem [shape: f32[1,3], index: 11, kind: input, shape index: {}]
  %s12 = inlined_call_operand.vmem [shape: f32[64,3], index: 12, kind: output, shape index: {}]
  %s13 = sld [smem:[#allocation0]]
  $region58: #{denoiser_forward.11} parent=0
    _
  %s15 = ssub.s32 1, %s13
  %s16 = scalar_select 0, %s15, %s13
  // Predicated region
  $region2: #{denoiser_forward.11} parent=0 // pred_check
    _
  $region3: #{denoiser_forward.11} parent=0 // pred_check_branch
    %18 = sbr.rel (0) target = $region5
  $region4: #{denoiser_forward.11} parent=0 // pred_region
    _
  $region5: #{denoiser_forward.11} parent=0 // pred_fallthru
    _
  // Predicated region
  $region6: #{denoiser_forward.11} parent=0 // pred_check
    _
  $region7: #{denoiser_forward.11} parent=0 // pred_check_branch
    %20 = sbr.rel (0) target = $region9
  $region8: #{denoiser_forward.11} parent=0 // pred_region
    _
  $region9: #{denoiser_forward.11} parent=0 // pred_fallthru
    _
  // Predicated region
  $region10: #{denoiser_forward.11} parent=0 // pred_check
    _
  $region11: #{denoiser_forward.11} parent=0 // pred_check_branch
    %22 = sbr.rel (0) target = $region13
  $region12: #{denoiser_forward.11} parent=0 // pred_region
    _
  $region13: #{denoiser_forward.11} parent=0 // pred_fallthru
    _
  // Predicated region
  $region14: #{denoiser_forward.11} parent=0 // pred_check
    _
  $region15: #{denoiser_forward.11} parent=0 // pred_check_branch
    %24 = sbr.rel (0) target = $region17
  $region16: #{denoiser_forward.11} parent=0 // pred_region
    _
  $region17: #{denoiser_forward.11} parent=0 // pred_fallthru
    _
  // Predicated region
  $region18: #{denoiser_forward.11} parent=0 // pred_check
    _
  $region19: #{denoiser_forward.11} parent=0 // pred_check_branch
    %26 = sbr.rel (0) target = $region21
  $region20: #{denoiser_forward.11} parent=0 // pred_region
    _
  $region21: #{denoiser_forward.11} parent=0 // pred_fallthru
    _
  // Predicated region
  $region22: #{denoiser_forward.11} parent=0 // pred_check
    _
  $region23: #{denoiser_forward.11} parent=0 // pred_check_branch
    %28 = sbr.rel (0) target = $region25
  $region24: #{denoiser_forward.11} parent=0 // pred_region
    _
  $region25: #{denoiser_forward.11} parent=0 // pred_fallthru
    _
  // Predicated region
  $region26: #{denoiser_forward.11} parent=0 // pred_check
    _
  $region27: #{denoiser_forward.11} parent=0 // pred_check_branch
    %30 = sbr.rel (0) target = $region29
  $region28: #{denoiser_forward.11} parent=0 // pred_region
    _
  $region29: #{denoiser_forward.11} parent=0 // pred_fallthru
    _
  // Predicated region
  $region30: #{denoiser_forward.11} parent=0 // pred_check
    _
  $region31: #{denoiser_forward.11} parent=0 // pred_check_branch
    %32 = sbr.rel (0) target = $region33
  $region32: #{denoiser_forward.11} parent=0 // pred_region
    _
  $region33: #{denoiser_forward.11} parent=0 // pred_fallthru
    _
  // Predicated region
  $region34: #{denoiser_forward.11} parent=0 // pred_check
    _
  $region35: #{denoiser_forward.11} parent=0 // pred_check_branch
    %34 = sbr.rel (0) target = $region37
  $region36: #{denoiser_forward.11} parent=0 // pred_region
    _
  $region37: #{denoiser_forward.11} parent=0 // pred_fallthru
    _
  // Predicated region
  $region38: #{denoiser_forward.11} parent=0 // pred_check
    _
  $region39: #{denoiser_forward.11} parent=0 // pred_check_branch
    %36 = sbr.rel (0) target = $region41
  $region40: #{denoiser_forward.11} parent=0 // pred_region
    _
  $region41: #{denoiser_forward.11} parent=0 // pred_fallthru
    _
  // Predicated region
  $region42: #{denoiser_forward.11} parent=0 // pred_check
    _
  $region43: #{denoiser_forward.11} parent=0 // pred_check_branch
    %38 = sbr.rel (0) target = $region45
  $region44: #{denoiser_forward.11} parent=0 // pred_region
    _
  $region45: #{denoiser_forward.11} parent=0 // pred_fallthru
    _
  // Predicated region
  $region46: #{denoiser_forward.11} parent=0 // pred_check
    _
  $region47: #{denoiser_forward.11} parent=0 // pred_check_branch
    %40 = sbr.rel (0) target = $region49
  $region48: #{denoiser_forward.11} parent=0 // pred_region
    _
  $region49: #{denoiser_forward.11} parent=0 // pred_fallthru
    _
  %v42 = vld [vmem:[%s0] sm:$0xff]
  %v43 = vld [vmem:[%s0 + $0x8] sm:$0xff]
  %v44 = vld [vmem:[%s0 + $0x10] sm:$0xff]
  %v45 = vld [vmem:[%s0 + $0x18] sm:$0xff]
  %v46 = vld [vmem:[%s0 + $0x20] sm:$0xff]
  %v47 = vld [vmem:[%s0 + $0x28] sm:$0xff]
  %v48 = vld [vmem:[%s0 + $0x30] sm:$0xff]
  %v49 = vld [vmem:[%s0 + $0x38] sm:$0xff]
  %v50 = vld [vmem:[%s1] sm:$0xff]
  %v51 = vld [vmem:[%s1 + $0x8] sm:$0xff]
  %v52 = vld [vmem:[%s1 + $0x10] sm:$0xff]
  %v53 = vld [vmem:[%s1 + $0x18] sm:$0xff]
  %v54 = vld [vmem:[%s1 + $0x20] sm:$0xff]
  %v55 = vld [vmem:[%s1 + $0x28] sm:$0xff]
  %v56 = vld [vmem:[%s1 + $0x30] sm:$0xff]
  %v57 = vld [vmem:[%s1 + $0x38] sm:$0xff]
  %66 = vrot.lane.b32.xlu0 %v50, 32
  %v67 = vpop.permute.xlu0 %66
  %68 = vrot.lane.b32.xlu0 %v51, 32
  %v69 = vpop.permute.xlu0 %68
  %70 = vrot.lane.b32.xlu0 %v52, 32
  %v71 = vpop.permute.xlu0 %70
  %72 = vrot.lane.b32.xlu0 %v53, 32
  %v73 = vpop.permute.xlu0 %72
  %74 = vrot.lane.b32.xlu0 %v54, 32
  %v75 = vpop.permute.xlu0 %74
  %76 = vrot.lane.b32.xlu0 %v55, 32
  %v77 = vpop.permute.xlu0 %76
  %78 = vrot.lane.b32.xlu0 %v56, 32
  %v79 = vpop.permute.xlu0 %78
  %80 = vrot.lane.b32.xlu0 %v57, 32
  %v81 = vpop.permute.xlu0 %80
  %vm90 = vcmask 261120
  %v91 = vsel %vm90, %v42, %v67
  %v92 = vsel %vm90, %v43, %v69
  %v93 = vsel %vm90, %v44, %v71
  %v94 = vsel %vm90, %v45, %v73
  %v95 = vsel %vm90, %v46, %v75
  %v96 = vsel %vm90, %v47, %v77
  %v97 = vsel %vm90, %v48, %v79
  %v98 = vsel %vm90, %v49, %v81
  %v99 = vld [vmem:[%s2] sm:$0xf]
  %v100 = vld [vmem:[%s2 + $0x4] sm:$0xf]
  %v101 = vld [vmem:[%s2 + $0x8] sm:$0xf]
  %v102 = vld [vmem:[%s2 + $0xc] sm:$0xf]
  %v103 = vld [vmem:[%s2 + $0x10] sm:$0xf]
  %v104 = vld [vmem:[%s2 + $0x14] sm:$0xf]
  %v105 = vld [vmem:[%s2 + $0x18] sm:$0xf]
  %v106 = vld [vmem:[%s2 + $0x1c] sm:$0xf]
  %v107 = vld [vmem:[%s3] sm:$0x1]
  %v108 = vld [vmem:[%s4] sm:$0xf]
  %v109 = vld [vmem:[%s4 + $0x4] sm:$0xf]
  %v110 = vld [vmem:[%s4 + $0x8] sm:$0xf]
  %v111 = vld [vmem:[%s4 + $0xc] sm:$0xf]
  %v112 = vld [vmem:[%s5] sm:$0x1]
  %v113 = vld [vmem:[%s6] sm:$0x1]
  %v114 = vld [vmem:[%s7] sm:$0x1]
  %v115 = vpack.c.bf16 %v92, %v91
  %v116 = vpack.c.bf16 %v94, %v93
  %v117 = vpack.c.bf16 %v96, %v95
  %v118 = vpack.c.bf16 %v98, %v97
  %v120 = vlaneseq
  %v121 = vshrl.u32 %v120, 7
  %v122 = vsub.s32 0, %v121
  %v123 = vrot.slane %v107, %v122
  %v133 = vunpack.c.l.b16 %v99
  %v134 = vunpack.c.l.b16 %v100
  %v135 = vunpack.c.l.b16 %v101
  %v136 = vunpack.c.l.b16 %v102
  %v137 = vunpack.c.l.b16 %v103
  %v138 = vunpack.c.l.b16 %v104
  %v139 = vunpack.c.l.b16 %v105
  %v140 = vunpack.c.l.b16 %v106
  %v141 = vpack.c.b16 %v134, %v133
  %v142 = vpack.c.b16 %v136, %v135
  %v143 = vpack.c.b16 %v138, %v137
  %v144 = vpack.c.b16 %v140, %v139
  %vm149 = vcmask 523264
  %v151 = vsel %vm149, %v115, 0
  %v154 = vsel %vm149, %v116, 0
  %v157 = vsel %vm149, %v117, 0
  %v160 = vsel %vm149, %v118, 0
  %162 = vmatprep.subr.bf16.mxu0 0
  %163 = vmatpush1.bf16.msra.mxu0 %v141
  %164 = vmatprep.subr.bf16.mxu0 0
  %165 = vmatpush1.bf16.msra.mxu0 %v142
  %166 = vmatprep.subr.bf16.mxu0 0
  %167 = vmatpush1.bf16.msra.mxu0 %v143
  %168 = vmatprep.subr.bf16.mxu0 0
  %169 = vmatpush1.bf16.msra.mxu0 %v144
  %170 = vmatprep.subr.bf16.mxu0 0
  %171 = vmatpush1.bf16.msra.mxu0 0
  %172 = vmatprep.subr.bf16.mxu0 0
  %173 = vmatpush1.bf16.msra.mxu0 0
  %174 = vmatprep.subr.bf16.mxu0 0
  %175 = vmatpush1.bf16.msra.mxu0 0
  %176 = vmatprep.subr.bf16.mxu0 0
  %177 = vmatpush1.bf16.msra.mxu0 0
  %178 = vmatprep.subr.bf16.mxu0 0
  %179 = vmatpush1.bf16.msra.mxu0 0
  %180 = vmatprep.subr.bf16.mxu0 0
  %181 = vmatpush1.bf16.msra.mxu0 0
  %182 = vmatprep.subr.bf16.mxu0 0
  %183 = vmatpush1.bf16.msra.mxu0 0
  %184 = vmatprep.subr.bf16.mxu0 0
  %185 = vmatpush1.bf16.msra.mxu0 0
  %186 = vmatprep.subr.bf16.mxu0 0
  %187 = vmatpush1.bf16.msra.mxu0 0
  %188 = vmatprep.subr.bf16.mxu0 0
  %189 = vmatpush1.bf16.msra.mxu0 0
  %190 = vmatprep.subr.bf16.mxu0 0
  %191 = vmatpush1.bf16.msra.mxu0 0
  %192 = vmatprep.subr.bf16.mxu0 0
  %193 = vmatpush1.bf16.msra.mxu0 0
  %194 = vmatprep.mubr.bf16.mxu0 0
  %195 = vmatmul.mubr.bf16.gmra.mrb[0].mxu0 %v151
  %v196 = vpop.f32.mrb[0].mxu0
  %v197 = vadd.f32 %v123, %v196
  %v198 = vpop.f32.mrb[0].mxu0
  %v199 = vpop.f32.mrb[0].mxu0
  %v200 = vadd.f32 %v123, %v199
  %v201 = vpop.f32.mrb[0].mxu0
  %202 = vmatprep.mubr.bf16.mxu0 0
  %203 = vmatmul.mubr.bf16.gmra.mrb[0].mxu0 %v154
  %v204 = vpop.f32.mrb[0].mxu0
  %v205 = vadd.f32 %v123, %v204
  %v206 = vpop.f32.mrb[0].mxu0
  %v207 = vpop.f32.mrb[0].mxu0
  %v208 = vadd.f32 %v123, %v207
  %v209 = vpop.f32.mrb[0].mxu0
  %210 = vmatprep.mubr.bf16.mxu0 0
  %211 = vmatmul.mubr.bf16.gmra.mrb[0].mxu0 %v157
  %v212 = vpop.f32.mrb[0].mxu0
  %v213 = vadd.f32 %v123, %v212
  %v214 = vpop.f32.mrb[0].mxu0
  %v215 = vpop.f32.mrb[0].mxu0
  %v216 = vadd.f32 %v123, %v215
  %v217 = vpop.f32.mrb[0].mxu0
  %218 = vmatprep.mubr.bf16.mxu0 0
  %219 = vmatmul.mubr.bf16.gmra.mrb[0].mxu0 %v160
  %v220 = vpop.f32.mrb[0].mxu0
  %v221 = vadd.f32 %v123, %v220
  %v222 = vpop.f32.mrb[0].mxu0
  %v223 = vpop.f32.mrb[0].mxu0
  %v224 = vadd.f32 %v123, %v223
  %v225 = vpop.f32.mrb[0].mxu0
  %226 = vdwg.mxu0
  %v227 = vxor.u32 %v197, 2147483648
  %v228 = vxor.u32 %v200, 2147483648
  %v229 = vxor.u32 %v205, 2147483648
  %v230 = vxor.u32 %v208, 2147483648
  %v231 = vxor.u32 %v213, 2147483648
  %v232 = vxor.u32 %v216, 2147483648
  %v233 = vxor.u32 %v221, 2147483648
  %v234 = vxor.u32 %v224, 2147483648
  %v235 = vmul.f32 %v227, 1.442695
  %v236 = vpow.pop %v235
  %v237 = vmul.f32 %v228, 1.442695
  %v238 = vpow.pop %v237
  %v239 = vmul.f32 %v229, 1.442695
  %v240 = vpow.pop %v239
  %v241 = vmul.f32 %v230, 1.442695
  %v242 = vpow.pop %v241
  %v243 = vmul.f32 %v231, 1.442695
  %v244 = vpow.pop %v243
  %v245 = vmul.f32 %v232, 1.442695
  %v246 = vpow.pop %v245
  %v247 = vmul.f32 %v233, 1.442695
  %v248 = vpow.pop %v247
  %v249 = vmul.f32 %v234, 1.442695
  %v250 = vpow.pop %v249
  %v251 = vadd.f32 %v236, 1.0
  %v252 = vadd.f32 %v238, 1.0
  %v253 = vadd.f32 %v240, 1.0
  %v254 = vadd.f32 %v242, 1.0
  %v255 = vadd.f32 %v244, 1.0
  %v256 = vadd.f32 %v246, 1.0
  %v257 = vadd.f32 %v248, 1.0
  %v258 = vadd.f32 %v250, 1.0
  %v259 = vrcp.pop %v251
  %v260 = vmul.f32 1.0, %v259
  %v261 = vrcp.pop %v252
  %v262 = vmul.f32 1.0, %v261
  %v263 = vrcp.pop %v253
  %v264 = vmul.f32 1.0, %v263
  %v265 = vrcp.pop %v254
  %v266 = vmul.f32 1.0, %v265
  %v267 = vrcp.pop %v255
  %v268 = vmul.f32 1.0, %v267
  %v269 = vrcp.pop %v256
  %v270 = vmul.f32 1.0, %v269
  %v271 = vrcp.pop %v257
  %v272 = vmul.f32 1.0, %v271
  %v273 = vrcp.pop %v258
  %v274 = vmul.f32 1.0, %v273
  %v275 = vmul.f32 %v197, %v260
  %v276 = vmul.f32 %v200, %v262
  %v277 = vmul.f32 %v205, %v264
  %v278 = vmul.f32 %v208, %v266
  %v279 = vmul.f32 %v213, %v268
  %v280 = vmul.f32 %v216, %v270
  %v281 = vmul.f32 %v221, %v272
  %v282 = vmul.f32 %v224, %v274
  %v283 = vpack.c.bf16 %v276, %v275
  %v284 = vpack.c.bf16 %v278, %v277
  %v285 = vpack.c.bf16 %v280, %v279
  %v286 = vpack.c.bf16 %v282, %v281
  %v288 = vlaneseq
  %v289 = vshrl.u32 %v288, 7
  %v290 = vsub.s32 0, %v289
  %v291 = vrot.slane %v112, %v290
  %v297 = vunpack.c.l.b16 %v108
  %v298 = vunpack.c.l.b16 %v109
  %v299 = vunpack.c.l.b16 %v110
  %v300 = vunpack.c.l.b16 %v111
  %v301 = vpack.c.b16 %v298, %v297
  %v302 = vpack.c.b16 %v300, %v299
  %v306 = vsel %vm90, %v283, 0
  %v309 = vsel %vm90, %v284, 0
  %v312 = vsel %vm90, %v285, 0
  %v315 = vsel %vm90, %v286, 0
  %317 = vmatprep.subr.bf16.mxu0 0
  %318 = vmatpush1.bf16.msra.mxu0 %v301
  %319 = vmatprep.subr.bf16.mxu0 0
  %320 = vmatpush1.bf16.msra.mxu0 %v302
  %321 = vmatprep.subr.bf16.mxu0 0
  %322 = vmatpush1.bf16.msra.mxu0 0
  %323 = vmatprep.subr.bf16.mxu0 0
  %324 = vmatpush1.bf16.msra.mxu0 0
  %325 = vmatprep.subr.bf16.mxu0 0
  %326 = vmatpush1.bf16.msra.mxu0 0
  %327 = vmatprep.subr.bf16.mxu0 0
  %328 = vmatpush1.bf16.msra.mxu0 0
  %329 = vmatprep.subr.bf16.mxu0 0
  %330 = vmatpush1.bf16.msra.mxu0 0
  %331 = vmatprep.subr.bf16.mxu0 0
  %332 = vmatpush1.bf16.msra.mxu0 0
  %333 = vmatprep.subr.bf16.mxu0 0
  %334 = vmatpush1.bf16.msra.mxu0 0
  %335 = vmatprep.subr.bf16.mxu0 0
  %336 = vmatpush1.bf16.msra.mxu0 0
  %337 = vmatprep.subr.bf16.mxu0 0
  %338 = vmatpush1.bf16.msra.mxu0 0
  %339 = vmatprep.subr.bf16.mxu0 0
  %340 = vmatpush1.bf16.msra.mxu0 0
  %341 = vmatprep.subr.bf16.mxu0 0
  %342 = vmatpush1.bf16.msra.mxu0 0
  %343 = vmatprep.subr.bf16.mxu0 0
  %344 = vmatpush1.bf16.msra.mxu0 0
  %345 = vmatprep.subr.bf16.mxu0 0
  %346 = vmatpush1.bf16.msra.mxu0 0
  %347 = vmatprep.subr.bf16.mxu0 0
  %348 = vmatpush1.bf16.msra.mxu0 0
  %349 = vmatprep.mubr.bf16.mxu0 0
  %350 = vmatmul.mubr.bf16.gmra.mrb[0].mxu0 %v306
  %v351 = vpop.f32.mrb[0].mxu0
  %v352 = vadd.f32 %v291, %v351
  %v353 = vpop.f32.mrb[0].mxu0
  %v354 = vpop.f32.mrb[0].mxu0
  %v355 = vadd.f32 %v291, %v354
  %v356 = vpop.f32.mrb[0].mxu0
  %357 = vmatprep.mubr.bf16.mxu0 0
  %358 = vmatmul.mubr.bf16.gmra.mrb[0].mxu0 %v309
  %v359 = vpop.f32.mrb[0].mxu0
  %v360 = vadd.f32 %v291, %v359
  %v361 = vpop.f32.mrb[0].mxu0
  %v362 = vpop.f32.mrb[0].mxu0
  %v363 = vadd.f32 %v291, %v362
  %v364 = vpop.f32.mrb[0].mxu0
  %365 = vmatprep.mubr.bf16.mxu0 0
  %366 = vmatmul.mubr.bf16.gmra.mrb[0].mxu0 %v312
  %v367 = vpop.f32.mrb[0].mxu0
  %v368 = vadd.f32 %v291, %v367
  %v369 = vpop.f32.mrb[0].mxu0
  %v370 = vpop.f32.mrb[0].mxu0
  %v371 = vadd.f32 %v291, %v370
  %v372 = vpop.f32.mrb[0].mxu0
  %373 = vmatprep.mubr.bf16.mxu0 0
  %374 = vmatmul.mubr.bf16.gmra.mrb[0].mxu0 %v315
  %v375 = vpop.f32.mrb[0].mxu0
  %v376 = vadd.f32 %v291, %v375
  %v377 = vpop.f32.mrb[0].mxu0
  %v378 = vpop.f32.mrb[0].mxu0
  %v379 = vadd.f32 %v291, %v378
  %v380 = vpop.f32.mrb[0].mxu0
  %381 = vdwg.mxu0
  %v382 = vsel %vm90, %v352, 0.0
  %383 = vadd.xlane.f32.xlu0 %v382
  %v384 = vpop.xlane.xlu0 %383
  %v385 = vsel %vm90, %v355, 0.0
  %386 = vadd.xlane.f32.xlu0 %v385
  %v387 = vpop.xlane.xlu0 %386
  %v388 = vsel %vm90, %v360, 0.0
  %389 = vadd.xlane.f32.xlu0 %v388
  %v390 = vpop.xlane.xlu0 %389
  %v391 = vsel %vm90, %v363, 0.0
  %392 = vadd.xlane.f32.xlu0 %v391
  %v393 = vpop.xlane.xlu0 %392
  %v394 = vsel %vm90, %v368, 0.0
  %395 = vadd.xlane.f32.xlu0 %v394
  %v396 = vpop.xlane.xlu0 %395
  %v397 = vsel %vm90, %v371, 0.0
  %398 = vadd.xlane.f32.xlu0 %v397
  %v399 = vpop.xlane.xlu0 %398
  %v400 = vsel %vm90, %v376, 0.0
  %401 = vadd.xlane.f32.xlu0 %v400
  %v402 = vpop.xlane.xlu0 %401
  %v403 = vsel %vm90, %v379, 0.0
  %404 = vadd.xlane.f32.xlu0 %v403
  %v405 = vpop.xlane.xlu0 %404
  %v406 = vrcp.pop 32.0
  %v407 = vmul.f32 %v384, %v406
  %v408 = vmul.f32 %v387, %v406
  %v409 = vmul.f32 %v390, %v406
  %v410 = vmul.f32 %v393, %v406
  %v411 = vmul.f32 %v396, %v406
  %v412 = vmul.f32 %v399, %v406
  %v413 = vmul.f32 %v402, %v406
  %v414 = vmul.f32 %v405, %v406
  %v415 = vsub.f32 %v352, %v407
  %v416 = vsub.f32 %v355, %v408
  %v417 = vsub.f32 %v360, %v409
  %v418 = vsub.f32 %v363, %v410
  %v419 = vsub.f32 %v368, %v411
  %v420 = vsub.f32 %v371, %v412
  %v421 = vsub.f32 %v376, %v413
  %v422 = vsub.f32 %v379, %v414
  %v423 = vmul.f32 %v415, %v415
  %v424 = vmul.f32 %v416, %v416
  %v425 = vmul.f32 %v417, %v417
  %v426 = vmul.f32 %v418, %v418
  %v427 = vmul.f32 %v419, %v419
  %v428 = vmul.f32 %v420, %v420
  %v429 = vmul.f32 %v421, %v421
  %v430 = vmul.f32 %v422, %v422
  %v431 = vsel %vm90, %v423, 0.0
  %432 = vadd.xlane.f32.xlu0 %v431
  %v433 = vpop.xlane.xlu0 %432
  %v434 = vsel %vm90, %v424, 0.0
  %435 = vadd.xlane.f32.xlu0 %v434
  %v436 = vpop.xlane.xlu0 %435
  %v437 = vsel %vm90, %v425, 0.0
  %438 = vadd.xlane.f32.xlu0 %v437
  %v439 = vpop.xlane.xlu0 %438
  %v440 = vsel %vm90, %v426, 0.0
  %441 = vadd.xlane.f32.xlu0 %v440
  %v442 = vpop.xlane.xlu0 %441
  %v443 = vsel %vm90, %v427, 0.0
  %444 = vadd.xlane.f32.xlu0 %v443
  %v445 = vpop.xlane.xlu0 %444
  %v446 = vsel %vm90, %v428, 0.0
  %447 = vadd.xlane.f32.xlu0 %v446
  %v448 = vpop.xlane.xlu0 %447
  %v449 = vsel %vm90, %v429, 0.0
  %450 = vadd.xlane.f32.xlu0 %v449
  %v451 = vpop.xlane.xlu0 %450
  %v452 = vsel %vm90, %v430, 0.0
  %453 = vadd.xlane.f32.xlu0 %v452
  %v454 = vpop.xlane.xlu0 %453
  %v455 = vmul.f32 %v433, %v406
  %v456 = vmul.f32 %v436, %v406
  %v457 = vmul.f32 %v439, %v406
  %v458 = vmul.f32 %v442, %v406
  %v459 = vmul.f32 %v445, %v406
  %v460 = vmul.f32 %v448, %v406
  %v461 = vmul.f32 %v451, %v406
  %v462 = vmul.f32 %v454, %v406
  %v463 = vadd.f32 %v455, 1e-05
  %v464 = vadd.f32 %v456, 1e-05
  %v465 = vadd.f32 %v457, 1e-05
  %v466 = vadd.f32 %v458, 1e-05
  %v467 = vadd.f32 %v459, 1e-05
  %v468 = vadd.f32 %v460, 1e-05
  %v469 = vadd.f32 %v461, 1e-05
  %v470 = vadd.f32 %v462, 1e-05
  %v471 = vrsqrt.pop %v463
  %v472 = vrsqrt.pop %v464
  %v473 = vrsqrt.pop %v465
  %v474 = vrsqrt.pop %v466
  %v475 = vrsqrt.pop %v467
  %v476 = vrsqrt.pop %v468
  %v477 = vrsqrt.pop %v469
  %v478 = vrsqrt.pop %v470
  %v479 = vmul.f32 %v415, %v471
  %v480 = vmul.f32 %v416, %v472
  %v481 = vmul.f32 %v417, %v473
  %v482 = vmul.f32 %v418, %v474
  %v483 = vmul.f32 %v419, %v475
  %v484 = vmul.f32 %v420, %v476
  %v485 = vmul.f32 %v421, %v477
  %v486 = vmul.f32 %v422, %v478
  %v488 = vlaneseq
  %v489 = vshrl.u32 %v488, 7
  %v490 = vsub.s32 0, %v489
  %v491 = vrot.slane %v113, %v490
  %v493 = vmul.f32 %v479, %v491
  %v494 = vmul.f32 %v480, %v491
  %v495 = vmul.f32 %v481, %v491
  %v496 = vmul.f32 %v482, %v491
  %v497 = vmul.f32 %v483, %v491
  %v498 = vmul.f32 %v484, %v491
  %v499 = vmul.f32 %v485, %v491
  %v500 = vmul.f32 %v486, %v491
  %v502 = vlaneseq
  %v503 = vshrl.u32 %v502, 7
  %v504 = vsub.s32 0, %v503
  %v505 = vrot.slane %v114, %v504
  %v507 = vadd.f32 %v493, %v505
  %v508 = vadd.f32 %v494, %v505
  %v509 = vadd.f32 %v495, %v505
  %v510 = vadd.f32 %v496, %v505
  %v511 = vadd.f32 %v497, %v505
  %v512 = vadd.f32 %v498, %v505
  %v513 = vadd.f32 %v499, %v505
  %v514 = vadd.f32 %v500, %v505
  %v515 = vadd.f32 %v42, %v507
  %v516 = vadd.f32 %v43, %v508
  %v517 = vadd.f32 %v44, %v509
  %v518 = vadd.f32 %v45, %v510
  %v519 = vadd.f32 %v46, %v511
  %v520 = vadd.f32 %v47, %v512
  %v521 = vadd.f32 %v48, %v513
  %v522 = vadd.f32 %v49, %v514
  %v523 = vld [vmem:[%s8] sm:$0xf]
  %v524 = vld [vmem:[%s8 + $0x4] sm:$0xf]
  %v525 = vld [vmem:[%s8 + $0x8] sm:$0xf]
  %v526 = vld [vmem:[%s8 + $0xc] sm:$0xf]
  %v527 = vld [vmem:[%s9] sm:$0x1]
  %v528 = vld [vmem:[%s10] sm:$0xf]
  %v529 = vld [vmem:[%s10 + $0x4] sm:$0xf]
  %v530 = vld [vmem:[%s10 + $0x8] sm:$0xf]
  %v531 = vld [vmem:[%s10 + $0xc] sm:$0xf]
  %v532 = vld [vmem:[%s11] sm:$0x1]
  %v533 = vpack.c.bf16 %v516, %v515
  %v534 = vpack.c.bf16 %v518, %v517
  %v535 = vpack.c.bf16 %v520, %v519
  %v536 = vpack.c.bf16 %v522, %v521
  %v538 = vlaneseq
  %v539 = vshrl.u32 %v538, 7
  %v540 = vsub.s32 0, %v539
  %v541 = vrot.slane %v527, %v540
  %v547 = vunpack.c.l.b16 %v523
  %v548 = vunpack.c.l.b16 %v524
  %v549 = vunpack.c.l.b16 %v525
  %v550 = vunpack.c.l.b16 %v526
  %v551 = vpack.c.b16 %v548, %v547
  %v552 = vpack.c.b16 %v550, %v549
  %v556 = vsel %vm90, %v533, 0
  %v559 = vsel %vm90, %v534, 0
  %v562 = vsel %vm90, %v535, 0
  %v565 = vsel %vm90, %v536, 0
  %567 = vmatprep.subr.bf16.mxu0 0
  %568 = vmatpush1.bf16.msra.mxu0 %v551
  %569 = vmatprep.subr.bf16.mxu0 0
  %570 = vmatpush1.bf16.msra.mxu0 %v552
  %571 = vmatprep.subr.bf16.mxu0 0
  %572 = vmatpush1.bf16.msra.mxu0 0
  %573 = vmatprep.subr.bf16.mxu0 0
  %574 = vmatpush1.bf16.msra.mxu0 0
  %575 = vmatprep.subr.bf16.mxu0 0
  %576 = vmatpush1.bf16.msra.mxu0 0
  %577 = vmatprep.subr.bf16.mxu0 0
  %578 = vmatpush1.bf16.msra.mxu0 0
  %579 = vmatprep.subr.bf16.mxu0 0
  %580 = vmatpush1.bf16.msra.mxu0 0
  %581 = vmatprep.subr.bf16.mxu0 0
  %582 = vmatpush1.bf16.msra.mxu0 0
  %583 = vmatprep.subr.bf16.mxu0 0
  %584 = vmatpush1.bf16.msra.mxu0 0
  %585 = vmatprep.subr.bf16.mxu0 0
  %586 = vmatpush1.bf16.msra.mxu0 0
  %587 = vmatprep.subr.bf16.mxu0 0
  %588 = vmatpush1.bf16.msra.mxu0 0
  %589 = vmatprep.subr.bf16.mxu0 0
  %590 = vmatpush1.bf16.msra.mxu0 0
  %591 = vmatprep.subr.bf16.mxu0 0
  %592 = vmatpush1.bf16.msra.mxu0 0
  %593 = vmatprep.subr.bf16.mxu0 0
  %594 = vmatpush1.bf16.msra.mxu0 0
  %595 = vmatprep.subr.bf16.mxu0 0
  %596 = vmatpush1.bf16.msra.mxu0 0
  %597 = vmatprep.subr.bf16.mxu0 0
  %598 = vmatpush1.bf16.msra.mxu0 0
  %599 = vmatprep.mubr.bf16.mxu0 0
  %600 = vmatmul.mubr.bf16.gmra.mrb[0].mxu0 %v556
  %v601 = vpop.f32.mrb[0].mxu0
  %v602 = vadd.f32 %v541, %v601
  %v603 = vpop.f32.mrb[0].mxu0
  %v604 = vpop.f32.mrb[0].mxu0
  %v605 = vadd.f32 %v541, %v604
  %v606 = vpop.f32.mrb[0].mxu0
  %607 = vmatprep.mubr.bf16.mxu0 0
  %608 = vmatmul.mubr.bf16.gmra.mrb[0].mxu0 %v559
  %v609 = vpop.f32.mrb[0].mxu0
  %v610 = vadd.f32 %v541, %v609
  %v611 = vpop.f32.mrb[0].mxu0
  %v612 = vpop.f32.mrb[0].mxu0
  %v613 = vadd.f32 %v541, %v612
  %v614 = vpop.f32.mrb[0].mxu0
  %615 = vmatprep.mubr.bf16.mxu0 0
  %616 = vmatmul.mubr.bf16.gmra.mrb[0].mxu0 %v562
  %v617 = vpop.f32.mrb[0].mxu0
  %v618 = vadd.f32 %v541, %v617
  %v619 = vpop.f32.mrb[0].mxu0
  %v620 = vpop.f32.mrb[0].mxu0
  %v621 = vadd.f32 %v541, %v620
  %v622 = vpop.f32.mrb[0].mxu0
  %623 = vmatprep.mubr.bf16.mxu0 0
  %624 = vmatmul.mubr.bf16.gmra.mrb[0].mxu0 %v565
  %v625 = vpop.f32.mrb[0].mxu0
  %v626 = vadd.f32 %v541, %v625
  %v627 = vpop.f32.mrb[0].mxu0
  %v628 = vpop.f32.mrb[0].mxu0
  %v629 = vadd.f32 %v541, %v628
  %v630 = vpop.f32.mrb[0].mxu0
  %631 = vdwg.mxu0
  %v632 = vxor.u32 %v602, 2147483648
  %v633 = vxor.u32 %v605, 2147483648
  %v634 = vxor.u32 %v610, 2147483648
  %v635 = vxor.u32 %v613, 2147483648
  %v636 = vxor.u32 %v618, 2147483648
  %v637 = vxor.u32 %v621, 2147483648
  %v638 = vxor.u32 %v626, 2147483648
  %v639 = vxor.u32 %v629, 2147483648
  %v640 = vmul.f32 %v632, 1.442695
  %v641 = vpow.pop %v640
  %v642 = vmul.f32 %v633, 1.442695
  %v643 = vpow.pop %v642
  %v644 = vmul.f32 %v634, 1.442695
  %v645 = vpow.pop %v644
  %v646 = vmul.f32 %v635, 1.442695
  %v647 = vpow.pop %v646
  %v648 = vmul.f32 %v636, 1.442695
  %v649 = vpow.pop %v648
  %v650 = vmul.f32 %v637, 1.442695
  %v651 = vpow.pop %v650
  %v652 = vmul.f32 %v638, 1.442695
  %v653 = vpow.pop %v652
  %v654 = vmul.f32 %v639, 1.442695
  %v655 = vpow.pop %v654
  %v656 = vadd.f32 %v641, 1.0
  %v657 = vadd.f32 %v643, 1.0
  %v658 = vadd.f32 %v645, 1.0
  %v659 = vadd.f32 %v647, 1.0
  %v660 = vadd.f32 %v649, 1.0
  %v661 = vadd.f32 %v651, 1.0
  %v662 = vadd.f32 %v653, 1.0
  %v663 = vadd.f32 %v655, 1.0
  %v664 = vrcp.pop %v656
  %v665 = vmul.f32 1.0, %v664
  %v666 = vrcp.pop %v657
  %v667 = vmul.f32 1.0, %v666
  %v668 = vrcp.pop %v658
  %v669 = vmul.f32 1.0, %v668
  %v670 = vrcp.pop %v659
  %v671 = vmul.f32 1.0, %v670
  %v672 = vrcp.pop %v660
  %v673 = vmul.f32 1.0, %v672
  %v674 = vrcp.pop %v661
  %v675 = vmul.f32 1.0, %v674
  %v676 = vrcp.pop %v662
  %v677 = vmul.f32 1.0, %v676
  %v678 = vrcp.pop %v663
  %v679 = vmul.f32 1.0, %v678
  %v680 = vmul.f32 %v602, %v665
  %v681 = vmul.f32 %v605, %v667
  %v682 = vmul.f32 %v610, %v669
  %v683 = vmul.f32 %v613, %v671
  %v684 = vmul.f32 %v618, %v673
  %v685 = vmul.f32 %v621, %v675
  %v686 = vmul.f32 %v626, %v677
  %v687 = vmul.f32 %v629, %v679
  %v688 = vpack.c.bf16 %v681, %v680
  %v689 = vpack.c.bf16 %v683, %v682
  %v690 = vpack.c.bf16 %v685, %v684
  %v691 = vpack.c.bf16 %v687, %v686
  %v693 = vlaneseq
  %v694 = vshrl.u32 %v693, 7
  %v695 = vsub.s32 0, %v694
  %v696 = vrot.slane %v532, %v695
  %v702 = vunpack.c.l.b16 %v528
  %v703 = vunpack.c.l.b16 %v529
  %v704 = vunpack.c.l.b16 %v530
  %v705 = vunpack.c.l.b16 %v531
  %v706 = vpack.c.b16 %v703, %v702
  %v707 = vpack.c.b16 %v705, %v704
  %v711 = vsel %vm90, %v688, 0
  %v714 = vsel %vm90, %v689, 0
  %v717 = vsel %vm90, %v690, 0
  %v720 = vsel %vm90, %v691, 0
  %722 = vmatprep.subr.bf16.mxu0 0
  %723 = vmatpush1.bf16.msra.mxu0 %v706
  %724 = vmatprep.subr.bf16.mxu0 0
  %725 = vmatpush1.bf16.msra.mxu0 %v707
  %726 = vmatprep.subr.bf16.mxu0 0
  %727 = vmatpush1.bf16.msra.mxu0 0
  %728 = vmatprep.subr.bf16.mxu0 0
  %729 = vmatpush1.bf16.msra.mxu0 0
  %730 = vmatprep.subr.bf16.mxu0 0
  %731 = vmatpush1.bf16.msra.mxu0 0
  %732 = vmatprep.subr.bf16.mxu0 0
  %733 = vmatpush1.bf16.msra.mxu0 0
  %734 = vmatprep.subr.bf16.mxu0 0
  %735 = vmatpush1.bf16.msra.mxu0 0
  %736 = vmatprep.subr.bf16.mxu0 0
  %737 = vmatpush1.bf16.msra.mxu0 0
  %738 = vmatprep.subr.bf16.mxu0 0
  %739 = vmatpush1.bf16.msra.mxu0 0
  %740 = vmatprep.subr.bf16.mxu0 0
  %741 = vmatpush1.bf16.msra.mxu0 0
  %742 = vmatprep.subr.bf16.mxu0 0
  %743 = vmatpush1.bf16.msra.mxu0 0
  %744 = vmatprep.subr.bf16.mxu0 0
  %745 = vmatpush1.bf16.msra.mxu0 0
  %746 = vmatprep.subr.bf16.mxu0 0
  %747 = vmatpush1.bf16.msra.mxu0 0
  %748 = vmatprep.subr.bf16.mxu0 0
  %749 = vmatpush1.bf16.msra.mxu0 0
  %750 = vmatprep.subr.bf16.mxu0 0
  %751 = vmatpush1.bf16.msra.mxu0 0
  %752 = vmatprep.subr.bf16.mxu0 0
  %753 = vmatpush1.bf16.msra.mxu0 0
  %754 = vmatprep.mubr.bf16.mxu0 0
  %755 = vmatmul.mubr.bf16.gmra.mrb[0].mxu0 %v711
  %v756 = vpop.f32.mrb[0].mxu0
  %v757 = vadd.f32 %v696, %v756
  %v758 = vpop.f32.mrb[0].mxu0
  %v759 = vpop.f32.mrb[0].mxu0
  %v760 = vadd.f32 %v696, %v759
  %v761 = vpop.f32.mrb[0].mxu0
  %762 = vmatprep.mubr.bf16.mxu0 0
  %763 = vmatmul.mubr.bf16.gmra.mrb[0].mxu0 %v714
  %v764 = vpop.f32.mrb[0].mxu0
  %v765 = vadd.f32 %v696, %v764
  %v766 = vpop.f32.mrb[0].mxu0
  %v767 = vpop.f32.mrb[0].mxu0
  %v768 = vadd.f32 %v696, %v767
  %v769 = vpop.f32.mrb[0].mxu0
  %770 = vmatprep.mubr.bf16.mxu0 0
  %771 = vmatmul.mubr.bf16.gmra.mrb[0].mxu0 %v717
  %v772 = vpop.f32.mrb[0].mxu0
  %v773 = vadd.f32 %v696, %v772
  %v774 = vpop.f32.mrb[0].mxu0
  %v775 = vpop.f32.mrb[0].mxu0
  %v776 = vadd.f32 %v696, %v775
  %v777 = vpop.f32.mrb[0].mxu0
  %778 = vmatprep.mubr.bf16.mxu0 0
  %779 = vmatmul.mubr.bf16.gmra.mrb[0].mxu0 %v720
  %v780 = vpop.f32.mrb[0].mxu0
  %v781 = vadd.f32 %v696, %v780
  %v782 = vpop.f32.mrb[0].mxu0
  %v783 = vpop.f32.mrb[0].mxu0
  %v784 = vadd.f32 %v696, %v783
  %v785 = vpop.f32.mrb[0].mxu0
  %786 = vdwg.mxu0
  %vm787 = vcmask 23552
  %788 = vst.msk [vmem:[%s12] sm:$0xff] %vm787, %v757
  %789 = vst.msk [vmem:[%s12 + $0x8] sm:$0xff] %vm787, %v760
  %790 = vst.msk [vmem:[%s12 + $0x10] sm:$0xff] %vm787, %v765
  %791 = vst.msk [vmem:[%s12 + $0x18] sm:$0xff] %vm787, %v768
  %792 = vst.msk [vmem:[%s12 + $0x20] sm:$0xff] %vm787, %v773
  %793 = vst.msk [vmem:[%s12 + $0x28] sm:$0xff] %vm787, %v776
  %794 = vst.msk [vmem:[%s12 + $0x30] sm:$0xff] %vm787, %v781
  %795 = vst.msk [vmem:[%s12 + $0x38] sm:$0xff] %vm787, %v784
  // Predicated region
  $region50: #{denoiser_forward.11} parent=0 // pred_check
    _
  $region51: #{denoiser_forward.11} parent=0 // pred_check_branch
    %797 = sbr.rel (0) target = $region53
  $region52: #{denoiser_forward.11} parent=0 // pred_region
    _
  $region53: #{denoiser_forward.11} parent=0 // pred_fallthru
    _
  // Predicated region
  $region54: #{denoiser_forward.11} parent=0 // pred_check
    _
  $region55: #{denoiser_forward.11} parent=0 // pred_check_branch
    %799 = sbr.rel (0) target = $region57
  $region56: #{denoiser_forward.11} parent=0 // pred_region
    _
  $region57: #{denoiser_forward.11} parent=0 // pred_fallthru
    _

// kernel: denoiser_forward.9
$region0: #{denoiser_forward.9}
  #allocation0 [shape = 'u32[]', space=smem, size = 0x4, offset = 0x4, fixed_abs, tag = 'smem constant byte address 0x4 - core index']
  #allocation1 [shape = 'u32[144,128]{1,0:T(1,128)}', space=vmem, size = 0x12000, scoped, tag = 'internal scratch']
  %s0 = inlined_call_operand.vmem [shape: f32[2,16,32], index: 0, kind: input, shape index: {}]
  %s1 = inlined_call_operand.vmem [shape: f32[2,1,16], index: 1, kind: input, shape index: {}]
  %s2 = inlined_call_operand.vmem [shape: bf16[2,16,64], index: 2, kind: input, shape index: {}]
  %s3 = inlined_call_operand.vmem [shape: f32[2,1,64], index: 3, kind: input, shape index: {}]
  %s4 = inlined_call_operand.vmem [shape: bf16[2,32,96], index: 4, kind: input, shape index: {}]
  %s5 = inlined_call_operand.vmem [shape: f32[2,1,96], index: 5, kind: input, shape index: {}]
  %s6 = inlined_call_operand.vmem [shape: bf16[2,32,32], index: 6, kind: input, shape index: {}]
  %s7 = inlined_call_operand.vmem [shape: f32[2,1,32], index: 7, kind: input, shape index: {}]
  %s8 = inlined_call_operand.vmem [shape: bf16[2,16,64], index: 8, kind: input, shape index: {}]
  %s9 = inlined_call_operand.vmem [shape: f32[2,1,64], index: 9, kind: input, shape index: {}]
  %s10 = inlined_call_operand.vmem [shape: bf16[2,32,32], index: 10, kind: input, shape index: {}]
  %s11 = inlined_call_operand.vmem [shape: f32[2,1,32], index: 11, kind: input, shape index: {}]
  %s12 = inlined_call_operand.vmem [shape: bf16[2,32,32], index: 12, kind: input, shape index: {}]
  %s13 = inlined_call_operand.vmem [shape: f32[2,1,32], index: 13, kind: input, shape index: {}]
  %s14 = inlined_call_operand.vmem [shape: f32[2,16,32], index: 14, kind: output, shape index: {}]
  %s15 = sld [smem:[#allocation0]]
  $region89: #{denoiser_forward.9} parent=0
    _
  %s17 = ssub.s32 1, %s15
  %s18 = scalar_select 0, %s17, %s15
  loop: start=0, step=1, limit=4
  $region2: #{denoiser_forward.9} parent=0 // loop_pre_header
    _
  $region3: #{denoiser_forward.9} parent=0 // loop_header
    %s20 = sphi 0, %s24
    %p21 = scmp.ge.s32.totalorder %s20, 4
    %s30 = sphi 0, %s32
    %s33 = sphi 0, %s30
    %s34 = sphi 0, %s33
    %s50 = sphi 0, %s34
    %s56 = sphi 0, %s58
    %s59 = sphi 0, %s56
    %s60 = sphi 0, %s59
    %s76 = sphi 0, %s60
    %s80 = sphi 0, %s80
    %s82 = sphi 0, %s80
    %s83 = sphi 0, %s82
    %s97 = sphi 0, %s83
    %s101 = sphi 0, %s101
    %s103 = sphi 0, %s101
    %s104 = sphi 0, %s103
    %s118 = sphi 0, %s104
    %s122 = sphi 0, %s122
    %s124 = sphi 0, %s122
    %s125 = sphi 0, %s124
    %s139 = sphi 0, %s125
    %s143 = sphi 0, %s143
    %s145 = sphi 0, %s143
    %s146 = sphi 0, %s145
    %s160 = sphi 0, %s146
    %s164 = sphi 0, %s164
    %s166 = sphi 0, %s164
    %s167 = sphi 0, %s166
    %s181 = sphi 0, %s167
    %s185 = sphi 0, %s185
    %s187 = sphi 0, %s185
    %s188 = sphi 0, %s187
    %s202 = sphi 0, %s188
    %s206 = sphi 0, %s206
    %s208 = sphi 0, %s206
    %s209 = sphi 0, %s208
    %s223 = sphi 0, %s209
    %s227 = sphi 0, %s227
    %s229 = sphi 0, %s227
    %s230 = sphi 0, %s229
    %s244 = sphi 0, %s230
    %s248 = sphi 0, %s248
    %s250 = sphi 0, %s248
    %s251 = sphi 0, %s250
    %s265 = sphi 0, %s251
    %s269 = sphi 0, %s269
    %s271 = sphi 0, %s269
    %s272 = sphi 0, %s271
    %s286 = sphi 0, %s272
    %s290 = sphi 0, %s290
    %s292 = sphi 0, %s290
    %s293 = sphi 0, %s292
    %s307 = sphi 0, %s293
    %s311 = sphi 0, %s311
    %s313 = sphi 0, %s311
    %s314 = sphi 0, %s313
    %s328 = sphi 0, %s314
    %s334 = sphi 0, %s336
    %s337 = sphi 0, %s334
    %s338 = sphi 0, %s337
    %s354 = sphi 0, %s338
  $region4: #{denoiser_forward.9} parent=0 // loop_header_branch
    %23 = sbr.rel (%p21) target = $region8
  $region5: #{denoiser_forward.9} parent=0 // loop_body
    %s25 = ssub.s32 %s20, 1
    %s26 = ssub.s32 %s20, 2
    %s27 = sadd.s32 %s20, 1
    %s28 = ssub.s32 %s20, %s27
    %p29 = scmp.eq.s32.totalorder %s28, 0
    %s31 = sadd.s32 %s30, 1
    %s32 = scalar_select %p29, %s30, %s31
    %p35 = pneg %p29
    %p36 = scmp.eq.s32.totalorder %s20, 1
    %p37 = por %p35, %p36
    %p38 = scmp.ne.s32.totalorder %s30, %s33
    %p39 = scmp.eq.s32.totalorder %s20, 0
    %p40 = por %p38, %p39
    %p41 = scmp.ne.s32.totalorder %s30, %s33
    %p42 = scmp.eq.s32.totalorder %s25, 1
    %p43 = por %p41, %p42
    %p44 = scmp.ne.s32.totalorder %s33, %s34
    %p45 = scmp.eq.s32.totalorder %s25, 0
    %p46 = por %p44, %p45
    %p47 = scmp.ne.s32.totalorder %s33, %s34
    %p48 = scmp.eq.s32.totalorder %s26, 1
    %p49 = por %p47, %p48
    %p51 = scmp.ne.s32.totalorder %s34, %s50
    %p52 = scmp.eq.s32.totalorder %s26, 0
    %p53 = por %p51, %p52
    %s54 = ssub.s32 %s20, %s27
    %p55 = scmp.eq.s32.totalorder %s54, 0
    %s57 = sadd.s32 %s56, 1
    %s58 = scalar_select %p55, %s56, %s57
    %p61 = pneg %p55
    %p62 = scmp.eq.s32.totalorder %s20, 1
    %p63 = por %p61, %p62
    %p64 = scmp.ne.s32.totalorder %s56, %s59
    %p65 = scmp.eq.s32.totalorder %s20, 0
    %p66 = por %p64, %p65
    %p67 = scmp.ne.s32.totalorder %s56, %s59
    %p68 = scmp.eq.s32.totalorder %s25, 1
    %p69 = por %p67, %p68
    %p70 = scmp.ne.s32.totalorder %s59, %s60
    %p71 = scmp.eq.s32.totalorder %s25, 0
    %p72 = por %p70, %p71
    %p73 = scmp.ne.s32.totalorder %s59, %s60
    %p74 = scmp.eq.s32.totalorder %s26, 1
    %p75 = por %p73, %p74
    %p77 = scmp.ne.s32.totalorder %s60, %s76
    %p78 = scmp.eq.s32.totalorder %s26, 0
    %p79 = por %p77, %p78
    %s81 = sadd.s32 %s80, 1
    %p84 = scmp.eq.s32.totalorder %s20, 1
    %p85 = scmp.ne.s32.totalorder %s80, %s82
    %p86 = scmp.eq.s32.totalorder %s20, 0
    %p87 = por %p85, %p86
    %p88 = scmp.ne.s32.totalorder %s80, %s82
    %p89 = scmp.eq.s32.totalorder %s25, 1
    %p90 = por %p88, %p89
    %p91 = scmp.ne.s32.totalorder %s82, %s83
    %p92 = scmp.eq.s32.totalorder %s25, 0
    %p93 = por %p91, %p92
    %p94 = scmp.ne.s32.totalorder %s82, %s83
    %p95 = scmp.eq.s32.totalorder %s26, 1
    %p96 = por %p94, %p95
    %p98 = scmp.ne.s32.totalorder %s83, %s97
    %p99 = scmp.eq.s32.totalorder %s26, 0
    %p100 = por %p98, %p99
    %s102 = sadd.s32 %s101, 1
    %p105 = scmp.eq.s32.totalorder %s20, 1
    %p106 = scmp.ne.s32.totalorder %s101, %s103
    %p107 = scmp.eq.s32.totalorder %s20, 0
    %p108 = por %p106, %p107
    %p109 = scmp.ne.s32.totalorder %s101, %s103
    %p110 = scmp.eq.s32.totalorder %s25, 1
    %p111 = por %p109, %p110
    %p112 = scmp.ne.s32.totalorder %s103, %s104
    %p113 = scmp.eq.s32.totalorder %s25, 0
    %p114 = por %p112, %p113
    %p115 = scmp.ne.s32.totalorder %s103, %s104
    %p116 = scmp.eq.s32.totalorder %s26, 1
    %p117 = por %p115, %p116
    %p119 = scmp.ne.s32.totalorder %s104, %s118
    %p120 = scmp.eq.s32.totalorder %s26, 0
    %p121 = por %p119, %p120
    %s123 = sadd.s32 %s122, 1
    %p126 = scmp.eq.s32.totalorder %s20, 1
    %p127 = scmp.ne.s32.totalorder %s122, %s124
    %p128 = scmp.eq.s32.totalorder %s20, 0
    %p129 = por %p127, %p128
    %p130 = scmp.ne.s32.totalorder %s122, %s124
    %p131 = scmp.eq.s32.totalorder %s25, 1
    %p132 = por %p130, %p131
    %p133 = scmp.ne.s32.totalorder %s124, %s125
    %p134 = scmp.eq.s32.totalorder %s25, 0
    %p135 = por %p133, %p134
    %p136 = scmp.ne.s32.totalorder %s124, %s125
    %p137 = scmp.eq.s32.totalorder %s26, 1
    %p138 = por %p136, %p137
    %p140 = scmp.ne.s32.totalorder %s125, %s139
    %p141 = scmp.eq.s32.totalorder %s26, 0
    %p142 = por %p140, %p141
    %s144 = sadd.s32 %s143, 1
    %p147 = scmp.eq.s32.totalorder %s20, 1
    %p148 = scmp.ne.s32.totalorder %s143, %s145
    %p149 = scmp.eq.s32.totalorder %s20, 0
    %p150 = por %p148, %p149
    %p151 = scmp.ne.s32.totalorder %s143, %s145
    %p152 = scmp.eq.s32.totalorder %s25, 1
    %p153 = por %p151, %p152
    %p154 = scmp.ne.s32.totalorder %s145, %s146
    %p155 = scmp.eq.s32.totalorder %s25, 0
    %p156 = por %p154, %p155
    %p157 = scmp.ne.s32.totalorder %s145, %s146
    %p158 = scmp.eq.s32.totalorder %s26, 1
    %p159 = por %p157, %p158
    %p161 = scmp.ne.s32.totalorder %s146, %s160
    %p162 = scmp.eq.s32.totalorder %s26, 0
    %p163 = por %p161, %p162
    %s165 = sadd.s32 %s164, 1
    %p168 = scmp.eq.s32.totalorder %s20, 1
    %p169 = scmp.ne.s32.totalorder %s164, %s166
    %p170 = scmp.eq.s32.totalorder %s20, 0
    %p171 = por %p169, %p170
    %p172 = scmp.ne.s32.totalorder %s164, %s166
    %p173 = scmp.eq.s32.totalorder %s25, 1
    %p174 = por %p172, %p173
    %p175 = scmp.ne.s32.totalorder %s166, %s167
    %p176 = scmp.eq.s32.totalorder %s25, 0
    %p177 = por %p175, %p176
    %p178 = scmp.ne.s32.totalorder %s166, %s167
    %p179 = scmp.eq.s32.totalorder %s26, 1
    %p180 = por %p178, %p179
    %p182 = scmp.ne.s32.totalorder %s167, %s181
    %p183 = scmp.eq.s32.totalorder %s26, 0
    %p184 = por %p182, %p183
    %s186 = sadd.s32 %s185, 1
    %p189 = scmp.eq.s32.totalorder %s20, 1
    %p190 = scmp.ne.s32.totalorder %s185, %s187
    %p191 = scmp.eq.s32.totalorder %s20, 0
    %p192 = por %p190, %p191
    %p193 = scmp.ne.s32.totalorder %s185, %s187
    %p194 = scmp.eq.s32.totalorder %s25, 1
    %p195 = por %p193, %p194
    %p196 = scmp.ne.s32.totalorder %s187, %s188
    %p197 = scmp.eq.s32.totalorder %s25, 0
    %p198 = por %p196, %p197
    %p199 = scmp.ne.s32.totalorder %s187, %s188
    %p200 = scmp.eq.s32.totalorder %s26, 1
    %p201 = por %p199, %p200
    %p203 = scmp.ne.s32.totalorder %s188, %s202
    %p204 = scmp.eq.s32.totalorder %s26, 0
    %p205 = por %p203, %p204
    %s207 = sadd.s32 %s206, 1
    %p210 = scmp.eq.s32.totalorder %s20, 1
    %p211 = scmp.ne.s32.totalorder %s206, %s208
    %p212 = scmp.eq.s32.totalorder %s20, 0
    %p213 = por %p211, %p212
    %p214 = scmp.ne.s32.totalorder %s206, %s208
    %p215 = scmp.eq.s32.totalorder %s25, 1
    %p216 = por %p214, %p215
    %p217 = scmp.ne.s32.totalorder %s208, %s209
    %p218 = scmp.eq.s32.totalorder %s25, 0
    %p219 = por %p217, %p218
    %p220 = scmp.ne.s32.totalorder %s208, %s209
    %p221 = scmp.eq.s32.totalorder %s26, 1
    %p222 = por %p220, %p221
    %p224 = scmp.ne.s32.totalorder %s209, %s223
    %p225 = scmp.eq.s32.totalorder %s26, 0
    %p226 = por %p224, %p225
    %s228 = sadd.s32 %s227, 1
    %p231 = scmp.eq.s32.totalorder %s20, 1
    %p232 = scmp.ne.s32.totalorder %s227, %s229
    %p233 = scmp.eq.s32.totalorder %s20, 0
    %p234 = por %p232, %p233
    %p235 = scmp.ne.s32.totalorder %s227, %s229
    %p236 = scmp.eq.s32.totalorder %s25, 1
    %p237 = por %p235, %p236
    %p238 = scmp.ne.s32.totalorder %s229, %s230
    %p239 = scmp.eq.s32.totalorder %s25, 0
    %p240 = por %p238, %p239
    %p241 = scmp.ne.s32.totalorder %s229, %s230
    %p242 = scmp.eq.s32.totalorder %s26, 1
    %p243 = por %p241, %p242
    %p245 = scmp.ne.s32.totalorder %s230, %s244
    %p246 = scmp.eq.s32.totalorder %s26, 0
    %p247 = por %p245, %p246
    %s249 = sadd.s32 %s248, 1
    %p252 = scmp.eq.s32.totalorder %s20, 1
    %p253 = scmp.ne.s32.totalorder %s248, %s250
    %p254 = scmp.eq.s32.totalorder %s20, 0
    %p255 = por %p253, %p254
    %p256 = scmp.ne.s32.totalorder %s248, %s250
    %p257 = scmp.eq.s32.totalorder %s25, 1
    %p258 = por %p256, %p257
    %p259 = scmp.ne.s32.totalorder %s250, %s251
    %p260 = scmp.eq.s32.totalorder %s25, 0
    %p261 = por %p259, %p260
    %p262 = scmp.ne.s32.totalorder %s250, %s251
    %p263 = scmp.eq.s32.totalorder %s26, 1
    %p264 = por %p262, %p263
    %p266 = scmp.ne.s32.totalorder %s251, %s265
    %p267 = scmp.eq.s32.totalorder %s26, 0
    %p268 = por %p266, %p267
    %s270 = sadd.s32 %s269, 1
    %p273 = scmp.eq.s32.totalorder %s20, 1
    %p274 = scmp.ne.s32.totalorder %s269, %s271
    %p275 = scmp.eq.s32.totalorder %s20, 0
    %p276 = por %p274, %p275
    %p277 = scmp.ne.s32.totalorder %s269, %s271
    %p278 = scmp.eq.s32.totalorder %s25, 1
    %p279 = por %p277, %p278
    %p280 = scmp.ne.s32.totalorder %s271, %s272
    %p281 = scmp.eq.s32.totalorder %s25, 0
    %p282 = por %p280, %p281
    %p283 = scmp.ne.s32.totalorder %s271, %s272
    %p284 = scmp.eq.s32.totalorder %s26, 1
    %p285 = por %p283, %p284
    %p287 = scmp.ne.s32.totalorder %s272, %s286
    %p288 = scmp.eq.s32.totalorder %s26, 0
    %p289 = por %p287, %p288
    %s291 = sadd.s32 %s290, 1
    %p294 = scmp.eq.s32.totalorder %s20, 1
    %p295 = scmp.ne.s32.totalorder %s290, %s292
    %p296 = scmp.eq.s32.totalorder %s20, 0
    %p297 = por %p295, %p296
    %p298 = scmp.ne.s32.totalorder %s290, %s292
    %p299 = scmp.eq.s32.totalorder %s25, 1
    %p300 = por %p298, %p299
    %p301 = scmp.ne.s32.totalorder %s292, %s293
    %p302 = scmp.eq.s32.totalorder %s25, 0
    %p303 = por %p301, %p302
    %p304 = scmp.ne.s32.totalorder %s292, %s293
    %p305 = scmp.eq.s32.totalorder %s26, 1
    %p306 = por %p304, %p305
    %p308 = scmp.ne.s32.totalorder %s293, %s307
    %p309 = scmp.eq.s32.totalorder %s26, 0
    %p310 = por %p308, %p309
    %s312 = sadd.s32 %s311, 1
    %p315 = scmp.eq.s32.totalorder %s20, 1
    %p316 = scmp.ne.s32.totalorder %s311, %s313
    %p317 = scmp.eq.s32.totalorder %s20, 0
    %p318 = por %p316, %p317
    %p319 = scmp.ne.s32.totalorder %s311, %s313
    %p320 = scmp.eq.s32.totalorder %s25, 1
    %p321 = por %p319, %p320
    %p322 = scmp.ne.s32.totalorder %s313, %s314
    %p323 = scmp.eq.s32.totalorder %s25, 0
    %p324 = por %p322, %p323
    %p325 = scmp.ne.s32.totalorder %s313, %s314
    %p326 = scmp.eq.s32.totalorder %s26, 1
    %p327 = por %p325, %p326
    %p329 = scmp.ne.s32.totalorder %s314, %s328
    %p330 = scmp.eq.s32.totalorder %s26, 0
    %p331 = por %p329, %p330
    %s332 = ssub.s32 %s20, %s27
    %p333 = scmp.eq.s32.totalorder %s332, 0
    %s335 = sadd.s32 %s334, 1
    %s336 = scalar_select %p333, %s334, %s335
    %p339 = pneg %p333
    %p340 = scmp.eq.s32.totalorder %s20, 1
    %p341 = por %p339, %p340
    %p342 = scmp.ne.s32.totalorder %s334, %s337
    %p343 = scmp.eq.s32.totalorder %s20, 0
    %p344 = por %p342, %p343
    %p345 = scmp.ne.s32.totalorder %s334, %s337
    %p346 = scmp.eq.s32.totalorder %s25, 1
    %p347 = por %p345, %p346
    %p348 = scmp.ne.s32.totalorder %s337, %s338
    %p349 = scmp.eq.s32.totalorder %s25, 0
    %p350 = por %p348, %p349
    %p351 = scmp.ne.s32.totalorder %s337, %s338
    %p352 = scmp.eq.s32.totalorder %s26, 1
    %p353 = por %p351, %p352
    %p355 = scmp.ne.s32.totalorder %s338, %s354
    %p356 = scmp.eq.s32.totalorder %s26, 0
    %p357 = por %p355, %p356
    %p358 = scmp.le.s32.totalorder 1, %s20
    %p359 = scmp.lt.s32.totalorder %s20, 3
    %p360 = pnand %p358, %p359
    %p361 = pneg %p360
    // Predicated region
    $region9: #{denoiser_forward.9} parent=5 // pred_check
      _
    $region10: #{denoiser_forward.9} parent=5 // pred_check_branch
      %363 = sbr.rel (%p360) target = $region12
    $region11: #{denoiser_forward.9} parent=5 // pred_region
      %s364 = ssub.s32 %s20, 1
      // Predicated region
      $region13: #{denoiser_forward.9} parent=11 // pred_check
        %p365 = pneg %p93
      $region14: #{denoiser_forward.9} parent=11 // pred_check_branch
        %367 = sbr.rel (%p365) target = $region16
      $region15: #{denoiser_forward.9} parent=11 // pred_region
        _
      $region16: #{denoiser_forward.9} parent=11 // pred_fallthru
        _
      // Predicated region
      $region17: #{denoiser_forward.9} parent=11 // pred_check
        %p368 = pneg %p114
      $region18: #{denoiser_forward.9} parent=11 // pred_check_branch
        %370 = sbr.rel (%p368) target = $region20
      $region19: #{denoiser_forward.9} parent=11 // pred_region
        _
      $region20: #{denoiser_forward.9} parent=11 // pred_fallthru
        _
      // Predicated region
      $region21: #{denoiser_forward.9} parent=11 // pred_check
        %p371 = pneg %p135
      $region22: #{denoiser_forward.9} parent=11 // pred_check_branch
        %373 = sbr.rel (%p371) target = $region24
      $region23: #{denoiser_forward.9} parent=11 // pred_region
        _
      $region24: #{denoiser_forward.9} parent=11 // pred_fallthru
        _
      // Predicated region
      $region25: #{denoiser_forward.9} parent=11 // pred_check
        %p374 = pneg %p156
      $region26: #{denoiser_forward.9} parent=11 // pred_check_branch
        %376 = sbr.rel (%p374) target = $region28
      $region27: #{denoiser_forward.9} parent=11 // pred_region
        _
      $region28: #{denoiser_forward.9} parent=11 // pred_fallthru
        _
      // Predicated region
      $region29: #{denoiser_forward.9} parent=11 // pred_check
        %p377 = pneg %p177
      $region30: #{denoiser_forward.9} parent=11 // pred_check_branch
        %379 = sbr.rel (%p377) target = $region32
      $region31: #{denoiser_forward.9} parent=11 // pred_region
        _
      $region32: #{denoiser_forward.9} parent=11 // pred_fallthru
        _
      // Predicated region
      $region33: #{denoiser_forward.9} parent=11 // pred_check
        %p380 = pneg %p198
      $region34: #{denoiser_forward.9} parent=11 // pred_check_branch
        %382 = sbr.rel (%p380) target = $region36
      $region35: #{denoiser_forward.9} parent=11 // pred_region
        _
      $region36: #{denoiser_forward.9} parent=11 // pred_fallthru
        _
      // Predicated region
      $region37: #{denoiser_forward.9} parent=11 // pred_check
        %p383 = pneg %p219
      $region38: #{denoiser_forward.9} parent=11 // pred_check_branch
        %385 = sbr.rel (%p383) target = $region40
      $region39: #{denoiser_forward.9} parent=11 // pred_region
        _
      $region40: #{denoiser_forward.9} parent=11 // pred_fallthru
        _
      // Predicated region
      $region41: #{denoiser_forward.9} parent=11 // pred_check
        %p386 = pneg %p240
      $region42: #{denoiser_forward.9} parent=11 // pred_check_branch
        %388 = sbr.rel (%p386) target = $region44
      $region43: #{denoiser_forward.9} parent=11 // pred_region
        _
      $region44: #{denoiser_forward.9} parent=11 // pred_fallthru
        _
      // Predicated region
      $region45: #{denoiser_forward.9} parent=11 // pred_check
        %p389 = pneg %p261
      $region46: #{denoiser_forward.9} parent=11 // pred_check_branch
        %391 = sbr.rel (%p389) target = $region48
      $region47: #{denoiser_forward.9} parent=11 // pred_region
        _
      $region48: #{denoiser_forward.9} parent=11 // pred_fallthru
        _
      // Predicated region
      $region49: #{denoiser_forward.9} parent=11 // pred_check
        %p392 = pneg %p282
      $region50: #{denoiser_forward.9} parent=11 // pred_check_branch
        %394 = sbr.rel (%p392) target = $region52
      $region51: #{denoiser_forward.9} parent=11 // pred_region
        _
      $region52: #{denoiser_forward.9} parent=11 // pred_fallthru
        _
      // Predicated region
      $region53: #{denoiser_forward.9} parent=11 // pred_check
        %p395 = pneg %p303
      $region54: #{denoiser_forward.9} parent=11 // pred_check_branch
        %397 = sbr.rel (%p395) target = $region56
      $region55: #{denoiser_forward.9} parent=11 // pred_region
        _
      $region56: #{denoiser_forward.9} parent=11 // pred_fallthru
        _
      // Predicated region
      $region57: #{denoiser_forward.9} parent=11 // pred_check
        %p398 = pneg %p324
      $region58: #{denoiser_forward.9} parent=11 // pred_check_branch
        %400 = sbr.rel (%p398) target = $region60
      $region59: #{denoiser_forward.9} parent=11 // pred_region
        _
      $region60: #{denoiser_forward.9} parent=11 // pred_fallthru
        _
    $region12: #{denoiser_forward.9} parent=5 // pred_fallthru
      _
    %p401 = scmp.lt.s32.totalorder %s20, 2
    // Predicated region
    $region61: #{denoiser_forward.9} parent=5 // pred_check
      %p402 = pneg %p401
    $region62: #{denoiser_forward.9} parent=5 // pred_check_branch
      %404 = sbr.rel (%p402) target = $region64
    $region63: #{denoiser_forward.9} parent=5 // pred_region
      // Predicated region
      $region65: #{denoiser_forward.9} parent=63 // pred_check
        %p405 = pneg %p40
      $region66: #{denoiser_forward.9} parent=63 // pred_check_branch
        %407 = sbr.rel (%p405) target = $region68
      $region67: #{denoiser_forward.9} parent=63 // pred_region
        %p408 = scmp.lt.s32.totalorder %s20, 1
        %s409 = scalar_select %p408, %s20, 1
        %s410 = smul.addr %s409, 2
        %s411 = smul.addr %s410, 8
        %s412 = scalar_lea.vmem %s0, %s411
      $region68: #{denoiser_forward.9} parent=63 // pred_fallthru
        _
      // Predicated region
      $region69: #{denoiser_forward.9} parent=63 // pred_check
        %p413 = pneg %p66
      $region70: #{denoiser_forward.9} parent=63 // pred_check_branch
        %415 = sbr.rel (%p413) target = $region72
      $region71: #{denoiser_forward.9} parent=63 // pred_region
        %p416 = scmp.lt.s32.totalorder %s20, 1
        %s417 = scalar_select %p416, %s20, 1
        %s418 = scalar_lea.vmem %s1, %s417
      $region72: #{denoiser_forward.9} parent=63 // pred_fallthru
        _
    $region64: #{denoiser_forward.9} parent=5 // pred_fallthru
      _
    %p419 = scmp.le.s32.totalorder 1, %s20
    %p420 = scmp.lt.s32.totalorder %s20, 3
    %p421 = pnand %p419, %p420
    %p422 = pneg %p421
    // Predicated region
    $region73: #{denoiser_forward.9} parent=5 // pred_check
      _
    $region74: #{denoiser_forward.9} parent=5 // pred_check_branch
      %424 = sbr.rel (%p421) target = $region76
    $region75: #{denoiser_forward.9} parent=5 // pred_region
      %s425 = ssub.s32 %s20, 1
      %p426 = scmp.lt.s32.totalorder %s25, 1
      %s427 = scalar_select %p426, %s25, 1
      %s428 = smul.addr %s427, 2
      %s429 = smul.addr %s428, 8
      %s430 = scalar_lea.vmem %s0, %s429
      %p431 = pneg %p46
      %p432 = pneg %p43
      %p433 = scmp.lt.s32.totalorder %s25, 1
      %s434 = scalar_select %p433, %s25, 1
      %s435 = scalar_lea.vmem %s1, %s434
      %p436 = pneg %p72
      %p437 = pneg %p69
      %p438 = pneg %p93
      %p439 = pneg %p90
      %p440 = pneg %p114
      %p441 = pneg %p111
      %p442 = pneg %p135
      %p443 = pneg %p132
      %p444 = pneg %p156
      %p445 = pneg %p153
      %p446 = pneg %p177
      %p447 = pneg %p174
      %p448 = pneg %p198
      %p449 = pneg %p195
      %p450 = pneg %p219
      %p451 = pneg %p216
      %p452 = pneg %p240
      %p453 = pneg %p237
      %p454 = pneg %p261
      %p455 = pneg %p258
      %p456 = pneg %p282
      %p457 = pneg %p279
      %p458 = pneg %p303
      %p459 = pneg %p300
      %p460 = pneg %p324
      %p461 = pneg %p321
      %p462 = pneg %p350
      %p463 = pneg %p347
      %p464 = scmp.lt.s32.totalorder %s25, 1
      %s465 = scalar_select %p464, %s25, 1
      %s466 = smul.addr %s465, 2
      %s467 = smul.addr %s466, 8
      %s468 = scalar_lea.vmem %s14, %s467
      %p469 = scmp.lt.s32.totalorder %s25, 1
      %s470 = scalar_select %p469, %s25, 1
      %s471 = smul.addr %s470, 2
      %s472 = smul.addr %s471, 8
      %s473 = scalar_lea.vmem %s0, %s472
      %p474 = scmp.lt.s32.totalorder %s25, 1
      %s475 = scalar_select %p474, %s25, 1
      %s476 = scalar_lea.vmem %s1, %s475
      %p477 = scmp.lt.s32.totalorder %s25, 1
      %s478 = scalar_select %p477, %s25, 1
      %s479 = smul.addr %s478, 2
      %s480 = smul.addr %s479, 8
      %s481 = scalar_lea.vmem %s14, %s480
      %v483 = vld [vmem:[%s473] sm:$0xff]
      %v484 = vld [vmem:[%s473 + $0x8] sm:$0xff]
      %v485 = vld [vmem:[%s476] sm:$0x1]
      %v486 = vpack.c.bf16 %v485, %v485
      %v487 = vld [vmem:[%s2] sm:$0xf]
      %v488 = vld [vmem:[%s2 + $0x4] sm:$0xf]
      %v489 = vld [vmem:[%s3] sm:$0x1]
      %v492 = vunpack.c.l.b16 %v487
      %v493 = vunpack.c.l.b16 %v488
      %v494 = vpack.c.b16 %v493, %v492
      %vm496 = vcmask 130048
      %v498 = vsel %vm496, %v486, 0
      %500 = vmatprep.subr.bf16.mxu0 0
      %501 = vmatpush1.bf16.msra.mxu0 %v494
      %502 = vmatprep.subr.bf16.mxu0 0
      %503 = vmatpush1.bf16.msra.mxu0 0
      %504 = vmatprep.subr.bf16.mxu0 0
      %505 = vmatpush1.bf16.msra.mxu0 0
      %506 = vmatprep.subr.bf16.mxu0 0
      %507 = vmatpush1.bf16.msra.mxu0 0
      %508 = vmatprep.subr.bf16.mxu0 0
      %509 = vmatpush1.bf16.msra.mxu0 0
      %510 = vmatprep.subr.bf16.mxu0 0
      %511 = vmatpush1.bf16.msra.mxu0 0
      %512 = vmatprep.subr.bf16.mxu0 0
      %513 = vmatpush1.bf16.msra.mxu0 0
      %514 = vmatprep.subr.bf16.mxu0 0
      %515 = vmatpush1.bf16.msra.mxu0 0
      %516 = vmatprep.subr.bf16.mxu0 0
      %517 = vmatpush1.bf16.msra.mxu0 0
      %518 = vmatprep.subr.bf16.mxu0 0
      %519 = vmatpush1.bf16.msra.mxu0 0
      %520 = vmatprep.subr.bf16.mxu0 0
      %521 = vmatpush1.bf16.msra.mxu0 0
      %522 = vmatprep.subr.bf16.mxu0 0
      %523 = vmatpush1.bf16.msra.mxu0 0
      %524 = vmatprep.subr.bf16.mxu0 0
      %525 = vmatpush1.bf16.msra.mxu0 0
      %526 = vmatprep.subr.bf16.mxu0 0
      %527 = vmatpush1.bf16.msra.mxu0 0
      %528 = vmatprep.subr.bf16.mxu0 0
      %529 = vmatpush1.bf16.msra.mxu0 0
      %530 = vmatprep.subr.bf16.mxu0 0
      %531 = vmatpush1.bf16.msra.mxu0 0
      %532 = vmatprep.mubr.bf16.mxu0 0
      %533 = vmatmul.mubr.bf16.gmra.mrb[0].mxu0 %v498
      %v534 = vpop.f32.mrb[0].mxu0
      %v535 = vadd.f32 %v489, %v534
      %v536 = vpop.f32.mrb[0].mxu0
      %v537 = vpop.f32.mrb[0].mxu0
      %v538 = vpop.f32.mrb[0].mxu0
      %539 = vdwg.mxu0
      %vm540 = vcmask 261120
      %v541 = vsel %vm540, %v483, 0.0
      %542 = vadd.xlane.f32.xlu0 %v541
      %v543 = vpop.xlane.xlu0 %542
      %v544 = vsel %vm540, %v484, 0.0
      %545 = vadd.xlane.f32.xlu0 %v544
      %v546 = vpop.xlane.xlu0 %545
      %v547 = vrcp.pop 32.0
      %v548 = vmul.f32 %v543, %v547
      %v549 = vmul.f32 %v546, %v547
      %v550 = vsub.f32 %v483, %v548
      %v551 = vsub.f32 %v484, %v549
      %v552 = vmul.f32 %v550, %v550
      %v553 = vmul.f32 %v551, %v551
      %v554 = vsel %vm540, %v552, 0.0
      %555 = vadd.xlane.f32.xlu0 %v554
      %v556 = vpop.xlane.xlu0 %555
      %v557 = vsel %vm540, %v553, 0.0
      %558 = vadd.xlane.f32.xlu0 %v557
      %v559 = vpop.xlane.xlu0 %558
      %v560 = vmul.f32 %v556, %v547
      %v561 = vmul.f32 %v559, %v547
      %v562 = vadd.f32 %v560, 1e-05
      %v563 = vadd.f32 %v561, 1e-05
      %v564 = vrsqrt.pop %v562
      %v565 = vrsqrt.pop %v563
      %v566 = vmul.f32 %v550, %v564
      %v567 = vmul.f32 %v551, %v565
      %v568 = vlaneseq
      %v569 = vshrl.u32 %v568, 7
      %v570 = vsub.s32 0, %v569
      %v571 = vrot.slane %v535, %v570
      %v572 = vmul.f32 %v566, %v571
      %v573 = vmul.f32 %v567, %v571
      %575 = vrot.lane.b32.xlu0 %v571, 96
      %v576 = vpop.permute.xlu0 %575
      %v578 = vadd.f32 %v572, %v576
      %v579 = vadd.f32 %v573, %v576
      %v580 = vpack.c.bf16 %v579, %v578
      %v581 = vld [vmem:[%s4] sm:$0xf]
      %v582 = vld [vmem:[%s4 + $0x4] sm:$0xf]
      %v583 = vld [vmem:[%s4 + $0x8] sm:$0xf]
      %v584 = vld [vmem:[%s4 + $0xc] sm:$0xf]
      %v585 = vld [vmem:[%s5] sm:$0x1]
      %v587 = vlaneseq
      %v588 = vshrl.u32 %v587, 7
      %v589 = vsub.s32 0, %v588
      %v590 = vrot.slane %v585, %v589
      %v596 = vunpack.c.l.b16 %v581
      %v597 = vunpack.c.l.b16 %v582
      %v598 = vunpack.c.l.b16 %v583
      %v599 = vunpack.c.l.b16 %v584
      %v600 = vpack.c.b16 %v597, %v596
      %v601 = vpack.c.b16 %v599, %v598
      %v605 = vsel %vm540, %v580, 0
      %607 = vmatprep.subr.bf16.mxu0 0
      %608 = vmatpush1.bf16.msra.mxu0 %v600
      %609 = vmatprep.subr.bf16.mxu0 0
      %610 = vmatpush1.bf16.msra.mxu0 %v601
      %611 = vmatprep.subr.bf16.mxu0 0
      %612 = vmatpush1.bf16.msra.mxu0 0
      %613 = vmatprep.subr.bf16.mxu0 0
      %614 = vmatpush1.bf16.msra.mxu0 0
      %615 = vmatprep.subr.bf16.mxu0 0
      %616 = vmatpush1.bf16.msra.mxu0 0
      %617 = vmatprep.subr.bf16.mxu0 0
      %618 = vmatpush1.bf16.msra.mxu0 0
      %619 = vmatprep.subr.bf16.mxu0 0
      %620 = vmatpush1.bf16.msra.mxu0 0
      %621 = vmatprep.subr.bf16.mxu0 0
      %622 = vmatpush1.bf16.msra.mxu0 0
      %623 = vmatprep.subr.bf16.mxu0 0
      %624 = vmatpush1.bf16.msra.mxu0 0
      %625 = vmatprep.subr.bf16.mxu0 0
      %626 = vmatpush1.bf16.msra.mxu0 0
      %627 = vmatprep.subr.bf16.mxu0 0
      %628 = vmatpush1.bf16.msra.mxu0 0
      %629 = vmatprep.subr.bf16.mxu0 0
      %630 = vmatpush1.bf16.msra.mxu0 0
      %631 = vmatprep.subr.bf16.mxu0 0
      %632 = vmatpush1.bf16.msra.mxu0 0
      %633 = vmatprep.subr.bf16.mxu0 0
      %634 = vmatpush1.bf16.msra.mxu0 0
      %635 = vmatprep.subr.bf16.mxu0 0
      %636 = vmatpush1.bf16.msra.mxu0 0
      %637 = vmatprep.subr.bf16.mxu0 0
      %638 = vmatpush1.bf16.msra.mxu0 0
      %639 = vmatprep.mubr.bf16.mxu0 0
      %640 = vmatmul.mubr.bf16.gmra.mrb[0].mxu0 %v605
      %v641 = vpop.f32.mrb[0].mxu0
      %v642 = vadd.f32 %v590, %v641
      %v643 = vpop.f32.mrb[0].mxu0
      %v644 = vpop.f32.mrb[0].mxu0
      %v645 = vadd.f32 %v590, %v644
      %v646 = vpop.f32.mrb[0].mxu0
      %647 = vdwg.mxu0
      %v648 = vpack.c.bf16 %v645, %v642
      %650 = vrot.lane.b32.xlu0 %v648, 96
      %v651 = vpop.permute.xlu0 %650
      %vm652 = vcmask 64512
      %v654 = vsel %vm652, %v648, 0
      %v657 = vsel %vm652, %v651, 0
      %659 = vmatprep.subr.bf16.mxu0 0
      %660 = vmatpush1.bf16.xpose.msra.mxu0 %v657
      %661 = vmatprep.subr.bf16.mxu0 0
      %662 = vmatpush1.bf16.xpose.msra.mxu0 0
      %663 = vmatprep.subr.bf16.mxu0 0
      %664 = vmatpush1.bf16.xpose.msra.mxu0 0
      %665 = vmatprep.subr.bf16.mxu0 0
      %666 = vmatpush1.bf16.xpose.msra.mxu0 0
      %667 = vmatprep.subr.bf16.mxu0 0
      %668 = vmatpush1.bf16.xpose.msra.mxu0 0
      %669 = vmatprep.subr.bf16.mxu0 0
      %670 = vmatpush1.bf16.xpose.msra.mxu0 0
      %671 = vmatprep.subr.bf16.mxu0 0
      %672 = vmatpush1.bf16.xpose.msra.mxu0 0
      %673 = vmatprep.subr.bf16.mxu0 0
      %674 = vmatpush1.bf16.xpose.msra.mxu0 0
      %675 = vmatprep.subr.bf16.mxu0 0
      %676 = vmatpush1.bf16.xpose.msra.mxu0 0
      %677 = vmatprep.subr.bf16.mxu0 0
      %678 = vmatpush1.bf16.xpose.msra.mxu0 0
      %679 = vmatprep.subr.bf16.mxu0 0
      %680 = vmatpush1.bf16.xpose.msra.mxu0 0
      %681 = vmatprep.subr.bf16.mxu0 0
      %682 = vmatpush1.bf16.xpose.msra.mxu0 0
      %683 = vmatprep.subr.bf16.mxu0 0
      %684 = vmatpush1.bf16.xpose.msra.mxu0 0
      %685 = vmatprep.subr.bf16.mxu0 0
      %686 = vmatpush1.bf16.xpose.msra.mxu0 0
      %687 = vmatprep.subr.bf16.mxu0 0
      %688 = vmatpush1.bf16.xpose.msra.mxu0 0
      %689 = vmatprep.subr.bf16.mxu0 0
      %690 = vmatpush1.bf16.xpose.msra.mxu0 0
      %691 = vmatprep.mubr.bf16.mxu0 0
      %692 = vmatmul.mubr.bf16.gmra.mrb[0].mxu0 %v654
      %v693 = vpop.f32.mrb[0].mxu0
      %v694 = vadd.f32 0.0, %v693
      %v695 = vpop.f32.mrb[0].mxu0
      %v696 = vpop.f32.mrb[0].mxu0
      %v697 = vadd.f32 0.0, %v696
      %v698 = vpop.f32.mrb[0].mxu0
      %699 = vdwg.mxu0
      %v700 = vmul.f32 %v694, 0.35355338
      %v701 = vmul.f32 %v697, 0.35355338
      %v702 = vsel %vm496, %v700, -inf
      %703 = vmax.xlane.f32.xlu0 %v702
      %v704 = vpop.xlane.xlu0 %703
      %v705 = vsel %vm496, %v701, -inf
      %706 = vmax.xlane.f32.xlu0 %v705
      %v707 = vpop.xlane.xlu0 %706
      %v708 = vsub.f32 %v700, %v704
      %v709 = vsub.f32 %v701, %v707
      %v710 = vmul.f32 %v708, 1.442695
      %v711 = vpow.pop %v710
      %v712 = vmul.f32 %v709, 1.442695
      %v713 = vpow.pop %v712
      %v714 = vsel %vm496, %v711, 0.0
      %715 = vadd.xlane.f32.xlu0 %v714
      %v716 = vpop.xlane.xlu0 %715
      %v717 = vsel %vm496, %v713, 0.0
      %718 = vadd.xlane.f32.xlu0 %v717
      %v719 = vpop.xlane.xlu0 %718
      %v720 = vrcp.pop %v716
      %v721 = vrcp.pop %v719
      %v722 = vmul.f32 %v711, %v720
      %v723 = vmul.f32 %v713, %v721
      %v724 = vpack.c.bf16 %v723, %v722
      %725 = vrot.lane.b32.xlu0 %v648, 64
      %v726 = vpop.permute.xlu0 %725
      %v729 = vsel %vm496, %v724, 0
      %731 = vmatprep.subr.bf16.mxu0 0
      %732 = vmatpush1.bf16.msra.mxu0 %v726
      %733 = vmatprep.subr.bf16.mxu0 0
      %734 = vmatpush1.bf16.msra.mxu0 0
      %735 = vmatprep.subr.bf16.mxu0 0
      %736 = vmatpush1.bf16.msra.mxu0 0
      %737 = vmatprep.subr.bf16.mxu0 0
      %738 = vmatpush1.bf16.msra.mxu0 0
      %739 = vmatprep.subr.bf16.mxu0 0
      %740 = vmatpush1.bf16.msra.mxu0 0
      %741 = vmatprep.subr.bf16.mxu0 0
      %742 = vmatpush1.bf16.msra.mxu0 0
      %743 = vmatprep.subr.bf16.mxu0 0
      %744 = vmatpush1.bf16.msra.mxu0 0
      %745 = vmatprep.subr.bf16.mxu0 0
      %746 = vmatpush1.bf16.msra.mxu0 0
      %747 = vmatprep.subr.bf16.mxu0 0
      %748 = vmatpush1.bf16.msra.mxu0 0
      %749 = vmatprep.subr.bf16.mxu0 0
      %750 = vmatpush1.bf16.msra.mxu0 0
      %751 = vmatprep.subr.bf16.mxu0 0
      %752 = vmatpush1.bf16.msra.mxu0 0
      %753 = vmatprep.subr.bf16.mxu0 0
      %754 = vmatpush1.bf16.msra.mxu0 0
      %755 = vmatprep.subr.bf16.mxu0 0
      %756 = vmatpush1.bf16.msra.mxu0 0
      %757 = vmatprep.subr.bf16.mxu0 0
      %758 = vmatpush1.bf16.msra.mxu0 0
      %759 = vmatprep.subr.bf16.mxu0 0
      %760 = vmatpush1.bf16.msra.mxu0 0
      %761 = vmatprep.subr.bf16.mxu0 0
      %762 = vmatpush1.bf16.msra.mxu0 0
      %763 = vmatprep.mubr.bf16.mxu0 0
      %764 = vmatmul.mubr.bf16.gmra.mrb[0].mxu0 %v729
      %v765 = vpop.f32.mrb[0].mxu0
      %v766 = vadd.f32 0.0, %v765
      %v767 = vpop.f32.mrb[0].mxu0
      %v768 = vpop.f32.mrb[0].mxu0
      %v769 = vadd.f32 0.0, %v768
      %v770 = vpop.f32.mrb[0].mxu0
      %771 = vdwg.mxu0
      %772 = vrot.lane.b32.xlu0 %v648, 120
      %v773 = vpop.permute.xlu0 %772
      %774 = vrot.lane.b32.xlu0 %v648, 88
      %v775 = vpop.permute.xlu0 %774
      %v777 = vsel %vm652, %v773, 0
      %v780 = vsel %vm652, %v775, 0
      %782 = vmatprep.subr.bf16.mxu0 0
      %783 = vmatpush1.bf16.xpose.msra.mxu0 %v780
      %784 = vmatprep.subr.bf16.mxu0 0
      %785 = vmatpush1.bf16.xpose.msra.mxu0 0
      %786 = vmatprep.subr.bf16.mxu0 0
      %787 = vmatpush1.bf16.xpose.msra.mxu0 0
      %788 = vmatprep.subr.bf16.mxu0 0
      %789 = vmatpush1.bf16.xpose.msra.mxu0 0
      %790 = vmatprep.subr.bf16.mxu0 0
      %791 = vmatpush1.bf16.xpose.msra.mxu0 0
      %792 = vmatprep.subr.bf16.mxu0 0
      %793 = vmatpush1.bf16.xpose.msra.mxu0 0
      %794 = vmatprep.subr.bf16.mxu0 0
      %795 = vmatpush1.bf16.xpose.msra.mxu0 0
      %796 = vmatprep.subr.bf16.mxu0 0
      %797 = vmatpush1.bf16.xpose.msra.mxu0 0
      %798 = vmatprep.subr.bf16.mxu0 0
      %799 = vmatpush1.bf16.xpose.msra.mxu0 0
      %800 = vmatprep.subr.bf16.mxu0 0
      %801 = vmatpush1.bf16.xpose.msra.mxu0 0
      %802 = vmatprep.subr.bf16.mxu0 0
      %803 = vmatpush1.bf16.xpose.msra.mxu0 0
      %804 = vmatprep.subr.bf16.mxu0 0
      %805 = vmatpush1.bf16.xpose.msra.mxu0 0
      %806 = vmatprep.subr.bf16.mxu0 0
      %807 = vmatpush1.bf16.xpose.msra.mxu0 0
      %808 = vmatprep.subr.bf16.mxu0 0
      %809 = vmatpush1.bf16.xpose.msra.mxu0 0
      %810 = vmatprep.subr.bf16.mxu0 0
      %811 = vmatpush1.bf16.xpose.msra.mxu0 0
      %812 = vmatprep.subr.bf16.mxu0 0
      %813 = vmatpush1.bf16.xpose.msra.mxu0 0
      %814 = vmatprep.mubr.bf16.mxu0 0
      %815 = vmatmul.mubr.bf16.gmra.mrb[0].mxu0 %v777
      %v816 = vpop.f32.mrb[0].mxu0
      %v817 = vadd.f32 0.0, %v816
      %v818 = vpop.f32.mrb[0].mxu0
      %v819 = vpop.f32.mrb[0].mxu0
      %v820 = vadd.f32 0.0, %v819
      %v821 = vpop.f32.mrb[0].mxu0
      %822 = vdwg.mxu0
      %v823 = vmul.f32 %v817, 0.35355338
      %v824 = vmul.f32 %v820, 0.35355338
      %v825 = vsel %vm496, %v823, -inf
      %826 = vmax.xlane.f32.xlu0 %v825
      %v827 = vpop.xlane.xlu0 %826
      %v828 = vsel %vm496, %v824, -inf
      %829 = vmax.xlane.f32.xlu0 %v828
      %v830 = vpop.xlane.xlu0 %829
      %v831 = vsub.f32 %v823, %v827
      %v832 = vsub.f32 %v824, %v830
      %v833 = vmul.f32 %v831, 1.442695
      %v834 = vpow.pop %v833
      %v835 = vmul.f32 %v832, 1.442695
      %v836 = vpow.pop %v835
      %v837 = vsel %vm496, %v834, 0.0
      %838 = vadd.xlane.f32.xlu0 %v837
      %v839 = vpop.xlane.xlu0 %838
      %v840 = vsel %vm496, %v836, 0.0
      %841 = vadd.xlane.f32.xlu0 %v840
      %v842 = vpop.xlane.xlu0 %841
      %v843 = vrcp.pop %v839
      %v844 = vrcp.pop %v842
      %v845 = vmul.f32 %v834, %v843
      %v846 = vmul.f32 %v836, %v844
      %v847 = vpack.c.bf16 %v846, %v845
      %848 = vrot.lane.b32.xlu0 %v648, 56
      %v849 = vpop.permute.xlu0 %848
      %v852 = vsel %vm496, %v847, 0
      %854 = vmatprep.subr.bf16.mxu0 0
      %855 = vmatpush1.bf16.msra.mxu0 %v849
      %856 = vmatprep.subr.bf16.mxu0 0
      %857 = vmatpush1.bf16.msra.mxu0 0
      %858 = vmatprep.subr.bf16.mxu0 0
      %859 = vmatpush1.bf16.msra.mxu0 0
      %860 = vmatprep.subr.bf16.mxu0 0
      %861 = vmatpush1.bf16.msra.mxu0 0
      %862 = vmatprep.subr.bf16.mxu0 0
      %863 = vmatpush1.bf16.msra.mxu0 0
      %864 = vmatprep.subr.bf16.mxu0 0
      %865 = vmatpush1.bf16.msra.mxu0 0
      %866 = vmatprep.subr.bf16.mxu0 0
      %867 = vmatpush1.bf16.msra.mxu0 0
      %868 = vmatprep.subr.bf16.mxu0 0
      %869 = vmatpush1.bf16.msra.mxu0 0
      %870 = vmatprep.subr.bf16.mxu0 0
      %871 = vmatpush1.bf16.msra.mxu0 0
      %872 = vmatprep.subr.bf16.mxu0 0
      %873 = vmatpush1.bf16.msra.mxu0 0
      %874 = vmatprep.subr.bf16.mxu0 0
      %875 = vmatpush1.bf16.msra.mxu0 0
      %876 = vmatprep.subr.bf16.mxu0 0
      %877 = vmatpush1.bf16.msra.mxu0 0
      %878 = vmatprep.subr.bf16.mxu0 0
      %879 = vmatpush1.bf16.msra.mxu0 0
      %880 = vmatprep.subr.bf16.mxu0 0
      %881 = vmatpush1.bf16.msra.mxu0 0
      %882 = vmatprep.subr.bf16.mxu0 0
      %883 = vmatpush1.bf16.msra.mxu0 0
      %884 = vmatprep.subr.bf16.mxu0 0
      %885 = vmatpush1.bf16.msra.mxu0 0
      %886 = vmatprep.mubr.bf16.mxu0 0
      %887 = vmatmul.mubr.bf16.gmra.mrb[0].mxu0 %v852
      %v888 = vpop.f32.mrb[0].mxu0
      %v889 = vadd.f32 0.0, %v888
      %v890 = vpop.f32.mrb[0].mxu0
      %v891 = vpop.f32.mrb[0].mxu0
      %v892 = vadd.f32 0.0, %v891
      %v893 = vpop.f32.mrb[0].mxu0
      %894 = vdwg.mxu0
      %895 = vrot.lane.b32.xlu0 %v648, 112
      %v896 = vpop.permute.xlu0 %895
      %897 = vrot.lane.b32.xlu0 %v648, 80
      %v898 = vpop.permute.xlu0 %897
      %v900 = vsel %vm652, %v896, 0
      %v903 = vsel %vm652, %v898, 0
      %905 = vmatprep.subr.bf16.mxu0 0
      %906 = vmatpush1.bf16.xpose.msra.mxu0 %v903
      %907 = vmatprep.subr.bf16.mxu0 0
      %908 = vmatpush1.bf16.xpose.msra.mxu0 0
      %909 = vmatprep.subr.bf16.mxu0 0
      %910 = vmatpush1.bf16.xpose.msra.mxu0 0
      %911 = vmatprep.subr.bf16.mxu0 0
      %912 = vmatpush1.bf16.xpose.msra.mxu0 0
      %913 = vmatprep.subr.bf16.mxu0 0
      %914 = vmatpush1.bf16.xpose.msra.mxu0 0
      %915 = vmatprep.subr.bf16.mxu0 0
      %916 = vmatpush1.bf16.xpose.msra.mxu0 0
      %917 = vmatprep.subr.bf16.mxu0 0
      %918 = vmatpush1.bf16.xpose.msra.mxu0 0
      %919 = vmatprep.subr.bf16.mxu0 0
      %920 = vmatpush1.bf16.xpose.msra.mxu0 0
      %921 = vmatprep.subr.bf16.mxu0 0
      %922 = vmatpush1.bf16.xpose.msra.mxu0 0
      %923 = vmatprep.subr.bf16.mxu0 0
      %924 = vmatpush1.bf16.xpose.msra.mxu0 0
      %925 = vmatprep.subr.bf16.mxu0 0
      %926 = vmatpush1.bf16.xpose.msra.mxu0 0
      %927 = vmatprep.subr.bf16.mxu0 0
      %928 = vmatpush1.bf16.xpose.msra.mxu0 0
      %929 = vmatprep.subr.bf16.mxu0 0
      %930 = vmatpush1.bf16.xpose.msra.mxu0 0
      %931 = vmatprep.subr.bf16.mxu0 0
      %932 = vmatpush1.bf16.xpose.msra.mxu0 0
      %933 = vmatprep.subr.bf16.mxu0 0
      %934 = vmatpush1.bf16.xpose.msra.mxu0 0
      %935 = vmatprep.subr.bf16.mxu0 0
      %936 = vmatpush1.bf16.xpose.msra.mxu0 0
      %937 = vmatprep.mubr.bf16.mxu0 0
      %938 = vmatmul.mubr.bf16.gmra.mrb[0].mxu0 %v900
      %v939 = vpop.f32.mrb[0].mxu0
      %v940 = vadd.f32 0.0, %v939
      %v941 = vpop.f32.mrb[0].mxu0
      %v942 = vpop.f32.mrb[0].mxu0
      %v943 = vadd.f32 0.0, %v942
      %v944 = vpop.f32.mrb[0].mxu0
      %945 = vdwg.mxu0
      %v946 = vmul.f32 %v940, 0.35355338
      %v947 = vmul.f32 %v943, 0.35355338
      %v948 = vsel %vm496, %v946, -inf
      %949 = vmax.xlane.f32.xlu0 %v948
      %v950 = vpop.xlane.xlu0 %949
      %v951 = vsel %vm496, %v947, -inf
      %952 = vmax.xlane.f32.xlu0 %v951
      %v953 = vpop.xlane.xlu0 %952
      %v954 = vsub.f32 %v946, %v950
      %v955 = vsub.f32 %v947, %v953
      %v956 = vmul.f32 %v954, 1.442695
      %v957 = vpow.pop %v956
      %v958 = vmul.f32 %v955, 1.442695
      %v959 = vpow.pop %v958
      %v960 = vsel %vm496, %v957, 0.0
      %961 = vadd.xlane.f32.xlu0 %v960
      %v962 = vpop.xlane.xlu0 %961
      %v963 = vsel %vm496, %v959, 0.0
      %964 = vadd.xlane.f32.xlu0 %v963
      %v965 = vpop.xlane.xlu0 %964
      %v966 = vrcp.pop %v962
      %v967 = vrcp.pop %v965
      %v968 = vmul.f32 %v957, %v966
      %v969 = vmul.f32 %v959, %v967
      %v970 = vpack.c.bf16 %v969, %v968
      %971 = vrot.lane.b32.xlu0 %v648, 48
      %v972 = vpop.permute.xlu0 %971
      %v975 = vsel %vm496, %v970, 0
      %977 = vmatprep.subr.bf16.mxu0 0
      %978 = vmatpush1.bf16.msra.mxu0 %v972
      %979 = vmatprep.subr.bf16.mxu0 0
      %980 = vmatpush1.bf16.msra.mxu0 0
      %981 = vmatprep.subr.bf16.mxu0 0
      %982 = vmatpush1.bf16.msra.mxu0 0
      %983 = vmatprep.subr.bf16.mxu0 0
      %984 = vmatpush1.bf16.msra.mxu0 0
      %985 = vmatprep.subr.bf16.mxu0 0
      %986 = vmatpush1.bf16.msra.mxu0 0
      %987 = vmatprep.subr.bf16.mxu0 0
      %988 = vmatpush1.bf16.msra.mxu0 0
      %989 = vmatprep.subr.bf16.mxu0 0
      %990 = vmatpush1.bf16.msra.mxu0 0
      %991 = vmatprep.subr.bf16.mxu0 0
      %992 = vmatpush1.bf16.msra.mxu0 0
      %993 = vmatprep.subr.bf16.mxu0 0
      %994 = vmatpush1.bf16.msra.mxu0 0
      %995 = vmatprep.subr.bf16.mxu0 0
      %996 = vmatpush1.bf16.msra.mxu0 0
      %997 = vmatprep.subr.bf16.mxu0 0
      %998 = vmatpush1.bf16.msra.mxu0 0
      %999 = vmatprep.subr.bf16.mxu0 0
      %1000 = vmatpush1.bf16.msra.mxu0 0
      %1001 = vmatprep.subr.bf16.mxu0 0
      %1002 = vmatpush1.bf16.msra.mxu0 0
      %1003 = vmatprep.subr.bf16.mxu0 0
      %1004 = vmatpush1.bf16.msra.mxu0 0
      %1005 = vmatprep.subr.bf16.mxu0 0
      %1006 = vmatpush1.bf16.msra.mxu0 0
      %1007 = vmatprep.subr.bf16.mxu0 0
      %1008 = vmatpush1.bf16.msra.mxu0 0
      %1009 = vmatprep.mubr.bf16.mxu0 0
      %1010 = vmatmul.mubr.bf16.gmra.mrb[0].mxu0 %v975
      %v1011 = vpop.f32.mrb[0].mxu0
      %v1012 = vadd.f32 0.0, %v1011
      %v1013 = vpop.f32.mrb[0].mxu0
      %v1014 = vpop.f32.mrb[0].mxu0
      %v1015 = vadd.f32 0.0, %v1014
      %v1016 = vpop.f32.mrb[0].mxu0
      %1017 = vdwg.mxu0
      %1018 = vrot.lane.b32.xlu0 %v648, 104
      %v1019 = vpop.permute.xlu0 %1018
      %1020 = vrot.lane.b32.xlu0 %v648, 72
      %v1021 = vpop.permute.xlu0 %1020
      %v1023 = vsel %vm652, %v1019, 0
      %v1026 = vsel %vm652, %v1021, 0
      %1028 = vmatprep.subr.bf16.mxu0 0
      %1029 = vmatpush1.bf16.xpose.msra.mxu0 %v1026
      %1030 = vmatprep.subr.bf16.mxu0 0
      %1031 = vmatpush1.bf16.xpose.msra.mxu0 0
      %1032 = vmatprep.subr.bf16.mxu0 0
      %1033 = vmatpush1.bf16.xpose.msra.mxu0 0
      %1034 = vmatprep.subr.bf16.mxu0 0
      %1035 = vmatpush1.bf16.xpose.msra.mxu0 0
      %1036 = vmatprep.subr.bf16.mxu0 0
      %1037 = vmatpush1.bf16.xpose.msra.mxu0 0
      %1038 = vmatprep.subr.bf16.mxu0 0
      %1039 = vmatpush1.bf16.xpose.msra.mxu0 0
      %1040 = vmatprep.subr.bf16.mxu0 0
      %1041 = vmatpush1.bf16.xpose.msra.mxu0 0
      %1042 = vmatprep.subr.bf16.mxu0 0
      %1043 = vmatpush1.bf16.xpose.msra.mxu0 0
      %1044 = vmatprep.subr.bf16.mxu0 0
      %1045 = vmatpush1.bf16.xpose.msra.mxu0 0
      %1046 = vmatprep.subr.bf16.mxu0 0
      %1047 = vmatpush1.bf16.xpose.msra.mxu0 0
      %1048 = vmatprep.subr.bf16.mxu0 0
      %1049 = vmatpush1.bf16.xpose.msra.mxu0 0
      %1050 = vmatprep.subr.bf16.mxu0 0
      %1051 = vmatpush1.bf16.xpose.msra.mxu0 0
      %1052 = vmatprep.subr.bf16.mxu0 0
      %1053 = vmatpush1.bf16.xpose.msra.mxu0 0
      %1054 = vmatprep.subr.bf16.mxu0 0
      %1055 = vmatpush1.bf16.xpose.msra.mxu0 0
      %1056 = vmatprep.subr.bf16.mxu0 0
      %1057 = vmatpush1.bf16.xpose.msra.mxu0 0
      %1058 = vmatprep.subr.bf16.mxu0 0
      %1059 = vmatpush1.bf16.xpose.msra.mxu0 0
      %1060 = vmatprep.mubr.bf16.mxu0 0
      %1061 = vmatmul.mubr.bf16.gmra.mrb[0].mxu0 %v1023
      %v1062 = vpop.f32.mrb[0].mxu0
      %v1063 = vadd.f32 0.0, %v1062
      %v1064 = vpop.f32.mrb[0].mxu0
      %v1065 = vpop.f32.mrb[0].mxu0
      %v1066 = vadd.f32 0.0, %v1065
      %v1067 = vpop.f32.mrb[0].mxu0
      %1068 = vdwg.mxu0
      %v1069 = vmul.f32 %v1063, 0.35355338
      %v1070 = vmul.f32 %v1066, 0.35355338
      %v1071 = vsel %vm496, %v1069, -inf
      %1072 = vmax.xlane.f32.xlu0 %v1071
      %v1073 = vpop.xlane.xlu0 %1072
      %v1074 = vsel %vm496, %v1070, -inf
      %1075 = vmax.xlane.f32.xlu0 %v1074
      %v1076 = vpop.xlane.xlu0 %1075
      %v1077 = vsub.f32 %v1069, %v1073
      %v1078 = vsub.f32 %v1070, %v1076
      %v1079 = vmul.f32 %v1077, 1.442695
      %v1080 = vpow.pop %v1079
      %v1081 = vmul.f32 %v1078, 1.442695
      %v1082 = vpow.pop %v1081
      %v1083 = vsel %vm496, %v1080, 0.0
      %1084 = vadd.xlane.f32.xlu0 %v1083
      %v1085 = vpop.xlane.xlu0 %1084
      %v1086 = vsel %vm496, %v1082, 0.0
      %1087 = vadd.xlane.f32.xlu0 %v1086
      %v1088 = vpop.xlane.xlu0 %1087
      %v1089 = vrcp.pop %v1085
      %v1090 = vrcp.pop %v1088
      %v1091 = vmul.f32 %v1080, %v1089
      %v1092 = vmul.f32 %v1082, %v1090
      %v1093 = vpack.c.bf16 %v1092, %v1091
      %1094 = vrot.lane.b32.xlu0 %v648, 40
      %v1095 = vpop.permute.xlu0 %1094
      %v1098 = vsel %vm496, %v1093, 0
      %1100 = vmatprep.subr.bf16.mxu0 0
      %1101 = vmatpush1.bf16.msra.mxu0 %v1095
      %1102 = vmatprep.subr.bf16.mxu0 0
      %1103 = vmatpush1.bf16.msra.mxu0 0
      %1104 = vmatprep.subr.bf16.mxu0 0
      %1105 = vmatpush1.bf16.msra.mxu0 0
      %1106 = vmatprep.subr.bf16.mxu0 0
      %1107 = vmatpush1.bf16.msra.mxu0 0
      %1108 = vmatprep.subr.bf16.mxu0 0
      %1109 = vmatpush1.bf16.msra.mxu0 0
      %1110 = vmatprep.subr.bf16.mxu0 0
      %1111 = vmatpush1.bf16.msra.mxu0 0
      %1112 = vmatprep.subr.bf16.mxu0 0
      %1113 = vmatpush1.bf16.msra.mxu0 0
      %1114 = vmatprep.subr.bf16.mxu0 0
      %1115 = vmatpush1.bf16.msra.mxu0 0
      %1116 = vmatprep.subr.bf16.mxu0 0
      %1117 = vmatpush1.bf16.msra.mxu0 0
      %1118 = vmatprep.subr.bf16.mxu0 0
      %1119 = vmatpush1.bf16.msra.mxu0 0
      %1120 = vmatprep.subr.bf16.mxu0 0
      %1121 = vmatpush1.bf16.msra.mxu0 0
      %1122 = vmatprep.subr.bf16.mxu0 0
      %1123 = vmatpush1.bf16.msra.mxu0 0
      %1124 = vmatprep.subr.bf16.mxu0 0
      %1125 = vmatpush1.bf16.msra.mxu0 0
      %1126 = vmatprep.subr.bf16.mxu0 0
      %1127 = vmatpush1.bf16.msra.mxu0 0
      %1128 = vmatprep.subr.bf16.mxu0 0
      %1129 = vmatpush1.bf16.msra.mxu0 0
      %1130 = vmatprep.subr.bf16.mxu0 0
      %1131 = vmatpush1.bf16.msra.mxu0 0
      %1132 = vmatprep.mubr.bf16.mxu0 0
      %1133 = vmatmul.mubr.bf16.gmra.mrb[0].mxu0 %v1098
      %v1134 = vpop.f32.mrb[0].mxu0
      %v1135 = vadd.f32 0.0, %v1134
      %v1136 = vpop.f32.mrb[0].mxu0
      %v1137 = vpop.f32.mrb[0].mxu0
      %v1138 = vadd.f32 0.0, %v1137
      %v1139 = vpop.f32.mrb[0].mxu0
      %1140 = vdwg.mxu0
      %1143 = vrot.lane.b32.xlu0 %v889, 8
      %v1144 = vpop.permute.xlu0 %1143
      %1145 = vrot.lane.b32.xlu0 %v892, 8
      %v1146 = vpop.permute.xlu0 %1145
      %1151 = vrot.lane.b32.xlu0 %v1012, 16
      %v1152 = vpop.permute.xlu0 %1151
      %1153 = vrot.lane.b32.xlu0 %v1015, 16
      %v1154 = vpop.permute.xlu0 %1153
      %1159 = vrot.lane.b32.xlu0 %v1135, 24
      %v1160 = vpop.permute.xlu0 %1159
      %1161 = vrot.lane.b32.xlu0 %v1138, 24
      %v1162 = vpop.permute.xlu0 %1161
      %v1165 = vsel %vm652, %v766, %v1144
      %v1166 = vsel %vm652, %v769, %v1146
      %v1167 = vsel %vm496, %v1165, %v1152
      %v1168 = vsel %vm496, %v1166, %v1154
      %vm1169 = vcmask 195584
      %v1170 = vsel %vm1169, %v1167, %v1160
      %v1171 = vsel %vm1169, %v1168, %v1162
      %v1172 = vpack.c.bf16 %v1171, %v1170
      %v1173 = vld [vmem:[%s6] sm:$0xf]
      %v1174 = vld [vmem:[%s6 + $0x4] sm:$0xf]
      %v1175 = vld [vmem:[%s6 + $0x8] sm:$0xf]
      %v1176 = vld [vmem:[%s6 + $0xc] sm:$0xf]
      %v1181 = vunpack.c.l.b16 %v1173
      %v1182 = vunpack.c.l.b16 %v1174
      %v1183 = vunpack.c.l.b16 %v1175
      %v1184 = vunpack.c.l.b16 %v1176
      %v1185 = vpack.c.b16 %v1182, %v1181
      %v1186 = vpack.c.b16 %v1184, %v1183
      %v1190 = vsel %vm540, %v1172, 0
      %1192 = vmatprep.subr.bf16.mxu0 0
      %1193 = vmatpush1.bf16.msra.mxu0 %v1185
      %1194 = vmatprep.subr.bf16.mxu0 0
      %1195 = vmatpush1.bf16.msra.mxu0 %v1186
      %1196 = vmatprep.subr.bf16.mxu0 0
      %1197 = vmatpush1.bf16.msra.mxu0 0
      %1198 = vmatprep.subr.bf16.mxu0 0
      %1199 = vmatpush1.bf16.msra.mxu0 0
      %1200 = vmatprep.subr.bf16.mxu0 0
      %1201 = vmatpush1.bf16.msra.mxu0 0
      %1202 = vmatprep.subr.bf16.mxu0 0
      %1203 = vmatpush1.bf16.msra.mxu0 0
      %1204 = vmatprep.subr.bf16.mxu0 0
      %1205 = vmatpush1.bf16.msra.mxu0 0
      %1206 = vmatprep.subr.bf16.mxu0 0
      %1207 = vmatpush1.bf16.msra.mxu0 0
      %1208 = vmatprep.subr.bf16.mxu0 0
      %1209 = vmatpush1.bf16.msra.mxu0 0
      %1210 = vmatprep.subr.bf16.mxu0 0
      %1211 = vmatpush1.bf16.msra.mxu0 0
      %1212 = vmatprep.subr.bf16.mxu0 0
      %1213 = vmatpush1.bf16.msra.mxu0 0
      %1214 = vmatprep.subr.bf16.mxu0 0
      %1215 = vmatpush1.bf16.msra.mxu0 0
      %1216 = vmatprep.subr.bf16.mxu0 0
      %1217 = vmatpush1.bf16.msra.mxu0 0
      %1218 = vmatprep.subr.bf16.mxu0 0
      %1219 = vmatpush1.bf16.msra.mxu0 0
      %1220 = vmatprep.subr.bf16.mxu0 0
      %1221 = vmatpush1.bf16.msra.mxu0 0
      %1222 = vmatprep.subr.bf16.mxu0 0
      %1223 = vmatpush1.bf16.msra.mxu0 0
      %1224 = vmatprep.mubr.bf16.mxu0 0
      %1225 = vmatmul.mubr.bf16.gmra.mrb[0].mxu0 %v1190
      %v1226 = vpop.f32.mrb[0].mxu0
      %v1227 = vadd.f32 0.0, %v1226
      %v1228 = vpop.f32.mrb[0].mxu0
      %v1229 = vpop.f32.mrb[0].mxu0
      %v1230 = vadd.f32 0.0, %v1229
      %v1231 = vpop.f32.mrb[0].mxu0
      %1232 = vdwg.mxu0
      %v1233 = vadd.f32 %v483, %v1227
      %v1234 = vadd.f32 %v484, %v1230
      %v1235 = vld [vmem:[%s7] sm:$0x1]
      %v1237 = vlaneseq
      %v1238 = vshrl.u32 %v1237, 7
      %v1239 = vsub.s32 0, %v1238
      %v1240 = vrot.slane %v1235, %v1239
      %v1242 = vadd.f32 %v1233, %v1240
      %v1243 = vadd.f32 %v1234, %v1240
      %v1244 = vld [vmem:[%s8] sm:$0xf]
      %v1245 = vld [vmem:[%s8 + $0x4] sm:$0xf]
      %v1246 = vld [vmem:[%s9] sm:$0x1]
      %v1249 = vunpack.c.l.b16 %v1244
      %v1250 = vunpack.c.l.b16 %v1245
      %v1251 = vpack.c.b16 %v1250, %v1249
      %1253 = vmatprep.subr.bf16.mxu0 0
      %1254 = vmatpush1.bf16.msra.mxu0 %v1251
      %1255 = vmatprep.subr.bf16.mxu0 0
      %1256 = vmatpush1.bf16.msra.mxu0 0
      %1257 = vmatprep.subr.bf16.mxu0 0
      %1258 = vmatpush1.bf16.msra.mxu0 0
      %1259 = vmatprep.subr.bf16.mxu0 0
      %1260 = vmatpush1.bf16.msra.mxu0 0
      %1261 = vmatprep.subr.bf16.mxu0 0
      %1262 = vmatpush1.bf16.msra.mxu0 0
      %1263 = vmatprep.subr.bf16.mxu0 0
      %1264 = vmatpush1.bf16.msra.mxu0 0
      %1265 = vmatprep.subr.bf16.mxu0 0
      %1266 = vmatpush1.bf16.msra.mxu0 0
      %1267 = vmatprep.subr.bf16.mxu0 0
      %1268 = vmatpush1.bf16.msra.mxu0 0
      %1269 = vmatprep.subr.bf16.mxu0 0
      %1270 = vmatpush1.bf16.msra.mxu0 0
      %1271 = vmatprep.subr.bf16.mxu0 0
      %1272 = vmatpush1.bf16.msra.mxu0 0
      %1273 = vmatprep.subr.bf16.mxu0 0
      %1274 = vmatpush1.bf16.msra.mxu0 0
      %1275 = vmatprep.subr.bf16.mxu0 0
      %1276 = vmatpush1.bf16.msra.mxu0 0
      %1277 = vmatprep.subr.bf16.mxu0 0
      %1278 = vmatpush1.bf16.msra.mxu0 0
      %1279 = vmatprep.subr.bf16.mxu0 0
      %1280 = vmatpush1.bf16.msra.mxu0 0
      %1281 = vmatprep.subr.bf16.mxu0 0
      %1282 = vmatpush1.bf16.msra.mxu0 0
      %1283 = vmatprep.subr.bf16.mxu0 0
      %1284 = vmatpush1.bf16.msra.mxu0 0
      %1285 = vmatprep.mubr.bf16.mxu0 0
      %1286 = vmatmul.mubr.bf16.gmra.mrb[0].mxu0 %v498
      %v1287 = vpop.f32.mrb[0].mxu0
      %v1288 = vadd.f32 %v1246, %v1287
      %v1289 = vpop.f32.mrb[0].mxu0
      %v1290 = vpop.f32.mrb[0].mxu0
      %v1291 = vpop.f32.mrb[0].mxu0
      %1292 = vdwg.mxu0
      %v1293 = vsel %vm540, %v1242, 0.0
      %1294 = vadd.xlane.f32.xlu0 %v1293
      %v1295 = vpop.xlane.xlu0 %1294
      %v1296 = vsel %vm540, %v1243, 0.0
      %1297 = vadd.xlane.f32.xlu0 %v1296
      %v1298 = vpop.xlane.xlu0 %1297
      %v1299 = vmul.f32 %v1295, %v547
      %v1300 = vmul.f32 %v1298, %v547
      %v1301 = vsub.f32 %v1242, %v1299
      %v1302 = vsub.f32 %v1243, %v1300
      %v1303 = vmul.f32 %v1301, %v1301
      %v1304 = vmul.f32 %v1302, %v1302
      %v1305 = vsel %vm540, %v1303, 0.0
      %1306 = vadd.xlane.f32.xlu0 %v1305
      %v1307 = vpop.xlane.xlu0 %1306
      %v1308 = vsel %vm540, %v1304, 0.0
      %1309 = vadd.xlane.f32.xlu0 %v1308
      %v1310 = vpop.xlane.xlu0 %1309
      %v1311 = vmul.f32 %v1307, %v547
      %v1312 = vmul.f32 %v1310, %v547
      %v1313 = vadd.f32 %v1311, 1e-05
      %v1314 = vadd.f32 %v1312, 1e-05
      %v1315 = vrsqrt.pop %v1313
      %v1316 = vrsqrt.pop %v1314
      %v1317 = vmul.f32 %v1301, %v1315
      %v1318 = vmul.f32 %v1302, %v1316
      %v1319 = vlaneseq
      %v1320 = vshrl.u32 %v1319, 7
      %v1321 = vsub.s32 0, %v1320
      %v1322 = vrot.slane %v1288, %v1321
      %v1323 = vmul.f32 %v1317, %v1322
      %v1324 = vmul.f32 %v1318, %v1322
      %1326 = vrot.lane.b32.xlu0 %v1322, 96
      %v1327 = vpop.permute.xlu0 %1326
      %v1329 = vadd.f32 %v1323, %v1327
      %v1330 = vadd.f32 %v1324, %v1327
      %v1331 = vpack.c.bf16 %v1330, %v1329
      %v1332 = vld [vmem:[%s10] sm:$0xf]
      %v1333 = vld [vmem:[%s10 + $0x4] sm:$0xf]
      %v1334 = vld [vmem:[%s10 + $0x8] sm:$0xf]
      %v1335 = vld [vmem:[%s10 + $0xc] sm:$0xf]
      %v1336 = vld [vmem:[%s11] sm:$0x1]
      %v1338 = vlaneseq
      %v1339 = vshrl.u32 %v1338, 7
      %v1340 = vsub.s32 0, %v1339
      %v1341 = vrot.slane %v1336, %v1340
      %v1347 = vunpack.c.l.b16 %v1332
      %v1348 = vunpack.c.l.b16 %v1333
      %v1349 = vunpack.c.l.b16 %v1334
      %v1350 = vunpack.c.l.b16 %v1335
      %v1351 = vpack.c.b16 %v1348, %v1347
      %v1352 = vpack.c.b16 %v1350, %v1349
      %v1356 = vsel %vm540, %v1331, 0
      %1358 = vmatprep.subr.bf16.mxu0 0
      %1359 = vmatpush1.bf16.msra.mxu0 %v1351
      %1360 = vmatprep.subr.bf16.mxu0 0
      %1361 = vmatpush1.bf16.msra.mxu0 %v1352
      %1362 = vmatprep.subr.bf16.mxu0 0
      %1363 = vmatpush1.bf16.msra.mxu0 0
      %1364 = vmatprep.subr.bf16.mxu0 0
      %1365 = vmatpush1.bf16.msra.mxu0 0
      %1366 = vmatprep.subr.bf16.mxu0 0
      %1367 = vmatpush1.bf16.msra.mxu0 0
      %1368 = vmatprep.subr.bf16.mxu0 0
      %1369 = vmatpush1.bf16.msra.mxu0 0
      %1370 = vmatprep.subr.bf16.mxu0 0
      %1371 = vmatpush1.bf16.msra.mxu0 0
      %1372 = vmatprep.subr.bf16.mxu0 0
      %1373 = vmatpush1.bf16.msra.mxu0 0
      %1374 = vmatprep.subr.bf16.mxu0 0
      %1375 = vmatpush1.bf16.msra.mxu0 0
      %1376 = vmatprep.subr.bf16.mxu0 0
      %1377 = vmatpush1.bf16.msra.mxu0 0
      %1378 = vmatprep.subr.bf16.mxu0 0
      %1379 = vmatpush1.bf16.msra.mxu0 0
      %1380 = vmatprep.subr.bf16.mxu0 0
      %1381 = vmatpush1.bf16.msra.mxu0 0
      %1382 = vmatprep.subr.bf16.mxu0 0
      %1383 = vmatpush1.bf16.msra.mxu0 0
      %1384 = vmatprep.subr.bf16.mxu0 0
      %1385 = vmatpush1.bf16.msra.mxu0 0
      %1386 = vmatprep.subr.bf16.mxu0 0
      %1387 = vmatpush1.bf16.msra.mxu0 0
      %1388 = vmatprep.subr.bf16.mxu0 0
      %1389 = vmatpush1.bf16.msra.mxu0 0
      %1390 = vmatprep.mubr.bf16.mxu0 0
      %1391 = vmatmul.mubr.bf16.gmra.mrb[0].mxu0 %v1356
      %v1392 = vpop.f32.mrb[0].mxu0
      %v1393 = vadd.f32 %v1341, %v1392
      %v1394 = vpop.f32.mrb[0].mxu0
      %v1395 = vpop.f32.mrb[0].mxu0
      %v1396 = vadd.f32 %v1341, %v1395
      %v1397 = vpop.f32.mrb[0].mxu0
      %1398 = vdwg.mxu0
      %v1399 = vxor.u32 %v1393, 2147483648
      %v1400 = vxor.u32 %v1396, 2147483648
      %v1401 = vmul.f32 %v1399, 1.442695
      %v1402 = vpow.pop %v1401
      %v1403 = vmul.f32 %v1400, 1.442695
      %v1404 = vpow.pop %v1403
      %v1405 = vadd.f32 %v1402, 1.0
      %v1406 = vadd.f32 %v1404, 1.0
      %v1407 = vrcp.pop %v1405
      %v1408 = vmul.f32 1.0, %v1407
      %v1409 = vrcp.pop %v1406
      %v1410 = vmul.f32 1.0, %v1409
      %v1411 = vmul.f32 %v1393, %v1408
      %v1412 = vmul.f32 %v1396, %v1410
      %v1413 = vpack.c.bf16 %v1412, %v1411
      %v1414 = vld [vmem:[%s12] sm:$0xf]
      %v1415 = vld [vmem:[%s12 + $0x4] sm:$0xf]
      %v1416 = vld [vmem:[%s12 + $0x8] sm:$0xf]
      %v1417 = vld [vmem:[%s12 + $0xc] sm:$0xf]
      %v1422 = vunpack.c.l.b16 %v1414
      %v1423 = vunpack.c.l.b16 %v1415
      %v1424 = vunpack.c.l.b16 %v1416
      %v1425 = vunpack.c.l.b16 %v1417
      %v1426 = vpack.c.b16 %v1423, %v1422
      %v1427 = vpack.c.b16 %v1425, %v1424
      %v1431 = vsel %vm540, %v1413, 0
      %1433 = vmatprep.subr.bf16.mxu0 0
      %1434 = vmatpush1.bf16.msra.mxu0 %v1426
      %1435 = vmatprep.subr.bf16.mxu0 0
      %1436 = vmatpush1.bf16.msra.mxu0 %v1427
      %1437 = vmatprep.subr.bf16.mxu0 0
      %1438 = vmatpush1.bf16.msra.mxu0 0
      %1439 = vmatprep.subr.bf16.mxu0 0
      %1440 = vmatpush1.bf16.msra.mxu0 0
      %1441 = vmatprep.subr.bf16.mxu0 0
      %1442 = vmatpush1.bf16.msra.mxu0 0
      %1443 = vmatprep.subr.bf16.mxu0 0
      %1444 = vmatpush1.bf16.msra.mxu0 0
      %1445 = vmatprep.subr.bf16.mxu0 0
      %1446 = vmatpush1.bf16.msra.mxu0 0
      %1447 = vmatprep.subr.bf16.mxu0 0
      %1448 = vmatpush1.bf16.msra.mxu0 0
      %1449 = vmatprep.subr.bf16.mxu0 0
      %1450 = vmatpush1.bf16.msra.mxu0 0
      %1451 = vmatprep.subr.bf16.mxu0 0
      %1452 = vmatpush1.bf16.msra.mxu0 0
      %1453 = vmatprep.subr.bf16.mxu0 0
      %1454 = vmatpush1.bf16.msra.mxu0 0
      %1455 = vmatprep.subr.bf16.mxu0 0
      %1456 = vmatpush1.bf16.msra.mxu0 0
      %1457 = vmatprep.subr.bf16.mxu0 0
      %1458 = vmatpush1.bf16.msra.mxu0 0
      %1459 = vmatprep.subr.bf16.mxu0 0
      %1460 = vmatpush1.bf16.msra.mxu0 0
      %1461 = vmatprep.subr.bf16.mxu0 0
      %1462 = vmatpush1.bf16.msra.mxu0 0
      %1463 = vmatprep.subr.bf16.mxu0 0
      %1464 = vmatpush1.bf16.msra.mxu0 0
      %1465 = vmatprep.mubr.bf16.mxu0 0
      %1466 = vmatmul.mubr.bf16.gmra.mrb[0].mxu0 %v1431
      %v1467 = vpop.f32.mrb[0].mxu0
      %v1468 = vadd.f32 0.0, %v1467
      %v1469 = vpop.f32.mrb[0].mxu0
      %v1470 = vpop.f32.mrb[0].mxu0
      %v1471 = vadd.f32 0.0, %v1470
      %v1472 = vpop.f32.mrb[0].mxu0
      %1473 = vdwg.mxu0
      %v1474 = vadd.f32 %v1242, %v1468
      %v1475 = vadd.f32 %v1243, %v1471
      %v1476 = vld [vmem:[%s13] sm:$0x1]
      %v1478 = vlaneseq
      %v1479 = vshrl.u32 %v1478, 7
      %v1480 = vsub.s32 0, %v1479
      %v1481 = vrot.slane %v1476, %v1480
      %v1483 = vadd.f32 %v1474, %v1481
      %v1484 = vadd.f32 %v1475, %v1481
      %s1485 = scalar_lea.vmem %s2, 8
      %v1486 = vld [vmem:[%s1485] sm:$0xf]
      %v1487 = vld [vmem:[%s1485 + $0x4] sm:$0xf]
      %s1488 = scalar_lea.vmem %s3, 1
      %v1489 = vld [vmem:[%s1488] sm:$0x1]
      %v1492 = vunpack.c.l.b16 %v1486
      %v1493 = vunpack.c.l.b16 %v1487
      %v1494 = vpack.c.b16 %v1493, %v1492
      %1496 = vmatprep.subr.bf16.mxu0 0
      %1497 = vmatpush1.bf16.msra.mxu0 %v1494
      %1498 = vmatprep.subr.bf16.mxu0 0
      %1499 = vmatpush1.bf16.msra.mxu0 0
      %1500 = vmatprep.subr.bf16.mxu0 0
      %1501 = vmatpush1.bf16.msra.mxu0 0
      %1502 = vmatprep.subr.bf16.mxu0 0
      %1503 = vmatpush1.bf16.msra.mxu0 0
      %1504 = vmatprep.subr.bf16.mxu0 0
      %1505 = vmatpush1.bf16.msra.mxu0 0
      %1506 = vmatprep.subr.bf16.mxu0 0
      %1507 = vmatpush1.bf16.msra.mxu0 0
      %1508 = vmatprep.subr.bf16.mxu0 0
      %1509 = vmatpush1.bf16.msra.mxu0 0
      %1510 = vmatprep.subr.bf16.mxu0 0
      %1511 = vmatpush1.bf16.msra.mxu0 0
      %1512 = vmatprep.subr.bf16.mxu0 0
      %1513 = vmatpush1.bf16.msra.mxu0 0
      %1514 = vmatprep.subr.bf16.mxu0 0
      %1515 = vmatpush1.bf16.msra.mxu0 0
      %1516 = vmatprep.subr.bf16.mxu0 0
      %1517 = vmatpush1.bf16.msra.mxu0 0
      %1518 = vmatprep.subr.bf16.mxu0 0
      %1519 = vmatpush1.bf16.msra.mxu0 0
      %1520 = vmatprep.subr.bf16.mxu0 0
      %1521 = vmatpush1.bf16.msra.mxu0 0
      %1522 = vmatprep.subr.bf16.mxu0 0
      %1523 = vmatpush1.bf16.msra.mxu0 0
      %1524 = vmatprep.subr.bf16.mxu0 0
      %1525 = vmatpush1.bf16.msra.mxu0 0
      %1526 = vmatprep.subr.bf16.mxu0 0
      %1527 = vmatpush1.bf16.msra.mxu0 0
      %1528 = vmatprep.mubr.bf16.mxu0 0
      %1529 = vmatmul.mubr.bf16.gmra.mrb[0].mxu0 %v498
      %v1530 = vpop.f32.mrb[0].mxu0
      %v1531 = vadd.f32 %v1489, %v1530
      %v1532 = vpop.f32.mrb[0].mxu0
      %v1533 = vpop.f32.mrb[0].mxu0
      %v1534 = vpop.f32.mrb[0].mxu0
      %1535 = vdwg.mxu0
      %v1536 = vsel %vm540, %v1483, 0.0
      %1537 = vadd.xlane.f32.xlu0 %v1536
      %v1538 = vpop.xlane.xlu0 %1537
      %v1539 = vsel %vm540, %v1484, 0.0
      %1540 = vadd.xlane.f32.xlu0 %v1539
      %v1541 = vpop.xlane.xlu0 %1540
      %v1542 = vmul.f32 %v1538, %v547
      %v1543 = vmul.f32 %v1541, %v547
      %v1544 = vsub.f32 %v1483, %v1542
      %v1545 = vsub.f32 %v1484, %v1543
      %v1546 = vmul.f32 %v1544, %v1544
      %v1547 = vmul.f32 %v1545, %v1545
      %v1548 = vsel %vm540, %v1546, 0.0
      %1549 = vadd.xlane.f32.xlu0 %v1548
      %v1550 = vpop.xlane.xlu0 %1549
      %v1551 = vsel %vm540, %v1547, 0.0
      %1552 = vadd.xlane.f32.xlu0 %v1551
      %v1553 = vpop.xlane.xlu0 %1552
      %v1554 = vmul.f32 %v1550, %v547
      %v1555 = vmul.f32 %v1553, %v547
      %v1556 = vadd.f32 %v1554, 1e-05
      %v1557 = vadd.f32 %v1555, 1e-05
      %v1558 = vrsqrt.pop %v1556
      %v1559 = vrsqrt.pop %v1557
      %v1560 = vmul.f32 %v1544, %v1558
      %v1561 = vmul.f32 %v1545, %v1559
      %v1562 = vlaneseq
      %v1563 = vshrl.u32 %v1562, 7
      %v1564 = vsub.s32 0, %v1563
      %v1565 = vrot.slane %v1531, %v1564
      %v1566 = vmul.f32 %v1560, %v1565
      %v1567 = vmul.f32 %v1561, %v1565
      %1569 = vrot.lane.b32.xlu0 %v1565, 96
      %v1570 = vpop.permute.xlu0 %1569
      %v1572 = vadd.f32 %v1566, %v1570
      %v1573 = vadd.f32 %v1567, %v1570
      %v1574 = vpack.c.bf16 %v1573, %v1572
      %s1575 = scalar_lea.vmem %s4, 16
      %v1576 = vld [vmem:[%s1575] sm:$0xf]
      %v1577 = vld [vmem:[%s1575 + $0x4] sm:$0xf]
      %v1578 = vld [vmem:[%s1575 + $0x8] sm:$0xf]
      %v1579 = vld [vmem:[%s1575 + $0xc] sm:$0xf]
      %s1580 = scalar_lea.vmem %s5, 1
      %v1581 = vld [vmem:[%s1580] sm:$0x1]
      %v1583 = vlaneseq
      %v1584 = vshrl.u32 %v1583, 7
      %v1585 = vsub.s32 0, %v1584
      %v1586 = vrot.slane %v1581, %v1585
      %v1592 = vunpack.c.l.b16 %v1576
      %v1593 = vunpack.c.l.b16 %v1577
      %v1594 = vunpack.c.l.b16 %v1578
      %v1595 = vunpack.c.l.b16 %v1579
      %v1596 = vpack.c.b16 %v1593, %v1592
      %v1597 = vpack.c.b16 %v1595, %v1594
      %v1601 = vsel %vm540, %v1574, 0
      %1603 = vmatprep.subr.bf16.mxu0 0
      %1604 = vmatpush1.bf16.msra.mxu0 %v1596
      %1605 = vmatprep.subr.bf16.mxu0 0
      %1606 = vmatpush1.bf16.msra.mxu0 %v1597
      %1607 = vmatprep.subr.bf16.mxu0 0
      %1608 = vmatpush1.bf16.msra.mxu0 0
      %1609 = vmatprep.subr.bf16.mxu0 0
      %1610 = vmatpush1.bf16.msra.mxu0 0
      %1611 = vmatprep.subr.bf16.mxu0 0
      %1612 = vmatpush1.bf16.msra.mxu0 0
      %1613 = vmatprep.subr.bf16.mxu0 0
      %1614 = vmatpush1.bf16.msra.mxu0 0
      %1615 = vmatprep.subr.bf16.mxu0 0
      %1616 = vmatpush1.bf16.msra.mxu0 0
      %1617 = vmatprep.subr.bf16.mxu0 0
      %1618 = vmatpush1.bf16.msra.mxu0 0
      %1619 = vmatprep.subr.bf16.mxu0 0
      %1620 = vmatpush1.bf16.msra.mxu0 0
      %1621 = vmatprep.subr.bf16.mxu0 0
      %1622 = vmatpush1.bf16.msra.mxu0 0
      %1623 = vmatprep.subr.bf16.mxu0 0
      %1624 = vmatpush1.bf16.msra.mxu0 0
      %1625 = vmatprep.subr.bf16.mxu0 0
      %1626 = vmatpush1.bf16.msra.mxu0 0
      %1627 = vmatprep.subr.bf16.mxu0 0
      %1628 = vmatpush1.bf16.msra.mxu0 0
      %1629 = vmatprep.subr.bf16.mxu0 0
      %1630 = vmatpush1.bf16.msra.mxu0 0
      %1631 = vmatprep.subr.bf16.mxu0 0
      %1632 = vmatpush1.bf16.msra.mxu0 0
      %1633 = vmatprep.subr.bf16.mxu0 0
      %1634 = vmatpush1.bf16.msra.mxu0 0
      %1635 = vmatprep.mubr.bf16.mxu0 0
      %1636 = vmatmul.mubr.bf16.gmra.mrb[0].mxu0 %v1601
      %v1637 = vpop.f32.mrb[0].mxu0
      %v1638 = vadd.f32 %v1586, %v1637
      %v1639 = vpop.f32.mrb[0].mxu0
      %v1640 = vpop.f32.mrb[0].mxu0
      %v1641 = vadd.f32 %v1586, %v1640
      %v1642 = vpop.f32.mrb[0].mxu0
      %1643 = vdwg.mxu0
      %v1644 = vpack.c.bf16 %v1641, %v1638
      %1646 = vrot.lane.b32.xlu0 %v1644, 96
      %v1647 = vpop.permute.xlu0 %1646
      %v1649 = vsel %vm652, %v1644, 0
      %v1652 = vsel %vm652, %v1647, 0
      %1654 = vmatprep.subr.bf16.mxu0 0
      %1655 = vmatpush1.bf16.xpose.msra.mxu0 %v1652
      %1656 = vmatprep.subr.bf16.mxu0 0
      %1657 = vmatpush1.bf16.xpose.msra.mxu0 0
      %1658 = vmatprep.subr.bf16.mxu0 0
      %1659 = vmatpush1.bf16.xpose.msra.mxu0 0
      %1660 = vmatprep.subr.bf16.mxu0 0
      %1661 = vmatpush1.bf16.xpose.msra.mxu0 0
      %1662 = vmatprep.subr.bf16.mxu0 0
      %1663 = vmatpush1.bf16.xpose.msra.mxu0 0
      %1664 = vmatprep.subr.bf16.mxu0 0
      %1665 = vmatpush1.bf16.xpose.msra.mxu0 0
      %1666 = vmatprep.subr.bf16.mxu0 0
      %1667 = vmatpush1.bf16.xpose.msra.mxu0 0
      %1668 = vmatprep.subr.bf16.mxu0 0
      %1669 = vmatpush1.bf16.xpose.msra.mxu0 0
      %1670 = vmatprep.subr.bf16.mxu0 0
      %1671 = vmatpush1.bf16.xpose.msra.mxu0 0
      %1672 = vmatprep.subr.bf16.mxu0 0
      %1673 = vmatpush1.bf16.xpose.msra.mxu0 0
      %1674 = vmatprep.subr.bf16.mxu0 0
      %1675 = vmatpush1.bf16.xpose.msra.mxu0 0
      %1676 = vmatprep.subr.bf16.mxu0 0
      %1677 = vmatpush1.bf16.xpose.msra.mxu0 0
      %1678 = vmatprep.subr.bf16.mxu0 0
      %1679 = vmatpush1.bf16.xpose.msra.mxu0 0
      %1680 = vmatprep.subr.bf16.mxu0 0
      %1681 = vmatpush1.bf16.xpose.msra.mxu0 0
      %1682 = vmatprep.subr.bf16.mxu0 0
      %1683 = vmatpush1.bf16.xpose.msra.mxu0 0
      %1684 = vmatprep.subr.bf16.mxu0 0
      %1685 = vmatpush1.bf16.xpose.msra.mxu0 0
      %1686 = vmatprep.mubr.bf16.mxu0 0
      %1687 = vmatmul.mubr.bf16.gmra.mrb[0].mxu0 %v1649
      %v1688 = vpop.f32.mrb[0].mxu0
      %v1689 = vadd.f32 0.0, %v1688
      %v1690 = vpop.f32.mrb[0].mxu0
      %v1691 = vpop.f32.mrb[0].mxu0
      %v1692 = vadd.f32 0.0, %v1691
      %v1693 = vpop.f32.mrb[0].mxu0
      %1694 = vdwg.mxu0
      %v1695 = vmul.f32 %v1689, 0.35355338
      %v1696 = vmul.f32 %v1692, 0.35355338
      %v1697 = vsel %vm496, %v1695, -inf
      %1698 = vmax.xlane.f32.xlu0 %v1697
      %v1699 = vpop.xlane.xlu0 %1698
      %v1700 = vsel %vm496, %v1696, -inf
      %1701 = vmax.xlane.f32.xlu0 %v1700
      %v1702 = vpop.xlane.xlu0 %1701
      %v1703 = vsub.f32 %v1695, %v1699
      %v1704 = vsub.f32 %v1696, %v1702
      %v1705 = vmul.f32 %v1703, 1.442695
      %v1706 = vpow.pop %v1705
      %v1707 = vmul.f32 %v1704, 1.442695
      %v1708 = vpow.pop %v1707
      %v1709 = vsel %vm496, %v1706, 0.0
      %1710 = vadd.xlane.f32.xlu0 %v1709
      %v1711 = vpop.xlane.xlu0 %1710
      %v1712 = vsel %vm496, %v1708, 0.0
      %1713 = vadd.xlane.f32.xlu0 %v1712
      %v1714 = vpop.xlane.xlu0 %1713
      %v1715 = vrcp.pop %v1711
      %v1716 = vrcp.pop %v1714
      %v1717 = vmul.f32 %v1706, %v1715
      %v1718 = vmul.f32 %v1708, %v1716
      %v1719 = vpack.c.bf16 %v1718, %v1717
      %1720 = vrot.lane.b32.xlu0 %v1644, 64
      %v1721 = vpop.permute.xlu0 %1720
      %v1724 = vsel %vm496, %v1719, 0
      %1726 = vmatprep.subr.bf16.mxu0 0
      %1727 = vmatpush1.bf16.msra.mxu0 %v1721
      %1728 = vmatprep.subr.bf16.mxu0 0
      %1729 = vmatpush1.bf16.msra.mxu0 0
      %1730 = vmatprep.subr.bf16.mxu0 0
      %1731 = vmatpush1.bf16.msra.mxu0 0
      %1732 = vmatprep.subr.bf16.mxu0 0
      %1733 = vmatpush1.bf16.msra.mxu0 0
      %1734 = vmatprep.subr.bf16.mxu0 0
      %1735 = vmatpush1.bf16.msra.mxu0 0
      %1736 = vmatprep.subr.bf16.mxu0 0
      %1737 = vmatpush1.bf16.msra.mxu0 0
      %1738 = vmatprep.subr.bf16.mxu0 0
      %1739 = vmatpush1.bf16.msra.mxu0 0
      %1740 = vmatprep.subr.bf16.mxu0 0
      %1741 = vmatpush1.bf16.msra.mxu0 0
      %1742 = vmatprep.subr.bf16.mxu0 0
      %1743 = vmatpush1.bf16.msra.mxu0 0
      %1744 = vmatprep.subr.bf16.mxu0 0
      %1745 = vmatpush1.bf16.msra.mxu0 0
      %1746 = vmatprep.subr.bf16.mxu0 0
      %1747 = vmatpush1.bf16.msra.mxu0 0
      %1748 = vmatprep.subr.bf16.mxu0 0
      %1749 = vmatpush1.bf16.msra.mxu0 0
      %1750 = vmatprep.subr.bf16.mxu0 0
      %1751 = vmatpush1.bf16.msra.mxu0 0
      %1752 = vmatprep.subr.bf16.mxu0 0
      %1753 = vmatpush1.bf16.msra.mxu0 0
      %1754 = vmatprep.subr.bf16.mxu0 0
      %1755 = vmatpush1.bf16.msra.mxu0 0
      %1756 = vmatprep.subr.bf16.mxu0 0
      %1757 = vmatpush1.bf16.msra.mxu0 0
      %1758 = vmatprep.mubr.bf16.mxu0 0
      %1759 = vmatmul.mubr.bf16.gmra.mrb[0].mxu0 %v1724
      %v1760 = vpop.f32.mrb[0].mxu0
      %v1761 = vadd.f32 0.0, %v1760
      %v1762 = vpop.f32.mrb[0].mxu0
      %v1763 = vpop.f32.mrb[0].mxu0
      %v1764 = vadd.f32 0.0, %v1763
      %v1765 = vpop.f32.mrb[0].mxu0
      %1766 = vdwg.mxu0
      %1767 = vrot.lane.b32.xlu0 %v1644, 120
      %v1768 = vpop.permute.xlu0 %1767
      %1769 = vrot.lane.b32.xlu0 %v1644, 88
      %v1770 = vpop.permute.xlu0 %1769
      %v1772 = vsel %vm652, %v1768, 0
      %v1775 = vsel %vm652, %v1770, 0
      %1777 = vmatprep.subr.bf16.mxu0 0
      %1778 = vmatpush1.bf16.xpose.msra.mxu0 %v1775
      %1779 = vmatprep.subr.bf16.mxu0 0
      %1780 = vmatpush1.bf16.xpose.msra.mxu0 0
      %1781 = vmatprep.subr.bf16.mxu0 0
      %1782 = vmatpush1.bf16.xpose.msra.mxu0 0
      %1783 = vmatprep.subr.bf16.mxu0 0
      %1784 = vmatpush1.bf16.xpose.msra.mxu0 0
      %1785 = vmatprep.subr.bf16.mxu0 0
      %1786 = vmatpush1.bf16.xpose.msra.mxu0 0
      %1787 = vmatprep.subr.bf16.mxu0 0
      %1788 = vmatpush1.bf16.xpose.msra.mxu0 0
      %1789 = vmatprep.subr.bf16.mxu0 0
      %1790 = vmatpush1.bf16.xpose.msra.mxu0 0
      %1791 = vmatprep.subr.bf16.mxu0 0
      %1792 = vmatpush1.bf16.xpose.msra.mxu0 0
      %1793 = vmatprep.subr.bf16.mxu0 0
      %1794 = vmatpush1.bf16.xpose.msra.mxu0 0
      %1795 = vmatprep.subr.bf16.mxu0 0
      %1796 = vmatpush1.bf16.xpose.msra.mxu0 0
      %1797 = vmatprep.subr.bf16.mxu0 0
      %1798 = vmatpush1.bf16.xpose.msra.mxu0 0
      %1799 = vmatprep.subr.bf16.mxu0 0
      %1800 = vmatpush1.bf16.xpose.msra.mxu0 0
      %1801 = vmatprep.subr.bf16.mxu0 0
      %1802 = vmatpush1.bf16.xpose.msra.mxu0 0
      %1803 = vmatprep.subr.bf16.mxu0 0
      %1804 = vmatpush1.bf16.xpose.msra.mxu0 0
      %1805 = vmatprep.subr.bf16.mxu0 0
      %1806 = vmatpush1.bf16.xpose.msra.mxu0 0
      %1807 = vmatprep.subr.bf16.mxu0 0
      %1808 = vmatpush1.bf16.xpose.msra.mxu0 0
      %1809 = vmatprep.mubr.bf16.mxu0 0
      %1810 = vmatmul.mubr.bf16.gmra.mrb[0].mxu0 %v1772
      %v1811 = vpop.f32.mrb[0].mxu0
      %v1812 = vadd.f32 0.0, %v1811
      %v1813 = vpop.f32.mrb[0].mxu0
      %v1814 = vpop.f32.mrb[0].mxu0
      %v1815 = vadd.f32 0.0, %v1814
      %v1816 = vpop.f32.mrb[0].mxu0
      %1817 = vdwg.mxu0
      %v1818 = vmul.f32 %v1812, 0.35355338
      %v1819 = vmul.f32 %v1815, 0.35355338
      %v1820 = vsel %vm496, %v1818, -inf
      %1821 = vmax.xlane.f32.xlu0 %v1820
      %v1822 = vpop.xlane.xlu0 %1821
      %v1823 = vsel %vm496, %v1819, -inf
      %1824 = vmax.xlane.f32.xlu0 %v1823
      %v1825 = vpop.xlane.xlu0 %1824
      %v1826 = vsub.f32 %v1818, %v1822
      %v1827 = vsub.f32 %v1819, %v1825
      %v1828 = vmul.f32 %v1826, 1.442695
      %v1829 = vpow.pop %v1828
      %v1830 = vmul.f32 %v1827, 1.442695
      %v1831 = vpow.pop %v1830
      %v1832 = vsel %vm496, %v1829, 0.0
      %1833 = vadd.xlane.f32.xlu0 %v1832
      %v1834 = vpop.xlane.xlu0 %1833
      %v1835 = vsel %vm496, %v1831, 0.0
      %1836 = vadd.xlane.f32.xlu0 %v1835
      %v1837 = vpop.xlane.xlu0 %1836
      %v1838 = vrcp.pop %v1834
      %v1839 = vrcp.pop %v1837
      %v1840 = vmul.f32 %v1829, %v1838
      %v1841 = vmul.f32 %v1831, %v1839
      %v1842 = vpack.c.bf16 %v1841, %v1840
      %1843 = vrot.lane.b32.xlu0 %v1644, 56
      %v1844 = vpop.permute.xlu0 %1843
      %v1847 = vsel %vm496, %v1842, 0
      %1849 = vmatprep.subr.bf16.mxu0 0
      %1850 = vmatpush1.bf16.msra.mxu0 %v1844
      %1851 = vmatprep.subr.bf16.mxu0 0
      %1852 = vmatpush1.bf16.msra.mxu0 0
      %1853 = vmatprep.subr.bf16.mxu0 0
      %1854 = vmatpush1.bf16.msra.mxu0 0
      %1855 = vmatprep.subr.bf16.mxu0 0
      %1856 = vmatpush1.bf16.msra.mxu0 0
      %1857 = vmatprep.subr.bf16.mxu0 0
      %1858 = vmatpush1.bf16.msra.mxu0 0
      %1859 = vmatprep.subr.bf16.mxu0 0
      %1860 = vmatpush1.bf16.msra.mxu0 0
      %1861 = vmatprep.subr.bf16.mxu0 0
      %1862 = vmatpush1.bf16.msra.mxu0 0
      %1863 = vmatprep.subr.bf16.mxu0 0
      %1864 = vmatpush1.bf16.msra.mxu0 0
      %1865 = vmatprep.subr.bf16.mxu0 0
      %1866 = vmatpush1.bf16.msra.mxu0 0
      %1867 = vmatprep.subr.bf16.mxu0 0
      %1868 = vmatpush1.bf16.msra.mxu0 0
      %1869 = vmatprep.subr.bf16.mxu0 0
      %1870 = vmatpush1.bf16.msra.mxu0 0
      %1871 = vmatprep.subr.bf16.mxu0 0
      %1872 = vmatpush1.bf16.msra.mxu0 0
      %1873 = vmatprep.subr.bf16.mxu0 0
      %1874 = vmatpush1.bf16.msra.mxu0 0
      %1875 = vmatprep.subr.bf16.mxu0 0
      %1876 = vmatpush1.bf16.msra.mxu0 0
      %1877 = vmatprep.subr.bf16.mxu0 0
      %1878 = vmatpush1.bf16.msra.mxu0 0
      %1879 = vmatprep.subr.bf16.mxu0 0
      %1880 = vmatpush1.bf16.msra.mxu0 0
      %1881 = vmatprep.mubr.bf16.mxu0 0
      %1882 = vmatmul.mubr.bf16.gmra.mrb[0].mxu0 %v1847
      %v1883 = vpop.f32.mrb[0].mxu0
      %v1884 = vadd.f32 0.0, %v1883
      %v1885 = vpop.f32.mrb[0].mxu0
      %v1886 = vpop.f32.mrb[0].mxu0
      %v1887 = vadd.f32 0.0, %v1886
      %v1888 = vpop.f32.mrb[0].mxu0
      %1889 = vdwg.mxu0
      %1890 = vrot.lane.b32.xlu0 %v1644, 112
      %v1891 = vpop.permute.xlu0 %1890
      %1892 = vrot.lane.b32.xlu0 %v1644, 80
      %v1893 = vpop.permute.xlu0 %1892
      %v1895 = vsel %vm652, %v1891, 0
      %v1898 = vsel %vm652, %v1893, 0
      %1900 = vmatprep.subr.bf16.mxu0 0
      %1901 = vmatpush1.bf16.xpose.msra.mxu0 %v1898
      %1902 = vmatprep.subr.bf16.mxu0 0
      %1903 = vmatpush1.bf16.xpose.msra.mxu0 0
      %1904 = vmatprep.subr.bf16.mxu0 0
      %1905 = vmatpush1.bf16.xpose.msra.mxu0 0
      %1906 = vmatprep.subr.bf16.mxu0 0
      %1907 = vmatpush1.bf16.xpose.msra.mxu0 0
      %1908 = vmatprep.subr.bf16.mxu0 0
      %1909 = vmatpush1.bf16.xpose.msra.mxu0 0
      %1910 = vmatprep.subr.bf16.mxu0 0
      %1911 = vmatpush1.bf16.xpose.msra.mxu0 0
      %1912 = vmatprep.subr.bf16.mxu0 0
      %1913 = vmatpush1.bf16.xpose.msra.mxu0 0
      %1914 = vmatprep.subr.bf16.mxu0 0
      %1915 = vmatpush1.bf16.xpose.msra.mxu0 0
      %1916 = vmatprep.subr.bf16.mxu0 0
      %1917 = vmatpush1.bf16.xpose.msra.mxu0 0
      %1918 = vmatprep.subr.bf16.mxu0 0
      %1919 = vmatpush1.bf16.xpose.msra.mxu0 0
      %1920 = vmatprep.subr.bf16.mxu0 0
      %1921 = vmatpush1.bf16.xpose.msra.mxu0 0
      %1922 = vmatprep.subr.bf16.mxu0 0
      %1923 = vmatpush1.bf16.xpose.msra.mxu0 0
      %1924 = vmatprep.subr.bf16.mxu0 0
      %1925 = vmatpush1.bf16.xpose.msra.mxu0 0
      %1926 = vmatprep.subr.bf16.mxu0 0
      %1927 = vmatpush1.bf16.xpose.msra.mxu0 0
      %1928 = vmatprep.subr.bf16.mxu0 0
      %1929 = vmatpush1.bf16.xpose.msra.mxu0 0
      %1930 = vmatprep.subr.bf16.mxu0 0
      %1931 = vmatpush1.bf16.xpose.msra.mxu0 0
      %1932 = vmatprep.mubr.bf16.mxu0 0
      %1933 = vmatmul.mubr.bf16.gmra.mrb[0].mxu0 %v1895
      %v1934 = vpop.f32.mrb[0].mxu0
      %v1935 = vadd.f32 0.0, %v1934
      %v1936 = vpop.f32.mrb[0].mxu0
      %v1937 = vpop.f32.mrb[0].mxu0
      %v1938 = vadd.f32 0.0, %v1937
      %v1939 = vpop.f32.mrb[0].mxu0
      %1940 = vdwg.mxu0
      %v1941 = vmul.f32 %v1935, 0.35355338
      %v1942 = vmul.f32 %v1938, 0.35355338
      %v1943 = vsel %vm496, %v1941, -inf
      %1944 = vmax.xlane.f32.xlu0 %v1943
      %v1945 = vpop.xlane.xlu0 %1944
      %v1946 = vsel %vm496, %v1942, -inf
      %1947 = vmax.xlane.f32.xlu0 %v1946
      %v1948 = vpop.xlane.xlu0 %1947
      %v1949 = vsub.f32 %v1941, %v1945
      %v1950 = vsub.f32 %v1942, %v1948
      %v1951 = vmul.f32 %v1949, 1.442695
      %v1952 = vpow.pop %v1951
      %v1953 = vmul.f32 %v1950, 1.442695
      %v1954 = vpow.pop %v1953
      %v1955 = vsel %vm496, %v1952, 0.0
      %1956 = vadd.xlane.f32.xlu0 %v1955
      %v1957 = vpop.xlane.xlu0 %1956
      %v1958 = vsel %vm496, %v1954, 0.0
      %1959 = vadd.xlane.f32.xlu0 %v1958
      %v1960 = vpop.xlane.xlu0 %1959
      %v1961 = vrcp.pop %v1957
      %v1962 = vrcp.pop %v1960
      %v1963 = vmul.f32 %v1952, %v1961
      %v1964 = vmul.f32 %v1954, %v1962
      %v1965 = vpack.c.bf16 %v1964, %v1963
      %1966 = vrot.lane.b32.xlu0 %v1644, 48
      %v1967 = vpop.permute.xlu0 %1966
      %v1970 = vsel %vm496, %v1965, 0
      %1972 = vmatprep.subr.bf16.mxu0 0
      %1973 = vmatpush1.bf16.msra.mxu0 %v1967
      %1974 = vmatprep.subr.bf16.mxu0 0
      %1975 = vmatpush1.bf16.msra.mxu0 0
      %1976 = vmatprep.subr.bf16.mxu0 0
      %1977 = vmatpush1.bf16.msra.mxu0 0
      %1978 = vmatprep.subr.bf16.mxu0 0
      %1979 = vmatpush1.bf16.msra.mxu0 0
      %1980 = vmatprep.subr.bf16.mxu0 0
      %1981 = vmatpush1.bf16.msra.mxu0 0
      %1982 = vmatprep.subr.bf16.mxu0 0
      %1983 = vmatpush1.bf16.msra.mxu0 0
      %1984 = vmatprep.subr.bf16.mxu0 0
      %1985 = vmatpush1.bf16.msra.mxu0 0
      %1986 = vmatprep.subr.bf16.mxu0 0
      %1987 = vmatpush1.bf16.msra.mxu0 0
      %1988 = vmatprep.subr.bf16.mxu0 0
      %1989 = vmatpush1.bf16.msra.mxu0 0
      %1990 = vmatprep.subr.bf16.mxu0 0
      %1991 = vmatpush1.bf16.msra.mxu0 0
      %1992 = vmatprep.subr.bf16.mxu0 0
      %1993 = vmatpush1.bf16.msra.mxu0 0
      %1994 = vmatprep.subr.bf16.mxu0 0
      %1995 = vmatpush1.bf16.msra.mxu0 0
      %1996 = vmatprep.subr.bf16.mxu0 0
      %1997 = vmatpush1.bf16.msra.mxu0 0
      %1998 = vmatprep.subr.bf16.mxu0 0
      %1999 = vmatpush1.bf16.msra.mxu0 0
      %2000 = vmatprep.subr.bf16.mxu0 0
      %2001 = vmatpush1.bf16.msra.mxu0 0
      %2002 = vmatprep.subr.bf16.mxu0 0
      %2003 = vmatpush1.bf16.msra.mxu0 0
      %2004 = vmatprep.mubr.bf16.mxu0 0
      %2005 = vmatmul.mubr.bf16.gmra.mrb[0].mxu0 %v1970
      %v2006 = vpop.f32.mrb[0].mxu0
      %v2007 = vadd.f32 0.0, %v2006
      %v2008 = vpop.f32.mrb[0].mxu0
      %v2009 = vpop.f32.mrb[0].mxu0
      %v2010 = vadd.f32 0.0, %v2009
      %v2011 = vpop.f32.mrb[0].mxu0
      %2012 = vdwg.mxu0
      %2013 = vrot.lane.b32.xlu0 %v1644, 104
      %v2014 = vpop.permute.xlu0 %2013
      %2015 = vrot.lane.b32.xlu0 %v1644, 72
      %v2016 = vpop.permute.xlu0 %2015
      %v2018 = vsel %vm652, %v2014, 0
      %v2021 = vsel %vm652, %v2016, 0
      %2023 = vmatprep.subr.bf16.mxu0 0
      %2024 = vmatpush1.bf16.xpose.msra.mxu0 %v2021
      %2025 = vmatprep.subr.bf16.mxu0 0
      %2026 = vmatpush1.bf16.xpose.msra.mxu0 0
      %2027 = vmatprep.subr.bf16.mxu0 0
      %2028 = vmatpush1.bf16.xpose.msra.mxu0 0
      %2029 = vmatprep.subr.bf16.mxu0 0
      %2030 = vmatpush1.bf16.xpose.msra.mxu0 0
      %2031 = vmatprep.subr.bf16.mxu0 0
      %2032 = vmatpush1.bf16.xpose.msra.mxu0 0
      %2033 = vmatprep.subr.bf16.mxu0 0
      %2034 = vmatpush1.bf16.xpose.msra.mxu0 0
      %2035 = vmatprep.subr.bf16.mxu0 0
      %2036 = vmatpush1.bf16.xpose.msra.mxu0 0
      %2037 = vmatprep.subr.bf16.mxu0 0
      %2038 = vmatpush1.bf16.xpose.msra.mxu0 0
      %2039 = vmatprep.subr.bf16.mxu0 0
      %2040 = vmatpush1.bf16.xpose.msra.mxu0 0
      %2041 = vmatprep.subr.bf16.mxu0 0
      %2042 = vmatpush1.bf16.xpose.msra.mxu0 0
      %2043 = vmatprep.subr.bf16.mxu0 0
      %2044 = vmatpush1.bf16.xpose.msra.mxu0 0
      %2045 = vmatprep.subr.bf16.mxu0 0
      %2046 = vmatpush1.bf16.xpose.msra.mxu0 0
      %2047 = vmatprep.subr.bf16.mxu0 0
      %2048 = vmatpush1.bf16.xpose.msra.mxu0 0
      %2049 = vmatprep.subr.bf16.mxu0 0
      %2050 = vmatpush1.bf16.xpose.msra.mxu0 0
      %2051 = vmatprep.subr.bf16.mxu0 0
      %2052 = vmatpush1.bf16.xpose.msra.mxu0 0
      %2053 = vmatprep.subr.bf16.mxu0 0
      %2054 = vmatpush1.bf16.xpose.msra.mxu0 0
      %2055 = vmatprep.mubr.bf16.mxu0 0
      %2056 = vmatmul.mubr.bf16.gmra.mrb[0].mxu0 %v2018
      %v2057 = vpop.f32.mrb[0].mxu0
      %v2058 = vadd.f32 0.0, %v2057
      %v2059 = vpop.f32.mrb[0].mxu0
      %v2060 = vpop.f32.mrb[0].mxu0
      %v2061 = vadd.f32 0.0, %v2060
      %v2062 = vpop.f32.mrb[0].mxu0
      %2063 = vdwg.mxu0
      %v2064 = vmul.f32 %v2058, 0.35355338
      %v2065 = vmul.f32 %v2061, 0.35355338
      %v2066 = vsel %vm496, %v2064, -inf
      %2067 = vmax.xlane.f32.xlu0 %v2066
      %v2068 = vpop.xlane.xlu0 %2067
      %v2069 = vsel %vm496, %v2065, -inf
      %2070 = vmax.xlane.f32.xlu0 %v2069
      %v2071 = vpop.xlane.xlu0 %2070
      %v2072 = vsub.f32 %v2064, %v2068
      %v2073 = vsub.f32 %v2065, %v2071
      %v2074 = vmul.f32 %v2072, 1.442695
      %v2075 = vpow.pop %v2074
      %v2076 = vmul.f32 %v2073, 1.442695
      %v2077 = vpow.pop %v2076
      %v2078 = vsel %vm496, %v2075, 0.0
      %2079 = vadd.xlane.f32.xlu0 %v2078
      %v2080 = vpop.xlane.xlu0 %2079
      %v2081 = vsel %vm496, %v2077, 0.0
      %2082 = vadd.xlane.f32.xlu0 %v2081
      %v2083 = vpop.xlane.xlu0 %2082
      %v2084 = vrcp.pop %v2080
      %v2085 = vrcp.pop %v2083
      %v2086 = vmul.f32 %v2075, %v2084
      %v2087 = vmul.f32 %v2077, %v2085
      %v2088 = vpack.c.bf16 %v2087, %v2086
      %2089 = vrot.lane.b32.xlu0 %v1644, 40
      %v2090 = vpop.permute.xlu0 %2089
      %v2093 = vsel %vm496, %v2088, 0
      %2095 = vmatprep.subr.bf16.mxu0 0
      %2096 = vmatpush1.bf16.msra.mxu0 %v2090
      %2097 = vmatprep.subr.bf16.mxu0 0
      %2098 = vmatpush1.bf16.msra.mxu0 0
      %2099 = vmatprep.subr.bf16.mxu0 0
      %2100 = vmatpush1.bf16.msra.mxu0 0
      %2101 = vmatprep.subr.bf16.mxu0 0
      %2102 = vmatpush1.bf16.msra.mxu0 0
      %2103 = vmatprep.subr.bf16.mxu0 0
      %2104 = vmatpush1.bf16.msra.mxu0 0
      %2105 = vmatprep.subr.bf16.mxu0 0
      %2106 = vmatpush1.bf16.msra.mxu0 0
      %2107 = vmatprep.subr.bf16.mxu0 0
      %2108 = vmatpush1.bf16.msra.mxu0 0
      %2109 = vmatprep.subr.bf16.mxu0 0
      %2110 = vmatpush1.bf16.msra.mxu0 0
      %2111 = vmatprep.subr.bf16.mxu0 0
      %2112 = vmatpush1.bf16.msra.mxu0 0
      %2113 = vmatprep.subr.bf16.mxu0 0
      %2114 = vmatpush1.bf16.msra.mxu0 0
      %2115 = vmatprep.subr.bf16.mxu0 0
      %2116 = vmatpush1.bf16.msra.mxu0 0
      %2117 = vmatprep.subr.bf16.mxu0 0
      %2118 = vmatpush1.bf16.msra.mxu0 0
      %2119 = vmatprep.subr.bf16.mxu0 0
      %2120 = vmatpush1.bf16.msra.mxu0 0
      %2121 = vmatprep.subr.bf16.mxu0 0
      %2122 = vmatpush1.bf16.msra.mxu0 0
      %2123 = vmatprep.subr.bf16.mxu0 0
      %2124 = vmatpush1.bf16.msra.mxu0 0
      %2125 = vmatprep.subr.bf16.mxu0 0
      %2126 = vmatpush1.bf16.msra.mxu0 0
      %2127 = vmatprep.mubr.bf16.mxu0 0
      %2128 = vmatmul.mubr.bf16.gmra.mrb[0].mxu0 %v2093
      %v2129 = vpop.f32.mrb[0].mxu0
      %v2130 = vadd.f32 0.0, %v2129
      %v2131 = vpop.f32.mrb[0].mxu0
      %v2132 = vpop.f32.mrb[0].mxu0
      %v2133 = vadd.f32 0.0, %v2132
      %v2134 = vpop.f32.mrb[0].mxu0
      %2135 = vdwg.mxu0
      %2138 = vrot.lane.b32.xlu0 %v1884, 8
      %v2139 = vpop.permute.xlu0 %2138
      %2140 = vrot.lane.b32.xlu0 %v1887, 8
      %v2141 = vpop.permute.xlu0 %2140
      %2146 = vrot.lane.b32.xlu0 %v2007, 16
      %v2147 = vpop.permute.xlu0 %2146
      %2148 = vrot.lane.b32.xlu0 %v2010, 16
      %v2149 = vpop.permute.xlu0 %2148
      %2154 = vrot.lane.b32.xlu0 %v2130, 24
      %v2155 = vpop.permute.xlu0 %2154
      %2156 = vrot.lane.b32.xlu0 %v2133, 24
      %v2157 = vpop.permute.xlu0 %2156
      %v2160 = vsel %vm652, %v1761, %v2139
      %v2161 = vsel %vm652, %v1764, %v2141
      %v2162 = vsel %vm496, %v2160, %v2147
      %v2163 = vsel %vm496, %v2161, %v2149
      %v2164 = vsel %vm1169, %v2162, %v2155
      %v2165 = vsel %vm1169, %v2163, %v2157
      %v2166 = vpack.c.bf16 %v2165, %v2164
      %s2167 = scalar_lea.vmem %s6, 16
      %v2168 = vld [vmem:[%s2167] sm:$0xf]
      %v2169 = vld [vmem:[%s2167 + $0x4] sm:$0xf]
      %v2170 = vld [vmem:[%s2167 + $0x8] sm:$0xf]
      %v2171 = vld [vmem:[%s2167 + $0xc] sm:$0xf]
      %v2176 = vunpack.c.l.b16 %v2168
      %v2177 = vunpack.c.l.b16 %v2169
      %v2178 = vunpack.c.l.b16 %v2170
      %v2179 = vunpack.c.l.b16 %v2171
      %v2180 = vpack.c.b16 %v2177, %v2176
      %v2181 = vpack.c.b16 %v2179, %v2178
      %v2185 = vsel %vm540, %v2166, 0
      %2187 = vmatprep.subr.bf16.mxu0 0
      %2188 = vmatpush1.bf16.msra.mxu0 %v2180
      %2189 = vmatprep.subr.bf16.mxu0 0
      %2190 = vmatpush1.bf16.msra.mxu0 %v2181
      %2191 = vmatprep.subr.bf16.mxu0 0
      %2192 = vmatpush1.bf16.msra.mxu0 0
      %2193 = vmatprep.subr.bf16.mxu0 0
      %2194 = vmatpush1.bf16.msra.mxu0 0
      %2195 = vmatprep.subr.bf16.mxu0 0
      %2196 = vmatpush1.bf16.msra.mxu0 0
      %2197 = vmatprep.subr.bf16.mxu0 0
      %2198 = vmatpush1.bf16.msra.mxu0 0
      %2199 = vmatprep.subr.bf16.mxu0 0
      %2200 = vmatpush1.bf16.msra.mxu0 0
      %2201 = vmatprep.subr.bf16.mxu0 0
      %2202 = vmatpush1.bf16.msra.mxu0 0
      %2203 = vmatprep.subr.bf16.mxu0 0
      %2204 = vmatpush1.bf16.msra.mxu0 0
      %2205 = vmatprep.subr.bf16.mxu0 0
      %2206 = vmatpush1.bf16.msra.mxu0 0
      %2207 = vmatprep.subr.bf16.mxu0 0
      %2208 = vmatpush1.bf16.msra.mxu0 0
      %2209 = vmatprep.subr.bf16.mxu0 0
      %2210 = vmatpush1.bf16.msra.mxu0 0
      %2211 = vmatprep.subr.bf16.mxu0 0
      %2212 = vmatpush1.bf16.msra.mxu0 0
      %2213 = vmatprep.subr.bf16.mxu0 0
      %2214 = vmatpush1.bf16.msra.mxu0 0
      %2215 = vmatprep.subr.bf16.mxu0 0
      %2216 = vmatpush1.bf16.msra.mxu0 0
      %2217 = vmatprep.subr.bf16.mxu0 0
      %2218 = vmatpush1.bf16.msra.mxu0 0
      %2219 = vmatprep.mubr.bf16.mxu0 0
      %2220 = vmatmul.mubr.bf16.gmra.mrb[0].mxu0 %v2185
      %v2221 = vpop.f32.mrb[0].mxu0
      %v2222 = vadd.f32 0.0, %v2221
      %v2223 = vpop.f32.mrb[0].mxu0
      %v2224 = vpop.f32.mrb[0].mxu0
      %v2225 = vadd.f32 0.0, %v2224
      %v2226 = vpop.f32.mrb[0].mxu0
      %2227 = vdwg.mxu0
      %v2228 = vadd.f32 %v1483, %v2222
      %v2229 = vadd.f32 %v1484, %v2225
      %s2230 = scalar_lea.vmem %s7, 1
      %v2231 = vld [vmem:[%s2230] sm:$0x1]
      %v2233 = vlaneseq
      %v2234 = vshrl.u32 %v2233, 7
      %v2235 = vsub.s32 0, %v2234
      %v2236 = vrot.slane %v2231, %v2235
      %v2238 = vadd.f32 %v2228, %v2236
      %v2239 = vadd.f32 %v2229, %v2236
      %s2240 = scalar_lea.vmem %s8, 8
      %v2241 = vld [vmem:[%s2240] sm:$0xf]
      %v2242 = vld [vmem:[%s2240 + $0x4] sm:$0xf]
      %s2243 = scalar_lea.vmem %s9, 1
      %v2244 = vld [vmem:[%s2243] sm:$0x1]
      %v2247 = vunpack.c.l.b16 %v2241
      %v2248 = vunpack.c.l.b16 %v2242
      %v2249 = vpack.c.b16 %v2248, %v2247
      %2251 = vmatprep.subr.bf16.mxu0 0
      %2252 = vmatpush1.bf16.msra.mxu0 %v2249
      %2253 = vmatprep.subr.bf16.mxu0 0
      %2254 = vmatpush1.bf16.msra.mxu0 0
      %2255 = vmatprep.subr.bf16.mxu0 0
      %2256 = vmatpush1.bf16.msra.mxu0 0
      %2257 = vmatprep.subr.bf16.mxu0 0
      %2258 = vmatpush1.bf16.msra.mxu0 0
      %2259 = vmatprep.subr.bf16.mxu0 0
      %2260 = vmatpush1.bf16.msra.mxu0 0
      %2261 = vmatprep.subr.bf16.mxu0 0
      %2262 = vmatpush1.bf16.msra.mxu0 0
      %2263 = vmatprep.subr.bf16.mxu0 0
      %2264 = vmatpush1.bf16.msra.mxu0 0
      %2265 = vmatprep.subr.bf16.mxu0 0
      %2266 = vmatpush1.bf16.msra.mxu0 0
      %2267 = vmatprep.subr.bf16.mxu0 0
      %2268 = vmatpush1.bf16.msra.mxu0 0
      %2269 = vmatprep.subr.bf16.mxu0 0
      %2270 = vmatpush1.bf16.msra.mxu0 0
      %2271 = vmatprep.subr.bf16.mxu0 0
      %2272 = vmatpush1.bf16.msra.mxu0 0
      %2273 = vmatprep.subr.bf16.mxu0 0
      %2274 = vmatpush1.bf16.msra.mxu0 0
      %2275 = vmatprep.subr.bf16.mxu0 0
      %2276 = vmatpush1.bf16.msra.mxu0 0
      %2277 = vmatprep.subr.bf16.mxu0 0
      %2278 = vmatpush1.bf16.msra.mxu0 0
      %2279 = vmatprep.subr.bf16.mxu0 0
      %2280 = vmatpush1.bf16.msra.mxu0 0
      %2281 = vmatprep.subr.bf16.mxu0 0
      %2282 = vmatpush1.bf16.msra.mxu0 0
      %2283 = vmatprep.mubr.bf16.mxu0 0
      %2284 = vmatmul.mubr.bf16.gmra.mrb[0].mxu0 %v498
      %v2285 = vpop.f32.mrb[0].mxu0
      %v2286 = vadd.f32 %v2244, %v2285
      %v2287 = vpop.f32.mrb[0].mxu0
      %v2288 = vpop.f32.mrb[0].mxu0
      %v2289 = vpop.f32.mrb[0].mxu0
      %2290 = vdwg.mxu0
      %v2291 = vsel %vm540, %v2238, 0.0
      %2292 = vadd.xlane.f32.xlu0 %v2291
      %v2293 = vpop.xlane.xlu0 %2292
      %v2294 = vsel %vm540, %v2239, 0.0
      %2295 = vadd.xlane.f32.xlu0 %v2294
      %v2296 = vpop.xlane.xlu0 %2295
      %v2297 = vmul.f32 %v2293, %v547
      %v2298 = vmul.f32 %v2296, %v547
      %v2299 = vsub.f32 %v2238, %v2297
      %v2300 = vsub.f32 %v2239, %v2298
      %v2301 = vmul.f32 %v2299, %v2299
      %v2302 = vmul.f32 %v2300, %v2300
      %v2303 = vsel %vm540, %v2301, 0.0
      %2304 = vadd.xlane.f32.xlu0 %v2303
      %v2305 = vpop.xlane.xlu0 %2304
      %v2306 = vsel %vm540, %v2302, 0.0
      %2307 = vadd.xlane.f32.xlu0 %v2306
      %v2308 = vpop.xlane.xlu0 %2307
      %v2309 = vmul.f32 %v2305, %v547
      %v2310 = vmul.f32 %v2308, %v547
      %v2311 = vadd.f32 %v2309, 1e-05
      %v2312 = vadd.f32 %v2310, 1e-05
      %v2313 = vrsqrt.pop %v2311
      %v2314 = vrsqrt.pop %v2312
      %v2315 = vmul.f32 %v2299, %v2313
      %v2316 = vmul.f32 %v2300, %v2314
      %v2317 = vlaneseq
      %v2318 = vshrl.u32 %v2317, 7
      %v2319 = vsub.s32 0, %v2318
      %v2320 = vrot.slane %v2286, %v2319
      %v2321 = vmul.f32 %v2315, %v2320
      %v2322 = vmul.f32 %v2316, %v2320
      %2324 = vrot.lane.b32.xlu0 %v2320, 96
      %v2325 = vpop.permute.xlu0 %2324
      %v2327 = vadd.f32 %v2321, %v2325
      %v2328 = vadd.f32 %v2322, %v2325
      %v2329 = vpack.c.bf16 %v2328, %v2327
      %s2330 = scalar_lea.vmem %s10, 16
      %v2331 = vld [vmem:[%s2330] sm:$0xf]
      %v2332 = vld [vmem:[%s2330 + $0x4] sm:$0xf]
      %v2333 = vld [vmem:[%s2330 + $0x8] sm:$0xf]
      %v2334 = vld [vmem:[%s2330 + $0xc] sm:$0xf]
      %s2335 = scalar_lea.vmem %s11, 1
      %v2336 = vld [vmem:[%s2335] sm:$0x1]
      %v2338 = vlaneseq
      %v2339 = vshrl.u32 %v2338, 7
      %v2340 = vsub.s32 0, %v2339
      %v2341 = vrot.slane %v2336, %v2340
      %v2347 = vunpack.c.l.b16 %v2331
      %v2348 = vunpack.c.l.b16 %v2332
      %v2349 = vunpack.c.l.b16 %v2333
      %v2350 = vunpack.c.l.b16 %v2334
      %v2351 = vpack.c.b16 %v2348, %v2347
      %v2352 = vpack.c.b16 %v2350, %v2349
      %v2356 = vsel %vm540, %v2329, 0
      %2358 = vmatprep.subr.bf16.mxu0 0
      %2359 = vmatpush1.bf16.msra.mxu0 %v2351
      %2360 = vmatprep.subr.bf16.mxu0 0
      %2361 = vmatpush1.bf16.msra.mxu0 %v2352
      %2362 = vmatprep.subr.bf16.mxu0 0
      %2363 = vmatpush1.bf16.msra.mxu0 0
      %2364 = vmatprep.subr.bf16.mxu0 0
      %2365 = vmatpush1.bf16.msra.mxu0 0
      %2366 = vmatprep.subr.bf16.mxu0 0
      %2367 = vmatpush1.bf16.msra.mxu0 0
      %2368 = vmatprep.subr.bf16.mxu0 0
      %2369 = vmatpush1.bf16.msra.mxu0 0
      %2370 = vmatprep.subr.bf16.mxu0 0
      %2371 = vmatpush1.bf16.msra.mxu0 0
      %2372 = vmatprep.subr.bf16.mxu0 0
      %2373 = vmatpush1.bf16.msra.mxu0 0
      %2374 = vmatprep.subr.bf16.mxu0 0
      %2375 = vmatpush1.bf16.msra.mxu0 0
      %2376 = vmatprep.subr.bf16.mxu0 0
      %2377 = vmatpush1.bf16.msra.mxu0 0
      %2378 = vmatprep.subr.bf16.mxu0 0
      %2379 = vmatpush1.bf16.msra.mxu0 0
      %2380 = vmatprep.subr.bf16.mxu0 0
      %2381 = vmatpush1.bf16.msra.mxu0 0
      %2382 = vmatprep.subr.bf16.mxu0 0
      %2383 = vmatpush1.bf16.msra.mxu0 0
      %2384 = vmatprep.subr.bf16.mxu0 0
      %2385 = vmatpush1.bf16.msra.mxu0 0
      %2386 = vmatprep.subr.bf16.mxu0 0
      %2387 = vmatpush1.bf16.msra.mxu0 0
      %2388 = vmatprep.subr.bf16.mxu0 0
      %2389 = vmatpush1.bf16.msra.mxu0 0
      %2390 = vmatprep.mubr.bf16.mxu0 0
      %2391 = vmatmul.mubr.bf16.gmra.mrb[0].mxu0 %v2356
      %v2392 = vpop.f32.mrb[0].mxu0
      %v2393 = vadd.f32 %v2341, %v2392
      %v2394 = vpop.f32.mrb[0].mxu0
      %v2395 = vpop.f32.mrb[0].mxu0
      %v2396 = vadd.f32 %v2341, %v2395
      %v2397 = vpop.f32.mrb[0].mxu0
      %2398 = vdwg.mxu0
      %v2399 = vxor.u32 %v2393, 2147483648
      %v2400 = vxor.u32 %v2396, 2147483648
      %v2401 = vmul.f32 %v2399, 1.442695
      %v2402 = vpow.pop %v2401
      %v2403 = vmul.f32 %v2400, 1.442695
      %v2404 = vpow.pop %v2403
      %v2405 = vadd.f32 %v2402, 1.0
      %v2406 = vadd.f32 %v2404, 1.0
      %v2407 = vrcp.pop %v2405
      %v2408 = vmul.f32 1.0, %v2407
      %v2409 = vrcp.pop %v2406
      %v2410 = vmul.f32 1.0, %v2409
      %v2411 = vmul.f32 %v2393, %v2408
      %v2412 = vmul.f32 %v2396, %v2410
      %v2413 = vpack.c.bf16 %v2412, %v2411
      %s2414 = scalar_lea.vmem %s12, 16
      %v2415 = vld [vmem:[%s2414] sm:$0xf]
      %v2416 = vld [vmem:[%s2414 + $0x4] sm:$0xf]
      %v2417 = vld [vmem:[%s2414 + $0x8] sm:$0xf]
      %v2418 = vld [vmem:[%s2414 + $0xc] sm:$0xf]
      %v2423 = vunpack.c.l.b16 %v2415
      %v2424 = vunpack.c.l.b16 %v2416
      %v2425 = vunpack.c.l.b16 %v2417
      %v2426 = vunpack.c.l.b16 %v2418
      %v2427 = vpack.c.b16 %v2424, %v2423
      %v2428 = vpack.c.b16 %v2426, %v2425
      %v2432 = vsel %vm540, %v2413, 0
      %2434 = vmatprep.subr.bf16.mxu0 0
      %2435 = vmatpush1.bf16.msra.mxu0 %v2427
      %2436 = vmatprep.subr.bf16.mxu0 0
      %2437 = vmatpush1.bf16.msra.mxu0 %v2428
      %2438 = vmatprep.subr.bf16.mxu0 0
      %2439 = vmatpush1.bf16.msra.mxu0 0
      %2440 = vmatprep.subr.bf16.mxu0 0
      %2441 = vmatpush1.bf16.msra.mxu0 0
      %2442 = vmatprep.subr.bf16.mxu0 0
      %2443 = vmatpush1.bf16.msra.mxu0 0
      %2444 = vmatprep.subr.bf16.mxu0 0
      %2445 = vmatpush1.bf16.msra.mxu0 0
      %2446 = vmatprep.subr.bf16.mxu0 0
      %2447 = vmatpush1.bf16.msra.mxu0 0
      %2448 = vmatprep.subr.bf16.mxu0 0
      %2449 = vmatpush1.bf16.msra.mxu0 0
      %2450 = vmatprep.subr.bf16.mxu0 0
      %2451 = vmatpush1.bf16.msra.mxu0 0
      %2452 = vmatprep.subr.bf16.mxu0 0
      %2453 = vmatpush1.bf16.msra.mxu0 0
      %2454 = vmatprep.subr.bf16.mxu0 0
      %2455 = vmatpush1.bf16.msra.mxu0 0
      %2456 = vmatprep.subr.bf16.mxu0 0
      %2457 = vmatpush1.bf16.msra.mxu0 0
      %2458 = vmatprep.subr.bf16.mxu0 0
      %2459 = vmatpush1.bf16.msra.mxu0 0
      %2460 = vmatprep.subr.bf16.mxu0 0
      %2461 = vmatpush1.bf16.msra.mxu0 0
      %2462 = vmatprep.subr.bf16.mxu0 0
      %2463 = vmatpush1.bf16.msra.mxu0 0
      %2464 = vmatprep.subr.bf16.mxu0 0
      %2465 = vmatpush1.bf16.msra.mxu0 0
      %2466 = vmatprep.mubr.bf16.mxu0 0
      %2467 = vmatmul.mubr.bf16.gmra.mrb[0].mxu0 %v2432
      %v2468 = vpop.f32.mrb[0].mxu0
      %v2469 = vadd.f32 0.0, %v2468
      %v2470 = vpop.f32.mrb[0].mxu0
      %v2471 = vpop.f32.mrb[0].mxu0
      %v2472 = vadd.f32 0.0, %v2471
      %v2473 = vpop.f32.mrb[0].mxu0
      %2474 = vdwg.mxu0
      %v2475 = vadd.f32 %v2238, %v2469
      %v2476 = vadd.f32 %v2239, %v2472
      %s2477 = scalar_lea.vmem %s13, 1
      %v2478 = vld [vmem:[%s2477] sm:$0x1]
      %v2480 = vlaneseq
      %v2481 = vshrl.u32 %v2480, 7
      %v2482 = vsub.s32 0, %v2481
      %v2483 = vrot.slane %v2478, %v2482
      %v2485 = vadd.f32 %v2475, %v2483
      %v2486 = vadd.f32 %v2476, %v2483
      %2487 = vst.msk [vmem:[%s481] sm:$0xff] %vm540, %v2485
      %2488 = vst.msk [vmem:[%s481 + $0x8] sm:$0xff] %vm540, %v2486
      %p2489 = scmp.lt.s32.totalorder %s25, 1
      %s2490 = scalar_select %p2489, %s25, 1
      %s2491 = smul.addr %s2490, 2
      %s2492 = smul.addr %s2491, 8
      %s2493 = scalar_lea.vmem %s14, %s2492
      // Predicated region
      $region77: #{denoiser_forward.9} parent=75 // pred_check
        %p2494 = pneg %p347
      $region78: #{denoiser_forward.9} parent=75 // pred_check_branch
        %2496 = sbr.rel (%p2494) target = $region80
      $region79: #{denoiser_forward.9} parent=75 // pred_region
        _
      $region80: #{denoiser_forward.9} parent=75 // pred_fallthru
        _
    $region76: #{denoiser_forward.9} parent=5 // pred_fallthru
      _
    %p2497 = scmp.le.s32.totalorder 2, %s20
    // Predicated region
    $region81: #{denoiser_forward.9} parent=5 // pred_check
      %p2498 = pneg %p2497
    $region82: #{denoiser_forward.9} parent=5 // pred_check_branch
      %2500 = sbr.rel (%p2498) target = $region84
    $region83: #{denoiser_forward.9} parent=5 // pred_region
      %s2501 = ssub.s32 %s20, 2
      // Predicated region
      $region85: #{denoiser_forward.9} parent=83 // pred_check
        %p2502 = pneg %p353
      $region86: #{denoiser_forward.9} parent=83 // pred_check_branch
        %2504 = sbr.rel (%p2502) target = $region88
      $region87: #{denoiser_forward.9} parent=83 // pred_region
        %p2505 = scmp.lt.s32.totalorder %s26, 1
        %s2506 = scalar_select %p2505, %s26, 1
        %s2507 = smul.addr %s2506, 2
        %s2508 = smul.addr %s2507, 8
        %s2509 = scalar_lea.vmem %s14, %s2508
      $region88: #{denoiser_forward.9} parent=83 // pred_fallthru
        _
    $region84: #{denoiser_forward.9} parent=5 // pred_fallthru
      _
  $region6: #{denoiser_forward.9} parent=0 // loop_footer
    %s24 = sadd.s32 1, %s20
  $region7: #{denoiser_forward.9} parent=0 // loop_footer_branch
    %19 = sbr.rel target = $region3
  $region8: #{denoiser_forward.9} parent=0 // loop_exit
    _

</llo_original>
